<compile_context>
chip_gen: v6e
topology: v6e:2x2x1
jax: 0.10.0
libtpu: 0.0.40
codegen_flags: <defaults>
</compile_context>

<pallas_src>
import functools
import math

import numpy as np

import jax
import jax.numpy as jnp
from jax.experimental import pallas as pl
from jax.experimental.pallas import tpu as pltpu


# 3x3 neighbourhood, tap order t = ky*3 + kx  ->  (dy, dx) = (ky-1, kx-1).
_TAPS = tuple((ky - 1, kx - 1) for ky in range(3) for kx in range(3))


# ---------------------------------------------------------------------------
# In-kernel helpers
# ---------------------------------------------------------------------------
def _conv3x3_taps(x, mask_ref, width, num_lanes):
    """The 9 taps of a 3x3 / pad=1 / stride=1 conv via lane rolls + masks.

    x: (C, B*H*W) f32 with pixel index m = b*H*W + y*W + xpos on the lane
    (minor) axis.  Tap (dy, dx) of output pixel m is x[m + dy*W + dx] when
    that neighbour is inside the image and 0 otherwise; pltpu.roll (XLU slot,
    jnp.roll semantics) plus a precomputed 0/1 boundary mask (VPU) implements
    exactly that.  Rolls wrap across image / batch-tile boundaries only at
    positions the mask zeroes out, so packing images on the lane axis is safe.
    """
    taps = []
    for t, (dy, dx) in enumerate(_TAPS):
        s = dy * width + dx
        if s == 0:
            taps.append(x)                          # centre tap: no roll/mask
        else:
            rolled = pltpu.roll(x, (-s) % num_lanes, axis=1)
            taps.append(rolled * mask_ref[t])
    return taps


def _fbnet_fused_kernel(*refs, stem_width, block_meta):
    """refs = (x, stem_w9, stem_b, stem_mask, stem_D,
               [pw_w, pw_b, dw_w, dw_b, mask, (D if stride 2), pwl_w, pwl_b]
                 per block,
               out).

    Activations live as (C, B_tile*H*W) f32 with pixels (and the packed batch
    tile) on the lane axis, so every matmul/store is >=128 lanes wide.
    """
    out_ref = refs[-1]
    x_ref = refs[0]

    # ---- stem: 3x3 conv stride 2 + folded-BN bias + ReLU ------------------
    w9_ref, b_ref, mask_ref, d_ref = refs[1:5]
    idx = 5
    num_lanes = x_ref.shape[-1]
    x = x_ref[...].astype(jnp.float32)              # bf16 input -> one cast
    taps = _conv3x3_taps(x, mask_ref, stem_width, num_lanes)
    # One wide MXU matmul over all 9 taps (single hoisted bf16 convert).
    xcat = jnp.concatenate(taps, axis=0).astype(jnp.bfloat16)   # (9*Cin, BM)
    acc = jnp.dot(w9_ref[...], xcat, preferred_element_type=jnp.float32)
    # stride-2: keep even rows/cols with one 0/1 matmul (exact; MXU slack).
    acc = jnp.dot(acc.astype(jnp.bfloat16), d_ref[...],
                  preferred_element_type=jnp.float32)
    y = jnp.maximum(acc + b_ref[...], 0.0)          # f32 epilogue (v5e-safe)

    # ---- inverted-residual blocks -----------------------------------------
    for meta in block_meta:
        pw_w, pw_b, dw_w, dw_b, mask_ref = refs[idx:idx + 5]
        idx += 5
        if meta["stride"] == 2:
            d_ref = refs[idx]
            idx += 1
        else:
            d_ref = None
        pwl_w, pwl_b = refs[idx:idx + 2]
        idx += 2

        y_bf = y.astype(jnp.bfloat16)               # single cast, reused
        # 1x1 expand + folded BN + ReLU (MXU)
        m = jnp.maximum(
            jnp.dot(pw_w[...], y_bf, preferred_element_type=jnp.float32)
            + pw_b[...], 0.0)

        # 3x3 depthwise + folded BN + ReLU: XLU rolls + 9-term f32 VPU FMA.
        taps = _conv3x3_taps(m, mask_ref, meta["width"], m.shape[-1])
        acc = taps[0] * dw_w[0]
        for t in range(1, 9):
            acc = acc + taps[t] * dw_w[t]
        if d_ref is not None:                       # stride-2 downsample
            acc = jnp.dot(acc.astype(jnp.bfloat16), d_ref[...],
                          preferred_element_type=jnp.float32)
        d = jnp.maximum(acc + dw_b[...], 0.0)

        # 1x1 project + folded BN (no ReLU), fused residual add
        o = jnp.dot(pwl_w[...], d.astype(jnp.bfloat16),
                    preferred_element_type=jnp.float32) + pwl_b[...]
        if meta["residual"]:
            o = o + y
        y = o

    out_ref[...] = y.astype(out_ref.dtype)


# ---------------------------------------------------------------------------
# Host-side constants (masks / stride-2 downsample matrices)
# ---------------------------------------------------------------------------
def _boundary_masks(h, w, b_tile):
    """(9, 1, b_tile*h*w) f32 0/1 masks: tap (dy, dx) stays inside the image."""
    m = h * w
    ys, xs = np.divmod(np.arange(m), w)
    masks = np.ones((9, 1, b_tile * m), np.float32)
    for t, (dy, dx) in enumerate(_TAPS):
        ok = ((ys + dy >= 0) & (ys + dy < h) &
              (xs + dx >= 0) & (xs + dx < w)).astype(np.float32)
        masks[t, 0, :] = np.tile(ok, b_tile)
    return jnp.asarray(masks)


def _downsample_matrix(h, w, b_tile):
    """0/1 (b*h*w, b*(h//2)*(w//2)) matrix selecting even rows/cols per image.

    A stride-1 3x3/pad=1 conv evaluated at even pixels equals the stride-2
    conv, so conv-then-select is exact.  0/1 is exact in bf16.
    TODO(synk): at real resolutions replace with a strided / halo-tiled
    downsample; the dense matrix is only viable at toy sizes.
    """
    ho, wo = h // 2, w // 2
    d = np.zeros((h * w, ho * wo), np.float32)
    for oy in range(ho):
        for ox in range(wo):
            d[(2 * oy) * w + 2 * ox, oy * wo + ox] = 1.0
    full = np.kron(np.eye(b_tile, dtype=np.float32), d)
    return jnp.asarray(full, jnp.bfloat16)


# ---------------------------------------------------------------------------
# Parameters (deterministic, synthetic).  BN folded: scale -> weights,
# bias kept for the f32 epilogue.
# ---------------------------------------------------------------------------
def _bn_fold(key, c):
    k1, k2, k3, k4 = jax.random.split(key, 4)
    gamma = 1.0 + 0.1 * jax.random.normal(k1, (c,), jnp.float32)
    beta = 0.1 * jax.random.normal(k2, (c,), jnp.float32)
    mean = 0.1 * jax.random.normal(k3, (c,), jnp.float32)
    var = jnp.abs(1.0 + 0.1 * jax.random.normal(k4, (c,), jnp.float32))
    scale = gamma / jnp.sqrt(var + 1e-5)
    bias = beta - mean * scale
    return scale, bias


# Small FBNet-style arch def (stem + 3 IRF blocks), out_channels = 16.
ARCH = {
    "stem": dict(cout=8, stride=2),
    "blocks": [
        dict(expansion=3, cout=8, stride=1),    # residual (cin==cout, s=1)
        dict(expansion=3, cout=16, stride=2),
        dict(expansion=3, cout=16, stride=1),   # residual (cin==cout, s=1)
    ],
    "dropout_ratio": 0.2,
}


def init_params(key, dim_in=3):
    """Learned weights only (resolution/batch-independent); BN scale folded
    into the conv weights (bf16 for the MXU), biases / depthwise weights f32."""
    key, k_w, k_bn = jax.random.split(key, 3)
    cout = ARCH["stem"]["cout"]
    w_stem = 0.1 * jax.random.normal(k_w, (3, 3, dim_in, cout), jnp.float32)
    s, b = _bn_fold(k_bn, cout)
    # (Cout, 9*Cin), tap-major / cin-minor to match the in-kernel tap concat.
    w9 = jnp.transpose(w_stem.reshape(9, dim_in, cout), (2, 0, 1))
    w9 = (w9 * s[:, None, None]).reshape(cout, 9 * dim_in)
    params = {"stem": dict(w=w9.astype(jnp.bfloat16), b=b.reshape(cout, 1))}

    cin = cout
    blocks = []
    for spec in ARCH["blocks"]:
        cmid, cout = cin * spec["expansion"], spec["cout"]
        key, k1, k2, k3, k4, k5, k6 = jax.random.split(key, 7)
        pw_w = 0.1 * jax.random.normal(k1, (cin, cmid), jnp.float32)
        pw_s, pw_b = _bn_fold(k2, cmid)
        dw_w = 0.1 * jax.random.normal(k3, (3, 3, cmid), jnp.float32)
        dw_s, dw_b = _bn_fold(k4, cmid)
        pwl_w = 0.1 * jax.random.normal(k5, (cmid, cout), jnp.float32)
        pwl_s, pwl_b = _bn_fold(k6, cout)
        blocks.append(dict(
            pw_w=(pw_w.T * pw_s[:, None]).astype(jnp.bfloat16),   # (Cmid,Cin)
            pw_b=pw_b.reshape(cmid, 1),
            dw_w=(dw_w.reshape(9, cmid) * dw_s[None, :]).reshape(9, cmid, 1),
            dw_b=dw_b.reshape(cmid, 1),
            pwl_w=(pwl_w.T * pwl_s[:, None]).astype(jnp.bfloat16),  # (Cout,Cmid)
            pwl_b=pwl_b.reshape(cout, 1),
            stride=spec["stride"],
            residual=(spec["stride"] == 1 and cin == cout),
        ))
        cin = cout
    params["blocks"] = blocks
    params["out_channels"] = cin
    return params


# ---------------------------------------------------------------------------
# Forward pass: one pallas_call for the whole backbone.
# ---------------------------------------------------------------------------
def fbnet_backbone_forward(x_nchw, params, *, b_tile=8):
    n, cin, h, w = x_nchw.shape
    b_tile = math.gcd(n, b_tile)      # images packed on the lane axis
    n_steps = n // b_tile             # keep >=2 'parallel' steps for v7x 2 TCs
    m0 = h * w

    # NCHW -> lane-dense (C, N*H*W) bf16: pure layout plumbing outside the
    # kernel; bf16 halves the only per-step HBM->VMEM input DMA.
    x = (x_nchw.reshape(n, cin, m0).transpose(1, 0, 2)
         .reshape(cin, n * m0).astype(jnp.bfloat16))

    args = []
    in_specs = [pl.BlockSpec((cin, b_tile * m0), lambda i: (0, i))]

    def add_const(a):
        # Whole-array, VMEM-resident constant (same block every grid step).
        # TODO(synk): when the arch grows, add pipeline_mode=pl.Buffered(1)
        # so constants are not double-buffered (matters under v7x's 64 MiB
        # VMEM); negligible at this size (~2.5 MiB of constants).
        args.append(a)
        nd = a.ndim
        in_specs.append(pl.BlockSpec(a.shape, lambda *_i, _nd=nd: (0,) * _nd))

    stem = params["stem"]
    add_const(stem["w"])
    add_const(stem["b"])
    add_const(_boundary_masks(h, w, b_tile))
    add_const(_downsample_matrix(h, w, b_tile))
    cur_h, cur_w = h // 2, w // 2

    block_meta = []
    for blk in params["blocks"]:
        block_meta.append(dict(width=cur_w, stride=blk["stride"],
                               residual=blk["residual"]))
        add_const(blk["pw_w"])
        add_const(blk["pw_b"])
        add_const(blk["dw_w"])
        add_const(blk["dw_b"])
        add_const(_boundary_masks(cur_h, cur_w, b_tile))
        if blk["stride"] == 2:
            add_const(_downsample_matrix(cur_h, cur_w, b_tile))
            cur_h, cur_w = cur_h // 2, cur_w // 2
        add_const(blk["pwl_w"])
        add_const(blk["pwl_b"])

    cout = params["out_channels"]
    m_out = cur_h * cur_w

    # Advisory cost hint for XLA scheduling around the fused custom call.
    bm = b_tile * m0
    macs = int(stem["w"].size) * bm + stem["b"].shape[0] * bm * (bm // 4)
    bm //= 4
    for blk in params["blocks"]:
        cmid, cin_b = blk["pw_w"].shape
        cout_b = blk["pwl_w"].shape[0]
        macs += cmid * cin_b * bm + 9 * cmid * bm
        if blk["stride"] == 2:
            macs += cmid * bm * (bm // 4)
            bm //= 4
        macs += cout_b * cmid * bm
    const_bytes = sum(int(a.size) * a.dtype.itemsize for a in args)
    cost = pl.CostEstimate(
        flops=2 * macs * n_steps,
        transcendentals=0,
        bytes_accessed=int(x.size) * 2 + n * cout * m_out * 4 + const_bytes)

    kernel = functools.partial(_fbnet_fused_kernel, stem_width=w,
                               block_meta=tuple(block_meta))

    out = pl.pallas_call(
        kernel,
        out_shape=jax.ShapeDtypeStruct((cout, n * m_out), jnp.float32),
        grid=(n_steps,),
        in_specs=in_specs,
        out_specs=pl.BlockSpec((cout, b_tile * m_out), lambda i: (0, i)),
        compiler_params=pltpu.CompilerParams(
            dimension_semantics=("parallel",),
            vmem_limit_bytes=32 * 1024 * 1024),
        cost_estimate=cost,
    )(x, *args)

    # Dropout(p=0.2) is identity at inference time.
    # TODO(synk): training-mode stochastic dropout not implemented.
    return out.reshape(cout, n, cur_h, cur_w).transpose(1, 0, 2, 3)


if __name__ == "__main__":
    key = jax.random.PRNGKey(0)
    k_x, k_p = jax.random.split(key)
    # 16 images of 3x16x16 -> two grid steps of 8 lane-packed images each:
    # every store is >=128 lanes wide and both v7x TensorCores get work.
    n, dim_in, h, w = 16, 3, 16, 16
    x = jax.random.normal(k_x, (n, dim_in, h, w), jnp.float32)
    params = init_params(k_p, dim_in=dim_in)

    out = fbnet_backbone_forward(x, params)
    out = jax.block_until_ready(out)

    assert out.shape == (n, 16, 4, 4), out.shape   # out_channels=16, 16/4 spatial
    assert out.dtype == jnp.float32
    assert bool(jnp.all(jnp.isfinite(out)))
    print("KERNEL_OK")
</pallas_src>

<mosaic_0001>
module attributes {stable_mosaic.version = 11 : i64} {
  func.func @_fbnet_fused_kernel(%arg0: i32, %arg1: memref<3x2048xbf16, #tpu.memory_space<vmem>>, %arg2: memref<8x27xbf16, #tpu.memory_space<vmem>>, %arg3: memref<8x1xf32, #tpu.memory_space<vmem>>, %arg4: memref<9x1x2048xf32, #tpu.memory_space<vmem>>, %arg5: memref<2048x512xbf16, #tpu.memory_space<vmem>>, %arg6: memref<24x8xbf16, #tpu.memory_space<vmem>>, %arg7: memref<24x1xf32, #tpu.memory_space<vmem>>, %arg8: memref<9x24x1xf32, #tpu.memory_space<vmem>>, %arg9: memref<24x1xf32, #tpu.memory_space<vmem>>, %arg10: memref<9x1x512xf32, #tpu.memory_space<vmem>>, %arg11: memref<8x24xbf16, #tpu.memory_space<vmem>>, %arg12: memref<8x1xf32, #tpu.memory_space<vmem>>, %arg13: memref<24x8xbf16, #tpu.memory_space<vmem>>, %arg14: memref<24x1xf32, #tpu.memory_space<vmem>>, %arg15: memref<9x24x1xf32, #tpu.memory_space<vmem>>, %arg16: memref<24x1xf32, #tpu.memory_space<vmem>>, %arg17: memref<9x1x512xf32, #tpu.memory_space<vmem>>, %arg18: memref<512x128xbf16, #tpu.memory_space<vmem>>, %arg19: memref<16x24xbf16, #tpu.memory_space<vmem>>, %arg20: memref<16x1xf32, #tpu.memory_space<vmem>>, %arg21: memref<48x16xbf16, #tpu.memory_space<vmem>>, %arg22: memref<48x1xf32, #tpu.memory_space<vmem>>, %arg23: memref<9x48x1xf32, #tpu.memory_space<vmem>>, %arg24: memref<48x1xf32, #tpu.memory_space<vmem>>, %arg25: memref<9x1x128xf32, #tpu.memory_space<vmem>>, %arg26: memref<16x48xbf16, #tpu.memory_space<vmem>>, %arg27: memref<16x1xf32, #tpu.memory_space<vmem>>, %arg28: memref<16x128xf32, #tpu.memory_space<vmem>>) attributes {dimension_semantics = [#tpu.dimension_semantics<parallel>], iteration_bounds = array<i64: 2>, scalar_prefetch = 0 : i64, scratch_operands = 0 : i64, tpu.core_type = #tpu.core_type<tc>, window_params = [{transform_indices = @transform_0, window_bounds = array<i64: 3, 2048>}, {pipeline_mode = #tpu.pipeline_mode<synchronous>, transform_indices = @transform_1, window_bounds = array<i64: 8, 27>}, {pipeline_mode = #tpu.pipeline_mode<synchronous>, transform_indices = @transform_2, window_bounds = array<i64: 8, 1>}, {pipeline_mode = #tpu.pipeline_mode<synchronous>, transform_indices = @transform_3, window_bounds = array<i64: 9, 1, 2048>}, {pipeline_mode = #tpu.pipeline_mode<synchronous>, transform_indices = @transform_4, window_bounds = array<i64: 2048, 512>}, {pipeline_mode = #tpu.pipeline_mode<synchronous>, transform_indices = @transform_5, window_bounds = array<i64: 24, 8>}, {pipeline_mode = #tpu.pipeline_mode<synchronous>, transform_indices = @transform_6, window_bounds = array<i64: 24, 1>}, {pipeline_mode = #tpu.pipeline_mode<synchronous>, transform_indices = @transform_7, window_bounds = array<i64: 9, 24, 1>}, {pipeline_mode = #tpu.pipeline_mode<synchronous>, transform_indices = @transform_8, window_bounds = array<i64: 24, 1>}, {pipeline_mode = #tpu.pipeline_mode<synchronous>, transform_indices = @transform_9, window_bounds = array<i64: 9, 1, 512>}, {pipeline_mode = #tpu.pipeline_mode<synchronous>, transform_indices = @transform_10, window_bounds = array<i64: 8, 24>}, {pipeline_mode = #tpu.pipeline_mode<synchronous>, transform_indices = @transform_11, window_bounds = array<i64: 8, 1>}, {pipeline_mode = #tpu.pipeline_mode<synchronous>, transform_indices = @transform_12, window_bounds = array<i64: 24, 8>}, {pipeline_mode = #tpu.pipeline_mode<synchronous>, transform_indices = @transform_13, window_bounds = array<i64: 24, 1>}, {pipeline_mode = #tpu.pipeline_mode<synchronous>, transform_indices = @transform_14, window_bounds = array<i64: 9, 24, 1>}, {pipeline_mode = #tpu.pipeline_mode<synchronous>, transform_indices = @transform_15, window_bounds = array<i64: 24, 1>}, {pipeline_mode = #tpu.pipeline_mode<synchronous>, transform_indices = @transform_16, window_bounds = array<i64: 9, 1, 512>}, {pipeline_mode = #tpu.pipeline_mode<synchronous>, transform_indices = @transform_17, window_bounds = array<i64: 512, 128>}, {pipeline_mode = #tpu.pipeline_mode<synchronous>, transform_indices = @transform_18, window_bounds = array<i64: 16, 24>}, {pipeline_mode = #tpu.pipeline_mode<synchronous>, transform_indices = @transform_19, window_bounds = array<i64: 16, 1>}, {pipeline_mode = #tpu.pipeline_mode<synchronous>, transform_indices = @transform_20, window_bounds = array<i64: 48, 16>}, {pipeline_mode = #tpu.pipeline_mode<synchronous>, transform_indices = @transform_21, window_bounds = array<i64: 48, 1>}, {pipeline_mode = #tpu.pipeline_mode<synchronous>, transform_indices = @transform_22, window_bounds = array<i64: 9, 48, 1>}, {pipeline_mode = #tpu.pipeline_mode<synchronous>, transform_indices = @transform_23, window_bounds = array<i64: 48, 1>}, {pipeline_mode = #tpu.pipeline_mode<synchronous>, transform_indices = @transform_24, window_bounds = array<i64: 9, 1, 128>}, {pipeline_mode = #tpu.pipeline_mode<synchronous>, transform_indices = @transform_25, window_bounds = array<i64: 16, 48>}, {pipeline_mode = #tpu.pipeline_mode<synchronous>, transform_indices = @transform_26, window_bounds = array<i64: 16, 1>}, {transform_indices = @transform_27, window_bounds = array<i64: 16, 128>}]} {
    %c0 = arith.constant 0 : index
    %c0_0 = arith.constant 0 : index
    %0 = vector.load %arg1[%c0, %c0_0] : memref<3x2048xbf16, #tpu.memory_space<vmem>>, vector<3x2048xbf16>
    %1 = arith.extf %0 : vector<3x2048xbf16> to vector<3x2048xf32>
    %c17_i32 = arith.constant 17 : i32
    %2 = tpu.dynamic_rotate %1 by %c17_i32 dim 1 : vector<3x2048xf32>, i32 -> vector<3x2048xf32>
    %c0_1 = arith.constant 0 : index
    %c0_2 = arith.constant 0 : index
    %c0_3 = arith.constant 0 : index
    %3 = vector.load %arg4[%c0_1, %c0_2, %c0_3] : memref<9x1x2048xf32, #tpu.memory_space<vmem>>, vector<1x1x2048xf32>
    %4 = vector.shape_cast %3 : vector<1x1x2048xf32> to vector<1x2048xf32>
    %5 = vector.broadcast %4 : vector<1x2048xf32> to vector<3x2048xf32>
    %6 = arith.mulf %2, %5 : vector<3x2048xf32>
    %c16_i32 = arith.constant 16 : i32
    %7 = tpu.dynamic_rotate %1 by %c16_i32 dim 1 : vector<3x2048xf32>, i32 -> vector<3x2048xf32>
    %c1 = arith.constant 1 : index
    %c0_4 = arith.constant 0 : index
    %c0_5 = arith.constant 0 : index
    %8 = vector.load %arg4[%c1, %c0_4, %c0_5] : memref<9x1x2048xf32, #tpu.memory_space<vmem>>, vector<1x1x2048xf32>
    %9 = vector.shape_cast %8 : vector<1x1x2048xf32> to vector<1x2048xf32>
    %10 = vector.broadcast %9 : vector<1x2048xf32> to vector<3x2048xf32>
    %11 = arith.mulf %7, %10 : vector<3x2048xf32>
    %c15_i32 = arith.constant 15 : i32
    %12 = tpu.dynamic_rotate %1 by %c15_i32 dim 1 : vector<3x2048xf32>, i32 -> vector<3x2048xf32>
    %c2 = arith.constant 2 : index
    %c0_6 = arith.constant 0 : index
    %c0_7 = arith.constant 0 : index
    %13 = vector.load %arg4[%c2, %c0_6, %c0_7] : memref<9x1x2048xf32, #tpu.memory_space<vmem>>, vector<1x1x2048xf32>
    %14 = vector.shape_cast %13 : vector<1x1x2048xf32> to vector<1x2048xf32>
    %15 = vector.broadcast %14 : vector<1x2048xf32> to vector<3x2048xf32>
    %16 = arith.mulf %12, %15 : vector<3x2048xf32>
    %c1_i32 = arith.constant 1 : i32
    %17 = tpu.dynamic_rotate %1 by %c1_i32 dim 1 : vector<3x2048xf32>, i32 -> vector<3x2048xf32>
    %c3 = arith.constant 3 : index
    %c0_8 = arith.constant 0 : index
    %c0_9 = arith.constant 0 : index
    %18 = vector.load %arg4[%c3, %c0_8, %c0_9] : memref<9x1x2048xf32, #tpu.memory_space<vmem>>, vector<1x1x2048xf32>
    %19 = vector.shape_cast %18 : vector<1x1x2048xf32> to vector<1x2048xf32>
    %20 = vector.broadcast %19 : vector<1x2048xf32> to vector<3x2048xf32>
    %21 = arith.mulf %17, %20 : vector<3x2048xf32>
    %c2047_i32 = arith.constant 2047 : i32
    %22 = tpu.dynamic_rotate %1 by %c2047_i32 dim 1 : vector<3x2048xf32>, i32 -> vector<3x2048xf32>
    %c5 = arith.constant 5 : index
    %c0_10 = arith.constant 0 : index
    %c0_11 = arith.constant 0 : index
    %23 = vector.load %arg4[%c5, %c0_10, %c0_11] : memref<9x1x2048xf32, #tpu.memory_space<vmem>>, vector<1x1x2048xf32>
    %24 = vector.shape_cast %23 : vector<1x1x2048xf32> to vector<1x2048xf32>
    %25 = vector.broadcast %24 : vector<1x2048xf32> to vector<3x2048xf32>
    %26 = arith.mulf %22, %25 : vector<3x2048xf32>
    %c2033_i32 = arith.constant 2033 : i32
    %27 = tpu.dynamic_rotate %1 by %c2033_i32 dim 1 : vector<3x2048xf32>, i32 -> vector<3x2048xf32>
    %c6 = arith.constant 6 : index
    %c0_12 = arith.constant 0 : index
    %c0_13 = arith.constant 0 : index
    %28 = vector.load %arg4[%c6, %c0_12, %c0_13] : memref<9x1x2048xf32, #tpu.memory_space<vmem>>, vector<1x1x2048xf32>
    %29 = vector.shape_cast %28 : vector<1x1x2048xf32> to vector<1x2048xf32>
    %30 = vector.broadcast %29 : vector<1x2048xf32> to vector<3x2048xf32>
    %31 = arith.mulf %27, %30 : vector<3x2048xf32>
    %c2032_i32 = arith.constant 2032 : i32
    %32 = tpu.dynamic_rotate %1 by %c2032_i32 dim 1 : vector<3x2048xf32>, i32 -> vector<3x2048xf32>
    %c7 = arith.constant 7 : index
    %c0_14 = arith.constant 0 : index
    %c0_15 = arith.constant 0 : index
    %33 = vector.load %arg4[%c7, %c0_14, %c0_15] : memref<9x1x2048xf32, #tpu.memory_space<vmem>>, vector<1x1x2048xf32>
    %34 = vector.shape_cast %33 : vector<1x1x2048xf32> to vector<1x2048xf32>
    %35 = vector.broadcast %34 : vector<1x2048xf32> to vector<3x2048xf32>
    %36 = arith.mulf %32, %35 : vector<3x2048xf32>
    %c2031_i32 = arith.constant 2031 : i32
    %37 = tpu.dynamic_rotate %1 by %c2031_i32 dim 1 : vector<3x2048xf32>, i32 -> vector<3x2048xf32>
    %c8 = arith.constant 8 : index
    %c0_16 = arith.constant 0 : index
    %c0_17 = arith.constant 0 : index
    %38 = vector.load %arg4[%c8, %c0_16, %c0_17] : memref<9x1x2048xf32, #tpu.memory_space<vmem>>, vector<1x1x2048xf32>
    %39 = vector.shape_cast %38 : vector<1x1x2048xf32> to vector<1x2048xf32>
    %40 = vector.broadcast %39 : vector<1x2048xf32> to vector<3x2048xf32>
    %41 = arith.mulf %37, %40 : vector<3x2048xf32>
    %42 = tpu.concatenate %6, %11, %16, %21, %1, %26, %31, %36, %41 in 0 : vector<3x2048xf32>, vector<3x2048xf32>, vector<3x2048xf32>, vector<3x2048xf32>, vector<3x2048xf32>, vector<3x2048xf32>, vector<3x2048xf32>, vector<3x2048xf32>, vector<3x2048xf32> -> vector<27x2048xf32>
    %43 = arith.truncf %42 : vector<27x2048xf32> to vector<27x2048xbf16>
    %c0_18 = arith.constant 0 : index
    %c0_19 = arith.constant 0 : index
    %44 = vector.load %arg2[%c0_18, %c0_19] : memref<8x27xbf16, #tpu.memory_space<vmem>>, vector<8x27xbf16>
    %cst = arith.constant dense<0.000000e+00> : vector<8x2048xf32>
    %45 = tpu.matmul %44, %43, %cst {dimension_numbers = #tpu.dot_dimension_numbers<[1], [0], [0], [1], [0, 0, 1, 1], [], []>} : vector<8x27xbf16>, vector<27x2048xbf16>, vector<8x2048xf32> -> vector<8x2048xf32>
    %46 = arith.truncf %45 : vector<8x2048xf32> to vector<8x2048xbf16>
    %c0_20 = arith.constant 0 : index
    %c0_21 = arith.constant 0 : index
    %47 = vector.load %arg5[%c0_20, %c0_21] : memref<2048x512xbf16, #tpu.memory_space<vmem>>, vector<2048x512xbf16>
    %cst_22 = arith.constant dense<0.000000e+00> : vector<8x512xf32>
    %48 = tpu.matmul %46, %47, %cst_22 {dimension_numbers = #tpu.dot_dimension_numbers<[1], [0], [0], [1], [0, 0, 1, 1], [], []>} : vector<8x2048xbf16>, vector<2048x512xbf16>, vector<8x512xf32> -> vector<8x512xf32>
    %c0_23 = arith.constant 0 : index
    %c0_24 = arith.constant 0 : index
    %49 = vector.load %arg3[%c0_23, %c0_24] : memref<8x1xf32, #tpu.memory_space<vmem>>, vector<8x1xf32>
    %50 = vector.broadcast %49 : vector<8x1xf32> to vector<8x512xf32>
    %51 = arith.addf %48, %50 : vector<8x512xf32>
    %cst_25 = arith.constant 0.000000e+00 : f32
    %52 = vector.broadcast %cst_25 : f32 to vector<8x512xf32>
    %53 = arith.maximumf %51, %52 : vector<8x512xf32>
    %54 = arith.truncf %53 : vector<8x512xf32> to vector<8x512xbf16>
    %c0_26 = arith.constant 0 : index
    %c0_27 = arith.constant 0 : index
    %55 = vector.load %arg6[%c0_26, %c0_27] : memref<24x8xbf16, #tpu.memory_space<vmem>>, vector<24x8xbf16>
    %cst_28 = arith.constant dense<0.000000e+00> : vector<24x512xf32>
    %56 = tpu.matmul %55, %54, %cst_28 {dimension_numbers = #tpu.dot_dimension_numbers<[1], [0], [0], [1], [0, 0, 1, 1], [], []>} : vector<24x8xbf16>, vector<8x512xbf16>, vector<24x512xf32> -> vector<24x512xf32>
    %c0_29 = arith.constant 0 : index
    %c0_30 = arith.constant 0 : index
    %57 = vector.load %arg7[%c0_29, %c0_30] : memref<24x1xf32, #tpu.memory_space<vmem>>, vector<24x1xf32>
    %58 = vector.broadcast %57 : vector<24x1xf32> to vector<24x512xf32>
    %59 = arith.addf %56, %58 : vector<24x512xf32>
    %cst_31 = arith.constant 0.000000e+00 : f32
    %60 = vector.broadcast %cst_31 : f32 to vector<24x512xf32>
    %61 = arith.maximumf %59, %60 : vector<24x512xf32>
    %c9_i32 = arith.constant 9 : i32
    %62 = tpu.dynamic_rotate %61 by %c9_i32 dim 1 : vector<24x512xf32>, i32 -> vector<24x512xf32>
    %c0_32 = arith.constant 0 : index
    %c0_33 = arith.constant 0 : index
    %c0_34 = arith.constant 0 : index
    %63 = vector.load %arg10[%c0_32, %c0_33, %c0_34] : memref<9x1x512xf32, #tpu.memory_space<vmem>>, vector<1x1x512xf32>
    %64 = vector.shape_cast %63 : vector<1x1x512xf32> to vector<1x512xf32>
    %65 = vector.broadcast %64 : vector<1x512xf32> to vector<24x512xf32>
    %66 = arith.mulf %62, %65 : vector<24x512xf32>
    %c8_i32 = arith.constant 8 : i32
    %67 = tpu.dynamic_rotate %61 by %c8_i32 dim 1 : vector<24x512xf32>, i32 -> vector<24x512xf32>
    %c1_35 = arith.constant 1 : index
    %c0_36 = arith.constant 0 : index
    %c0_37 = arith.constant 0 : index
    %68 = vector.load %arg10[%c1_35, %c0_36, %c0_37] : memref<9x1x512xf32, #tpu.memory_space<vmem>>, vector<1x1x512xf32>
    %69 = vector.shape_cast %68 : vector<1x1x512xf32> to vector<1x512xf32>
    %70 = vector.broadcast %69 : vector<1x512xf32> to vector<24x512xf32>
    %71 = arith.mulf %67, %70 : vector<24x512xf32>
    %c7_i32 = arith.constant 7 : i32
    %72 = tpu.dynamic_rotate %61 by %c7_i32 dim 1 : vector<24x512xf32>, i32 -> vector<24x512xf32>
    %c2_38 = arith.constant 2 : index
    %c0_39 = arith.constant 0 : index
    %c0_40 = arith.constant 0 : index
    %73 = vector.load %arg10[%c2_38, %c0_39, %c0_40] : memref<9x1x512xf32, #tpu.memory_space<vmem>>, vector<1x1x512xf32>
    %74 = vector.shape_cast %73 : vector<1x1x512xf32> to vector<1x512xf32>
    %75 = vector.broadcast %74 : vector<1x512xf32> to vector<24x512xf32>
    %76 = arith.mulf %72, %75 : vector<24x512xf32>
    %c1_i32_41 = arith.constant 1 : i32
    %77 = tpu.dynamic_rotate %61 by %c1_i32_41 dim 1 : vector<24x512xf32>, i32 -> vector<24x512xf32>
    %c3_42 = arith.constant 3 : index
    %c0_43 = arith.constant 0 : index
    %c0_44 = arith.constant 0 : index
    %78 = vector.load %arg10[%c3_42, %c0_43, %c0_44] : memref<9x1x512xf32, #tpu.memory_space<vmem>>, vector<1x1x512xf32>
    %79 = vector.shape_cast %78 : vector<1x1x512xf32> to vector<1x512xf32>
    %80 = vector.broadcast %79 : vector<1x512xf32> to vector<24x512xf32>
    %81 = arith.mulf %77, %80 : vector<24x512xf32>
    %c511_i32 = arith.constant 511 : i32
    %82 = tpu.dynamic_rotate %61 by %c511_i32 dim 1 : vector<24x512xf32>, i32 -> vector<24x512xf32>
    %c5_45 = arith.constant 5 : index
    %c0_46 = arith.constant 0 : index
    %c0_47 = arith.constant 0 : index
    %83 = vector.load %arg10[%c5_45, %c0_46, %c0_47] : memref<9x1x512xf32, #tpu.memory_space<vmem>>, vector<1x1x512xf32>
    %84 = vector.shape_cast %83 : vector<1x1x512xf32> to vector<1x512xf32>
    %85 = vector.broadcast %84 : vector<1x512xf32> to vector<24x512xf32>
    %86 = arith.mulf %82, %85 : vector<24x512xf32>
    %c505_i32 = arith.constant 505 : i32
    %87 = tpu.dynamic_rotate %61 by %c505_i32 dim 1 : vector<24x512xf32>, i32 -> vector<24x512xf32>
    %c6_48 = arith.constant 6 : index
    %c0_49 = arith.constant 0 : index
    %c0_50 = arith.constant 0 : index
    %88 = vector.load %arg10[%c6_48, %c0_49, %c0_50] : memref<9x1x512xf32, #tpu.memory_space<vmem>>, vector<1x1x512xf32>
    %89 = vector.shape_cast %88 : vector<1x1x512xf32> to vector<1x512xf32>
    %90 = vector.broadcast %89 : vector<1x512xf32> to vector<24x512xf32>
    %91 = arith.mulf %87, %90 : vector<24x512xf32>
    %c504_i32 = arith.constant 504 : i32
    %92 = tpu.dynamic_rotate %61 by %c504_i32 dim 1 : vector<24x512xf32>, i32 -> vector<24x512xf32>
    %c7_51 = arith.constant 7 : index
    %c0_52 = arith.constant 0 : index
    %c0_53 = arith.constant 0 : index
    %93 = vector.load %arg10[%c7_51, %c0_52, %c0_53] : memref<9x1x512xf32, #tpu.memory_space<vmem>>, vector<1x1x512xf32>
    %94 = vector.shape_cast %93 : vector<1x1x512xf32> to vector<1x512xf32>
    %95 = vector.broadcast %94 : vector<1x512xf32> to vector<24x512xf32>
    %96 = arith.mulf %92, %95 : vector<24x512xf32>
    %c503_i32 = arith.constant 503 : i32
    %97 = tpu.dynamic_rotate %61 by %c503_i32 dim 1 : vector<24x512xf32>, i32 -> vector<24x512xf32>
    %c8_54 = arith.constant 8 : index
    %c0_55 = arith.constant 0 : index
    %c0_56 = arith.constant 0 : index
    %98 = vector.load %arg10[%c8_54, %c0_55, %c0_56] : memref<9x1x512xf32, #tpu.memory_space<vmem>>, vector<1x1x512xf32>
    %99 = vector.shape_cast %98 : vector<1x1x512xf32> to vector<1x512xf32>
    %100 = vector.broadcast %99 : vector<1x512xf32> to vector<24x512xf32>
    %101 = arith.mulf %97, %100 : vector<24x512xf32>
    %c0_57 = arith.constant 0 : index
    %c0_58 = arith.constant 0 : index
    %c0_59 = arith.constant 0 : index
    %102 = vector.load %arg8[%c0_57, %c0_58, %c0_59] : memref<9x24x1xf32, #tpu.memory_space<vmem>>, vector<1x24x1xf32>
    %103 = vector.shape_cast %102 : vector<1x24x1xf32> to vector<24x1xf32>
    %104 = vector.broadcast %103 : vector<24x1xf32> to vector<24x512xf32>
    %105 = arith.mulf %66, %104 : vector<24x512xf32>
    %c1_60 = arith.constant 1 : index
    %c0_61 = arith.constant 0 : index
    %c0_62 = arith.constant 0 : index
    %106 = vector.load %arg8[%c1_60, %c0_61, %c0_62] : memref<9x24x1xf32, #tpu.memory_space<vmem>>, vector<1x24x1xf32>
    %107 = vector.shape_cast %106 : vector<1x24x1xf32> to vector<24x1xf32>
    %108 = vector.broadcast %107 : vector<24x1xf32> to vector<24x512xf32>
    %109 = arith.mulf %71, %108 : vector<24x512xf32>
    %110 = arith.addf %105, %109 : vector<24x512xf32>
    %c2_63 = arith.constant 2 : index
    %c0_64 = arith.constant 0 : index
    %c0_65 = arith.constant 0 : index
    %111 = vector.load %arg8[%c2_63, %c0_64, %c0_65] : memref<9x24x1xf32, #tpu.memory_space<vmem>>, vector<1x24x1xf32>
    %112 = vector.shape_cast %111 : vector<1x24x1xf32> to vector<24x1xf32>
    %113 = vector.broadcast %112 : vector<24x1xf32> to vector<24x512xf32>
    %114 = arith.mulf %76, %113 : vector<24x512xf32>
    %115 = arith.addf %110, %114 : vector<24x512xf32>
    %c3_66 = arith.constant 3 : index
    %c0_67 = arith.constant 0 : index
    %c0_68 = arith.constant 0 : index
    %116 = vector.load %arg8[%c3_66, %c0_67, %c0_68] : memref<9x24x1xf32, #tpu.memory_space<vmem>>, vector<1x24x1xf32>
    %117 = vector.shape_cast %116 : vector<1x24x1xf32> to vector<24x1xf32>
    %118 = vector.broadcast %117 : vector<24x1xf32> to vector<24x512xf32>
    %119 = arith.mulf %81, %118 : vector<24x512xf32>
    %120 = arith.addf %115, %119 : vector<24x512xf32>
    %c4 = arith.constant 4 : index
    %c0_69 = arith.constant 0 : index
    %c0_70 = arith.constant 0 : index
    %121 = vector.load %arg8[%c4, %c0_69, %c0_70] : memref<9x24x1xf32, #tpu.memory_space<vmem>>, vector<1x24x1xf32>
    %122 = vector.shape_cast %121 : vector<1x24x1xf32> to vector<24x1xf32>
    %123 = vector.broadcast %122 : vector<24x1xf32> to vector<24x512xf32>
    %124 = arith.mulf %61, %123 : vector<24x512xf32>
    %125 = arith.addf %120, %124 : vector<24x512xf32>
    %c5_71 = arith.constant 5 : index
    %c0_72 = arith.constant 0 : index
    %c0_73 = arith.constant 0 : index
    %126 = vector.load %arg8[%c5_71, %c0_72, %c0_73] : memref<9x24x1xf32, #tpu.memory_space<vmem>>, vector<1x24x1xf32>
    %127 = vector.shape_cast %126 : vector<1x24x1xf32> to vector<24x1xf32>
    %128 = vector.broadcast %127 : vector<24x1xf32> to vector<24x512xf32>
    %129 = arith.mulf %86, %128 : vector<24x512xf32>
    %130 = arith.addf %125, %129 : vector<24x512xf32>
    %c6_74 = arith.constant 6 : index
    %c0_75 = arith.constant 0 : index
    %c0_76 = arith.constant 0 : index
    %131 = vector.load %arg8[%c6_74, %c0_75, %c0_76] : memref<9x24x1xf32, #tpu.memory_space<vmem>>, vector<1x24x1xf32>
    %132 = vector.shape_cast %131 : vector<1x24x1xf32> to vector<24x1xf32>
    %133 = vector.broadcast %132 : vector<24x1xf32> to vector<24x512xf32>
    %134 = arith.mulf %91, %133 : vector<24x512xf32>
    %135 = arith.addf %130, %134 : vector<24x512xf32>
    %c7_77 = arith.constant 7 : index
    %c0_78 = arith.constant 0 : index
    %c0_79 = arith.constant 0 : index
    %136 = vector.load %arg8[%c7_77, %c0_78, %c0_79] : memref<9x24x1xf32, #tpu.memory_space<vmem>>, vector<1x24x1xf32>
    %137 = vector.shape_cast %136 : vector<1x24x1xf32> to vector<24x1xf32>
    %138 = vector.broadcast %137 : vector<24x1xf32> to vector<24x512xf32>
    %139 = arith.mulf %96, %138 : vector<24x512xf32>
    %140 = arith.addf %135, %139 : vector<24x512xf32>
    %c8_80 = arith.constant 8 : index
    %c0_81 = arith.constant 0 : index
    %c0_82 = arith.constant 0 : index
    %141 = vector.load %arg8[%c8_80, %c0_81, %c0_82] : memref<9x24x1xf32, #tpu.memory_space<vmem>>, vector<1x24x1xf32>
    %142 = vector.shape_cast %141 : vector<1x24x1xf32> to vector<24x1xf32>
    %143 = vector.broadcast %142 : vector<24x1xf32> to vector<24x512xf32>
    %144 = arith.mulf %101, %143 : vector<24x512xf32>
    %145 = arith.addf %140, %144 : vector<24x512xf32>
    %c0_83 = arith.constant 0 : index
    %c0_84 = arith.constant 0 : index
    %146 = vector.load %arg9[%c0_83, %c0_84] : memref<24x1xf32, #tpu.memory_space<vmem>>, vector<24x1xf32>
    %147 = vector.broadcast %146 : vector<24x1xf32> to vector<24x512xf32>
    %148 = arith.addf %145, %147 : vector<24x512xf32>
    %cst_85 = arith.constant 0.000000e+00 : f32
    %149 = vector.broadcast %cst_85 : f32 to vector<24x512xf32>
    %150 = arith.maximumf %148, %149 : vector<24x512xf32>
    %c0_86 = arith.constant 0 : index
    %c0_87 = arith.constant 0 : index
    %151 = vector.load %arg11[%c0_86, %c0_87] : memref<8x24xbf16, #tpu.memory_space<vmem>>, vector<8x24xbf16>
    %152 = arith.truncf %150 : vector<24x512xf32> to vector<24x512xbf16>
    %cst_88 = arith.constant dense<0.000000e+00> : vector<8x512xf32>
    %153 = tpu.matmul %151, %152, %cst_88 {dimension_numbers = #tpu.dot_dimension_numbers<[1], [0], [0], [1], [0, 0, 1, 1], [], []>} : vector<8x24xbf16>, vector<24x512xbf16>, vector<8x512xf32> -> vector<8x512xf32>
    %c0_89 = arith.constant 0 : index
    %c0_90 = arith.constant 0 : index
    %154 = vector.load %arg12[%c0_89, %c0_90] : memref<8x1xf32, #tpu.memory_space<vmem>>, vector<8x1xf32>
    %155 = vector.broadcast %154 : vector<8x1xf32> to vector<8x512xf32>
    %156 = arith.addf %153, %155 : vector<8x512xf32>
    %157 = arith.addf %156, %53 : vector<8x512xf32>
    %158 = arith.truncf %157 : vector<8x512xf32> to vector<8x512xbf16>
    %c0_91 = arith.constant 0 : index
    %c0_92 = arith.constant 0 : index
    %159 = vector.load %arg13[%c0_91, %c0_92] : memref<24x8xbf16, #tpu.memory_space<vmem>>, vector<24x8xbf16>
    %cst_93 = arith.constant dense<0.000000e+00> : vector<24x512xf32>
    %160 = tpu.matmul %159, %158, %cst_93 {dimension_numbers = #tpu.dot_dimension_numbers<[1], [0], [0], [1], [0, 0, 1, 1], [], []>} : vector<24x8xbf16>, vector<8x512xbf16>, vector<24x512xf32> -> vector<24x512xf32>
    %c0_94 = arith.constant 0 : index
    %c0_95 = arith.constant 0 : index
    %161 = vector.load %arg14[%c0_94, %c0_95] : memref<24x1xf32, #tpu.memory_space<vmem>>, vector<24x1xf32>
    %162 = vector.broadcast %161 : vector<24x1xf32> to vector<24x512xf32>
    %163 = arith.addf %160, %162 : vector<24x512xf32>
    %cst_96 = arith.constant 0.000000e+00 : f32
    %164 = vector.broadcast %cst_96 : f32 to vector<24x512xf32>
    %165 = arith.maximumf %163, %164 : vector<24x512xf32>
    %c9_i32_97 = arith.constant 9 : i32
    %166 = tpu.dynamic_rotate %165 by %c9_i32_97 dim 1 : vector<24x512xf32>, i32 -> vector<24x512xf32>
    %c0_98 = arith.constant 0 : index
    %c0_99 = arith.constant 0 : index
    %c0_100 = arith.constant 0 : index
    %167 = vector.load %arg17[%c0_98, %c0_99, %c0_100] : memref<9x1x512xf32, #tpu.memory_space<vmem>>, vector<1x1x512xf32>
    %168 = vector.shape_cast %167 : vector<1x1x512xf32> to vector<1x512xf32>
    %169 = vector.broadcast %168 : vector<1x512xf32> to vector<24x512xf32>
    %170 = arith.mulf %166, %169 : vector<24x512xf32>
    %c8_i32_101 = arith.constant 8 : i32
    %171 = tpu.dynamic_rotate %165 by %c8_i32_101 dim 1 : vector<24x512xf32>, i32 -> vector<24x512xf32>
    %c1_102 = arith.constant 1 : index
    %c0_103 = arith.constant 0 : index
    %c0_104 = arith.constant 0 : index
    %172 = vector.load %arg17[%c1_102, %c0_103, %c0_104] : memref<9x1x512xf32, #tpu.memory_space<vmem>>, vector<1x1x512xf32>
    %173 = vector.shape_cast %172 : vector<1x1x512xf32> to vector<1x512xf32>
    %174 = vector.broadcast %173 : vector<1x512xf32> to vector<24x512xf32>
    %175 = arith.mulf %171, %174 : vector<24x512xf32>
    %c7_i32_105 = arith.constant 7 : i32
    %176 = tpu.dynamic_rotate %165 by %c7_i32_105 dim 1 : vector<24x512xf32>, i32 -> vector<24x512xf32>
    %c2_106 = arith.constant 2 : index
    %c0_107 = arith.constant 0 : index
    %c0_108 = arith.constant 0 : index
    %177 = vector.load %arg17[%c2_106, %c0_107, %c0_108] : memref<9x1x512xf32, #tpu.memory_space<vmem>>, vector<1x1x512xf32>
    %178 = vector.shape_cast %177 : vector<1x1x512xf32> to vector<1x512xf32>
    %179 = vector.broadcast %178 : vector<1x512xf32> to vector<24x512xf32>
    %180 = arith.mulf %176, %179 : vector<24x512xf32>
    %c1_i32_109 = arith.constant 1 : i32
    %181 = tpu.dynamic_rotate %165 by %c1_i32_109 dim 1 : vector<24x512xf32>, i32 -> vector<24x512xf32>
    %c3_110 = arith.constant 3 : index
    %c0_111 = arith.constant 0 : index
    %c0_112 = arith.constant 0 : index
    %182 = vector.load %arg17[%c3_110, %c0_111, %c0_112] : memref<9x1x512xf32, #tpu.memory_space<vmem>>, vector<1x1x512xf32>
    %183 = vector.shape_cast %182 : vector<1x1x512xf32> to vector<1x512xf32>
    %184 = vector.broadcast %183 : vector<1x512xf32> to vector<24x512xf32>
    %185 = arith.mulf %181, %184 : vector<24x512xf32>
    %c511_i32_113 = arith.constant 511 : i32
    %186 = tpu.dynamic_rotate %165 by %c511_i32_113 dim 1 : vector<24x512xf32>, i32 -> vector<24x512xf32>
    %c5_114 = arith.constant 5 : index
    %c0_115 = arith.constant 0 : index
    %c0_116 = arith.constant 0 : index
    %187 = vector.load %arg17[%c5_114, %c0_115, %c0_116] : memref<9x1x512xf32, #tpu.memory_space<vmem>>, vector<1x1x512xf32>
    %188 = vector.shape_cast %187 : vector<1x1x512xf32> to vector<1x512xf32>
    %189 = vector.broadcast %188 : vector<1x512xf32> to vector<24x512xf32>
    %190 = arith.mulf %186, %189 : vector<24x512xf32>
    %c505_i32_117 = arith.constant 505 : i32
    %191 = tpu.dynamic_rotate %165 by %c505_i32_117 dim 1 : vector<24x512xf32>, i32 -> vector<24x512xf32>
    %c6_118 = arith.constant 6 : index
    %c0_119 = arith.constant 0 : index
    %c0_120 = arith.constant 0 : index
    %192 = vector.load %arg17[%c6_118, %c0_119, %c0_120] : memref<9x1x512xf32, #tpu.memory_space<vmem>>, vector<1x1x512xf32>
    %193 = vector.shape_cast %192 : vector<1x1x512xf32> to vector<1x512xf32>
    %194 = vector.broadcast %193 : vector<1x512xf32> to vector<24x512xf32>
    %195 = arith.mulf %191, %194 : vector<24x512xf32>
    %c504_i32_121 = arith.constant 504 : i32
    %196 = tpu.dynamic_rotate %165 by %c504_i32_121 dim 1 : vector<24x512xf32>, i32 -> vector<24x512xf32>
    %c7_122 = arith.constant 7 : index
    %c0_123 = arith.constant 0 : index
    %c0_124 = arith.constant 0 : index
    %197 = vector.load %arg17[%c7_122, %c0_123, %c0_124] : memref<9x1x512xf32, #tpu.memory_space<vmem>>, vector<1x1x512xf32>
    %198 = vector.shape_cast %197 : vector<1x1x512xf32> to vector<1x512xf32>
    %199 = vector.broadcast %198 : vector<1x512xf32> to vector<24x512xf32>
    %200 = arith.mulf %196, %199 : vector<24x512xf32>
    %c503_i32_125 = arith.constant 503 : i32
    %201 = tpu.dynamic_rotate %165 by %c503_i32_125 dim 1 : vector<24x512xf32>, i32 -> vector<24x512xf32>
    %c8_126 = arith.constant 8 : index
    %c0_127 = arith.constant 0 : index
    %c0_128 = arith.constant 0 : index
    %202 = vector.load %arg17[%c8_126, %c0_127, %c0_128] : memref<9x1x512xf32, #tpu.memory_space<vmem>>, vector<1x1x512xf32>
    %203 = vector.shape_cast %202 : vector<1x1x512xf32> to vector<1x512xf32>
    %204 = vector.broadcast %203 : vector<1x512xf32> to vector<24x512xf32>
    %205 = arith.mulf %201, %204 : vector<24x512xf32>
    %c0_129 = arith.constant 0 : index
    %c0_130 = arith.constant 0 : index
    %c0_131 = arith.constant 0 : index
    %206 = vector.load %arg15[%c0_129, %c0_130, %c0_131] : memref<9x24x1xf32, #tpu.memory_space<vmem>>, vector<1x24x1xf32>
    %207 = vector.shape_cast %206 : vector<1x24x1xf32> to vector<24x1xf32>
    %208 = vector.broadcast %207 : vector<24x1xf32> to vector<24x512xf32>
    %209 = arith.mulf %170, %208 : vector<24x512xf32>
    %c1_132 = arith.constant 1 : index
    %c0_133 = arith.constant 0 : index
    %c0_134 = arith.constant 0 : index
    %210 = vector.load %arg15[%c1_132, %c0_133, %c0_134] : memref<9x24x1xf32, #tpu.memory_space<vmem>>, vector<1x24x1xf32>
    %211 = vector.shape_cast %210 : vector<1x24x1xf32> to vector<24x1xf32>
    %212 = vector.broadcast %211 : vector<24x1xf32> to vector<24x512xf32>
    %213 = arith.mulf %175, %212 : vector<24x512xf32>
    %214 = arith.addf %209, %213 : vector<24x512xf32>
    %c2_135 = arith.constant 2 : index
    %c0_136 = arith.constant 0 : index
    %c0_137 = arith.constant 0 : index
    %215 = vector.load %arg15[%c2_135, %c0_136, %c0_137] : memref<9x24x1xf32, #tpu.memory_space<vmem>>, vector<1x24x1xf32>
    %216 = vector.shape_cast %215 : vector<1x24x1xf32> to vector<24x1xf32>
    %217 = vector.broadcast %216 : vector<24x1xf32> to vector<24x512xf32>
    %218 = arith.mulf %180, %217 : vector<24x512xf32>
    %219 = arith.addf %214, %218 : vector<24x512xf32>
    %c3_138 = arith.constant 3 : index
    %c0_139 = arith.constant 0 : index
    %c0_140 = arith.constant 0 : index
    %220 = vector.load %arg15[%c3_138, %c0_139, %c0_140] : memref<9x24x1xf32, #tpu.memory_space<vmem>>, vector<1x24x1xf32>
    %221 = vector.shape_cast %220 : vector<1x24x1xf32> to vector<24x1xf32>
    %222 = vector.broadcast %221 : vector<24x1xf32> to vector<24x512xf32>
    %223 = arith.mulf %185, %222 : vector<24x512xf32>
    %224 = arith.addf %219, %223 : vector<24x512xf32>
    %c4_141 = arith.constant 4 : index
    %c0_142 = arith.constant 0 : index
    %c0_143 = arith.constant 0 : index
    %225 = vector.load %arg15[%c4_141, %c0_142, %c0_143] : memref<9x24x1xf32, #tpu.memory_space<vmem>>, vector<1x24x1xf32>
    %226 = vector.shape_cast %225 : vector<1x24x1xf32> to vector<24x1xf32>
    %227 = vector.broadcast %226 : vector<24x1xf32> to vector<24x512xf32>
    %228 = arith.mulf %165, %227 : vector<24x512xf32>
    %229 = arith.addf %224, %228 : vector<24x512xf32>
    %c5_144 = arith.constant 5 : index
    %c0_145 = arith.constant 0 : index
    %c0_146 = arith.constant 0 : index
    %230 = vector.load %arg15[%c5_144, %c0_145, %c0_146] : memref<9x24x1xf32, #tpu.memory_space<vmem>>, vector<1x24x1xf32>
    %231 = vector.shape_cast %230 : vector<1x24x1xf32> to vector<24x1xf32>
    %232 = vector.broadcast %231 : vector<24x1xf32> to vector<24x512xf32>
    %233 = arith.mulf %190, %232 : vector<24x512xf32>
    %234 = arith.addf %229, %233 : vector<24x512xf32>
    %c6_147 = arith.constant 6 : index
    %c0_148 = arith.constant 0 : index
    %c0_149 = arith.constant 0 : index
    %235 = vector.load %arg15[%c6_147, %c0_148, %c0_149] : memref<9x24x1xf32, #tpu.memory_space<vmem>>, vector<1x24x1xf32>
    %236 = vector.shape_cast %235 : vector<1x24x1xf32> to vector<24x1xf32>
    %237 = vector.broadcast %236 : vector<24x1xf32> to vector<24x512xf32>
    %238 = arith.mulf %195, %237 : vector<24x512xf32>
    %239 = arith.addf %234, %238 : vector<24x512xf32>
    %c7_150 = arith.constant 7 : index
    %c0_151 = arith.constant 0 : index
    %c0_152 = arith.constant 0 : index
    %240 = vector.load %arg15[%c7_150, %c0_151, %c0_152] : memref<9x24x1xf32, #tpu.memory_space<vmem>>, vector<1x24x1xf32>
    %241 = vector.shape_cast %240 : vector<1x24x1xf32> to vector<24x1xf32>
    %242 = vector.broadcast %241 : vector<24x1xf32> to vector<24x512xf32>
    %243 = arith.mulf %200, %242 : vector<24x512xf32>
    %244 = arith.addf %239, %243 : vector<24x512xf32>
    %c8_153 = arith.constant 8 : index
    %c0_154 = arith.constant 0 : index
    %c0_155 = arith.constant 0 : index
    %245 = vector.load %arg15[%c8_153, %c0_154, %c0_155] : memref<9x24x1xf32, #tpu.memory_space<vmem>>, vector<1x24x1xf32>
    %246 = vector.shape_cast %245 : vector<1x24x1xf32> to vector<24x1xf32>
    %247 = vector.broadcast %246 : vector<24x1xf32> to vector<24x512xf32>
    %248 = arith.mulf %205, %247 : vector<24x512xf32>
    %249 = arith.addf %244, %248 : vector<24x512xf32>
    %250 = arith.truncf %249 : vector<24x512xf32> to vector<24x512xbf16>
    %c0_156 = arith.constant 0 : index
    %c0_157 = arith.constant 0 : index
    %251 = vector.load %arg18[%c0_156, %c0_157] : memref<512x128xbf16, #tpu.memory_space<vmem>>, vector<512x128xbf16>
    %cst_158 = arith.constant dense<0.000000e+00> : vector<24x128xf32>
    %252 = tpu.matmul %250, %251, %cst_158 {dimension_numbers = #tpu.dot_dimension_numbers<[1], [0], [0], [1], [0, 0, 1, 1], [], []>} : vector<24x512xbf16>, vector<512x128xbf16>, vector<24x128xf32> -> vector<24x128xf32>
    %c0_159 = arith.constant 0 : index
    %c0_160 = arith.constant 0 : index
    %253 = vector.load %arg16[%c0_159, %c0_160] : memref<24x1xf32, #tpu.memory_space<vmem>>, vector<24x1xf32>
    %254 = vector.broadcast %253 : vector<24x1xf32> to vector<24x128xf32>
    %255 = arith.addf %252, %254 : vector<24x128xf32>
    %cst_161 = arith.constant 0.000000e+00 : f32
    %256 = vector.broadcast %cst_161 : f32 to vector<24x128xf32>
    %257 = arith.maximumf %255, %256 : vector<24x128xf32>
    %c0_162 = arith.constant 0 : index
    %c0_163 = arith.constant 0 : index
    %258 = vector.load %arg19[%c0_162, %c0_163] : memref<16x24xbf16, #tpu.memory_space<vmem>>, vector<16x24xbf16>
    %259 = arith.truncf %257 : vector<24x128xf32> to vector<24x128xbf16>
    %cst_164 = arith.constant dense<0.000000e+00> : vector<16x128xf32>
    %260 = tpu.matmul %258, %259, %cst_164 {dimension_numbers = #tpu.dot_dimension_numbers<[1], [0], [0], [1], [0, 0, 1, 1], [], []>} : vector<16x24xbf16>, vector<24x128xbf16>, vector<16x128xf32> -> vector<16x128xf32>
    %c0_165 = arith.constant 0 : index
    %c0_166 = arith.constant 0 : index
    %261 = vector.load %arg20[%c0_165, %c0_166] : memref<16x1xf32, #tpu.memory_space<vmem>>, vector<16x1xf32>
    %262 = vector.broadcast %261 : vector<16x1xf32> to vector<16x128xf32>
    %263 = arith.addf %260, %262 : vector<16x128xf32>
    %264 = arith.truncf %263 : vector<16x128xf32> to vector<16x128xbf16>
    %c0_167 = arith.constant 0 : index
    %c0_168 = arith.constant 0 : index
    %265 = vector.load %arg21[%c0_167, %c0_168] : memref<48x16xbf16, #tpu.memory_space<vmem>>, vector<48x16xbf16>
    %cst_169 = arith.constant dense<0.000000e+00> : vector<48x128xf32>
    %266 = tpu.matmul %265, %264, %cst_169 {dimension_numbers = #tpu.dot_dimension_numbers<[1], [0], [0], [1], [0, 0, 1, 1], [], []>} : vector<48x16xbf16>, vector<16x128xbf16>, vector<48x128xf32> -> vector<48x128xf32>
    %c0_170 = arith.constant 0 : index
    %c0_171 = arith.constant 0 : index
    %267 = vector.load %arg22[%c0_170, %c0_171] : memref<48x1xf32, #tpu.memory_space<vmem>>, vector<48x1xf32>
    %268 = vector.broadcast %267 : vector<48x1xf32> to vector<48x128xf32>
    %269 = arith.addf %266, %268 : vector<48x128xf32>
    %cst_172 = arith.constant 0.000000e+00 : f32
    %270 = vector.broadcast %cst_172 : f32 to vector<48x128xf32>
    %271 = arith.maximumf %269, %270 : vector<48x128xf32>
    %c5_i32 = arith.constant 5 : i32
    %272 = tpu.dynamic_rotate %271 by %c5_i32 dim 1 : vector<48x128xf32>, i32 -> vector<48x128xf32>
    %c0_173 = arith.constant 0 : index
    %c0_174 = arith.constant 0 : index
    %c0_175 = arith.constant 0 : index
    %273 = vector.load %arg25[%c0_173, %c0_174, %c0_175] : memref<9x1x128xf32, #tpu.memory_space<vmem>>, vector<1x1x128xf32>
    %274 = vector.shape_cast %273 : vector<1x1x128xf32> to vector<1x128xf32>
    %275 = vector.broadcast %274 : vector<1x128xf32> to vector<48x128xf32>
    %276 = arith.mulf %272, %275 : vector<48x128xf32>
    %c4_i32 = arith.constant 4 : i32
    %277 = tpu.dynamic_rotate %271 by %c4_i32 dim 1 : vector<48x128xf32>, i32 -> vector<48x128xf32>
    %c1_176 = arith.constant 1 : index
    %c0_177 = arith.constant 0 : index
    %c0_178 = arith.constant 0 : index
    %278 = vector.load %arg25[%c1_176, %c0_177, %c0_178] : memref<9x1x128xf32, #tpu.memory_space<vmem>>, vector<1x1x128xf32>
    %279 = vector.shape_cast %278 : vector<1x1x128xf32> to vector<1x128xf32>
    %280 = vector.broadcast %279 : vector<1x128xf32> to vector<48x128xf32>
    %281 = arith.mulf %277, %280 : vector<48x128xf32>
    %c3_i32 = arith.constant 3 : i32
    %282 = tpu.dynamic_rotate %271 by %c3_i32 dim 1 : vector<48x128xf32>, i32 -> vector<48x128xf32>
    %c2_179 = arith.constant 2 : index
    %c0_180 = arith.constant 0 : index
    %c0_181 = arith.constant 0 : index
    %283 = vector.load %arg25[%c2_179, %c0_180, %c0_181] : memref<9x1x128xf32, #tpu.memory_space<vmem>>, vector<1x1x128xf32>
    %284 = vector.shape_cast %283 : vector<1x1x128xf32> to vector<1x128xf32>
    %285 = vector.broadcast %284 : vector<1x128xf32> to vector<48x128xf32>
    %286 = arith.mulf %282, %285 : vector<48x128xf32>
    %c1_i32_182 = arith.constant 1 : i32
    %287 = tpu.dynamic_rotate %271 by %c1_i32_182 dim 1 : vector<48x128xf32>, i32 -> vector<48x128xf32>
    %c3_183 = arith.constant 3 : index
    %c0_184 = arith.constant 0 : index
    %c0_185 = arith.constant 0 : index
    %288 = vector.load %arg25[%c3_183, %c0_184, %c0_185] : memref<9x1x128xf32, #tpu.memory_space<vmem>>, vector<1x1x128xf32>
    %289 = vector.shape_cast %288 : vector<1x1x128xf32> to vector<1x128xf32>
    %290 = vector.broadcast %289 : vector<1x128xf32> to vector<48x128xf32>
    %291 = arith.mulf %287, %290 : vector<48x128xf32>
    %c127_i32 = arith.constant 127 : i32
    %292 = tpu.dynamic_rotate %271 by %c127_i32 dim 1 : vector<48x128xf32>, i32 -> vector<48x128xf32>
    %c5_186 = arith.constant 5 : index
    %c0_187 = arith.constant 0 : index
    %c0_188 = arith.constant 0 : index
    %293 = vector.load %arg25[%c5_186, %c0_187, %c0_188] : memref<9x1x128xf32, #tpu.memory_space<vmem>>, vector<1x1x128xf32>
    %294 = vector.shape_cast %293 : vector<1x1x128xf32> to vector<1x128xf32>
    %295 = vector.broadcast %294 : vector<1x128xf32> to vector<48x128xf32>
    %296 = arith.mulf %292, %295 : vector<48x128xf32>
    %c125_i32 = arith.constant 125 : i32
    %297 = tpu.dynamic_rotate %271 by %c125_i32 dim 1 : vector<48x128xf32>, i32 -> vector<48x128xf32>
    %c6_189 = arith.constant 6 : index
    %c0_190 = arith.constant 0 : index
    %c0_191 = arith.constant 0 : index
    %298 = vector.load %arg25[%c6_189, %c0_190, %c0_191] : memref<9x1x128xf32, #tpu.memory_space<vmem>>, vector<1x1x128xf32>
    %299 = vector.shape_cast %298 : vector<1x1x128xf32> to vector<1x128xf32>
    %300 = vector.broadcast %299 : vector<1x128xf32> to vector<48x128xf32>
    %301 = arith.mulf %297, %300 : vector<48x128xf32>
    %c124_i32 = arith.constant 124 : i32
    %302 = tpu.dynamic_rotate %271 by %c124_i32 dim 1 : vector<48x128xf32>, i32 -> vector<48x128xf32>
    %c7_192 = arith.constant 7 : index
    %c0_193 = arith.constant 0 : index
    %c0_194 = arith.constant 0 : index
    %303 = vector.load %arg25[%c7_192, %c0_193, %c0_194] : memref<9x1x128xf32, #tpu.memory_space<vmem>>, vector<1x1x128xf32>
    %304 = vector.shape_cast %303 : vector<1x1x128xf32> to vector<1x128xf32>
    %305 = vector.broadcast %304 : vector<1x128xf32> to vector<48x128xf32>
    %306 = arith.mulf %302, %305 : vector<48x128xf32>
    %c123_i32 = arith.constant 123 : i32
    %307 = tpu.dynamic_rotate %271 by %c123_i32 dim 1 : vector<48x128xf32>, i32 -> vector<48x128xf32>
    %c8_195 = arith.constant 8 : index
    %c0_196 = arith.constant 0 : index
    %c0_197 = arith.constant 0 : index
    %308 = vector.load %arg25[%c8_195, %c0_196, %c0_197] : memref<9x1x128xf32, #tpu.memory_space<vmem>>, vector<1x1x128xf32>
    %309 = vector.shape_cast %308 : vector<1x1x128xf32> to vector<1x128xf32>
    %310 = vector.broadcast %309 : vector<1x128xf32> to vector<48x128xf32>
    %311 = arith.mulf %307, %310 : vector<48x128xf32>
    %c0_198 = arith.constant 0 : index
    %c0_199 = arith.constant 0 : index
    %c0_200 = arith.constant 0 : index
    %312 = vector.load %arg23[%c0_198, %c0_199, %c0_200] : memref<9x48x1xf32, #tpu.memory_space<vmem>>, vector<1x48x1xf32>
    %313 = vector.shape_cast %312 : vector<1x48x1xf32> to vector<48x1xf32>
    %314 = vector.broadcast %313 : vector<48x1xf32> to vector<48x128xf32>
    %315 = arith.mulf %276, %314 : vector<48x128xf32>
    %c1_201 = arith.constant 1 : index
    %c0_202 = arith.constant 0 : index
    %c0_203 = arith.constant 0 : index
    %316 = vector.load %arg23[%c1_201, %c0_202, %c0_203] : memref<9x48x1xf32, #tpu.memory_space<vmem>>, vector<1x48x1xf32>
    %317 = vector.shape_cast %316 : vector<1x48x1xf32> to vector<48x1xf32>
    %318 = vector.broadcast %317 : vector<48x1xf32> to vector<48x128xf32>
    %319 = arith.mulf %281, %318 : vector<48x128xf32>
    %320 = arith.addf %315, %319 : vector<48x128xf32>
    %c2_204 = arith.constant 2 : index
    %c0_205 = arith.constant 0 : index
    %c0_206 = arith.constant 0 : index
    %321 = vector.load %arg23[%c2_204, %c0_205, %c0_206] : memref<9x48x1xf32, #tpu.memory_space<vmem>>, vector<1x48x1xf32>
    %322 = vector.shape_cast %321 : vector<1x48x1xf32> to vector<48x1xf32>
    %323 = vector.broadcast %322 : vector<48x1xf32> to vector<48x128xf32>
    %324 = arith.mulf %286, %323 : vector<48x128xf32>
    %325 = arith.addf %320, %324 : vector<48x128xf32>
    %c3_207 = arith.constant 3 : index
    %c0_208 = arith.constant 0 : index
    %c0_209 = arith.constant 0 : index
    %326 = vector.load %arg23[%c3_207, %c0_208, %c0_209] : memref<9x48x1xf32, #tpu.memory_space<vmem>>, vector<1x48x1xf32>
    %327 = vector.shape_cast %326 : vector<1x48x1xf32> to vector<48x1xf32>
    %328 = vector.broadcast %327 : vector<48x1xf32> to vector<48x128xf32>
    %329 = arith.mulf %291, %328 : vector<48x128xf32>
    %330 = arith.addf %325, %329 : vector<48x128xf32>
    %c4_210 = arith.constant 4 : index
    %c0_211 = arith.constant 0 : index
    %c0_212 = arith.constant 0 : index
    %331 = vector.load %arg23[%c4_210, %c0_211, %c0_212] : memref<9x48x1xf32, #tpu.memory_space<vmem>>, vector<1x48x1xf32>
    %332 = vector.shape_cast %331 : vector<1x48x1xf32> to vector<48x1xf32>
    %333 = vector.broadcast %332 : vector<48x1xf32> to vector<48x128xf32>
    %334 = arith.mulf %271, %333 : vector<48x128xf32>
    %335 = arith.addf %330, %334 : vector<48x128xf32>
    %c5_213 = arith.constant 5 : index
    %c0_214 = arith.constant 0 : index
    %c0_215 = arith.constant 0 : index
    %336 = vector.load %arg23[%c5_213, %c0_214, %c0_215] : memref<9x48x1xf32, #tpu.memory_space<vmem>>, vector<1x48x1xf32>
    %337 = vector.shape_cast %336 : vector<1x48x1xf32> to vector<48x1xf32>
    %338 = vector.broadcast %337 : vector<48x1xf32> to vector<48x128xf32>
    %339 = arith.mulf %296, %338 : vector<48x128xf32>
    %340 = arith.addf %335, %339 : vector<48x128xf32>
    %c6_216 = arith.constant 6 : index
    %c0_217 = arith.constant 0 : index
    %c0_218 = arith.constant 0 : index
    %341 = vector.load %arg23[%c6_216, %c0_217, %c0_218] : memref<9x48x1xf32, #tpu.memory_space<vmem>>, vector<1x48x1xf32>
    %342 = vector.shape_cast %341 : vector<1x48x1xf32> to vector<48x1xf32>
    %343 = vector.broadcast %342 : vector<48x1xf32> to vector<48x128xf32>
    %344 = arith.mulf %301, %343 : vector<48x128xf32>
    %345 = arith.addf %340, %344 : vector<48x128xf32>
    %c7_219 = arith.constant 7 : index
    %c0_220 = arith.constant 0 : index
    %c0_221 = arith.constant 0 : index
    %346 = vector.load %arg23[%c7_219, %c0_220, %c0_221] : memref<9x48x1xf32, #tpu.memory_space<vmem>>, vector<1x48x1xf32>
    %347 = vector.shape_cast %346 : vector<1x48x1xf32> to vector<48x1xf32>
    %348 = vector.broadcast %347 : vector<48x1xf32> to vector<48x128xf32>
    %349 = arith.mulf %306, %348 : vector<48x128xf32>
    %350 = arith.addf %345, %349 : vector<48x128xf32>
    %c8_222 = arith.constant 8 : index
    %c0_223 = arith.constant 0 : index
    %c0_224 = arith.constant 0 : index
    %351 = vector.load %arg23[%c8_222, %c0_223, %c0_224] : memref<9x48x1xf32, #tpu.memory_space<vmem>>, vector<1x48x1xf32>
    %352 = vector.shape_cast %351 : vector<1x48x1xf32> to vector<48x1xf32>
    %353 = vector.broadcast %352 : vector<48x1xf32> to vector<48x128xf32>
    %354 = arith.mulf %311, %353 : vector<48x128xf32>
    %355 = arith.addf %350, %354 : vector<48x128xf32>
    %c0_225 = arith.constant 0 : index
    %c0_226 = arith.constant 0 : index
    %356 = vector.load %arg24[%c0_225, %c0_226] : memref<48x1xf32, #tpu.memory_space<vmem>>, vector<48x1xf32>
    %357 = vector.broadcast %356 : vector<48x1xf32> to vector<48x128xf32>
    %358 = arith.addf %355, %357 : vector<48x128xf32>
    %cst_227 = arith.constant 0.000000e+00 : f32
    %359 = vector.broadcast %cst_227 : f32 to vector<48x128xf32>
    %360 = arith.maximumf %358, %359 : vector<48x128xf32>
    %c0_228 = arith.constant 0 : index
    %c0_229 = arith.constant 0 : index
    %361 = vector.load %arg26[%c0_228, %c0_229] : memref<16x48xbf16, #tpu.memory_space<vmem>>, vector<16x48xbf16>
    %362 = arith.truncf %360 : vector<48x128xf32> to vector<48x128xbf16>
    %cst_230 = arith.constant dense<0.000000e+00> : vector<16x128xf32>
    %363 = tpu.matmul %361, %362, %cst_230 {dimension_numbers = #tpu.dot_dimension_numbers<[1], [0], [0], [1], [0, 0, 1, 1], [], []>} : vector<16x48xbf16>, vector<48x128xbf16>, vector<16x128xf32> -> vector<16x128xf32>
    %c0_231 = arith.constant 0 : index
    %c0_232 = arith.constant 0 : index
    %364 = vector.load %arg27[%c0_231, %c0_232] : memref<16x1xf32, #tpu.memory_space<vmem>>, vector<16x1xf32>
    %365 = vector.broadcast %364 : vector<16x1xf32> to vector<16x128xf32>
    %366 = arith.addf %363, %365 : vector<16x128xf32>
    %367 = arith.addf %366, %263 : vector<16x128xf32>
    %c0_233 = arith.constant 0 : index
    %c0_234 = arith.constant 0 : index
    %368 = vector.load %arg28[%c0_233, %c0_234] : memref<16x128xf32, #tpu.memory_space<vmem>>, vector<16x128xf32>
    tpu.vector_store %arg28[%c0_233, %c0_234], %367 {strides = array<i32>} : memref<16x128xf32, #tpu.memory_space<vmem>>, vector<16x128xf32>,
    return
  }
  func.func @transform_0(%arg0: i32) -> (i32, i32) {
    %c0_i32 = arith.constant 0 : i32
    %c0_i32_0 = arith.constant 0 : i32
    return %c0_i32, %arg0 : i32, i32
  }
  func.func @transform_1(%arg0: i32) -> (i32, i32) {
    %c0_i32 = arith.constant 0 : i32
    %c0_i32_0 = arith.constant 0 : i32
    %c0_i32_1 = arith.constant 0 : i32
    return %c0_i32, %c0_i32_0 : i32, i32
  }
  func.func @transform_2(%arg0: i32) -> (i32, i32) {
    %c0_i32 = arith.constant 0 : i32
    %c0_i32_0 = arith.constant 0 : i32
    %c0_i32_1 = arith.constant 0 : i32
    return %c0_i32, %c0_i32_0 : i32, i32
  }
  func.func @transform_3(%arg0: i32) -> (i32, i32, i32) {
    %c0_i32 = arith.constant 0 : i32
    %c0_i32_0 = arith.constant 0 : i32
    %c0_i32_1 = arith.constant 0 : i32
    %c0_i32_2 = arith.constant 0 : i32
    return %c0_i32, %c0_i32_0, %c0_i32_1 : i32, i32, i32
  }
  func.func @transform_4(%arg0: i32) -> (i32, i32) {
    %c0_i32 = arith.constant 0 : i32
    %c0_i32_0 = arith.constant 0 : i32
    %c0_i32_1 = arith.constant 0 : i32
    return %c0_i32, %c0_i32_0 : i32, i32
  }
  func.func @transform_5(%arg0: i32) -> (i32, i32) {
    %c0_i32 = arith.constant 0 : i32
    %c0_i32_0 = arith.constant 0 : i32
    %c0_i32_1 = arith.constant 0 : i32
    return %c0_i32, %c0_i32_0 : i32, i32
  }
  func.func @transform_6(%arg0: i32) -> (i32, i32) {
    %c0_i32 = arith.constant 0 : i32
    %c0_i32_0 = arith.constant 0 : i32
    %c0_i32_1 = arith.constant 0 : i32
    return %c0_i32, %c0_i32_0 : i32, i32
  }
  func.func @transform_7(%arg0: i32) -> (i32, i32, i32) {
    %c0_i32 = arith.constant 0 : i32
    %c0_i32_0 = arith.constant 0 : i32
    %c0_i32_1 = arith.constant 0 : i32
    %c0_i32_2 = arith.constant 0 : i32
    return %c0_i32, %c0_i32_0, %c0_i32_1 : i32, i32, i32
  }
  func.func @transform_8(%arg0: i32) -> (i32, i32) {
    %c0_i32 = arith.constant 0 : i32
    %c0_i32_0 = arith.constant 0 : i32
    %c0_i32_1 = arith.constant 0 : i32
    return %c0_i32, %c0_i32_0 : i32, i32
  }
  func.func @transform_9(%arg0: i32) -> (i32, i32, i32) {
    %c0_i32 = arith.constant 0 : i32
    %c0_i32_0 = arith.constant 0 : i32
    %c0_i32_1 = arith.constant 0 : i32
    %c0_i32_2 = arith.constant 0 : i32
    return %c0_i32, %c0_i32_0, %c0_i32_1 : i32, i32, i32
  }
  func.func @transform_10(%arg0: i32) -> (i32, i32) {
    %c0_i32 = arith.constant 0 : i32
    %c0_i32_0 = arith.constant 0 : i32
    %c0_i32_1 = arith.constant 0 : i32
    return %c0_i32, %c0_i32_0 : i32, i32
  }
  func.func @transform_11(%arg0: i32) -> (i32, i32) {
    %c0_i32 = arith.constant 0 : i32
    %c0_i32_0 = arith.constant 0 : i32
    %c0_i32_1 = arith.constant 0 : i32
    return %c0_i32, %c0_i32_0 : i32, i32
  }
  func.func @transform_12(%arg0: i32) -> (i32, i32) {
    %c0_i32 = arith.constant 0 : i32
    %c0_i32_0 = arith.constant 0 : i32
    %c0_i32_1 = arith.constant 0 : i32
    return %c0_i32, %c0_i32_0 : i32, i32
  }
  func.func @transform_13(%arg0: i32) -> (i32, i32) {
    %c0_i32 = arith.constant 0 : i32
    %c0_i32_0 = arith.constant 0 : i32
    %c0_i32_1 = arith.constant 0 : i32
    return %c0_i32, %c0_i32_0 : i32, i32
  }
  func.func @transform_14(%arg0: i32) -> (i32, i32, i32) {
    %c0_i32 = arith.constant 0 : i32
    %c0_i32_0 = arith.constant 0 : i32
    %c0_i32_1 = arith.constant 0 : i32
    %c0_i32_2 = arith.constant 0 : i32
    return %c0_i32, %c0_i32_0, %c0_i32_1 : i32, i32, i32
  }
  func.func @transform_15(%arg0: i32) -> (i32, i32) {
    %c0_i32 = arith.constant 0 : i32
    %c0_i32_0 = arith.constant 0 : i32
    %c0_i32_1 = arith.constant 0 : i32
    return %c0_i32, %c0_i32_0 : i32, i32
  }
  func.func @transform_16(%arg0: i32) -> (i32, i32, i32) {
    %c0_i32 = arith.constant 0 : i32
    %c0_i32_0 = arith.constant 0 : i32
    %c0_i32_1 = arith.constant 0 : i32
    %c0_i32_2 = arith.constant 0 : i32
    return %c0_i32, %c0_i32_0, %c0_i32_1 : i32, i32, i32
  }
  func.func @transform_17(%arg0: i32) -> (i32, i32) {
    %c0_i32 = arith.constant 0 : i32
    %c0_i32_0 = arith.constant 0 : i32
    %c0_i32_1 = arith.constant 0 : i32
    return %c0_i32, %c0_i32_0 : i32, i32
  }
  func.func @transform_18(%arg0: i32) -> (i32, i32) {
    %c0_i32 = arith.constant 0 : i32
    %c0_i32_0 = arith.constant 0 : i32
    %c0_i32_1 = arith.constant 0 : i32
    return %c0_i32, %c0_i32_0 : i32, i32
  }
  func.func @transform_19(%arg0: i32) -> (i32, i32) {
    %c0_i32 = arith.constant 0 : i32
    %c0_i32_0 = arith.constant 0 : i32
    %c0_i32_1 = arith.constant 0 : i32
    return %c0_i32, %c0_i32_0 : i32, i32
  }
  func.func @transform_20(%arg0: i32) -> (i32, i32) {
    %c0_i32 = arith.constant 0 : i32
    %c0_i32_0 = arith.constant 0 : i32
    %c0_i32_1 = arith.constant 0 : i32
    return %c0_i32, %c0_i32_0 : i32, i32
  }
  func.func @transform_21(%arg0: i32) -> (i32, i32) {
    %c0_i32 = arith.constant 0 : i32
    %c0_i32_0 = arith.constant 0 : i32
    %c0_i32_1 = arith.constant 0 : i32
    return %c0_i32, %c0_i32_0 : i32, i32
  }
  func.func @transform_22(%arg0: i32) -> (i32, i32, i32) {
    %c0_i32 = arith.constant 0 : i32
    %c0_i32_0 = arith.constant 0 : i32
    %c0_i32_1 = arith.constant 0 : i32
    %c0_i32_2 = arith.constant 0 : i32
    return %c0_i32, %c0_i32_0, %c0_i32_1 : i32, i32, i32
  }
  func.func @transform_23(%arg0: i32) -> (i32, i32) {
    %c0_i32 = arith.constant 0 : i32
    %c0_i32_0 = arith.constant 0 : i32
    %c0_i32_1 = arith.constant 0 : i32
    return %c0_i32, %c0_i32_0 : i32, i32
  }
  func.func @transform_24(%arg0: i32) -> (i32, i32, i32) {
    %c0_i32 = arith.constant 0 : i32
    %c0_i32_0 = arith.constant 0 : i32
    %c0_i32_1 = arith.constant 0 : i32
    %c0_i32_2 = arith.constant 0 : i32
    return %c0_i32, %c0_i32_0, %c0_i32_1 : i32, i32, i32
  }
  func.func @transform_25(%arg0: i32) -> (i32, i32) {
    %c0_i32 = arith.constant 0 : i32
    %c0_i32_0 = arith.constant 0 : i32
    %c0_i32_1 = arith.constant 0 : i32
    return %c0_i32, %c0_i32_0 : i32, i32
  }
  func.func @transform_26(%arg0: i32) -> (i32, i32) {
    %c0_i32 = arith.constant 0 : i32
    %c0_i32_0 = arith.constant 0 : i32
    %c0_i32_1 = arith.constant 0 : i32
    return %c0_i32, %c0_i32_0 : i32, i32
  }
  func.func @transform_27(%arg0: i32) -> (i32, i32) {
    %c0_i32 = arith.constant 0 : i32
    %c0_i32_0 = arith.constant 0 : i32
    return %c0_i32, %arg0 : i32, i32
  }
}

</mosaic_0001>

<llo_original>
// kernel: tpu_custom_call.1
$region0: #{tpu_custom_call.1}
  #allocation0 [shape = 'u32[]', space=smem, size = 0x4, offset = 0x4, fixed_abs, tag = 'smem constant byte address 0x4 - core index']
  #allocation1 [shape = 'u32[144,128]{1,0:T(1,128)}', space=vmem, size = 0x12000, scoped, tag = 'internal scratch']
  %s0 = inlined_call_operand.hbm [shape: bf16[3,4096], index: 0, kind: input, shape index: {}]
  %s1 = inlined_call_operand.hbm [shape: bf16[8,27], index: 1, kind: input, shape index: {}]
  %s2 = inlined_call_operand.vmem [shape: f32[8,1], index: 2, kind: input, shape index: {}]
  %s3 = inlined_call_operand.hbm [shape: f32[9,1,2048], index: 3, kind: input, shape index: {}]
  %s4 = inlined_call_operand.hbm [shape: bf16[2048,512], index: 4, kind: input, shape index: {}]
  %s5 = inlined_call_operand.vmem [shape: bf16[24,8], index: 5, kind: input, shape index: {}]
  %s6 = inlined_call_operand.vmem [shape: f32[24,1], index: 6, kind: input, shape index: {}]
  %s7 = inlined_call_operand.vmem [shape: f32[9,24,1], index: 7, kind: input, shape index: {}]
  %s8 = inlined_call_operand.vmem [shape: f32[24,1], index: 8, kind: input, shape index: {}]
  %s9 = inlined_call_operand.hbm [shape: f32[9,1,512], index: 9, kind: input, shape index: {}]
  %s10 = inlined_call_operand.hbm [shape: bf16[8,24], index: 10, kind: input, shape index: {}]
  %s11 = inlined_call_operand.vmem [shape: f32[8,1], index: 11, kind: input, shape index: {}]
  %s12 = inlined_call_operand.vmem [shape: bf16[24,8], index: 12, kind: input, shape index: {}]
  %s13 = inlined_call_operand.vmem [shape: f32[24,1], index: 13, kind: input, shape index: {}]
  %s14 = inlined_call_operand.vmem [shape: f32[9,24,1], index: 14, kind: input, shape index: {}]
  %s15 = inlined_call_operand.vmem [shape: f32[24,1], index: 15, kind: input, shape index: {}]
  %s16 = inlined_call_operand.hbm [shape: f32[9,1,512], index: 16, kind: input, shape index: {}]
  %s17 = inlined_call_operand.hbm [shape: bf16[512,128], index: 17, kind: input, shape index: {}]
  %s18 = inlined_call_operand.hbm [shape: bf16[16,24], index: 18, kind: input, shape index: {}]
  %s19 = inlined_call_operand.vmem [shape: f32[16,1], index: 19, kind: input, shape index: {}]
  %s20 = inlined_call_operand.vmem [shape: bf16[48,16], index: 20, kind: input, shape index: {}]
  %s21 = inlined_call_operand.vmem [shape: f32[48,1], index: 21, kind: input, shape index: {}]
  %s22 = inlined_call_operand.vmem [shape: f32[9,48,1], index: 22, kind: input, shape index: {}]
  %s23 = inlined_call_operand.vmem [shape: f32[48,1], index: 23, kind: input, shape index: {}]
  %s24 = inlined_call_operand.hbm [shape: f32[9,1,128], index: 24, kind: input, shape index: {}]
  %s25 = inlined_call_operand.hbm [shape: bf16[16,48], index: 25, kind: input, shape index: {}]
  %s26 = inlined_call_operand.vmem [shape: f32[16,1], index: 26, kind: input, shape index: {}]
  %s27 = inlined_call_operand.hbm [shape: f32[16,256], index: 27, kind: output, shape index: {}]
  %s28 = sld [smem:[#allocation0]]
  $region185: #{tpu_custom_call.1} parent=0
    _
  %s30 = ssub.s32 1, %s28
  %s31 = scalar_select 0, %s30, %s28
  $region1: #{tpu_custom_call.1} parent=0
    #allocation2 [shape = 'u8[32768]{0}', space=vmem, size = 0x8000, scoped, tag = 'input window, operand 0']
    #allocation3 [shape = 's32[2]{0}', space=sflag, size = 0x8, scoped, tag = 'scoped memory for tpu_custom_call.1']
    #allocation4 [shape = 's32[2]{0}', space=sflag, size = 0x8, scoped, tag = 'scoped memory for tpu_custom_call.1']
    #allocation5 [shape = 'u8[2048]{0}', space=vmem, size = 0x800, scoped, tag = 'input window, operand 1, single buffered']
    #allocation6 [shape = 's32[1]{0}', space=sflag, size = 0x4, scoped, tag = 'scoped memory for tpu_custom_call.1']
    #allocation7 [shape = 'u8[73728]{0}', space=vmem, size = 0x12000, scoped, tag = 'input window, operand 3, single buffered']
    #allocation8 [shape = 'u8[2097152]{0}', space=vmem, size = 0x200000, scoped, tag = 'input window, operand 4, single buffered']
    #allocation9 [shape = 's32[1]{0}', space=sflag, size = 0x4, scoped, tag = 'scoped memory for tpu_custom_call.1']
    #allocation10 [shape = 'u8[18432]{0}', space=vmem, size = 0x4800, scoped, tag = 'input window, operand 9, single buffered']
    #allocation11 [shape = 'u8[2048]{0}', space=vmem, size = 0x800, scoped, tag = 'input window, operand 10, single buffered']
    #allocation12 [shape = 's32[1]{0}', space=sflag, size = 0x4, scoped, tag = 'scoped memory for tpu_custom_call.1']
    #allocation13 [shape = 'u8[18432]{0}', space=vmem, size = 0x4800, scoped, tag = 'input window, operand 16, single buffered']
    #allocation14 [shape = 'u8[131072]{0}', space=vmem, size = 0x20000, scoped, tag = 'input window, operand 17, single buffered']
    #allocation15 [shape = 's32[1]{0}', space=sflag, size = 0x4, scoped, tag = 'scoped memory for tpu_custom_call.1']
    #allocation16 [shape = 'u8[4096]{0}', space=vmem, size = 0x1000, scoped, tag = 'input window, operand 18, single buffered']
    #allocation17 [shape = 'u8[4608]{0}', space=vmem, size = 0x1400, scoped, tag = 'input window, operand 24, single buffered']
    #allocation18 [shape = 's32[1]{0}', space=sflag, size = 0x4, scoped, tag = 'scoped memory for tpu_custom_call.1']
    #allocation19 [shape = 'u8[4096]{0}', space=vmem, size = 0x1000, scoped, tag = 'input window, operand 25, single buffered']
    #allocation20 [shape = 'u8[16384]{0}', space=vmem, size = 0x4000, scoped, tag = 'output window, operand 0']
    %32 = vsyncpa [#allocation3], 0
    %s33 = scalar_lea.sflag [#allocation3], 1
    %34 = vsyncpa %s33, 0
    %35 = vsyncpa [#allocation6], 0
    %36 = vsyncpa [#allocation9], 0
    %37 = vsyncpa [#allocation12], 0
    %38 = vsyncpa [#allocation15], 0
    %39 = vsyncpa [#allocation18], 0
    %40 = vsyncpa [#allocation4], 0
    %s41 = scalar_lea.sflag [#allocation4], 1
    %42 = vsyncpa %s41, 0
    loop: start=0, step=1, limit=4
    $region2: #{tpu_custom_call.1} parent=1 // loop_pre_header
      _
    $region3: #{tpu_custom_call.1} parent=1 // loop_header
      %s44 = sphi 0, %s48
      %p45 = scmp.ge.s32.totalorder %s44, 4
      %s54 = sphi 0, %s56
      %s57 = sphi 0, %s54
      %s58 = sphi 0, %s57
      %s74 = sphi 0, %s58
      %s78 = sphi 0, %s78
      %s80 = sphi 0, %s78
      %s81 = sphi 0, %s80
      %s95 = sphi 0, %s81
      %s99 = sphi 0, %s99
      %s101 = sphi 0, %s99
      %s102 = sphi 0, %s101
      %s116 = sphi 0, %s102
      %s120 = sphi 0, %s120
      %s122 = sphi 0, %s120
      %s123 = sphi 0, %s122
      %s137 = sphi 0, %s123
      %s141 = sphi 0, %s141
      %s143 = sphi 0, %s141
      %s144 = sphi 0, %s143
      %s158 = sphi 0, %s144
      %s162 = sphi 0, %s162
      %s164 = sphi 0, %s162
      %s165 = sphi 0, %s164
      %s179 = sphi 0, %s165
      %s183 = sphi 0, %s183
      %s185 = sphi 0, %s183
      %s186 = sphi 0, %s185
      %s200 = sphi 0, %s186
      %s204 = sphi 0, %s204
      %s206 = sphi 0, %s204
      %s207 = sphi 0, %s206
      %s221 = sphi 0, %s207
      %s225 = sphi 0, %s225
      %s227 = sphi 0, %s225
      %s228 = sphi 0, %s227
      %s242 = sphi 0, %s228
      %s246 = sphi 0, %s246
      %s248 = sphi 0, %s246
      %s249 = sphi 0, %s248
      %s263 = sphi 0, %s249
      %s267 = sphi 0, %s267
      %s269 = sphi 0, %s267
      %s270 = sphi 0, %s269
      %s284 = sphi 0, %s270
      %s288 = sphi 0, %s288
      %s290 = sphi 0, %s288
      %s291 = sphi 0, %s290
      %s305 = sphi 0, %s291
      %s309 = sphi 0, %s309
      %s311 = sphi 0, %s309
      %s312 = sphi 0, %s311
      %s326 = sphi 0, %s312
      %s330 = sphi 0, %s330
      %s332 = sphi 0, %s330
      %s333 = sphi 0, %s332
      %s347 = sphi 0, %s333
      %s351 = sphi 0, %s351
      %s353 = sphi 0, %s351
      %s354 = sphi 0, %s353
      %s368 = sphi 0, %s354
      %s372 = sphi 0, %s372
      %s374 = sphi 0, %s372
      %s375 = sphi 0, %s374
      %s389 = sphi 0, %s375
      %s393 = sphi 0, %s393
      %s395 = sphi 0, %s393
      %s396 = sphi 0, %s395
      %s410 = sphi 0, %s396
      %s414 = sphi 0, %s414
      %s416 = sphi 0, %s414
      %s417 = sphi 0, %s416
      %s431 = sphi 0, %s417
      %s435 = sphi 0, %s435
      %s437 = sphi 0, %s435
      %s438 = sphi 0, %s437
      %s452 = sphi 0, %s438
      %s456 = sphi 0, %s456
      %s458 = sphi 0, %s456
      %s459 = sphi 0, %s458
      %s473 = sphi 0, %s459
      %s477 = sphi 0, %s477
      %s479 = sphi 0, %s477
      %s480 = sphi 0, %s479
      %s494 = sphi 0, %s480
      %s498 = sphi 0, %s498
      %s500 = sphi 0, %s498
      %s501 = sphi 0, %s500
      %s515 = sphi 0, %s501
      %s519 = sphi 0, %s519
      %s521 = sphi 0, %s519
      %s522 = sphi 0, %s521
      %s536 = sphi 0, %s522
      %s540 = sphi 0, %s540
      %s542 = sphi 0, %s540
      %s543 = sphi 0, %s542
      %s557 = sphi 0, %s543
      %s561 = sphi 0, %s561
      %s563 = sphi 0, %s561
      %s564 = sphi 0, %s563
      %s578 = sphi 0, %s564
      %s582 = sphi 0, %s582
      %s584 = sphi 0, %s582
      %s585 = sphi 0, %s584
      %s599 = sphi 0, %s585
      %s603 = sphi 0, %s603
      %s605 = sphi 0, %s603
      %s606 = sphi 0, %s605
      %s620 = sphi 0, %s606
      %s626 = sphi 0, %s628
      %s629 = sphi 0, %s626
      %s630 = sphi 0, %s629
      %s646 = sphi 0, %s630
    $region4: #{tpu_custom_call.1} parent=1 // loop_header_branch
      %47 = sbr.rel (%p45) target = $region8
    $region5: #{tpu_custom_call.1} parent=1 // loop_body
      %s49 = ssub.s32 %s44, 1
      %s50 = ssub.s32 %s44, 2
      %s51 = sadd.s32 %s44, 1
      %s52 = ssub.s32 %s44, %s51
      %p53 = scmp.eq.s32.totalorder %s52, 0
      %s55 = sadd.s32 %s54, 1
      %s56 = scalar_select %p53, %s54, %s55
      %p59 = pneg %p53
      %p60 = scmp.eq.s32.totalorder %s44, 1
      %p61 = por %p59, %p60
      %p62 = scmp.ne.s32.totalorder %s54, %s57
      %p63 = scmp.eq.s32.totalorder %s44, 0
      %p64 = por %p62, %p63
      %p65 = scmp.ne.s32.totalorder %s54, %s57
      %p66 = scmp.eq.s32.totalorder %s49, 1
      %p67 = por %p65, %p66
      %p68 = scmp.ne.s32.totalorder %s57, %s58
      %p69 = scmp.eq.s32.totalorder %s49, 0
      %p70 = por %p68, %p69
      %p71 = scmp.ne.s32.totalorder %s57, %s58
      %p72 = scmp.eq.s32.totalorder %s50, 1
      %p73 = por %p71, %p72
      %p75 = scmp.ne.s32.totalorder %s58, %s74
      %p76 = scmp.eq.s32.totalorder %s50, 0
      %p77 = por %p75, %p76
      %s79 = sadd.s32 %s78, 1
      %p82 = scmp.eq.s32.totalorder %s44, 1
      %p83 = scmp.ne.s32.totalorder %s78, %s80
      %p84 = scmp.eq.s32.totalorder %s44, 0
      %p85 = por %p83, %p84
      %p86 = scmp.ne.s32.totalorder %s78, %s80
      %p87 = scmp.eq.s32.totalorder %s49, 1
      %p88 = por %p86, %p87
      %p89 = scmp.ne.s32.totalorder %s80, %s81
      %p90 = scmp.eq.s32.totalorder %s49, 0
      %p91 = por %p89, %p90
      %p92 = scmp.ne.s32.totalorder %s80, %s81
      %p93 = scmp.eq.s32.totalorder %s50, 1
      %p94 = por %p92, %p93
      %p96 = scmp.ne.s32.totalorder %s81, %s95
      %p97 = scmp.eq.s32.totalorder %s50, 0
      %p98 = por %p96, %p97
      %s100 = sadd.s32 %s99, 1
      %p103 = scmp.eq.s32.totalorder %s44, 1
      %p104 = scmp.ne.s32.totalorder %s99, %s101
      %p105 = scmp.eq.s32.totalorder %s44, 0
      %p106 = por %p104, %p105
      %p107 = scmp.ne.s32.totalorder %s99, %s101
      %p108 = scmp.eq.s32.totalorder %s49, 1
      %p109 = por %p107, %p108
      %p110 = scmp.ne.s32.totalorder %s101, %s102
      %p111 = scmp.eq.s32.totalorder %s49, 0
      %p112 = por %p110, %p111
      %p113 = scmp.ne.s32.totalorder %s101, %s102
      %p114 = scmp.eq.s32.totalorder %s50, 1
      %p115 = por %p113, %p114
      %p117 = scmp.ne.s32.totalorder %s102, %s116
      %p118 = scmp.eq.s32.totalorder %s50, 0
      %p119 = por %p117, %p118
      %s121 = sadd.s32 %s120, 1
      %p124 = scmp.eq.s32.totalorder %s44, 1
      %p125 = scmp.ne.s32.totalorder %s120, %s122
      %p126 = scmp.eq.s32.totalorder %s44, 0
      %p127 = por %p125, %p126
      %p128 = scmp.ne.s32.totalorder %s120, %s122
      %p129 = scmp.eq.s32.totalorder %s49, 1
      %p130 = por %p128, %p129
      %p131 = scmp.ne.s32.totalorder %s122, %s123
      %p132 = scmp.eq.s32.totalorder %s49, 0
      %p133 = por %p131, %p132
      %p134 = scmp.ne.s32.totalorder %s122, %s123
      %p135 = scmp.eq.s32.totalorder %s50, 1
      %p136 = por %p134, %p135
      %p138 = scmp.ne.s32.totalorder %s123, %s137
      %p139 = scmp.eq.s32.totalorder %s50, 0
      %p140 = por %p138, %p139
      %s142 = sadd.s32 %s141, 1
      %p145 = scmp.eq.s32.totalorder %s44, 1
      %p146 = scmp.ne.s32.totalorder %s141, %s143
      %p147 = scmp.eq.s32.totalorder %s44, 0
      %p148 = por %p146, %p147
      %p149 = scmp.ne.s32.totalorder %s141, %s143
      %p150 = scmp.eq.s32.totalorder %s49, 1
      %p151 = por %p149, %p150
      %p152 = scmp.ne.s32.totalorder %s143, %s144
      %p153 = scmp.eq.s32.totalorder %s49, 0
      %p154 = por %p152, %p153
      %p155 = scmp.ne.s32.totalorder %s143, %s144
      %p156 = scmp.eq.s32.totalorder %s50, 1
      %p157 = por %p155, %p156
      %p159 = scmp.ne.s32.totalorder %s144, %s158
      %p160 = scmp.eq.s32.totalorder %s50, 0
      %p161 = por %p159, %p160
      %s163 = sadd.s32 %s162, 1
      %p166 = scmp.eq.s32.totalorder %s44, 1
      %p167 = scmp.ne.s32.totalorder %s162, %s164
      %p168 = scmp.eq.s32.totalorder %s44, 0
      %p169 = por %p167, %p168
      %p170 = scmp.ne.s32.totalorder %s162, %s164
      %p171 = scmp.eq.s32.totalorder %s49, 1
      %p172 = por %p170, %p171
      %p173 = scmp.ne.s32.totalorder %s164, %s165
      %p174 = scmp.eq.s32.totalorder %s49, 0
      %p175 = por %p173, %p174
      %p176 = scmp.ne.s32.totalorder %s164, %s165
      %p177 = scmp.eq.s32.totalorder %s50, 1
      %p178 = por %p176, %p177
      %p180 = scmp.ne.s32.totalorder %s165, %s179
      %p181 = scmp.eq.s32.totalorder %s50, 0
      %p182 = por %p180, %p181
      %s184 = sadd.s32 %s183, 1
      %p187 = scmp.eq.s32.totalorder %s44, 1
      %p188 = scmp.ne.s32.totalorder %s183, %s185
      %p189 = scmp.eq.s32.totalorder %s44, 0
      %p190 = por %p188, %p189
      %p191 = scmp.ne.s32.totalorder %s183, %s185
      %p192 = scmp.eq.s32.totalorder %s49, 1
      %p193 = por %p191, %p192
      %p194 = scmp.ne.s32.totalorder %s185, %s186
      %p195 = scmp.eq.s32.totalorder %s49, 0
      %p196 = por %p194, %p195
      %p197 = scmp.ne.s32.totalorder %s185, %s186
      %p198 = scmp.eq.s32.totalorder %s50, 1
      %p199 = por %p197, %p198
      %p201 = scmp.ne.s32.totalorder %s186, %s200
      %p202 = scmp.eq.s32.totalorder %s50, 0
      %p203 = por %p201, %p202
      %s205 = sadd.s32 %s204, 1
      %p208 = scmp.eq.s32.totalorder %s44, 1
      %p209 = scmp.ne.s32.totalorder %s204, %s206
      %p210 = scmp.eq.s32.totalorder %s44, 0
      %p211 = por %p209, %p210
      %p212 = scmp.ne.s32.totalorder %s204, %s206
      %p213 = scmp.eq.s32.totalorder %s49, 1
      %p214 = por %p212, %p213
      %p215 = scmp.ne.s32.totalorder %s206, %s207
      %p216 = scmp.eq.s32.totalorder %s49, 0
      %p217 = por %p215, %p216
      %p218 = scmp.ne.s32.totalorder %s206, %s207
      %p219 = scmp.eq.s32.totalorder %s50, 1
      %p220 = por %p218, %p219
      %p222 = scmp.ne.s32.totalorder %s207, %s221
      %p223 = scmp.eq.s32.totalorder %s50, 0
      %p224 = por %p222, %p223
      %s226 = sadd.s32 %s225, 1
      %p229 = scmp.eq.s32.totalorder %s44, 1
      %p230 = scmp.ne.s32.totalorder %s225, %s227
      %p231 = scmp.eq.s32.totalorder %s44, 0
      %p232 = por %p230, %p231
      %p233 = scmp.ne.s32.totalorder %s225, %s227
      %p234 = scmp.eq.s32.totalorder %s49, 1
      %p235 = por %p233, %p234
      %p236 = scmp.ne.s32.totalorder %s227, %s228
      %p237 = scmp.eq.s32.totalorder %s49, 0
      %p238 = por %p236, %p237
      %p239 = scmp.ne.s32.totalorder %s227, %s228
      %p240 = scmp.eq.s32.totalorder %s50, 1
      %p241 = por %p239, %p240
      %p243 = scmp.ne.s32.totalorder %s228, %s242
      %p244 = scmp.eq.s32.totalorder %s50, 0
      %p245 = por %p243, %p244
      %s247 = sadd.s32 %s246, 1
      %p250 = scmp.eq.s32.totalorder %s44, 1
      %p251 = scmp.ne.s32.totalorder %s246, %s248
      %p252 = scmp.eq.s32.totalorder %s44, 0
      %p253 = por %p251, %p252
      %p254 = scmp.ne.s32.totalorder %s246, %s248
      %p255 = scmp.eq.s32.totalorder %s49, 1
      %p256 = por %p254, %p255
      %p257 = scmp.ne.s32.totalorder %s248, %s249
      %p258 = scmp.eq.s32.totalorder %s49, 0
      %p259 = por %p257, %p258
      %p260 = scmp.ne.s32.totalorder %s248, %s249
      %p261 = scmp.eq.s32.totalorder %s50, 1
      %p262 = por %p260, %p261
      %p264 = scmp.ne.s32.totalorder %s249, %s263
      %p265 = scmp.eq.s32.totalorder %s50, 0
      %p266 = por %p264, %p265
      %s268 = sadd.s32 %s267, 1
      %p271 = scmp.eq.s32.totalorder %s44, 1
      %p272 = scmp.ne.s32.totalorder %s267, %s269
      %p273 = scmp.eq.s32.totalorder %s44, 0
      %p274 = por %p272, %p273
      %p275 = scmp.ne.s32.totalorder %s267, %s269
      %p276 = scmp.eq.s32.totalorder %s49, 1
      %p277 = por %p275, %p276
      %p278 = scmp.ne.s32.totalorder %s269, %s270
      %p279 = scmp.eq.s32.totalorder %s49, 0
      %p280 = por %p278, %p279
      %p281 = scmp.ne.s32.totalorder %s269, %s270
      %p282 = scmp.eq.s32.totalorder %s50, 1
      %p283 = por %p281, %p282
      %p285 = scmp.ne.s32.totalorder %s270, %s284
      %p286 = scmp.eq.s32.totalorder %s50, 0
      %p287 = por %p285, %p286
      %s289 = sadd.s32 %s288, 1
      %p292 = scmp.eq.s32.totalorder %s44, 1
      %p293 = scmp.ne.s32.totalorder %s288, %s290
      %p294 = scmp.eq.s32.totalorder %s44, 0
      %p295 = por %p293, %p294
      %p296 = scmp.ne.s32.totalorder %s288, %s290
      %p297 = scmp.eq.s32.totalorder %s49, 1
      %p298 = por %p296, %p297
      %p299 = scmp.ne.s32.totalorder %s290, %s291
      %p300 = scmp.eq.s32.totalorder %s49, 0
      %p301 = por %p299, %p300
      %p302 = scmp.ne.s32.totalorder %s290, %s291
      %p303 = scmp.eq.s32.totalorder %s50, 1
      %p304 = por %p302, %p303
      %p306 = scmp.ne.s32.totalorder %s291, %s305
      %p307 = scmp.eq.s32.totalorder %s50, 0
      %p308 = por %p306, %p307
      %s310 = sadd.s32 %s309, 1
      %p313 = scmp.eq.s32.totalorder %s44, 1
      %p314 = scmp.ne.s32.totalorder %s309, %s311
      %p315 = scmp.eq.s32.totalorder %s44, 0
      %p316 = por %p314, %p315
      %p317 = scmp.ne.s32.totalorder %s309, %s311
      %p318 = scmp.eq.s32.totalorder %s49, 1
      %p319 = por %p317, %p318
      %p320 = scmp.ne.s32.totalorder %s311, %s312
      %p321 = scmp.eq.s32.totalorder %s49, 0
      %p322 = por %p320, %p321
      %p323 = scmp.ne.s32.totalorder %s311, %s312
      %p324 = scmp.eq.s32.totalorder %s50, 1
      %p325 = por %p323, %p324
      %p327 = scmp.ne.s32.totalorder %s312, %s326
      %p328 = scmp.eq.s32.totalorder %s50, 0
      %p329 = por %p327, %p328
      %s331 = sadd.s32 %s330, 1
      %p334 = scmp.eq.s32.totalorder %s44, 1
      %p335 = scmp.ne.s32.totalorder %s330, %s332
      %p336 = scmp.eq.s32.totalorder %s44, 0
      %p337 = por %p335, %p336
      %p338 = scmp.ne.s32.totalorder %s330, %s332
      %p339 = scmp.eq.s32.totalorder %s49, 1
      %p340 = por %p338, %p339
      %p341 = scmp.ne.s32.totalorder %s332, %s333
      %p342 = scmp.eq.s32.totalorder %s49, 0
      %p343 = por %p341, %p342
      %p344 = scmp.ne.s32.totalorder %s332, %s333
      %p345 = scmp.eq.s32.totalorder %s50, 1
      %p346 = por %p344, %p345
      %p348 = scmp.ne.s32.totalorder %s333, %s347
      %p349 = scmp.eq.s32.totalorder %s50, 0
      %p350 = por %p348, %p349
      %s352 = sadd.s32 %s351, 1
      %p355 = scmp.eq.s32.totalorder %s44, 1
      %p356 = scmp.ne.s32.totalorder %s351, %s353
      %p357 = scmp.eq.s32.totalorder %s44, 0
      %p358 = por %p356, %p357
      %p359 = scmp.ne.s32.totalorder %s351, %s353
      %p360 = scmp.eq.s32.totalorder %s49, 1
      %p361 = por %p359, %p360
      %p362 = scmp.ne.s32.totalorder %s353, %s354
      %p363 = scmp.eq.s32.totalorder %s49, 0
      %p364 = por %p362, %p363
      %p365 = scmp.ne.s32.totalorder %s353, %s354
      %p366 = scmp.eq.s32.totalorder %s50, 1
      %p367 = por %p365, %p366
      %p369 = scmp.ne.s32.totalorder %s354, %s368
      %p370 = scmp.eq.s32.totalorder %s50, 0
      %p371 = por %p369, %p370
      %s373 = sadd.s32 %s372, 1
      %p376 = scmp.eq.s32.totalorder %s44, 1
      %p377 = scmp.ne.s32.totalorder %s372, %s374
      %p378 = scmp.eq.s32.totalorder %s44, 0
      %p379 = por %p377, %p378
      %p380 = scmp.ne.s32.totalorder %s372, %s374
      %p381 = scmp.eq.s32.totalorder %s49, 1
      %p382 = por %p380, %p381
      %p383 = scmp.ne.s32.totalorder %s374, %s375
      %p384 = scmp.eq.s32.totalorder %s49, 0
      %p385 = por %p383, %p384
      %p386 = scmp.ne.s32.totalorder %s374, %s375
      %p387 = scmp.eq.s32.totalorder %s50, 1
      %p388 = por %p386, %p387
      %p390 = scmp.ne.s32.totalorder %s375, %s389
      %p391 = scmp.eq.s32.totalorder %s50, 0
      %p392 = por %p390, %p391
      %s394 = sadd.s32 %s393, 1
      %p397 = scmp.eq.s32.totalorder %s44, 1
      %p398 = scmp.ne.s32.totalorder %s393, %s395
      %p399 = scmp.eq.s32.totalorder %s44, 0
      %p400 = por %p398, %p399
      %p401 = scmp.ne.s32.totalorder %s393, %s395
      %p402 = scmp.eq.s32.totalorder %s49, 1
      %p403 = por %p401, %p402
      %p404 = scmp.ne.s32.totalorder %s395, %s396
      %p405 = scmp.eq.s32.totalorder %s49, 0
      %p406 = por %p404, %p405
      %p407 = scmp.ne.s32.totalorder %s395, %s396
      %p408 = scmp.eq.s32.totalorder %s50, 1
      %p409 = por %p407, %p408
      %p411 = scmp.ne.s32.totalorder %s396, %s410
      %p412 = scmp.eq.s32.totalorder %s50, 0
      %p413 = por %p411, %p412
      %s415 = sadd.s32 %s414, 1
      %p418 = scmp.eq.s32.totalorder %s44, 1
      %p419 = scmp.ne.s32.totalorder %s414, %s416
      %p420 = scmp.eq.s32.totalorder %s44, 0
      %p421 = por %p419, %p420
      %p422 = scmp.ne.s32.totalorder %s414, %s416
      %p423 = scmp.eq.s32.totalorder %s49, 1
      %p424 = por %p422, %p423
      %p425 = scmp.ne.s32.totalorder %s416, %s417
      %p426 = scmp.eq.s32.totalorder %s49, 0
      %p427 = por %p425, %p426
      %p428 = scmp.ne.s32.totalorder %s416, %s417
      %p429 = scmp.eq.s32.totalorder %s50, 1
      %p430 = por %p428, %p429
      %p432 = scmp.ne.s32.totalorder %s417, %s431
      %p433 = scmp.eq.s32.totalorder %s50, 0
      %p434 = por %p432, %p433
      %s436 = sadd.s32 %s435, 1
      %p439 = scmp.eq.s32.totalorder %s44, 1
      %p440 = scmp.ne.s32.totalorder %s435, %s437
      %p441 = scmp.eq.s32.totalorder %s44, 0
      %p442 = por %p440, %p441
      %p443 = scmp.ne.s32.totalorder %s435, %s437
      %p444 = scmp.eq.s32.totalorder %s49, 1
      %p445 = por %p443, %p444
      %p446 = scmp.ne.s32.totalorder %s437, %s438
      %p447 = scmp.eq.s32.totalorder %s49, 0
      %p448 = por %p446, %p447
      %p449 = scmp.ne.s32.totalorder %s437, %s438
      %p450 = scmp.eq.s32.totalorder %s50, 1
      %p451 = por %p449, %p450
      %p453 = scmp.ne.s32.totalorder %s438, %s452
      %p454 = scmp.eq.s32.totalorder %s50, 0
      %p455 = por %p453, %p454
      %s457 = sadd.s32 %s456, 1
      %p460 = scmp.eq.s32.totalorder %s44, 1
      %p461 = scmp.ne.s32.totalorder %s456, %s458
      %p462 = scmp.eq.s32.totalorder %s44, 0
      %p463 = por %p461, %p462
      %p464 = scmp.ne.s32.totalorder %s456, %s458
      %p465 = scmp.eq.s32.totalorder %s49, 1
      %p466 = por %p464, %p465
      %p467 = scmp.ne.s32.totalorder %s458, %s459
      %p468 = scmp.eq.s32.totalorder %s49, 0
      %p469 = por %p467, %p468
      %p470 = scmp.ne.s32.totalorder %s458, %s459
      %p471 = scmp.eq.s32.totalorder %s50, 1
      %p472 = por %p470, %p471
      %p474 = scmp.ne.s32.totalorder %s459, %s473
      %p475 = scmp.eq.s32.totalorder %s50, 0
      %p476 = por %p474, %p475
      %s478 = sadd.s32 %s477, 1
      %p481 = scmp.eq.s32.totalorder %s44, 1
      %p482 = scmp.ne.s32.totalorder %s477, %s479
      %p483 = scmp.eq.s32.totalorder %s44, 0
      %p484 = por %p482, %p483
      %p485 = scmp.ne.s32.totalorder %s477, %s479
      %p486 = scmp.eq.s32.totalorder %s49, 1
      %p487 = por %p485, %p486
      %p488 = scmp.ne.s32.totalorder %s479, %s480
      %p489 = scmp.eq.s32.totalorder %s49, 0
      %p490 = por %p488, %p489
      %p491 = scmp.ne.s32.totalorder %s479, %s480
      %p492 = scmp.eq.s32.totalorder %s50, 1
      %p493 = por %p491, %p492
      %p495 = scmp.ne.s32.totalorder %s480, %s494
      %p496 = scmp.eq.s32.totalorder %s50, 0
      %p497 = por %p495, %p496
      %s499 = sadd.s32 %s498, 1
      %p502 = scmp.eq.s32.totalorder %s44, 1
      %p503 = scmp.ne.s32.totalorder %s498, %s500
      %p504 = scmp.eq.s32.totalorder %s44, 0
      %p505 = por %p503, %p504
      %p506 = scmp.ne.s32.totalorder %s498, %s500
      %p507 = scmp.eq.s32.totalorder %s49, 1
      %p508 = por %p506, %p507
      %p509 = scmp.ne.s32.totalorder %s500, %s501
      %p510 = scmp.eq.s32.totalorder %s49, 0
      %p511 = por %p509, %p510
      %p512 = scmp.ne.s32.totalorder %s500, %s501
      %p513 = scmp.eq.s32.totalorder %s50, 1
      %p514 = por %p512, %p513
      %p516 = scmp.ne.s32.totalorder %s501, %s515
      %p517 = scmp.eq.s32.totalorder %s50, 0
      %p518 = por %p516, %p517
      %s520 = sadd.s32 %s519, 1
      %p523 = scmp.eq.s32.totalorder %s44, 1
      %p524 = scmp.ne.s32.totalorder %s519, %s521
      %p525 = scmp.eq.s32.totalorder %s44, 0
      %p526 = por %p524, %p525
      %p527 = scmp.ne.s32.totalorder %s519, %s521
      %p528 = scmp.eq.s32.totalorder %s49, 1
      %p529 = por %p527, %p528
      %p530 = scmp.ne.s32.totalorder %s521, %s522
      %p531 = scmp.eq.s32.totalorder %s49, 0
      %p532 = por %p530, %p531
      %p533 = scmp.ne.s32.totalorder %s521, %s522
      %p534 = scmp.eq.s32.totalorder %s50, 1
      %p535 = por %p533, %p534
      %p537 = scmp.ne.s32.totalorder %s522, %s536
      %p538 = scmp.eq.s32.totalorder %s50, 0
      %p539 = por %p537, %p538
      %s541 = sadd.s32 %s540, 1
      %p544 = scmp.eq.s32.totalorder %s44, 1
      %p545 = scmp.ne.s32.totalorder %s540, %s542
      %p546 = scmp.eq.s32.totalorder %s44, 0
      %p547 = por %p545, %p546
      %p548 = scmp.ne.s32.totalorder %s540, %s542
      %p549 = scmp.eq.s32.totalorder %s49, 1
      %p550 = por %p548, %p549
      %p551 = scmp.ne.s32.totalorder %s542, %s543
      %p552 = scmp.eq.s32.totalorder %s49, 0
      %p553 = por %p551, %p552
      %p554 = scmp.ne.s32.totalorder %s542, %s543
      %p555 = scmp.eq.s32.totalorder %s50, 1
      %p556 = por %p554, %p555
      %p558 = scmp.ne.s32.totalorder %s543, %s557
      %p559 = scmp.eq.s32.totalorder %s50, 0
      %p560 = por %p558, %p559
      %s562 = sadd.s32 %s561, 1
      %p565 = scmp.eq.s32.totalorder %s44, 1
      %p566 = scmp.ne.s32.totalorder %s561, %s563
      %p567 = scmp.eq.s32.totalorder %s44, 0
      %p568 = por %p566, %p567
      %p569 = scmp.ne.s32.totalorder %s561, %s563
      %p570 = scmp.eq.s32.totalorder %s49, 1
      %p571 = por %p569, %p570
      %p572 = scmp.ne.s32.totalorder %s563, %s564
      %p573 = scmp.eq.s32.totalorder %s49, 0
      %p574 = por %p572, %p573
      %p575 = scmp.ne.s32.totalorder %s563, %s564
      %p576 = scmp.eq.s32.totalorder %s50, 1
      %p577 = por %p575, %p576
      %p579 = scmp.ne.s32.totalorder %s564, %s578
      %p580 = scmp.eq.s32.totalorder %s50, 0
      %p581 = por %p579, %p580
      %s583 = sadd.s32 %s582, 1
      %p586 = scmp.eq.s32.totalorder %s44, 1
      %p587 = scmp.ne.s32.totalorder %s582, %s584
      %p588 = scmp.eq.s32.totalorder %s44, 0
      %p589 = por %p587, %p588
      %p590 = scmp.ne.s32.totalorder %s582, %s584
      %p591 = scmp.eq.s32.totalorder %s49, 1
      %p592 = por %p590, %p591
      %p593 = scmp.ne.s32.totalorder %s584, %s585
      %p594 = scmp.eq.s32.totalorder %s49, 0
      %p595 = por %p593, %p594
      %p596 = scmp.ne.s32.totalorder %s584, %s585
      %p597 = scmp.eq.s32.totalorder %s50, 1
      %p598 = por %p596, %p597
      %p600 = scmp.ne.s32.totalorder %s585, %s599
      %p601 = scmp.eq.s32.totalorder %s50, 0
      %p602 = por %p600, %p601
      %s604 = sadd.s32 %s603, 1
      %p607 = scmp.eq.s32.totalorder %s44, 1
      %p608 = scmp.ne.s32.totalorder %s603, %s605
      %p609 = scmp.eq.s32.totalorder %s44, 0
      %p610 = por %p608, %p609
      %p611 = scmp.ne.s32.totalorder %s603, %s605
      %p612 = scmp.eq.s32.totalorder %s49, 1
      %p613 = por %p611, %p612
      %p614 = scmp.ne.s32.totalorder %s605, %s606
      %p615 = scmp.eq.s32.totalorder %s49, 0
      %p616 = por %p614, %p615
      %p617 = scmp.ne.s32.totalorder %s605, %s606
      %p618 = scmp.eq.s32.totalorder %s50, 1
      %p619 = por %p617, %p618
      %p621 = scmp.ne.s32.totalorder %s606, %s620
      %p622 = scmp.eq.s32.totalorder %s50, 0
      %p623 = por %p621, %p622
      %s624 = ssub.s32 %s44, %s51
      %p625 = scmp.eq.s32.totalorder %s624, 0
      %s627 = sadd.s32 %s626, 1
      %s628 = scalar_select %p625, %s626, %s627
      %p631 = pneg %p625
      %p632 = scmp.eq.s32.totalorder %s44, 1
      %p633 = por %p631, %p632
      %p634 = scmp.ne.s32.totalorder %s626, %s629
      %p635 = scmp.eq.s32.totalorder %s44, 0
      %p636 = por %p634, %p635
      %p637 = scmp.ne.s32.totalorder %s626, %s629
      %p638 = scmp.eq.s32.totalorder %s49, 1
      %p639 = por %p637, %p638
      %p640 = scmp.ne.s32.totalorder %s629, %s630
      %p641 = scmp.eq.s32.totalorder %s49, 0
      %p642 = por %p640, %p641
      %p643 = scmp.ne.s32.totalorder %s629, %s630
      %p644 = scmp.eq.s32.totalorder %s50, 1
      %p645 = por %p643, %p644
      %p647 = scmp.ne.s32.totalorder %s630, %s646
      %p648 = scmp.eq.s32.totalorder %s50, 0
      %p649 = por %p647, %p648
      %p650 = scmp.le.s32.totalorder 1, %s44
      %p651 = scmp.lt.s32.totalorder %s44, 3
      %p652 = pnand %p650, %p651
      %p653 = pneg %p652
      // Predicated region
      $region9: #{tpu_custom_call.1} parent=5 // pred_check
        _
      $region10: #{tpu_custom_call.1} parent=5 // pred_check_branch
        %655 = sbr.rel (%p652) target = $region12
      $region11: #{tpu_custom_call.1} parent=5 // pred_region
        %s656 = ssub.s32 %s44, 1
        // Predicated region
        $region13: #{tpu_custom_call.1} parent=11 // pred_check
          %p657 = pneg %p91
        $region14: #{tpu_custom_call.1} parent=11 // pred_check_branch
          %659 = sbr.rel (%p657) target = $region16
        $region15: #{tpu_custom_call.1} parent=11 // pred_region
          %s661 = ssub.s32 64, 64
          %662 = vsyncadd [#allocation6], %s661
          %s664 = sshll.u32 [#allocation5], 4
          %s665 = int_to_ptr.vmem [resolvable:$true] %s664
          %667 = dma.hbm_to_vmem [thread:$0]  %s1, 64, %s665, [#allocation6]
        $region16: #{tpu_custom_call.1} parent=11 // pred_fallthru
          _
        // Predicated region
        $region17: #{tpu_custom_call.1} parent=11 // pred_check
          %p668 = pneg %p112
        $region18: #{tpu_custom_call.1} parent=11 // pred_check_branch
          %670 = sbr.rel (%p668) target = $region20
        $region19: #{tpu_custom_call.1} parent=11 // pred_region
          _
        $region20: #{tpu_custom_call.1} parent=11 // pred_fallthru
          _
        // Predicated region
        $region21: #{tpu_custom_call.1} parent=11 // pred_check
          %p671 = pneg %p133
        $region22: #{tpu_custom_call.1} parent=11 // pred_check_branch
          %673 = sbr.rel (%p671) target = $region24
        $region23: #{tpu_custom_call.1} parent=11 // pred_region
          %s675 = ssub.s32 2304, 2304
          %676 = vsyncadd [#allocation6], %s675
          %s677 = sshll.u32 [#allocation7], 4
          %s678 = int_to_ptr.vmem [resolvable:$true] %s677
          %683 = dma.hbm_to_vmem [thread:$0]  %s3, 2304, %s678, [#allocation6], 256, 256, 16
        $region24: #{tpu_custom_call.1} parent=11 // pred_fallthru
          _
        // Predicated region
        $region25: #{tpu_custom_call.1} parent=11 // pred_check
          %p684 = pneg %p154
        $region26: #{tpu_custom_call.1} parent=11 // pred_check_branch
          %686 = sbr.rel (%p684) target = $region28
        $region27: #{tpu_custom_call.1} parent=11 // pred_region
          %s688 = ssub.s32 65536, 65536
          %689 = vsyncadd [#allocation9], %s688
          %s690 = sshll.u32 [#allocation8], 4
          %s691 = int_to_ptr.vmem [resolvable:$true] %s690
          %696 = dma.hbm_to_vmem [thread:$0]  %s4, 65536, %s691, [#allocation9], 256, 256, 16
        $region28: #{tpu_custom_call.1} parent=11 // pred_fallthru
          _
        // Predicated region
        $region29: #{tpu_custom_call.1} parent=11 // pred_check
          %p697 = pneg %p175
        $region30: #{tpu_custom_call.1} parent=11 // pred_check_branch
          %699 = sbr.rel (%p697) target = $region32
        $region31: #{tpu_custom_call.1} parent=11 // pred_region
          _
        $region32: #{tpu_custom_call.1} parent=11 // pred_fallthru
          _
        // Predicated region
        $region33: #{tpu_custom_call.1} parent=11 // pred_check
          %p700 = pneg %p196
        $region34: #{tpu_custom_call.1} parent=11 // pred_check_branch
          %702 = sbr.rel (%p700) target = $region36
        $region35: #{tpu_custom_call.1} parent=11 // pred_region
          _
        $region36: #{tpu_custom_call.1} parent=11 // pred_fallthru
          _
        // Predicated region
        $region37: #{tpu_custom_call.1} parent=11 // pred_check
          %p703 = pneg %p217
        $region38: #{tpu_custom_call.1} parent=11 // pred_check_branch
          %705 = sbr.rel (%p703) target = $region40
        $region39: #{tpu_custom_call.1} parent=11 // pred_region
          _
        $region40: #{tpu_custom_call.1} parent=11 // pred_fallthru
          _
        // Predicated region
        $region41: #{tpu_custom_call.1} parent=11 // pred_check
          %p706 = pneg %p238
        $region42: #{tpu_custom_call.1} parent=11 // pred_check_branch
          %708 = sbr.rel (%p706) target = $region44
        $region43: #{tpu_custom_call.1} parent=11 // pred_region
          _
        $region44: #{tpu_custom_call.1} parent=11 // pred_fallthru
          _
        // Predicated region
        $region45: #{tpu_custom_call.1} parent=11 // pred_check
          %p709 = pneg %p259
        $region46: #{tpu_custom_call.1} parent=11 // pred_check_branch
          %711 = sbr.rel (%p709) target = $region48
        $region47: #{tpu_custom_call.1} parent=11 // pred_region
          %s713 = ssub.s32 576, 576
          %714 = vsyncadd [#allocation9], %s713
          %s715 = sshll.u32 [#allocation10], 4
          %s716 = int_to_ptr.vmem [resolvable:$true] %s715
          %721 = dma.hbm_to_vmem [thread:$0]  %s9, 576, %s716, [#allocation9], 64, 64, 4
        $region48: #{tpu_custom_call.1} parent=11 // pred_fallthru
          _
        // Predicated region
        $region49: #{tpu_custom_call.1} parent=11 // pred_check
          %p722 = pneg %p280
        $region50: #{tpu_custom_call.1} parent=11 // pred_check_branch
          %724 = sbr.rel (%p722) target = $region52
        $region51: #{tpu_custom_call.1} parent=11 // pred_region
          %s726 = ssub.s32 64, 64
          %727 = vsyncadd [#allocation12], %s726
          %s729 = sshll.u32 [#allocation11], 4
          %s730 = int_to_ptr.vmem [resolvable:$true] %s729
          %732 = dma.hbm_to_vmem [thread:$0]  %s10, 64, %s730, [#allocation12]
        $region52: #{tpu_custom_call.1} parent=11 // pred_fallthru
          _
        // Predicated region
        $region53: #{tpu_custom_call.1} parent=11 // pred_check
          %p733 = pneg %p301
        $region54: #{tpu_custom_call.1} parent=11 // pred_check_branch
          %735 = sbr.rel (%p733) target = $region56
        $region55: #{tpu_custom_call.1} parent=11 // pred_region
          _
        $region56: #{tpu_custom_call.1} parent=11 // pred_fallthru
          _
        // Predicated region
        $region57: #{tpu_custom_call.1} parent=11 // pred_check
          %p736 = pneg %p322
        $region58: #{tpu_custom_call.1} parent=11 // pred_check_branch
          %738 = sbr.rel (%p736) target = $region60
        $region59: #{tpu_custom_call.1} parent=11 // pred_region
          _
        $region60: #{tpu_custom_call.1} parent=11 // pred_fallthru
          _
        // Predicated region
        $region61: #{tpu_custom_call.1} parent=11 // pred_check
          %p739 = pneg %p343
        $region62: #{tpu_custom_call.1} parent=11 // pred_check_branch
          %741 = sbr.rel (%p739) target = $region64
        $region63: #{tpu_custom_call.1} parent=11 // pred_region
          _
        $region64: #{tpu_custom_call.1} parent=11 // pred_fallthru
          _
        // Predicated region
        $region65: #{tpu_custom_call.1} parent=11 // pred_check
          %p742 = pneg %p364
        $region66: #{tpu_custom_call.1} parent=11 // pred_check_branch
          %744 = sbr.rel (%p742) target = $region68
        $region67: #{tpu_custom_call.1} parent=11 // pred_region
          _
        $region68: #{tpu_custom_call.1} parent=11 // pred_fallthru
          _
        // Predicated region
        $region69: #{tpu_custom_call.1} parent=11 // pred_check
          %p745 = pneg %p385
        $region70: #{tpu_custom_call.1} parent=11 // pred_check_branch
          %747 = sbr.rel (%p745) target = $region72
        $region71: #{tpu_custom_call.1} parent=11 // pred_region
          _
        $region72: #{tpu_custom_call.1} parent=11 // pred_fallthru
          _
        // Predicated region
        $region73: #{tpu_custom_call.1} parent=11 // pred_check
          %p748 = pneg %p406
        $region74: #{tpu_custom_call.1} parent=11 // pred_check_branch
          %750 = sbr.rel (%p748) target = $region76
        $region75: #{tpu_custom_call.1} parent=11 // pred_region
          %s752 = ssub.s32 576, 576
          %753 = vsyncadd [#allocation12], %s752
          %s754 = sshll.u32 [#allocation13], 4
          %s755 = int_to_ptr.vmem [resolvable:$true] %s754
          %760 = dma.hbm_to_vmem [thread:$0]  %s16, 576, %s755, [#allocation12], 64, 64, 4
        $region76: #{tpu_custom_call.1} parent=11 // pred_fallthru
          _
        // Predicated region
        $region77: #{tpu_custom_call.1} parent=11 // pred_check
          %p761 = pneg %p427
        $region78: #{tpu_custom_call.1} parent=11 // pred_check_branch
          %763 = sbr.rel (%p761) target = $region80
        $region79: #{tpu_custom_call.1} parent=11 // pred_region
          %s765 = ssub.s32 4096, 4096
          %766 = vsyncadd [#allocation15], %s765
          %s767 = sshll.u32 [#allocation14], 4
          %s768 = int_to_ptr.vmem [resolvable:$true] %s767
          %773 = dma.hbm_to_vmem [thread:$0]  %s17, 4096, %s768, [#allocation15], 64, 64, 4
        $region80: #{tpu_custom_call.1} parent=11 // pred_fallthru
          _
        // Predicated region
        $region81: #{tpu_custom_call.1} parent=11 // pred_check
          %p774 = pneg %p448
        $region82: #{tpu_custom_call.1} parent=11 // pred_check_branch
          %776 = sbr.rel (%p774) target = $region84
        $region83: #{tpu_custom_call.1} parent=11 // pred_region
          %s778 = ssub.s32 128, 128
          %779 = vsyncadd [#allocation15], %s778
          %s780 = sshll.u32 [#allocation16], 4
          %s781 = int_to_ptr.vmem [resolvable:$true] %s780
          %786 = dma.hbm_to_vmem [thread:$0]  %s18, 128, %s781, [#allocation15], 64, 64, 4
        $region84: #{tpu_custom_call.1} parent=11 // pred_fallthru
          _
        // Predicated region
        $region85: #{tpu_custom_call.1} parent=11 // pred_check
          %p787 = pneg %p469
        $region86: #{tpu_custom_call.1} parent=11 // pred_check_branch
          %789 = sbr.rel (%p787) target = $region88
        $region87: #{tpu_custom_call.1} parent=11 // pred_region
          _
        $region88: #{tpu_custom_call.1} parent=11 // pred_fallthru
          _
        // Predicated region
        $region89: #{tpu_custom_call.1} parent=11 // pred_check
          %p790 = pneg %p490
        $region90: #{tpu_custom_call.1} parent=11 // pred_check_branch
          %792 = sbr.rel (%p790) target = $region92
        $region91: #{tpu_custom_call.1} parent=11 // pred_region
          _
        $region92: #{tpu_custom_call.1} parent=11 // pred_fallthru
          _
        // Predicated region
        $region93: #{tpu_custom_call.1} parent=11 // pred_check
          %p793 = pneg %p511
        $region94: #{tpu_custom_call.1} parent=11 // pred_check_branch
          %795 = sbr.rel (%p793) target = $region96
        $region95: #{tpu_custom_call.1} parent=11 // pred_region
          _
        $region96: #{tpu_custom_call.1} parent=11 // pred_fallthru
          _
        // Predicated region
        $region97: #{tpu_custom_call.1} parent=11 // pred_check
          %p796 = pneg %p532
        $region98: #{tpu_custom_call.1} parent=11 // pred_check_branch
          %798 = sbr.rel (%p796) target = $region100
        $region99: #{tpu_custom_call.1} parent=11 // pred_region
          _
        $region100: #{tpu_custom_call.1} parent=11 // pred_fallthru
          _
        // Predicated region
        $region101: #{tpu_custom_call.1} parent=11 // pred_check
          %p799 = pneg %p553
        $region102: #{tpu_custom_call.1} parent=11 // pred_check_branch
          %801 = sbr.rel (%p799) target = $region104
        $region103: #{tpu_custom_call.1} parent=11 // pred_region
          _
        $region104: #{tpu_custom_call.1} parent=11 // pred_fallthru
          _
        // Predicated region
        $region105: #{tpu_custom_call.1} parent=11 // pred_check
          %p802 = pneg %p574
        $region106: #{tpu_custom_call.1} parent=11 // pred_check_branch
          %804 = sbr.rel (%p802) target = $region108
        $region107: #{tpu_custom_call.1} parent=11 // pred_region
          %s806 = ssub.s32 144, 144
          %807 = vsyncadd [#allocation18], %s806
          %s808 = sshll.u32 [#allocation17], 4
          %s809 = int_to_ptr.vmem [resolvable:$true] %s808
          %814 = dma.hbm_to_vmem [thread:$0]  %s24, 144, %s809, [#allocation18], 16, 16, 1
        $region108: #{tpu_custom_call.1} parent=11 // pred_fallthru
          _
        // Predicated region
        $region109: #{tpu_custom_call.1} parent=11 // pred_check
          %p815 = pneg %p595
        $region110: #{tpu_custom_call.1} parent=11 // pred_check_branch
          %817 = sbr.rel (%p815) target = $region112
        $region111: #{tpu_custom_call.1} parent=11 // pred_region
          %s819 = ssub.s32 128, 128
          %820 = vsyncadd [#allocation18], %s819
          %s821 = sshll.u32 [#allocation19], 4
          %s822 = int_to_ptr.vmem [resolvable:$true] %s821
          %827 = dma.hbm_to_vmem [thread:$0]  %s25, 128, %s822, [#allocation18], 64, 64, 4
        $region112: #{tpu_custom_call.1} parent=11 // pred_fallthru
          _
        // Predicated region
        $region113: #{tpu_custom_call.1} parent=11 // pred_check
          %p828 = pneg %p616
        $region114: #{tpu_custom_call.1} parent=11 // pred_check_branch
          %830 = sbr.rel (%p828) target = $region116
        $region115: #{tpu_custom_call.1} parent=11 // pred_region
          _
        $region116: #{tpu_custom_call.1} parent=11 // pred_fallthru
          _
      $region12: #{tpu_custom_call.1} parent=5 // pred_fallthru
        _
      %p831 = scmp.lt.s32.totalorder %s44, 2
      // Predicated region
      $region117: #{tpu_custom_call.1} parent=5 // pred_check
        %p832 = pneg %p831
      $region118: #{tpu_custom_call.1} parent=5 // pred_check_branch
        %834 = sbr.rel (%p832) target = $region120
      $region119: #{tpu_custom_call.1} parent=5 // pred_region
        // Predicated region
        $region121: #{tpu_custom_call.1} parent=119 // pred_check
          %p835 = pneg %p64
        $region122: #{tpu_custom_call.1} parent=119 // pred_check_branch
          %837 = sbr.rel (%p835) target = $region124
        $region123: #{tpu_custom_call.1} parent=119 // pred_region
          %s838 = sand.u32 %s54, 1
          %s839 = scalar_lea.sflag [#allocation3], %s838
          %s840 = sand.u32 %s54, 1
          %s841 = smul.addr %s840, 32
          %s842 = scalar_lea.vmem [#allocation2], %s841
          %s843 = smul.u32 16, %s44
          %s845 = ssub.s32 512, 512
          %846 = vsyncadd %s839, %s845
          %s847 = smul.addr %s843, 32
          %s848 = scalar_lea.hbm %s0, %s847
          %s850 = sshll.u32 %s842, 4
          %s851 = int_to_ptr.vmem [resolvable:$true] %s850
          %853 = dma.hbm_to_vmem [thread:$0]  %s848, 512, %s851, %s839
        $region124: #{tpu_custom_call.1} parent=119 // pred_fallthru
          _
      $region120: #{tpu_custom_call.1} parent=5 // pred_fallthru
        _
      %p854 = scmp.le.s32.totalorder 1, %s44
      %p855 = scmp.lt.s32.totalorder %s44, 3
      %p856 = pnand %p854, %p855
      %p857 = pneg %p856
      // Predicated region
      $region125: #{tpu_custom_call.1} parent=5 // pred_check
        _
      $region126: #{tpu_custom_call.1} parent=5 // pred_check_branch
        %859 = sbr.rel (%p856) target = $region128
      $region127: #{tpu_custom_call.1} parent=5 // pred_region
        %s860 = ssub.s32 %s44, 1
        %s861 = sand.u32 %s57, 1
        %s862 = scalar_lea.sflag [#allocation3], %s861
        %s863 = sand.u32 %s57, 1
        %s864 = smul.addr %s863, 32
        %s865 = scalar_lea.vmem [#allocation2], %s864
        // Predicated region
        $region129: #{tpu_custom_call.1} parent=127 // pred_check
          %p866 = pneg %p70
        $region130: #{tpu_custom_call.1} parent=127 // pred_check_branch
          %868 = sbr.rel (%p866) target = $region132
        $region131: #{tpu_custom_call.1} parent=127 // pred_region
          %869 = dma.done %s862, 512
        $region132: #{tpu_custom_call.1} parent=127 // pred_fallthru
          _
        // Predicated region
        $region133: #{tpu_custom_call.1} parent=127 // pred_check
          %p870 = pneg %p91
        $region134: #{tpu_custom_call.1} parent=127 // pred_check_branch
          %872 = sbr.rel (%p870) target = $region136
        $region135: #{tpu_custom_call.1} parent=127 // pred_region
          %873 = dma.done [#allocation6], 64
        $region136: #{tpu_custom_call.1} parent=127 // pred_fallthru
          _
        // Predicated region
        $region137: #{tpu_custom_call.1} parent=127 // pred_check
          %p874 = pneg %p133
        $region138: #{tpu_custom_call.1} parent=127 // pred_check_branch
          %876 = sbr.rel (%p874) target = $region140
        $region139: #{tpu_custom_call.1} parent=127 // pred_region
          %877 = dma.done [#allocation6], 2304
        $region140: #{tpu_custom_call.1} parent=127 // pred_fallthru
          _
        // Predicated region
        $region141: #{tpu_custom_call.1} parent=127 // pred_check
          %p878 = pneg %p154
        $region142: #{tpu_custom_call.1} parent=127 // pred_check_branch
          %880 = sbr.rel (%p878) target = $region144
        $region143: #{tpu_custom_call.1} parent=127 // pred_region
          %881 = dma.done [#allocation9], 65536
        $region144: #{tpu_custom_call.1} parent=127 // pred_fallthru
          _
        // Predicated region
        $region145: #{tpu_custom_call.1} parent=127 // pred_check
          %p882 = pneg %p259
        $region146: #{tpu_custom_call.1} parent=127 // pred_check_branch
          %884 = sbr.rel (%p882) target = $region148
        $region147: #{tpu_custom_call.1} parent=127 // pred_region
          %885 = dma.done [#allocation9], 576
        $region148: #{tpu_custom_call.1} parent=127 // pred_fallthru
          _
        // Predicated region
        $region149: #{tpu_custom_call.1} parent=127 // pred_check
          %p886 = pneg %p280
        $region150: #{tpu_custom_call.1} parent=127 // pred_check_branch
          %888 = sbr.rel (%p886) target = $region152
        $region151: #{tpu_custom_call.1} parent=127 // pred_region
          %889 = dma.done [#allocation12], 64
        $region152: #{tpu_custom_call.1} parent=127 // pred_fallthru
          _
        // Predicated region
        $region153: #{tpu_custom_call.1} parent=127 // pred_check
          %p890 = pneg %p406
        $region154: #{tpu_custom_call.1} parent=127 // pred_check_branch
          %892 = sbr.rel (%p890) target = $region156
        $region155: #{tpu_custom_call.1} parent=127 // pred_region
          %893 = dma.done [#allocation12], 576
        $region156: #{tpu_custom_call.1} parent=127 // pred_fallthru
          _
        // Predicated region
        $region157: #{tpu_custom_call.1} parent=127 // pred_check
          %p894 = pneg %p427
        $region158: #{tpu_custom_call.1} parent=127 // pred_check_branch
          %896 = sbr.rel (%p894) target = $region160
        $region159: #{tpu_custom_call.1} parent=127 // pred_region
          %897 = dma.done [#allocation15], 4096
        $region160: #{tpu_custom_call.1} parent=127 // pred_fallthru
          _
        // Predicated region
        $region161: #{tpu_custom_call.1} parent=127 // pred_check
          %p898 = pneg %p448
        $region162: #{tpu_custom_call.1} parent=127 // pred_check_branch
          %900 = sbr.rel (%p898) target = $region164
        $region163: #{tpu_custom_call.1} parent=127 // pred_region
          %901 = dma.done [#allocation15], 128
        $region164: #{tpu_custom_call.1} parent=127 // pred_fallthru
          _
        // Predicated region
        $region165: #{tpu_custom_call.1} parent=127 // pred_check
          %p902 = pneg %p574
        $region166: #{tpu_custom_call.1} parent=127 // pred_check_branch
          %904 = sbr.rel (%p902) target = $region168
        $region167: #{tpu_custom_call.1} parent=127 // pred_region
          %905 = dma.done [#allocation18], 144
        $region168: #{tpu_custom_call.1} parent=127 // pred_fallthru
          _
        // Predicated region
        $region169: #{tpu_custom_call.1} parent=127 // pred_check
          %p906 = pneg %p595
        $region170: #{tpu_custom_call.1} parent=127 // pred_check_branch
          %908 = sbr.rel (%p906) target = $region172
        $region171: #{tpu_custom_call.1} parent=127 // pred_region
          %909 = dma.done [#allocation18], 128
        $region172: #{tpu_custom_call.1} parent=127 // pred_fallthru
          _
        %s910 = sand.u32 %s57, 1
        %s911 = scalar_lea.sflag [#allocation3], %s910
        %s912 = sand.u32 %s57, 1
        %s913 = smul.addr %s912, 32
        %s914 = scalar_lea.vmem [#allocation2], %s913
        %p915 = pneg %p70
        %p916 = pneg %p67
        %p917 = pneg %p91
        %p918 = pneg %p88
        %p919 = pneg %p112
        %p920 = pneg %p109
        %p921 = pneg %p133
        %p922 = pneg %p130
        %p923 = pneg %p154
        %p924 = pneg %p151
        %p925 = pneg %p175
        %p926 = pneg %p172
        %p927 = pneg %p196
        %p928 = pneg %p193
        %p929 = pneg %p217
        %p930 = pneg %p214
        %p931 = pneg %p238
        %p932 = pneg %p235
        %p933 = pneg %p259
        %p934 = pneg %p256
        %p935 = pneg %p280
        %p936 = pneg %p277
        %p937 = pneg %p301
        %p938 = pneg %p298
        %p939 = pneg %p322
        %p940 = pneg %p319
        %p941 = pneg %p343
        %p942 = pneg %p340
        %p943 = pneg %p364
        %p944 = pneg %p361
        %p945 = pneg %p385
        %p946 = pneg %p382
        %p947 = pneg %p406
        %p948 = pneg %p403
        %p949 = pneg %p427
        %p950 = pneg %p424
        %p951 = pneg %p448
        %p952 = pneg %p445
        %p953 = pneg %p469
        %p954 = pneg %p466
        %p955 = pneg %p490
        %p956 = pneg %p487
        %p957 = pneg %p511
        %p958 = pneg %p508
        %p959 = pneg %p532
        %p960 = pneg %p529
        %p961 = pneg %p553
        %p962 = pneg %p550
        %p963 = pneg %p574
        %p964 = pneg %p571
        %p965 = pneg %p595
        %p966 = pneg %p592
        %p967 = pneg %p616
        %p968 = pneg %p613
        %p969 = pneg %p642
        %p970 = pneg %p639
        %s971 = sand.u32 %s629, 1
        %s972 = scalar_lea.sflag [#allocation4], %s971
        %s973 = sand.u32 %s629, 1
        %s974 = smul.addr %s973, 16
        %s975 = scalar_lea.vmem [#allocation20], %s974
        %s976 = smul.u32 16, %s49
        %v978 = vld [vmem:[%s865] sm:$0xff]
        %v979 = vld [vmem:[%s865 + $0x8] sm:$0xff]
        %v980 = vld [vmem:[%s865 + $0x10] sm:$0xff]
        %v981 = vld [vmem:[%s865 + $0x18] sm:$0xff]
        %v982 = vunpack.c.l.bf16 %v978
        %v983 = vunpack.c.h.bf16 %v978
        %v984 = vunpack.c.l.bf16 %v979
        %v985 = vunpack.c.h.bf16 %v979
        %v986 = vunpack.c.l.bf16 %v980
        %v987 = vunpack.c.h.bf16 %v980
        %v988 = vunpack.c.l.bf16 %v981
        %v989 = vunpack.c.h.bf16 %v981
        %v998 = vcombine.high %v982, %v982
        %v999 = vcombine.high %v983, %v983
        %v1000 = vcombine.high %v984, %v984
        %v1001 = vcombine.high %v985, %v985
        %v1002 = vcombine.high %v986, %v986
        %v1003 = vcombine.high %v987, %v987
        %v1004 = vcombine.high %v988, %v988
        %v1005 = vcombine.high %v989, %v989
        %1014 = vrot.lane.b32.xlu0 %v982, 17
        %v1015 = vpop.permute.xlu0 %1014
        %1016 = vrot.lane.b32.xlu0 %v998, 17
        %v1017 = vpop.permute.xlu0 %1016
        %1018 = vrot.lane.b32.xlu0 %v983, 17
        %v1019 = vpop.permute.xlu0 %1018
        %1020 = vrot.lane.b32.xlu0 %v999, 17
        %v1021 = vpop.permute.xlu0 %1020
        %1022 = vrot.lane.b32.xlu0 %v984, 17
        %v1023 = vpop.permute.xlu0 %1022
        %1024 = vrot.lane.b32.xlu0 %v1000, 17
        %v1025 = vpop.permute.xlu0 %1024
        %1026 = vrot.lane.b32.xlu0 %v985, 17
        %v1027 = vpop.permute.xlu0 %1026
        %1028 = vrot.lane.b32.xlu0 %v1001, 17
        %v1029 = vpop.permute.xlu0 %1028
        %1030 = vrot.lane.b32.xlu0 %v986, 17
        %v1031 = vpop.permute.xlu0 %1030
        %1032 = vrot.lane.b32.xlu0 %v1002, 17
        %v1033 = vpop.permute.xlu0 %1032
        %1034 = vrot.lane.b32.xlu0 %v987, 17
        %v1035 = vpop.permute.xlu0 %1034
        %1036 = vrot.lane.b32.xlu0 %v1003, 17
        %v1037 = vpop.permute.xlu0 %1036
        %1038 = vrot.lane.b32.xlu0 %v988, 17
        %v1039 = vpop.permute.xlu0 %1038
        %1040 = vrot.lane.b32.xlu0 %v1004, 17
        %v1041 = vpop.permute.xlu0 %1040
        %1042 = vrot.lane.b32.xlu0 %v989, 17
        %v1043 = vpop.permute.xlu0 %1042
        %1044 = vrot.lane.b32.xlu0 %v1005, 17
        %v1045 = vpop.permute.xlu0 %1044
        %v1046 = vlaneseq
        %v1047 = vand.u32 %v1046, 127
        %vm1048 = vcmp.lt.s32.totalorder %v1047, 17
        %v1049 = vsel %vm1048, %v1043, %v1045
        %v1050 = vsel %vm1048, %v1041, %v1043
        %v1051 = vsel %vm1048, %v1039, %v1041
        %v1052 = vsel %vm1048, %v1037, %v1039
        %v1053 = vsel %vm1048, %v1035, %v1037
        %v1054 = vsel %vm1048, %v1033, %v1035
        %v1055 = vsel %vm1048, %v1031, %v1033
        %v1056 = vsel %vm1048, %v1029, %v1031
        %v1057 = vsel %vm1048, %v1027, %v1029
        %v1058 = vsel %vm1048, %v1025, %v1027
        %v1059 = vsel %vm1048, %v1023, %v1025
        %v1060 = vsel %vm1048, %v1021, %v1023
        %v1061 = vsel %vm1048, %v1019, %v1021
        %v1062 = vsel %vm1048, %v1017, %v1019
        %v1063 = vsel %vm1048, %v1015, %v1017
        %v1064 = vsel %vm1048, %v1045, %v1015
        %v1065 = vld [vmem:[#allocation7] sm:$0xff]
        %v1066 = vld [vmem:[#allocation7 + $0x8] sm:$0xff]
        %v1069 = vlaneseq
        %v1070 = vshrl.u32 %v1069, 7
        %v1071 = vsub.s32 0, %v1070
        %v1072 = vrot.slane %v1065, %v1071
        %v1073 = vlaneseq
        %v1074 = vshrl.u32 %v1073, 7
        %v1075 = vsub.s32 1, %v1074
        %v1076 = vrot.slane %v1065, %v1075
        %v1077 = vlaneseq
        %v1078 = vshrl.u32 %v1077, 7
        %v1079 = vsub.s32 2, %v1078
        %v1080 = vrot.slane %v1065, %v1079
        %v1081 = vlaneseq
        %v1082 = vshrl.u32 %v1081, 7
        %v1083 = vsub.s32 3, %v1082
        %v1084 = vrot.slane %v1065, %v1083
        %v1085 = vlaneseq
        %v1086 = vshrl.u32 %v1085, 7
        %v1087 = vsub.s32 4, %v1086
        %v1088 = vrot.slane %v1065, %v1087
        %v1089 = vlaneseq
        %v1090 = vshrl.u32 %v1089, 7
        %v1091 = vsub.s32 5, %v1090
        %v1092 = vrot.slane %v1065, %v1091
        %v1093 = vlaneseq
        %v1094 = vshrl.u32 %v1093, 7
        %v1095 = vsub.s32 6, %v1094
        %v1096 = vrot.slane %v1065, %v1095
        %v1097 = vlaneseq
        %v1098 = vshrl.u32 %v1097, 7
        %v1099 = vsub.s32 7, %v1098
        %v1100 = vrot.slane %v1065, %v1099
        %v1101 = vlaneseq
        %v1102 = vshrl.u32 %v1101, 7
        %v1103 = vsub.s32 0, %v1102
        %v1104 = vrot.slane %v1066, %v1103
        %v1105 = vlaneseq
        %v1106 = vshrl.u32 %v1105, 7
        %v1107 = vsub.s32 1, %v1106
        %v1108 = vrot.slane %v1066, %v1107
        %v1109 = vlaneseq
        %v1110 = vshrl.u32 %v1109, 7
        %v1111 = vsub.s32 2, %v1110
        %v1112 = vrot.slane %v1066, %v1111
        %v1113 = vlaneseq
        %v1114 = vshrl.u32 %v1113, 7
        %v1115 = vsub.s32 3, %v1114
        %v1116 = vrot.slane %v1066, %v1115
        %v1117 = vlaneseq
        %v1118 = vshrl.u32 %v1117, 7
        %v1119 = vsub.s32 4, %v1118
        %v1120 = vrot.slane %v1066, %v1119
        %v1121 = vlaneseq
        %v1122 = vshrl.u32 %v1121, 7
        %v1123 = vsub.s32 5, %v1122
        %v1124 = vrot.slane %v1066, %v1123
        %v1125 = vlaneseq
        %v1126 = vshrl.u32 %v1125, 7
        %v1127 = vsub.s32 6, %v1126
        %v1128 = vrot.slane %v1066, %v1127
        %v1129 = vlaneseq
        %v1130 = vshrl.u32 %v1129, 7
        %v1131 = vsub.s32 7, %v1130
        %v1132 = vrot.slane %v1066, %v1131
        %v1149 = vmul.f32 %v1064, %v1072
        %v1150 = vmul.f32 %v1063, %v1076
        %v1151 = vmul.f32 %v1062, %v1080
        %v1152 = vmul.f32 %v1061, %v1084
        %v1153 = vmul.f32 %v1060, %v1088
        %v1154 = vmul.f32 %v1059, %v1092
        %v1155 = vmul.f32 %v1058, %v1096
        %v1156 = vmul.f32 %v1057, %v1100
        %v1157 = vmul.f32 %v1056, %v1104
        %v1158 = vmul.f32 %v1055, %v1108
        %v1159 = vmul.f32 %v1054, %v1112
        %v1160 = vmul.f32 %v1053, %v1116
        %v1161 = vmul.f32 %v1052, %v1120
        %v1162 = vmul.f32 %v1051, %v1124
        %v1163 = vmul.f32 %v1050, %v1128
        %v1164 = vmul.f32 %v1049, %v1132
        %1165 = vrot.lane.b32.xlu0 %v982, 16
        %v1166 = vpop.permute.xlu0 %1165
        %1167 = vrot.lane.b32.xlu0 %v998, 16
        %v1168 = vpop.permute.xlu0 %1167
        %1169 = vrot.lane.b32.xlu0 %v983, 16
        %v1170 = vpop.permute.xlu0 %1169
        %1171 = vrot.lane.b32.xlu0 %v999, 16
        %v1172 = vpop.permute.xlu0 %1171
        %1173 = vrot.lane.b32.xlu0 %v984, 16
        %v1174 = vpop.permute.xlu0 %1173
        %1175 = vrot.lane.b32.xlu0 %v1000, 16
        %v1176 = vpop.permute.xlu0 %1175
        %1177 = vrot.lane.b32.xlu0 %v985, 16
        %v1178 = vpop.permute.xlu0 %1177
        %1179 = vrot.lane.b32.xlu0 %v1001, 16
        %v1180 = vpop.permute.xlu0 %1179
        %1181 = vrot.lane.b32.xlu0 %v986, 16
        %v1182 = vpop.permute.xlu0 %1181
        %1183 = vrot.lane.b32.xlu0 %v1002, 16
        %v1184 = vpop.permute.xlu0 %1183
        %1185 = vrot.lane.b32.xlu0 %v987, 16
        %v1186 = vpop.permute.xlu0 %1185
        %1187 = vrot.lane.b32.xlu0 %v1003, 16
        %v1188 = vpop.permute.xlu0 %1187
        %1189 = vrot.lane.b32.xlu0 %v988, 16
        %v1190 = vpop.permute.xlu0 %1189
        %1191 = vrot.lane.b32.xlu0 %v1004, 16
        %v1192 = vpop.permute.xlu0 %1191
        %1193 = vrot.lane.b32.xlu0 %v989, 16
        %v1194 = vpop.permute.xlu0 %1193
        %1195 = vrot.lane.b32.xlu0 %v1005, 16
        %v1196 = vpop.permute.xlu0 %1195
        %vm1197 = vcmp.lt.s32.totalorder %v1047, 16
        %v1198 = vsel %vm1197, %v1194, %v1196
        %v1199 = vsel %vm1197, %v1192, %v1194
        %v1200 = vsel %vm1197, %v1190, %v1192
        %v1201 = vsel %vm1197, %v1188, %v1190
        %v1202 = vsel %vm1197, %v1186, %v1188
        %v1203 = vsel %vm1197, %v1184, %v1186
        %v1204 = vsel %vm1197, %v1182, %v1184
        %v1205 = vsel %vm1197, %v1180, %v1182
        %v1206 = vsel %vm1197, %v1178, %v1180
        %v1207 = vsel %vm1197, %v1176, %v1178
        %v1208 = vsel %vm1197, %v1174, %v1176
        %v1209 = vsel %vm1197, %v1172, %v1174
        %v1210 = vsel %vm1197, %v1170, %v1172
        %v1211 = vsel %vm1197, %v1168, %v1170
        %v1212 = vsel %vm1197, %v1166, %v1168
        %v1213 = vsel %vm1197, %v1196, %v1166
        %s1214 = scalar_lea.vmem [#allocation7], 16
        %v1215 = vld [vmem:[%s1214] sm:$0xff]
        %v1216 = vld [vmem:[%s1214 + $0x8] sm:$0xff]
        %v1219 = vlaneseq
        %v1220 = vshrl.u32 %v1219, 7
        %v1221 = vsub.s32 0, %v1220
        %v1222 = vrot.slane %v1215, %v1221
        %v1223 = vlaneseq
        %v1224 = vshrl.u32 %v1223, 7
        %v1225 = vsub.s32 1, %v1224
        %v1226 = vrot.slane %v1215, %v1225
        %v1227 = vlaneseq
        %v1228 = vshrl.u32 %v1227, 7
        %v1229 = vsub.s32 2, %v1228
        %v1230 = vrot.slane %v1215, %v1229
        %v1231 = vlaneseq
        %v1232 = vshrl.u32 %v1231, 7
        %v1233 = vsub.s32 3, %v1232
        %v1234 = vrot.slane %v1215, %v1233
        %v1235 = vlaneseq
        %v1236 = vshrl.u32 %v1235, 7
        %v1237 = vsub.s32 4, %v1236
        %v1238 = vrot.slane %v1215, %v1237
        %v1239 = vlaneseq
        %v1240 = vshrl.u32 %v1239, 7
        %v1241 = vsub.s32 5, %v1240
        %v1242 = vrot.slane %v1215, %v1241
        %v1243 = vlaneseq
        %v1244 = vshrl.u32 %v1243, 7
        %v1245 = vsub.s32 6, %v1244
        %v1246 = vrot.slane %v1215, %v1245
        %v1247 = vlaneseq
        %v1248 = vshrl.u32 %v1247, 7
        %v1249 = vsub.s32 7, %v1248
        %v1250 = vrot.slane %v1215, %v1249
        %v1251 = vlaneseq
        %v1252 = vshrl.u32 %v1251, 7
        %v1253 = vsub.s32 0, %v1252
        %v1254 = vrot.slane %v1216, %v1253
        %v1255 = vlaneseq
        %v1256 = vshrl.u32 %v1255, 7
        %v1257 = vsub.s32 1, %v1256
        %v1258 = vrot.slane %v1216, %v1257
        %v1259 = vlaneseq
        %v1260 = vshrl.u32 %v1259, 7
        %v1261 = vsub.s32 2, %v1260
        %v1262 = vrot.slane %v1216, %v1261
        %v1263 = vlaneseq
        %v1264 = vshrl.u32 %v1263, 7
        %v1265 = vsub.s32 3, %v1264
        %v1266 = vrot.slane %v1216, %v1265
        %v1267 = vlaneseq
        %v1268 = vshrl.u32 %v1267, 7
        %v1269 = vsub.s32 4, %v1268
        %v1270 = vrot.slane %v1216, %v1269
        %v1271 = vlaneseq
        %v1272 = vshrl.u32 %v1271, 7
        %v1273 = vsub.s32 5, %v1272
        %v1274 = vrot.slane %v1216, %v1273
        %v1275 = vlaneseq
        %v1276 = vshrl.u32 %v1275, 7
        %v1277 = vsub.s32 6, %v1276
        %v1278 = vrot.slane %v1216, %v1277
        %v1279 = vlaneseq
        %v1280 = vshrl.u32 %v1279, 7
        %v1281 = vsub.s32 7, %v1280
        %v1282 = vrot.slane %v1216, %v1281
        %v1299 = vmul.f32 %v1213, %v1222
        %v1300 = vmul.f32 %v1212, %v1226
        %v1301 = vmul.f32 %v1211, %v1230
        %v1302 = vmul.f32 %v1210, %v1234
        %v1303 = vmul.f32 %v1209, %v1238
        %v1304 = vmul.f32 %v1208, %v1242
        %v1305 = vmul.f32 %v1207, %v1246
        %v1306 = vmul.f32 %v1206, %v1250
        %v1307 = vmul.f32 %v1205, %v1254
        %v1308 = vmul.f32 %v1204, %v1258
        %v1309 = vmul.f32 %v1203, %v1262
        %v1310 = vmul.f32 %v1202, %v1266
        %v1311 = vmul.f32 %v1201, %v1270
        %v1312 = vmul.f32 %v1200, %v1274
        %v1313 = vmul.f32 %v1199, %v1278
        %v1314 = vmul.f32 %v1198, %v1282
        %1315 = vrot.lane.b32.xlu0 %v982, 15
        %v1316 = vpop.permute.xlu0 %1315
        %1317 = vrot.lane.b32.xlu0 %v998, 15
        %v1318 = vpop.permute.xlu0 %1317
        %1319 = vrot.lane.b32.xlu0 %v983, 15
        %v1320 = vpop.permute.xlu0 %1319
        %1321 = vrot.lane.b32.xlu0 %v999, 15
        %v1322 = vpop.permute.xlu0 %1321
        %1323 = vrot.lane.b32.xlu0 %v984, 15
        %v1324 = vpop.permute.xlu0 %1323
        %1325 = vrot.lane.b32.xlu0 %v1000, 15
        %v1326 = vpop.permute.xlu0 %1325
        %1327 = vrot.lane.b32.xlu0 %v985, 15
        %v1328 = vpop.permute.xlu0 %1327
        %1329 = vrot.lane.b32.xlu0 %v1001, 15
        %v1330 = vpop.permute.xlu0 %1329
        %1331 = vrot.lane.b32.xlu0 %v986, 15
        %v1332 = vpop.permute.xlu0 %1331
        %1333 = vrot.lane.b32.xlu0 %v1002, 15
        %v1334 = vpop.permute.xlu0 %1333
        %1335 = vrot.lane.b32.xlu0 %v987, 15
        %v1336 = vpop.permute.xlu0 %1335
        %1337 = vrot.lane.b32.xlu0 %v1003, 15
        %v1338 = vpop.permute.xlu0 %1337
        %1339 = vrot.lane.b32.xlu0 %v988, 15
        %v1340 = vpop.permute.xlu0 %1339
        %1341 = vrot.lane.b32.xlu0 %v1004, 15
        %v1342 = vpop.permute.xlu0 %1341
        %1343 = vrot.lane.b32.xlu0 %v989, 15
        %v1344 = vpop.permute.xlu0 %1343
        %1345 = vrot.lane.b32.xlu0 %v1005, 15
        %v1346 = vpop.permute.xlu0 %1345
        %vm1347 = vcmp.lt.s32.totalorder %v1047, 15
        %v1348 = vsel %vm1347, %v1344, %v1346
        %v1349 = vsel %vm1347, %v1342, %v1344
        %v1350 = vsel %vm1347, %v1340, %v1342
        %v1351 = vsel %vm1347, %v1338, %v1340
        %v1352 = vsel %vm1347, %v1336, %v1338
        %v1353 = vsel %vm1347, %v1334, %v1336
        %v1354 = vsel %vm1347, %v1332, %v1334
        %v1355 = vsel %vm1347, %v1330, %v1332
        %v1356 = vsel %vm1347, %v1328, %v1330
        %v1357 = vsel %vm1347, %v1326, %v1328
        %v1358 = vsel %vm1347, %v1324, %v1326
        %v1359 = vsel %vm1347, %v1322, %v1324
        %v1360 = vsel %vm1347, %v1320, %v1322
        %v1361 = vsel %vm1347, %v1318, %v1320
        %v1362 = vsel %vm1347, %v1316, %v1318
        %v1363 = vsel %vm1347, %v1346, %v1316
        %s1364 = scalar_lea.vmem [#allocation7], 32
        %v1365 = vld [vmem:[%s1364] sm:$0xff]
        %v1366 = vld [vmem:[%s1364 + $0x8] sm:$0xff]
        %v1369 = vlaneseq
        %v1370 = vshrl.u32 %v1369, 7
        %v1371 = vsub.s32 0, %v1370
        %v1372 = vrot.slane %v1365, %v1371
        %v1373 = vlaneseq
        %v1374 = vshrl.u32 %v1373, 7
        %v1375 = vsub.s32 1, %v1374
        %v1376 = vrot.slane %v1365, %v1375
        %v1377 = vlaneseq
        %v1378 = vshrl.u32 %v1377, 7
        %v1379 = vsub.s32 2, %v1378
        %v1380 = vrot.slane %v1365, %v1379
        %v1381 = vlaneseq
        %v1382 = vshrl.u32 %v1381, 7
        %v1383 = vsub.s32 3, %v1382
        %v1384 = vrot.slane %v1365, %v1383
        %v1385 = vlaneseq
        %v1386 = vshrl.u32 %v1385, 7
        %v1387 = vsub.s32 4, %v1386
        %v1388 = vrot.slane %v1365, %v1387
        %v1389 = vlaneseq
        %v1390 = vshrl.u32 %v1389, 7
        %v1391 = vsub.s32 5, %v1390
        %v1392 = vrot.slane %v1365, %v1391
        %v1393 = vlaneseq
        %v1394 = vshrl.u32 %v1393, 7
        %v1395 = vsub.s32 6, %v1394
        %v1396 = vrot.slane %v1365, %v1395
        %v1397 = vlaneseq
        %v1398 = vshrl.u32 %v1397, 7
        %v1399 = vsub.s32 7, %v1398
        %v1400 = vrot.slane %v1365, %v1399
        %v1401 = vlaneseq
        %v1402 = vshrl.u32 %v1401, 7
        %v1403 = vsub.s32 0, %v1402
        %v1404 = vrot.slane %v1366, %v1403
        %v1405 = vlaneseq
        %v1406 = vshrl.u32 %v1405, 7
        %v1407 = vsub.s32 1, %v1406
        %v1408 = vrot.slane %v1366, %v1407
        %v1409 = vlaneseq
        %v1410 = vshrl.u32 %v1409, 7
        %v1411 = vsub.s32 2, %v1410
        %v1412 = vrot.slane %v1366, %v1411
        %v1413 = vlaneseq
        %v1414 = vshrl.u32 %v1413, 7
        %v1415 = vsub.s32 3, %v1414
        %v1416 = vrot.slane %v1366, %v1415
        %v1417 = vlaneseq
        %v1418 = vshrl.u32 %v1417, 7
        %v1419 = vsub.s32 4, %v1418
        %v1420 = vrot.slane %v1366, %v1419
        %v1421 = vlaneseq
        %v1422 = vshrl.u32 %v1421, 7
        %v1423 = vsub.s32 5, %v1422
        %v1424 = vrot.slane %v1366, %v1423
        %v1425 = vlaneseq
        %v1426 = vshrl.u32 %v1425, 7
        %v1427 = vsub.s32 6, %v1426
        %v1428 = vrot.slane %v1366, %v1427
        %v1429 = vlaneseq
        %v1430 = vshrl.u32 %v1429, 7
        %v1431 = vsub.s32 7, %v1430
        %v1432 = vrot.slane %v1366, %v1431
        %v1449 = vmul.f32 %v1363, %v1372
        %v1450 = vmul.f32 %v1362, %v1376
        %v1451 = vmul.f32 %v1361, %v1380
        %v1452 = vmul.f32 %v1360, %v1384
        %v1453 = vmul.f32 %v1359, %v1388
        %v1454 = vmul.f32 %v1358, %v1392
        %v1455 = vmul.f32 %v1357, %v1396
        %v1456 = vmul.f32 %v1356, %v1400
        %v1457 = vmul.f32 %v1355, %v1404
        %v1458 = vmul.f32 %v1354, %v1408
        %v1459 = vmul.f32 %v1353, %v1412
        %v1460 = vmul.f32 %v1352, %v1416
        %v1461 = vmul.f32 %v1351, %v1420
        %v1462 = vmul.f32 %v1350, %v1424
        %v1463 = vmul.f32 %v1349, %v1428
        %v1464 = vmul.f32 %v1348, %v1432
        %1465 = vrot.lane.b32.xlu0 %v982, 1
        %v1466 = vpop.permute.xlu0 %1465
        %1467 = vrot.lane.b32.xlu0 %v998, 1
        %v1468 = vpop.permute.xlu0 %1467
        %1469 = vrot.lane.b32.xlu0 %v983, 1
        %v1470 = vpop.permute.xlu0 %1469
        %1471 = vrot.lane.b32.xlu0 %v999, 1
        %v1472 = vpop.permute.xlu0 %1471
        %1473 = vrot.lane.b32.xlu0 %v984, 1
        %v1474 = vpop.permute.xlu0 %1473
        %1475 = vrot.lane.b32.xlu0 %v1000, 1
        %v1476 = vpop.permute.xlu0 %1475
        %1477 = vrot.lane.b32.xlu0 %v985, 1
        %v1478 = vpop.permute.xlu0 %1477
        %1479 = vrot.lane.b32.xlu0 %v1001, 1
        %v1480 = vpop.permute.xlu0 %1479
        %1481 = vrot.lane.b32.xlu0 %v986, 1
        %v1482 = vpop.permute.xlu0 %1481
        %1483 = vrot.lane.b32.xlu0 %v1002, 1
        %v1484 = vpop.permute.xlu0 %1483
        %1485 = vrot.lane.b32.xlu0 %v987, 1
        %v1486 = vpop.permute.xlu0 %1485
        %1487 = vrot.lane.b32.xlu0 %v1003, 1
        %v1488 = vpop.permute.xlu0 %1487
        %1489 = vrot.lane.b32.xlu0 %v988, 1
        %v1490 = vpop.permute.xlu0 %1489
        %1491 = vrot.lane.b32.xlu0 %v1004, 1
        %v1492 = vpop.permute.xlu0 %1491
        %1493 = vrot.lane.b32.xlu0 %v989, 1
        %v1494 = vpop.permute.xlu0 %1493
        %1495 = vrot.lane.b32.xlu0 %v1005, 1
        %v1496 = vpop.permute.xlu0 %1495
        %vm1497 = vcmp.lt.s32.totalorder %v1047, 1
        %v1498 = vsel %vm1497, %v1494, %v1496
        %v1499 = vsel %vm1497, %v1492, %v1494
        %v1500 = vsel %vm1497, %v1490, %v1492
        %v1501 = vsel %vm1497, %v1488, %v1490
        %v1502 = vsel %vm1497, %v1486, %v1488
        %v1503 = vsel %vm1497, %v1484, %v1486
        %v1504 = vsel %vm1497, %v1482, %v1484
        %v1505 = vsel %vm1497, %v1480, %v1482
        %v1506 = vsel %vm1497, %v1478, %v1480
        %v1507 = vsel %vm1497, %v1476, %v1478
        %v1508 = vsel %vm1497, %v1474, %v1476
        %v1509 = vsel %vm1497, %v1472, %v1474
        %v1510 = vsel %vm1497, %v1470, %v1472
        %v1511 = vsel %vm1497, %v1468, %v1470
        %v1512 = vsel %vm1497, %v1466, %v1468
        %v1513 = vsel %vm1497, %v1496, %v1466
        %s1514 = scalar_lea.vmem [#allocation7], 48
        %v1515 = vld [vmem:[%s1514] sm:$0xff]
        %v1516 = vld [vmem:[%s1514 + $0x8] sm:$0xff]
        %v1519 = vlaneseq
        %v1520 = vshrl.u32 %v1519, 7
        %v1521 = vsub.s32 0, %v1520
        %v1522 = vrot.slane %v1515, %v1521
        %v1523 = vlaneseq
        %v1524 = vshrl.u32 %v1523, 7
        %v1525 = vsub.s32 1, %v1524
        %v1526 = vrot.slane %v1515, %v1525
        %v1527 = vlaneseq
        %v1528 = vshrl.u32 %v1527, 7
        %v1529 = vsub.s32 2, %v1528
        %v1530 = vrot.slane %v1515, %v1529
        %v1531 = vlaneseq
        %v1532 = vshrl.u32 %v1531, 7
        %v1533 = vsub.s32 3, %v1532
        %v1534 = vrot.slane %v1515, %v1533
        %v1535 = vlaneseq
        %v1536 = vshrl.u32 %v1535, 7
        %v1537 = vsub.s32 4, %v1536
        %v1538 = vrot.slane %v1515, %v1537
        %v1539 = vlaneseq
        %v1540 = vshrl.u32 %v1539, 7
        %v1541 = vsub.s32 5, %v1540
        %v1542 = vrot.slane %v1515, %v1541
        %v1543 = vlaneseq
        %v1544 = vshrl.u32 %v1543, 7
        %v1545 = vsub.s32 6, %v1544
        %v1546 = vrot.slane %v1515, %v1545
        %v1547 = vlaneseq
        %v1548 = vshrl.u32 %v1547, 7
        %v1549 = vsub.s32 7, %v1548
        %v1550 = vrot.slane %v1515, %v1549
        %v1551 = vlaneseq
        %v1552 = vshrl.u32 %v1551, 7
        %v1553 = vsub.s32 0, %v1552
        %v1554 = vrot.slane %v1516, %v1553
        %v1555 = vlaneseq
        %v1556 = vshrl.u32 %v1555, 7
        %v1557 = vsub.s32 1, %v1556
        %v1558 = vrot.slane %v1516, %v1557
        %v1559 = vlaneseq
        %v1560 = vshrl.u32 %v1559, 7
        %v1561 = vsub.s32 2, %v1560
        %v1562 = vrot.slane %v1516, %v1561
        %v1563 = vlaneseq
        %v1564 = vshrl.u32 %v1563, 7
        %v1565 = vsub.s32 3, %v1564
        %v1566 = vrot.slane %v1516, %v1565
        %v1567 = vlaneseq
        %v1568 = vshrl.u32 %v1567, 7
        %v1569 = vsub.s32 4, %v1568
        %v1570 = vrot.slane %v1516, %v1569
        %v1571 = vlaneseq
        %v1572 = vshrl.u32 %v1571, 7
        %v1573 = vsub.s32 5, %v1572
        %v1574 = vrot.slane %v1516, %v1573
        %v1575 = vlaneseq
        %v1576 = vshrl.u32 %v1575, 7
        %v1577 = vsub.s32 6, %v1576
        %v1578 = vrot.slane %v1516, %v1577
        %v1579 = vlaneseq
        %v1580 = vshrl.u32 %v1579, 7
        %v1581 = vsub.s32 7, %v1580
        %v1582 = vrot.slane %v1516, %v1581
        %v1599 = vmul.f32 %v1513, %v1522
        %v1600 = vmul.f32 %v1512, %v1526
        %v1601 = vmul.f32 %v1511, %v1530
        %v1602 = vmul.f32 %v1510, %v1534
        %v1603 = vmul.f32 %v1509, %v1538
        %v1604 = vmul.f32 %v1508, %v1542
        %v1605 = vmul.f32 %v1507, %v1546
        %v1606 = vmul.f32 %v1506, %v1550
        %v1607 = vmul.f32 %v1505, %v1554
        %v1608 = vmul.f32 %v1504, %v1558
        %v1609 = vmul.f32 %v1503, %v1562
        %v1610 = vmul.f32 %v1502, %v1566
        %v1611 = vmul.f32 %v1501, %v1570
        %v1612 = vmul.f32 %v1500, %v1574
        %v1613 = vmul.f32 %v1499, %v1578
        %v1614 = vmul.f32 %v1498, %v1582
        %1615 = vrot.lane.b32.xlu0 %v982, 127
        %v1616 = vpop.permute.xlu0 %1615
        %1617 = vrot.lane.b32.xlu0 %v998, 127
        %v1618 = vpop.permute.xlu0 %1617
        %1619 = vrot.lane.b32.xlu0 %v983, 127
        %v1620 = vpop.permute.xlu0 %1619
        %1621 = vrot.lane.b32.xlu0 %v999, 127
        %v1622 = vpop.permute.xlu0 %1621
        %1623 = vrot.lane.b32.xlu0 %v984, 127
        %v1624 = vpop.permute.xlu0 %1623
        %1625 = vrot.lane.b32.xlu0 %v1000, 127
        %v1626 = vpop.permute.xlu0 %1625
        %1627 = vrot.lane.b32.xlu0 %v985, 127
        %v1628 = vpop.permute.xlu0 %1627
        %1629 = vrot.lane.b32.xlu0 %v1001, 127
        %v1630 = vpop.permute.xlu0 %1629
        %1631 = vrot.lane.b32.xlu0 %v986, 127
        %v1632 = vpop.permute.xlu0 %1631
        %1633 = vrot.lane.b32.xlu0 %v1002, 127
        %v1634 = vpop.permute.xlu0 %1633
        %1635 = vrot.lane.b32.xlu0 %v987, 127
        %v1636 = vpop.permute.xlu0 %1635
        %1637 = vrot.lane.b32.xlu0 %v1003, 127
        %v1638 = vpop.permute.xlu0 %1637
        %1639 = vrot.lane.b32.xlu0 %v988, 127
        %v1640 = vpop.permute.xlu0 %1639
        %1641 = vrot.lane.b32.xlu0 %v1004, 127
        %v1642 = vpop.permute.xlu0 %1641
        %1643 = vrot.lane.b32.xlu0 %v989, 127
        %v1644 = vpop.permute.xlu0 %1643
        %1645 = vrot.lane.b32.xlu0 %v1005, 127
        %v1646 = vpop.permute.xlu0 %1645
        %vm1647 = vcmp.lt.s32.totalorder %v1047, 127
        %v1648 = vsel %vm1647, %v1644, %v1646
        %v1649 = vsel %vm1647, %v1642, %v1644
        %v1650 = vsel %vm1647, %v1640, %v1642
        %v1651 = vsel %vm1647, %v1638, %v1640
        %v1652 = vsel %vm1647, %v1636, %v1638
        %v1653 = vsel %vm1647, %v1634, %v1636
        %v1654 = vsel %vm1647, %v1632, %v1634
        %v1655 = vsel %vm1647, %v1630, %v1632
        %v1656 = vsel %vm1647, %v1628, %v1630
        %v1657 = vsel %vm1647, %v1626, %v1628
        %v1658 = vsel %vm1647, %v1624, %v1626
        %v1659 = vsel %vm1647, %v1622, %v1624
        %v1660 = vsel %vm1647, %v1620, %v1622
        %v1661 = vsel %vm1647, %v1618, %v1620
        %v1662 = vsel %vm1647, %v1616, %v1618
        %v1663 = vsel %vm1647, %v1646, %v1616
        %s1664 = scalar_lea.vmem [#allocation7], 80
        %v1665 = vld [vmem:[%s1664] sm:$0xff]
        %v1666 = vld [vmem:[%s1664 + $0x8] sm:$0xff]
        %v1669 = vlaneseq
        %v1670 = vshrl.u32 %v1669, 7
        %v1671 = vsub.s32 0, %v1670
        %v1672 = vrot.slane %v1665, %v1671
        %v1673 = vlaneseq
        %v1674 = vshrl.u32 %v1673, 7
        %v1675 = vsub.s32 1, %v1674
        %v1676 = vrot.slane %v1665, %v1675
        %v1677 = vlaneseq
        %v1678 = vshrl.u32 %v1677, 7
        %v1679 = vsub.s32 2, %v1678
        %v1680 = vrot.slane %v1665, %v1679
        %v1681 = vlaneseq
        %v1682 = vshrl.u32 %v1681, 7
        %v1683 = vsub.s32 3, %v1682
        %v1684 = vrot.slane %v1665, %v1683
        %v1685 = vlaneseq
        %v1686 = vshrl.u32 %v1685, 7
        %v1687 = vsub.s32 4, %v1686
        %v1688 = vrot.slane %v1665, %v1687
        %v1689 = vlaneseq
        %v1690 = vshrl.u32 %v1689, 7
        %v1691 = vsub.s32 5, %v1690
        %v1692 = vrot.slane %v1665, %v1691
        %v1693 = vlaneseq
        %v1694 = vshrl.u32 %v1693, 7
        %v1695 = vsub.s32 6, %v1694
        %v1696 = vrot.slane %v1665, %v1695
        %v1697 = vlaneseq
        %v1698 = vshrl.u32 %v1697, 7
        %v1699 = vsub.s32 7, %v1698
        %v1700 = vrot.slane %v1665, %v1699
        %v1701 = vlaneseq
        %v1702 = vshrl.u32 %v1701, 7
        %v1703 = vsub.s32 0, %v1702
        %v1704 = vrot.slane %v1666, %v1703
        %v1705 = vlaneseq
        %v1706 = vshrl.u32 %v1705, 7
        %v1707 = vsub.s32 1, %v1706
        %v1708 = vrot.slane %v1666, %v1707
        %v1709 = vlaneseq
        %v1710 = vshrl.u32 %v1709, 7
        %v1711 = vsub.s32 2, %v1710
        %v1712 = vrot.slane %v1666, %v1711
        %v1713 = vlaneseq
        %v1714 = vshrl.u32 %v1713, 7
        %v1715 = vsub.s32 3, %v1714
        %v1716 = vrot.slane %v1666, %v1715
        %v1717 = vlaneseq
        %v1718 = vshrl.u32 %v1717, 7
        %v1719 = vsub.s32 4, %v1718
        %v1720 = vrot.slane %v1666, %v1719
        %v1721 = vlaneseq
        %v1722 = vshrl.u32 %v1721, 7
        %v1723 = vsub.s32 5, %v1722
        %v1724 = vrot.slane %v1666, %v1723
        %v1725 = vlaneseq
        %v1726 = vshrl.u32 %v1725, 7
        %v1727 = vsub.s32 6, %v1726
        %v1728 = vrot.slane %v1666, %v1727
        %v1729 = vlaneseq
        %v1730 = vshrl.u32 %v1729, 7
        %v1731 = vsub.s32 7, %v1730
        %v1732 = vrot.slane %v1666, %v1731
        %v1749 = vmul.f32 %v1662, %v1672
        %v1750 = vmul.f32 %v1661, %v1676
        %v1751 = vmul.f32 %v1660, %v1680
        %v1752 = vmul.f32 %v1659, %v1684
        %v1753 = vmul.f32 %v1658, %v1688
        %v1754 = vmul.f32 %v1657, %v1692
        %v1755 = vmul.f32 %v1656, %v1696
        %v1756 = vmul.f32 %v1655, %v1700
        %v1757 = vmul.f32 %v1654, %v1704
        %v1758 = vmul.f32 %v1653, %v1708
        %v1759 = vmul.f32 %v1652, %v1712
        %v1760 = vmul.f32 %v1651, %v1716
        %v1761 = vmul.f32 %v1650, %v1720
        %v1762 = vmul.f32 %v1649, %v1724
        %v1763 = vmul.f32 %v1648, %v1728
        %v1764 = vmul.f32 %v1663, %v1732
        %1765 = vrot.lane.b32.xlu0 %v982, 113
        %v1766 = vpop.permute.xlu0 %1765
        %1767 = vrot.lane.b32.xlu0 %v998, 113
        %v1768 = vpop.permute.xlu0 %1767
        %1769 = vrot.lane.b32.xlu0 %v983, 113
        %v1770 = vpop.permute.xlu0 %1769
        %1771 = vrot.lane.b32.xlu0 %v999, 113
        %v1772 = vpop.permute.xlu0 %1771
        %1773 = vrot.lane.b32.xlu0 %v984, 113
        %v1774 = vpop.permute.xlu0 %1773
        %1775 = vrot.lane.b32.xlu0 %v1000, 113
        %v1776 = vpop.permute.xlu0 %1775
        %1777 = vrot.lane.b32.xlu0 %v985, 113
        %v1778 = vpop.permute.xlu0 %1777
        %1779 = vrot.lane.b32.xlu0 %v1001, 113
        %v1780 = vpop.permute.xlu0 %1779
        %1781 = vrot.lane.b32.xlu0 %v986, 113
        %v1782 = vpop.permute.xlu0 %1781
        %1783 = vrot.lane.b32.xlu0 %v1002, 113
        %v1784 = vpop.permute.xlu0 %1783
        %1785 = vrot.lane.b32.xlu0 %v987, 113
        %v1786 = vpop.permute.xlu0 %1785
        %1787 = vrot.lane.b32.xlu0 %v1003, 113
        %v1788 = vpop.permute.xlu0 %1787
        %1789 = vrot.lane.b32.xlu0 %v988, 113
        %v1790 = vpop.permute.xlu0 %1789
        %1791 = vrot.lane.b32.xlu0 %v1004, 113
        %v1792 = vpop.permute.xlu0 %1791
        %1793 = vrot.lane.b32.xlu0 %v989, 113
        %v1794 = vpop.permute.xlu0 %1793
        %1795 = vrot.lane.b32.xlu0 %v1005, 113
        %v1796 = vpop.permute.xlu0 %1795
        %vm1797 = vcmp.lt.s32.totalorder %v1047, 113
        %v1798 = vsel %vm1797, %v1794, %v1796
        %v1799 = vsel %vm1797, %v1792, %v1794
        %v1800 = vsel %vm1797, %v1790, %v1792
        %v1801 = vsel %vm1797, %v1788, %v1790
        %v1802 = vsel %vm1797, %v1786, %v1788
        %v1803 = vsel %vm1797, %v1784, %v1786
        %v1804 = vsel %vm1797, %v1782, %v1784
        %v1805 = vsel %vm1797, %v1780, %v1782
        %v1806 = vsel %vm1797, %v1778, %v1780
        %v1807 = vsel %vm1797, %v1776, %v1778
        %v1808 = vsel %vm1797, %v1774, %v1776
        %v1809 = vsel %vm1797, %v1772, %v1774
        %v1810 = vsel %vm1797, %v1770, %v1772
        %v1811 = vsel %vm1797, %v1768, %v1770
        %v1812 = vsel %vm1797, %v1766, %v1768
        %v1813 = vsel %vm1797, %v1796, %v1766
        %s1814 = scalar_lea.vmem [#allocation7], 96
        %v1815 = vld [vmem:[%s1814] sm:$0xff]
        %v1816 = vld [vmem:[%s1814 + $0x8] sm:$0xff]
        %v1819 = vlaneseq
        %v1820 = vshrl.u32 %v1819, 7
        %v1821 = vsub.s32 0, %v1820
        %v1822 = vrot.slane %v1815, %v1821
        %v1823 = vlaneseq
        %v1824 = vshrl.u32 %v1823, 7
        %v1825 = vsub.s32 1, %v1824
        %v1826 = vrot.slane %v1815, %v1825
        %v1827 = vlaneseq
        %v1828 = vshrl.u32 %v1827, 7
        %v1829 = vsub.s32 2, %v1828
        %v1830 = vrot.slane %v1815, %v1829
        %v1831 = vlaneseq
        %v1832 = vshrl.u32 %v1831, 7
        %v1833 = vsub.s32 3, %v1832
        %v1834 = vrot.slane %v1815, %v1833
        %v1835 = vlaneseq
        %v1836 = vshrl.u32 %v1835, 7
        %v1837 = vsub.s32 4, %v1836
        %v1838 = vrot.slane %v1815, %v1837
        %v1839 = vlaneseq
        %v1840 = vshrl.u32 %v1839, 7
        %v1841 = vsub.s32 5, %v1840
        %v1842 = vrot.slane %v1815, %v1841
        %v1843 = vlaneseq
        %v1844 = vshrl.u32 %v1843, 7
        %v1845 = vsub.s32 6, %v1844
        %v1846 = vrot.slane %v1815, %v1845
        %v1847 = vlaneseq
        %v1848 = vshrl.u32 %v1847, 7
        %v1849 = vsub.s32 7, %v1848
        %v1850 = vrot.slane %v1815, %v1849
        %v1851 = vlaneseq
        %v1852 = vshrl.u32 %v1851, 7
        %v1853 = vsub.s32 0, %v1852
        %v1854 = vrot.slane %v1816, %v1853
        %v1855 = vlaneseq
        %v1856 = vshrl.u32 %v1855, 7
        %v1857 = vsub.s32 1, %v1856
        %v1858 = vrot.slane %v1816, %v1857
        %v1859 = vlaneseq
        %v1860 = vshrl.u32 %v1859, 7
        %v1861 = vsub.s32 2, %v1860
        %v1862 = vrot.slane %v1816, %v1861
        %v1863 = vlaneseq
        %v1864 = vshrl.u32 %v1863, 7
        %v1865 = vsub.s32 3, %v1864
        %v1866 = vrot.slane %v1816, %v1865
        %v1867 = vlaneseq
        %v1868 = vshrl.u32 %v1867, 7
        %v1869 = vsub.s32 4, %v1868
        %v1870 = vrot.slane %v1816, %v1869
        %v1871 = vlaneseq
        %v1872 = vshrl.u32 %v1871, 7
        %v1873 = vsub.s32 5, %v1872
        %v1874 = vrot.slane %v1816, %v1873
        %v1875 = vlaneseq
        %v1876 = vshrl.u32 %v1875, 7
        %v1877 = vsub.s32 6, %v1876
        %v1878 = vrot.slane %v1816, %v1877
        %v1879 = vlaneseq
        %v1880 = vshrl.u32 %v1879, 7
        %v1881 = vsub.s32 7, %v1880
        %v1882 = vrot.slane %v1816, %v1881
        %v1899 = vmul.f32 %v1812, %v1822
        %v1900 = vmul.f32 %v1811, %v1826
        %v1901 = vmul.f32 %v1810, %v1830
        %v1902 = vmul.f32 %v1809, %v1834
        %v1903 = vmul.f32 %v1808, %v1838
        %v1904 = vmul.f32 %v1807, %v1842
        %v1905 = vmul.f32 %v1806, %v1846
        %v1906 = vmul.f32 %v1805, %v1850
        %v1907 = vmul.f32 %v1804, %v1854
        %v1908 = vmul.f32 %v1803, %v1858
        %v1909 = vmul.f32 %v1802, %v1862
        %v1910 = vmul.f32 %v1801, %v1866
        %v1911 = vmul.f32 %v1800, %v1870
        %v1912 = vmul.f32 %v1799, %v1874
        %v1913 = vmul.f32 %v1798, %v1878
        %v1914 = vmul.f32 %v1813, %v1882
        %1915 = vrot.lane.b32.xlu0 %v982, 112
        %v1916 = vpop.permute.xlu0 %1915
        %1917 = vrot.lane.b32.xlu0 %v998, 112
        %v1918 = vpop.permute.xlu0 %1917
        %1919 = vrot.lane.b32.xlu0 %v983, 112
        %v1920 = vpop.permute.xlu0 %1919
        %1921 = vrot.lane.b32.xlu0 %v999, 112
        %v1922 = vpop.permute.xlu0 %1921
        %1923 = vrot.lane.b32.xlu0 %v984, 112
        %v1924 = vpop.permute.xlu0 %1923
        %1925 = vrot.lane.b32.xlu0 %v1000, 112
        %v1926 = vpop.permute.xlu0 %1925
        %1927 = vrot.lane.b32.xlu0 %v985, 112
        %v1928 = vpop.permute.xlu0 %1927
        %1929 = vrot.lane.b32.xlu0 %v1001, 112
        %v1930 = vpop.permute.xlu0 %1929
        %1931 = vrot.lane.b32.xlu0 %v986, 112
        %v1932 = vpop.permute.xlu0 %1931
        %1933 = vrot.lane.b32.xlu0 %v1002, 112
        %v1934 = vpop.permute.xlu0 %1933
        %1935 = vrot.lane.b32.xlu0 %v987, 112
        %v1936 = vpop.permute.xlu0 %1935
        %1937 = vrot.lane.b32.xlu0 %v1003, 112
        %v1938 = vpop.permute.xlu0 %1937
        %1939 = vrot.lane.b32.xlu0 %v988, 112
        %v1940 = vpop.permute.xlu0 %1939
        %1941 = vrot.lane.b32.xlu0 %v1004, 112
        %v1942 = vpop.permute.xlu0 %1941
        %1943 = vrot.lane.b32.xlu0 %v989, 112
        %v1944 = vpop.permute.xlu0 %1943
        %1945 = vrot.lane.b32.xlu0 %v1005, 112
        %v1946 = vpop.permute.xlu0 %1945
        %vm1947 = vcmp.lt.s32.totalorder %v1047, 112
        %v1948 = vsel %vm1947, %v1944, %v1946
        %v1949 = vsel %vm1947, %v1942, %v1944
        %v1950 = vsel %vm1947, %v1940, %v1942
        %v1951 = vsel %vm1947, %v1938, %v1940
        %v1952 = vsel %vm1947, %v1936, %v1938
        %v1953 = vsel %vm1947, %v1934, %v1936
        %v1954 = vsel %vm1947, %v1932, %v1934
        %v1955 = vsel %vm1947, %v1930, %v1932
        %v1956 = vsel %vm1947, %v1928, %v1930
        %v1957 = vsel %vm1947, %v1926, %v1928
        %v1958 = vsel %vm1947, %v1924, %v1926
        %v1959 = vsel %vm1947, %v1922, %v1924
        %v1960 = vsel %vm1947, %v1920, %v1922
        %v1961 = vsel %vm1947, %v1918, %v1920
        %v1962 = vsel %vm1947, %v1916, %v1918
        %v1963 = vsel %vm1947, %v1946, %v1916
        %s1964 = scalar_lea.vmem [#allocation7], 112
        %v1965 = vld [vmem:[%s1964] sm:$0xff]
        %v1966 = vld [vmem:[%s1964 + $0x8] sm:$0xff]
        %v1969 = vlaneseq
        %v1970 = vshrl.u32 %v1969, 7
        %v1971 = vsub.s32 0, %v1970
        %v1972 = vrot.slane %v1965, %v1971
        %v1973 = vlaneseq
        %v1974 = vshrl.u32 %v1973, 7
        %v1975 = vsub.s32 1, %v1974
        %v1976 = vrot.slane %v1965, %v1975
        %v1977 = vlaneseq
        %v1978 = vshrl.u32 %v1977, 7
        %v1979 = vsub.s32 2, %v1978
        %v1980 = vrot.slane %v1965, %v1979
        %v1981 = vlaneseq
        %v1982 = vshrl.u32 %v1981, 7
        %v1983 = vsub.s32 3, %v1982
        %v1984 = vrot.slane %v1965, %v1983
        %v1985 = vlaneseq
        %v1986 = vshrl.u32 %v1985, 7
        %v1987 = vsub.s32 4, %v1986
        %v1988 = vrot.slane %v1965, %v1987
        %v1989 = vlaneseq
        %v1990 = vshrl.u32 %v1989, 7
        %v1991 = vsub.s32 5, %v1990
        %v1992 = vrot.slane %v1965, %v1991
        %v1993 = vlaneseq
        %v1994 = vshrl.u32 %v1993, 7
        %v1995 = vsub.s32 6, %v1994
        %v1996 = vrot.slane %v1965, %v1995
        %v1997 = vlaneseq
        %v1998 = vshrl.u32 %v1997, 7
        %v1999 = vsub.s32 7, %v1998
        %v2000 = vrot.slane %v1965, %v1999
        %v2001 = vlaneseq
        %v2002 = vshrl.u32 %v2001, 7
        %v2003 = vsub.s32 0, %v2002
        %v2004 = vrot.slane %v1966, %v2003
        %v2005 = vlaneseq
        %v2006 = vshrl.u32 %v2005, 7
        %v2007 = vsub.s32 1, %v2006
        %v2008 = vrot.slane %v1966, %v2007
        %v2009 = vlaneseq
        %v2010 = vshrl.u32 %v2009, 7
        %v2011 = vsub.s32 2, %v2010
        %v2012 = vrot.slane %v1966, %v2011
        %v2013 = vlaneseq
        %v2014 = vshrl.u32 %v2013, 7
        %v2015 = vsub.s32 3, %v2014
        %v2016 = vrot.slane %v1966, %v2015
        %v2017 = vlaneseq
        %v2018 = vshrl.u32 %v2017, 7
        %v2019 = vsub.s32 4, %v2018
        %v2020 = vrot.slane %v1966, %v2019
        %v2021 = vlaneseq
        %v2022 = vshrl.u32 %v2021, 7
        %v2023 = vsub.s32 5, %v2022
        %v2024 = vrot.slane %v1966, %v2023
        %v2025 = vlaneseq
        %v2026 = vshrl.u32 %v2025, 7
        %v2027 = vsub.s32 6, %v2026
        %v2028 = vrot.slane %v1966, %v2027
        %v2029 = vlaneseq
        %v2030 = vshrl.u32 %v2029, 7
        %v2031 = vsub.s32 7, %v2030
        %v2032 = vrot.slane %v1966, %v2031
        %v2049 = vmul.f32 %v1962, %v1972
        %v2050 = vmul.f32 %v1961, %v1976
        %v2051 = vmul.f32 %v1960, %v1980
        %v2052 = vmul.f32 %v1959, %v1984
        %v2053 = vmul.f32 %v1958, %v1988
        %v2054 = vmul.f32 %v1957, %v1992
        %v2055 = vmul.f32 %v1956, %v1996
        %v2056 = vmul.f32 %v1955, %v2000
        %v2057 = vmul.f32 %v1954, %v2004
        %v2058 = vmul.f32 %v1953, %v2008
        %v2059 = vmul.f32 %v1952, %v2012
        %v2060 = vmul.f32 %v1951, %v2016
        %v2061 = vmul.f32 %v1950, %v2020
        %v2062 = vmul.f32 %v1949, %v2024
        %v2063 = vmul.f32 %v1948, %v2028
        %v2064 = vmul.f32 %v1963, %v2032
        %2065 = vrot.lane.b32.xlu0 %v982, 111
        %v2066 = vpop.permute.xlu0 %2065
        %2067 = vrot.lane.b32.xlu0 %v998, 111
        %v2068 = vpop.permute.xlu0 %2067
        %2069 = vrot.lane.b32.xlu0 %v983, 111
        %v2070 = vpop.permute.xlu0 %2069
        %2071 = vrot.lane.b32.xlu0 %v999, 111
        %v2072 = vpop.permute.xlu0 %2071
        %2073 = vrot.lane.b32.xlu0 %v984, 111
        %v2074 = vpop.permute.xlu0 %2073
        %2075 = vrot.lane.b32.xlu0 %v1000, 111
        %v2076 = vpop.permute.xlu0 %2075
        %2077 = vrot.lane.b32.xlu0 %v985, 111
        %v2078 = vpop.permute.xlu0 %2077
        %2079 = vrot.lane.b32.xlu0 %v1001, 111
        %v2080 = vpop.permute.xlu0 %2079
        %2081 = vrot.lane.b32.xlu0 %v986, 111
        %v2082 = vpop.permute.xlu0 %2081
        %2083 = vrot.lane.b32.xlu0 %v1002, 111
        %v2084 = vpop.permute.xlu0 %2083
        %2085 = vrot.lane.b32.xlu0 %v987, 111
        %v2086 = vpop.permute.xlu0 %2085
        %2087 = vrot.lane.b32.xlu0 %v1003, 111
        %v2088 = vpop.permute.xlu0 %2087
        %2089 = vrot.lane.b32.xlu0 %v988, 111
        %v2090 = vpop.permute.xlu0 %2089
        %2091 = vrot.lane.b32.xlu0 %v1004, 111
        %v2092 = vpop.permute.xlu0 %2091
        %2093 = vrot.lane.b32.xlu0 %v989, 111
        %v2094 = vpop.permute.xlu0 %2093
        %2095 = vrot.lane.b32.xlu0 %v1005, 111
        %v2096 = vpop.permute.xlu0 %2095
        %vm2097 = vcmp.lt.s32.totalorder %v1047, 111
        %v2098 = vsel %vm2097, %v2094, %v2096
        %v2099 = vsel %vm2097, %v2092, %v2094
        %v2100 = vsel %vm2097, %v2090, %v2092
        %v2101 = vsel %vm2097, %v2088, %v2090
        %v2102 = vsel %vm2097, %v2086, %v2088
        %v2103 = vsel %vm2097, %v2084, %v2086
        %v2104 = vsel %vm2097, %v2082, %v2084
        %v2105 = vsel %vm2097, %v2080, %v2082
        %v2106 = vsel %vm2097, %v2078, %v2080
        %v2107 = vsel %vm2097, %v2076, %v2078
        %v2108 = vsel %vm2097, %v2074, %v2076
        %v2109 = vsel %vm2097, %v2072, %v2074
        %v2110 = vsel %vm2097, %v2070, %v2072
        %v2111 = vsel %vm2097, %v2068, %v2070
        %v2112 = vsel %vm2097, %v2066, %v2068
        %v2113 = vsel %vm2097, %v2096, %v2066
        %s2114 = scalar_lea.vmem [#allocation7], 128
        %v2115 = vld [vmem:[%s2114] sm:$0xff]
        %v2116 = vld [vmem:[%s2114 + $0x8] sm:$0xff]
        %v2119 = vlaneseq
        %v2120 = vshrl.u32 %v2119, 7
        %v2121 = vsub.s32 0, %v2120
        %v2122 = vrot.slane %v2115, %v2121
        %v2123 = vlaneseq
        %v2124 = vshrl.u32 %v2123, 7
        %v2125 = vsub.s32 1, %v2124
        %v2126 = vrot.slane %v2115, %v2125
        %v2127 = vlaneseq
        %v2128 = vshrl.u32 %v2127, 7
        %v2129 = vsub.s32 2, %v2128
        %v2130 = vrot.slane %v2115, %v2129
        %v2131 = vlaneseq
        %v2132 = vshrl.u32 %v2131, 7
        %v2133 = vsub.s32 3, %v2132
        %v2134 = vrot.slane %v2115, %v2133
        %v2135 = vlaneseq
        %v2136 = vshrl.u32 %v2135, 7
        %v2137 = vsub.s32 4, %v2136
        %v2138 = vrot.slane %v2115, %v2137
        %v2139 = vlaneseq
        %v2140 = vshrl.u32 %v2139, 7
        %v2141 = vsub.s32 5, %v2140
        %v2142 = vrot.slane %v2115, %v2141
        %v2143 = vlaneseq
        %v2144 = vshrl.u32 %v2143, 7
        %v2145 = vsub.s32 6, %v2144
        %v2146 = vrot.slane %v2115, %v2145
        %v2147 = vlaneseq
        %v2148 = vshrl.u32 %v2147, 7
        %v2149 = vsub.s32 7, %v2148
        %v2150 = vrot.slane %v2115, %v2149
        %v2151 = vlaneseq
        %v2152 = vshrl.u32 %v2151, 7
        %v2153 = vsub.s32 0, %v2152
        %v2154 = vrot.slane %v2116, %v2153
        %v2155 = vlaneseq
        %v2156 = vshrl.u32 %v2155, 7
        %v2157 = vsub.s32 1, %v2156
        %v2158 = vrot.slane %v2116, %v2157
        %v2159 = vlaneseq
        %v2160 = vshrl.u32 %v2159, 7
        %v2161 = vsub.s32 2, %v2160
        %v2162 = vrot.slane %v2116, %v2161
        %v2163 = vlaneseq
        %v2164 = vshrl.u32 %v2163, 7
        %v2165 = vsub.s32 3, %v2164
        %v2166 = vrot.slane %v2116, %v2165
        %v2167 = vlaneseq
        %v2168 = vshrl.u32 %v2167, 7
        %v2169 = vsub.s32 4, %v2168
        %v2170 = vrot.slane %v2116, %v2169
        %v2171 = vlaneseq
        %v2172 = vshrl.u32 %v2171, 7
        %v2173 = vsub.s32 5, %v2172
        %v2174 = vrot.slane %v2116, %v2173
        %v2175 = vlaneseq
        %v2176 = vshrl.u32 %v2175, 7
        %v2177 = vsub.s32 6, %v2176
        %v2178 = vrot.slane %v2116, %v2177
        %v2179 = vlaneseq
        %v2180 = vshrl.u32 %v2179, 7
        %v2181 = vsub.s32 7, %v2180
        %v2182 = vrot.slane %v2116, %v2181
        %v2199 = vmul.f32 %v2112, %v2122
        %v2200 = vmul.f32 %v2111, %v2126
        %v2201 = vmul.f32 %v2110, %v2130
        %v2202 = vmul.f32 %v2109, %v2134
        %v2203 = vmul.f32 %v2108, %v2138
        %v2204 = vmul.f32 %v2107, %v2142
        %v2205 = vmul.f32 %v2106, %v2146
        %v2206 = vmul.f32 %v2105, %v2150
        %v2207 = vmul.f32 %v2104, %v2154
        %v2208 = vmul.f32 %v2103, %v2158
        %v2209 = vmul.f32 %v2102, %v2162
        %v2210 = vmul.f32 %v2101, %v2166
        %v2211 = vmul.f32 %v2100, %v2170
        %v2212 = vmul.f32 %v2099, %v2174
        %v2213 = vmul.f32 %v2098, %v2178
        %v2214 = vmul.f32 %v2113, %v2182
        %v2231 = vrot.slane %v1299, 5
        %v2232 = vrot.slane %v1300, 5
        %v2233 = vrot.slane %v1301, 5
        %v2234 = vrot.slane %v1302, 5
        %v2235 = vrot.slane %v1303, 5
        %v2236 = vrot.slane %v1304, 5
        %v2237 = vrot.slane %v1305, 5
        %v2238 = vrot.slane %v1306, 5
        %v2239 = vrot.slane %v1307, 5
        %v2240 = vrot.slane %v1308, 5
        %v2241 = vrot.slane %v1309, 5
        %v2242 = vrot.slane %v1310, 5
        %v2243 = vrot.slane %v1311, 5
        %v2244 = vrot.slane %v1312, 5
        %v2245 = vrot.slane %v1313, 5
        %v2246 = vrot.slane %v1314, 5
        %v2279 = vrot.slane %v1449, 2
        %v2280 = vrot.slane %v1450, 2
        %v2281 = vrot.slane %v1451, 2
        %v2282 = vrot.slane %v1452, 2
        %v2283 = vrot.slane %v1453, 2
        %v2284 = vrot.slane %v1454, 2
        %v2285 = vrot.slane %v1455, 2
        %v2286 = vrot.slane %v1456, 2
        %v2287 = vrot.slane %v1457, 2
        %v2288 = vrot.slane %v1458, 2
        %v2289 = vrot.slane %v1459, 2
        %v2290 = vrot.slane %v1460, 2
        %v2291 = vrot.slane %v1461, 2
        %v2292 = vrot.slane %v1462, 2
        %v2293 = vrot.slane %v1463, 2
        %v2294 = vrot.slane %v1464, 2
        %v2327 = vrot.slane %v1599, 7
        %v2328 = vrot.slane %v1600, 7
        %v2329 = vrot.slane %v1601, 7
        %v2330 = vrot.slane %v1602, 7
        %v2331 = vrot.slane %v1603, 7
        %v2332 = vrot.slane %v1604, 7
        %v2333 = vrot.slane %v1605, 7
        %v2334 = vrot.slane %v1606, 7
        %v2335 = vrot.slane %v1607, 7
        %v2336 = vrot.slane %v1608, 7
        %v2337 = vrot.slane %v1609, 7
        %v2338 = vrot.slane %v1610, 7
        %v2339 = vrot.slane %v1611, 7
        %v2340 = vrot.slane %v1612, 7
        %v2341 = vrot.slane %v1613, 7
        %v2342 = vrot.slane %v1614, 7
        %v2359 = vcombine.low %v982, %v982
        %v2360 = vcombine.low %v983, %v983
        %v2361 = vcombine.low %v984, %v984
        %v2362 = vcombine.low %v985, %v985
        %v2363 = vcombine.low %v986, %v986
        %v2364 = vcombine.low %v987, %v987
        %v2365 = vcombine.low %v988, %v988
        %v2366 = vcombine.low %v989, %v989
        %v2391 = vrot.slane %v1749, 1
        %v2392 = vrot.slane %v1750, 1
        %v2393 = vrot.slane %v1751, 1
        %v2394 = vrot.slane %v1752, 1
        %v2395 = vrot.slane %v1753, 1
        %v2396 = vrot.slane %v1754, 1
        %v2397 = vrot.slane %v1755, 1
        %v2398 = vrot.slane %v1756, 1
        %v2399 = vrot.slane %v1757, 1
        %v2400 = vrot.slane %v1758, 1
        %v2401 = vrot.slane %v1759, 1
        %v2402 = vrot.slane %v1760, 1
        %v2403 = vrot.slane %v1761, 1
        %v2404 = vrot.slane %v1762, 1
        %v2405 = vrot.slane %v1763, 1
        %v2406 = vrot.slane %v1764, 1
        %v2439 = vrot.slane %v1899, 6
        %v2440 = vrot.slane %v1900, 6
        %v2441 = vrot.slane %v1901, 6
        %v2442 = vrot.slane %v1902, 6
        %v2443 = vrot.slane %v1903, 6
        %v2444 = vrot.slane %v1904, 6
        %v2445 = vrot.slane %v1905, 6
        %v2446 = vrot.slane %v1906, 6
        %v2447 = vrot.slane %v1907, 6
        %v2448 = vrot.slane %v1908, 6
        %v2449 = vrot.slane %v1909, 6
        %v2450 = vrot.slane %v1910, 6
        %v2451 = vrot.slane %v1911, 6
        %v2452 = vrot.slane %v1912, 6
        %v2453 = vrot.slane %v1913, 6
        %v2454 = vrot.slane %v1914, 6
        %v2487 = vrot.slane %v2049, 3
        %v2488 = vrot.slane %v2050, 3
        %v2489 = vrot.slane %v2051, 3
        %v2490 = vrot.slane %v2052, 3
        %v2491 = vrot.slane %v2053, 3
        %v2492 = vrot.slane %v2054, 3
        %v2493 = vrot.slane %v2055, 3
        %v2494 = vrot.slane %v2056, 3
        %v2495 = vrot.slane %v2057, 3
        %v2496 = vrot.slane %v2058, 3
        %v2497 = vrot.slane %v2059, 3
        %v2498 = vrot.slane %v2060, 3
        %v2499 = vrot.slane %v2061, 3
        %v2500 = vrot.slane %v2062, 3
        %v2501 = vrot.slane %v2063, 3
        %v2502 = vrot.slane %v2064, 3
        %vm2519 = vcmask 1042432
        %v2520 = vsel %vm2519, %v1149, %v2231
        %v2521 = vsel %vm2519, %v1150, %v2232
        %v2522 = vsel %vm2519, %v1151, %v2233
        %v2523 = vsel %vm2519, %v1152, %v2234
        %v2524 = vsel %vm2519, %v1153, %v2235
        %v2525 = vsel %vm2519, %v1154, %v2236
        %v2526 = vsel %vm2519, %v1155, %v2237
        %v2527 = vsel %vm2519, %v1156, %v2238
        %v2528 = vsel %vm2519, %v1157, %v2239
        %v2529 = vsel %vm2519, %v1158, %v2240
        %v2530 = vsel %vm2519, %v1159, %v2241
        %v2531 = vsel %vm2519, %v1160, %v2242
        %v2532 = vsel %vm2519, %v1161, %v2243
        %v2533 = vsel %vm2519, %v1162, %v2244
        %v2534 = vsel %vm2519, %v1163, %v2245
        %v2535 = vsel %vm2519, %v1164, %v2246
        %vm2536 = vcmask 1045504
        %v2537 = vsel %vm2536, %v2520, %v2279
        %v2538 = vsel %vm2536, %v2521, %v2280
        %v2539 = vsel %vm2536, %v2522, %v2281
        %v2540 = vsel %vm2536, %v2523, %v2282
        %v2541 = vsel %vm2536, %v2524, %v2283
        %v2542 = vsel %vm2536, %v2525, %v2284
        %v2543 = vsel %vm2536, %v2526, %v2285
        %v2544 = vsel %vm2536, %v2527, %v2286
        %v2545 = vsel %vm2536, %v2528, %v2287
        %v2546 = vsel %vm2536, %v2529, %v2288
        %v2547 = vsel %vm2536, %v2530, %v2289
        %v2548 = vsel %vm2536, %v2531, %v2290
        %v2549 = vsel %vm2536, %v2532, %v2291
        %v2550 = vsel %vm2536, %v2533, %v2292
        %v2551 = vsel %vm2536, %v2534, %v2293
        %v2552 = vsel %vm2536, %v2535, %v2294
        %vm2553 = vcmask 1040384
        %v2554 = vsel %vm2553, %v2279, %v2327
        %v2555 = vsel %vm2553, %v2280, %v2328
        %v2556 = vsel %vm2553, %v2281, %v2329
        %v2557 = vsel %vm2553, %v2282, %v2330
        %v2558 = vsel %vm2553, %v2283, %v2331
        %v2559 = vsel %vm2553, %v2284, %v2332
        %v2560 = vsel %vm2553, %v2285, %v2333
        %v2561 = vsel %vm2553, %v2286, %v2334
        %v2562 = vsel %vm2553, %v2287, %v2335
        %v2563 = vsel %vm2553, %v2288, %v2336
        %v2564 = vsel %vm2553, %v2289, %v2337
        %v2565 = vsel %vm2553, %v2290, %v2338
        %v2566 = vsel %vm2553, %v2291, %v2339
        %v2567 = vsel %vm2553, %v2292, %v2340
        %v2568 = vsel %vm2553, %v2293, %v2341
        %v2569 = vsel %vm2553, %v2294, %v2342
        %vm2570 = vcmask 1043456
        %v2571 = vsel %vm2570, %v2554, %v2359
        %v2572 = vsel %vm2570, %v2555, %v982
        %v2573 = vsel %vm2570, %v2556, %v2360
        %v2574 = vsel %vm2570, %v2557, %v983
        %v2575 = vsel %vm2570, %v2558, %v2361
        %v2576 = vsel %vm2570, %v2559, %v984
        %v2577 = vsel %vm2570, %v2560, %v2362
        %v2578 = vsel %vm2570, %v2561, %v985
        %v2579 = vsel %vm2570, %v2562, %v2363
        %v2580 = vsel %vm2570, %v2563, %v986
        %v2581 = vsel %vm2570, %v2564, %v2364
        %v2582 = vsel %vm2570, %v2565, %v987
        %v2583 = vsel %vm2570, %v2566, %v2365
        %v2584 = vsel %vm2570, %v2567, %v988
        %v2585 = vsel %vm2570, %v2568, %v2366
        %v2586 = vsel %vm2570, %v2569, %v989
        %vm2587 = vcmask 1046528
        %v2588 = vsel %vm2587, %v2571, %v2391
        %v2589 = vsel %vm2587, %v2572, %v2392
        %v2590 = vsel %vm2587, %v2573, %v2393
        %v2591 = vsel %vm2587, %v2574, %v2394
        %v2592 = vsel %vm2587, %v2575, %v2395
        %v2593 = vsel %vm2587, %v2576, %v2396
        %v2594 = vsel %vm2587, %v2577, %v2397
        %v2595 = vsel %vm2587, %v2578, %v2398
        %v2596 = vsel %vm2587, %v2579, %v2399
        %v2597 = vsel %vm2587, %v2580, %v2400
        %v2598 = vsel %vm2587, %v2581, %v2401
        %v2599 = vsel %vm2587, %v2582, %v2402
        %v2600 = vsel %vm2587, %v2583, %v2403
        %v2601 = vsel %vm2587, %v2584, %v2404
        %v2602 = vsel %vm2587, %v2585, %v2405
        %v2603 = vsel %vm2587, %v2586, %v2406
        %vm2604 = vcmask 1041408
        %v2605 = vsel %vm2604, %v2391, %v2439
        %v2606 = vsel %vm2604, %v2392, %v2440
        %v2607 = vsel %vm2604, %v2393, %v2441
        %v2608 = vsel %vm2604, %v2394, %v2442
        %v2609 = vsel %vm2604, %v2395, %v2443
        %v2610 = vsel %vm2604, %v2396, %v2444
        %v2611 = vsel %vm2604, %v2397, %v2445
        %v2612 = vsel %vm2604, %v2398, %v2446
        %v2613 = vsel %vm2604, %v2399, %v2447
        %v2614 = vsel %vm2604, %v2400, %v2448
        %v2615 = vsel %vm2604, %v2401, %v2449
        %v2616 = vsel %vm2604, %v2402, %v2450
        %v2617 = vsel %vm2604, %v2403, %v2451
        %v2618 = vsel %vm2604, %v2404, %v2452
        %v2619 = vsel %vm2604, %v2405, %v2453
        %v2620 = vsel %vm2604, %v2406, %v2454
        %vm2621 = vcmask 1044480
        %v2622 = vsel %vm2621, %v2605, %v2487
        %v2623 = vsel %vm2621, %v2606, %v2488
        %v2624 = vsel %vm2621, %v2607, %v2489
        %v2625 = vsel %vm2621, %v2608, %v2490
        %v2626 = vsel %vm2621, %v2609, %v2491
        %v2627 = vsel %vm2621, %v2610, %v2492
        %v2628 = vsel %vm2621, %v2611, %v2493
        %v2629 = vsel %vm2621, %v2612, %v2494
        %v2630 = vsel %vm2621, %v2613, %v2495
        %v2631 = vsel %vm2621, %v2614, %v2496
        %v2632 = vsel %vm2621, %v2615, %v2497
        %v2633 = vsel %vm2621, %v2616, %v2498
        %v2634 = vsel %vm2621, %v2617, %v2499
        %v2635 = vsel %vm2621, %v2618, %v2500
        %v2636 = vsel %vm2621, %v2619, %v2501
        %v2637 = vsel %vm2621, %v2620, %v2502
        %v2638 = vpack.c.bf16 %v2588, %v2537
        %v2639 = vpack.c.bf16 %v2589, %v2538
        %v2640 = vpack.c.bf16 %v2590, %v2539
        %v2641 = vpack.c.bf16 %v2591, %v2540
        %v2642 = vpack.c.bf16 %v2592, %v2541
        %v2643 = vpack.c.bf16 %v2593, %v2542
        %v2644 = vpack.c.bf16 %v2594, %v2543
        %v2645 = vpack.c.bf16 %v2595, %v2544
        %v2646 = vpack.c.bf16 %v2596, %v2545
        %v2647 = vpack.c.bf16 %v2597, %v2546
        %v2648 = vpack.c.bf16 %v2598, %v2547
        %v2649 = vpack.c.bf16 %v2599, %v2548
        %v2650 = vpack.c.bf16 %v2600, %v2549
        %v2651 = vpack.c.bf16 %v2601, %v2550
        %v2652 = vpack.c.bf16 %v2602, %v2551
        %v2653 = vpack.c.bf16 %v2603, %v2552
        %v2654 = vpack.c.bf16 %v2199, %v2622
        %v2655 = vpack.c.bf16 %v2200, %v2623
        %v2656 = vpack.c.bf16 %v2201, %v2624
        %v2657 = vpack.c.bf16 %v2202, %v2625
        %v2658 = vpack.c.bf16 %v2203, %v2626
        %v2659 = vpack.c.bf16 %v2204, %v2627
        %v2660 = vpack.c.bf16 %v2205, %v2628
        %v2661 = vpack.c.bf16 %v2206, %v2629
        %v2662 = vpack.c.bf16 %v2207, %v2630
        %v2663 = vpack.c.bf16 %v2208, %v2631
        %v2664 = vpack.c.bf16 %v2209, %v2632
        %v2665 = vpack.c.bf16 %v2210, %v2633
        %v2666 = vpack.c.bf16 %v2211, %v2634
        %v2667 = vpack.c.bf16 %v2212, %v2635
        %v2668 = vpack.c.bf16 %v2213, %v2636
        %v2669 = vpack.c.bf16 %v2214, %v2637
        %v2670 = vld [vmem:[#allocation5] sm:$0xf]
        %vm2671 = vcmask 220160
        %v2673 = vsel %vm2671, %v2670, 0
        %v2675 = vsel %vm2621, 4294967295, 65535
        %v2676 = vsel %vm2536, %v2675, 0
        %v2678 = vand.u32 %v2654, %v2676
        %v2681 = vand.u32 %v2655, %v2676
        %v2684 = vand.u32 %v2656, %v2676
        %v2687 = vand.u32 %v2657, %v2676
        %v2690 = vand.u32 %v2658, %v2676
        %v2693 = vand.u32 %v2659, %v2676
        %v2696 = vand.u32 %v2660, %v2676
        %v2699 = vand.u32 %v2661, %v2676
        %v2702 = vand.u32 %v2662, %v2676
        %v2705 = vand.u32 %v2663, %v2676
        %v2708 = vand.u32 %v2664, %v2676
        %v2711 = vand.u32 %v2665, %v2676
        %v2714 = vand.u32 %v2666, %v2676
        %v2717 = vand.u32 %v2667, %v2676
        %v2720 = vand.u32 %v2668, %v2676
        %v2723 = vand.u32 %v2669, %v2676
        %2725 = vmatprep.subr.bf16.mxu0 0
        %2726 = vmatpush1.bf16.msra.mxu0 0
        %2727 = vmatprep.subr.bf16.mxu0 0
        %2728 = vmatpush1.bf16.msra.mxu0 0
        %2729 = vmatprep.subr.bf16.mxu0 0
        %2730 = vmatpush1.bf16.msra.mxu0 0
        %2731 = vmatprep.subr.bf16.mxu0 0
        %2732 = vmatpush1.bf16.msra.mxu0 0
        %2733 = vmatprep.subr.bf16.mxu0 0
        %2734 = vmatpush1.bf16.msra.mxu0 0
        %2735 = vmatprep.subr.bf16.mxu0 0
        %2736 = vmatpush1.bf16.msra.mxu0 0
        %2737 = vmatprep.subr.bf16.mxu0 %v2681
        %2738 = vmatpush1.bf16.msra.mxu0 %v2678
        %2739 = vmatprep.subr.bf16.mxu0 %v2639
        %2740 = vmatpush1.bf16.msra.mxu0 %v2638
        %2741 = vmatprep.subr.bf16.mxu0 0
        %2742 = vmatpush2.bf16.msra.mxu0 0
        %2743 = vmatprep.subr.bf16.mxu0 0
        %2744 = vmatpush2.bf16.msra.mxu0 0
        %2745 = vmatprep.subr.bf16.mxu0 0
        %2746 = vmatpush2.bf16.msra.mxu0 0
        %2747 = vmatprep.subr.bf16.mxu0 0
        %2748 = vmatpush2.bf16.msra.mxu0 0
        %2749 = vmatprep.subr.bf16.mxu0 0
        %2750 = vmatpush2.bf16.msra.mxu0 0
        %2751 = vmatprep.subr.bf16.mxu0 0
        %2752 = vmatpush2.bf16.msra.mxu0 0
        %2753 = vmatprep.subr.bf16.mxu0 0
        %2754 = vmatpush2.bf16.msra.mxu0 0
        %2755 = vmatprep.subr.bf16.mxu0 0
        %2756 = vmatpush2.bf16.msra.mxu0 0
        %2757 = vmatprep.mubr.bf16.mxu0 0
        %2758 = vmatmul.mubr.bf16.gmra.mxu0 %v2673
        %v2759 = vpop.f32.mrf.mxu0
        %v2760 = vadd.f32 0.0, %v2759
        %v2761 = vpop.f32.mrf.mxu0
        %v2762 = vadd.f32 0.0, %v2761
        %v2763 = vpop.f32.mrf.mxu0
        %v2764 = vpop.f32.mrf.mxu0
        %2765 = vdwg.mxu0
        %2766 = vmatprep.subr.bf16.mxu0 0
        %2767 = vmatpush1.bf16.msra.mxu0 0
        %2768 = vmatprep.subr.bf16.mxu0 0
        %2769 = vmatpush1.bf16.msra.mxu0 0
        %2770 = vmatprep.subr.bf16.mxu0 0
        %2771 = vmatpush1.bf16.msra.mxu0 0
        %2772 = vmatprep.subr.bf16.mxu0 0
        %2773 = vmatpush1.bf16.msra.mxu0 0
        %2774 = vmatprep.subr.bf16.mxu0 0
        %2775 = vmatpush1.bf16.msra.mxu0 0
        %2776 = vmatprep.subr.bf16.mxu0 0
        %2777 = vmatpush1.bf16.msra.mxu0 0
        %2778 = vmatprep.subr.bf16.mxu0 %v2687
        %2779 = vmatpush1.bf16.msra.mxu0 %v2684
        %2780 = vmatprep.subr.bf16.mxu0 %v2641
        %2781 = vmatpush1.bf16.msra.mxu0 %v2640
        %2782 = vmatprep.subr.bf16.mxu0 0
        %2783 = vmatpush2.bf16.msra.mxu0 0
        %2784 = vmatprep.subr.bf16.mxu0 0
        %2785 = vmatpush2.bf16.msra.mxu0 0
        %2786 = vmatprep.subr.bf16.mxu0 0
        %2787 = vmatpush2.bf16.msra.mxu0 0
        %2788 = vmatprep.subr.bf16.mxu0 0
        %2789 = vmatpush2.bf16.msra.mxu0 0
        %2790 = vmatprep.subr.bf16.mxu0 0
        %2791 = vmatpush2.bf16.msra.mxu0 0
        %2792 = vmatprep.subr.bf16.mxu0 0
        %2793 = vmatpush2.bf16.msra.mxu0 0
        %2794 = vmatprep.subr.bf16.mxu0 0
        %2795 = vmatpush2.bf16.msra.mxu0 0
        %2796 = vmatprep.subr.bf16.mxu0 0
        %2797 = vmatpush2.bf16.msra.mxu0 0
        %2798 = vmatprep.mubr.bf16.mxu0 0
        %2799 = vmatmul.mubr.bf16.gmra.mxu0 %v2673
        %v2800 = vpop.f32.mrf.mxu0
        %v2801 = vadd.f32 0.0, %v2800
        %v2802 = vpop.f32.mrf.mxu0
        %v2803 = vadd.f32 0.0, %v2802
        %v2804 = vpop.f32.mrf.mxu0
        %v2805 = vpop.f32.mrf.mxu0
        %2806 = vdwg.mxu0
        %2807 = vmatprep.subr.bf16.mxu0 0
        %2808 = vmatpush1.bf16.msra.mxu0 0
        %2809 = vmatprep.subr.bf16.mxu0 0
        %2810 = vmatpush1.bf16.msra.mxu0 0
        %2811 = vmatprep.subr.bf16.mxu0 0
        %2812 = vmatpush1.bf16.msra.mxu0 0
        %2813 = vmatprep.subr.bf16.mxu0 0
        %2814 = vmatpush1.bf16.msra.mxu0 0
        %2815 = vmatprep.subr.bf16.mxu0 0
        %2816 = vmatpush1.bf16.msra.mxu0 0
        %2817 = vmatprep.subr.bf16.mxu0 0
        %2818 = vmatpush1.bf16.msra.mxu0 0
        %2819 = vmatprep.subr.bf16.mxu0 %v2693
        %2820 = vmatpush1.bf16.msra.mxu0 %v2690
        %2821 = vmatprep.subr.bf16.mxu0 %v2643
        %2822 = vmatpush1.bf16.msra.mxu0 %v2642
        %2823 = vmatprep.subr.bf16.mxu0 0
        %2824 = vmatpush2.bf16.msra.mxu0 0
        %2825 = vmatprep.subr.bf16.mxu0 0
        %2826 = vmatpush2.bf16.msra.mxu0 0
        %2827 = vmatprep.subr.bf16.mxu0 0
        %2828 = vmatpush2.bf16.msra.mxu0 0
        %2829 = vmatprep.subr.bf16.mxu0 0
        %2830 = vmatpush2.bf16.msra.mxu0 0
        %2831 = vmatprep.subr.bf16.mxu0 0
        %2832 = vmatpush2.bf16.msra.mxu0 0
        %2833 = vmatprep.subr.bf16.mxu0 0
        %2834 = vmatpush2.bf16.msra.mxu0 0
        %2835 = vmatprep.subr.bf16.mxu0 0
        %2836 = vmatpush2.bf16.msra.mxu0 0
        %2837 = vmatprep.subr.bf16.mxu0 0
        %2838 = vmatpush2.bf16.msra.mxu0 0
        %2839 = vmatprep.mubr.bf16.mxu0 0
        %2840 = vmatmul.mubr.bf16.gmra.mxu0 %v2673
        %v2841 = vpop.f32.mrf.mxu0
        %v2842 = vadd.f32 0.0, %v2841
        %v2843 = vpop.f32.mrf.mxu0
        %v2844 = vadd.f32 0.0, %v2843
        %v2845 = vpop.f32.mrf.mxu0
        %v2846 = vpop.f32.mrf.mxu0
        %2847 = vdwg.mxu0
        %2848 = vmatprep.subr.bf16.mxu0 0
        %2849 = vmatpush1.bf16.msra.mxu0 0
        %2850 = vmatprep.subr.bf16.mxu0 0
        %2851 = vmatpush1.bf16.msra.mxu0 0
        %2852 = vmatprep.subr.bf16.mxu0 0
        %2853 = vmatpush1.bf16.msra.mxu0 0
        %2854 = vmatprep.subr.bf16.mxu0 0
        %2855 = vmatpush1.bf16.msra.mxu0 0
        %2856 = vmatprep.subr.bf16.mxu0 0
        %2857 = vmatpush1.bf16.msra.mxu0 0
        %2858 = vmatprep.subr.bf16.mxu0 0
        %2859 = vmatpush1.bf16.msra.mxu0 0
        %2860 = vmatprep.subr.bf16.mxu0 %v2699
        %2861 = vmatpush1.bf16.msra.mxu0 %v2696
        %2862 = vmatprep.subr.bf16.mxu0 %v2645
        %2863 = vmatpush1.bf16.msra.mxu0 %v2644
        %2864 = vmatprep.subr.bf16.mxu0 0
        %2865 = vmatpush2.bf16.msra.mxu0 0
        %2866 = vmatprep.subr.bf16.mxu0 0
        %2867 = vmatpush2.bf16.msra.mxu0 0
        %2868 = vmatprep.subr.bf16.mxu0 0
        %2869 = vmatpush2.bf16.msra.mxu0 0
        %2870 = vmatprep.subr.bf16.mxu0 0
        %2871 = vmatpush2.bf16.msra.mxu0 0
        %2872 = vmatprep.subr.bf16.mxu0 0
        %2873 = vmatpush2.bf16.msra.mxu0 0
        %2874 = vmatprep.subr.bf16.mxu0 0
        %2875 = vmatpush2.bf16.msra.mxu0 0
        %2876 = vmatprep.subr.bf16.mxu0 0
        %2877 = vmatpush2.bf16.msra.mxu0 0
        %2878 = vmatprep.subr.bf16.mxu0 0
        %2879 = vmatpush2.bf16.msra.mxu0 0
        %2880 = vmatprep.mubr.bf16.mxu0 0
        %2881 = vmatmul.mubr.bf16.gmra.mxu0 %v2673
        %v2882 = vpop.f32.mrf.mxu0
        %v2883 = vadd.f32 0.0, %v2882
        %v2884 = vpop.f32.mrf.mxu0
        %v2885 = vadd.f32 0.0, %v2884
        %v2886 = vpop.f32.mrf.mxu0
        %v2887 = vpop.f32.mrf.mxu0
        %2888 = vdwg.mxu0
        %2889 = vmatprep.subr.bf16.mxu0 0
        %2890 = vmatpush1.bf16.msra.mxu0 0
        %2891 = vmatprep.subr.bf16.mxu0 0
        %2892 = vmatpush1.bf16.msra.mxu0 0
        %2893 = vmatprep.subr.bf16.mxu0 0
        %2894 = vmatpush1.bf16.msra.mxu0 0
        %2895 = vmatprep.subr.bf16.mxu0 0
        %2896 = vmatpush1.bf16.msra.mxu0 0
        %2897 = vmatprep.subr.bf16.mxu0 0
        %2898 = vmatpush1.bf16.msra.mxu0 0
        %2899 = vmatprep.subr.bf16.mxu0 0
        %2900 = vmatpush1.bf16.msra.mxu0 0
        %2901 = vmatprep.subr.bf16.mxu0 %v2705
        %2902 = vmatpush1.bf16.msra.mxu0 %v2702
        %2903 = vmatprep.subr.bf16.mxu0 %v2647
        %2904 = vmatpush1.bf16.msra.mxu0 %v2646
        %2905 = vmatprep.subr.bf16.mxu0 0
        %2906 = vmatpush2.bf16.msra.mxu0 0
        %2907 = vmatprep.subr.bf16.mxu0 0
        %2908 = vmatpush2.bf16.msra.mxu0 0
        %2909 = vmatprep.subr.bf16.mxu0 0
        %2910 = vmatpush2.bf16.msra.mxu0 0
        %2911 = vmatprep.subr.bf16.mxu0 0
        %2912 = vmatpush2.bf16.msra.mxu0 0
        %2913 = vmatprep.subr.bf16.mxu0 0
        %2914 = vmatpush2.bf16.msra.mxu0 0
        %2915 = vmatprep.subr.bf16.mxu0 0
        %2916 = vmatpush2.bf16.msra.mxu0 0
        %2917 = vmatprep.subr.bf16.mxu0 0
        %2918 = vmatpush2.bf16.msra.mxu0 0
        %2919 = vmatprep.subr.bf16.mxu0 0
        %2920 = vmatpush2.bf16.msra.mxu0 0
        %2921 = vmatprep.mubr.bf16.mxu0 0
        %2922 = vmatmul.mubr.bf16.gmra.mxu0 %v2673
        %v2923 = vpop.f32.mrf.mxu0
        %v2924 = vadd.f32 0.0, %v2923
        %v2925 = vpop.f32.mrf.mxu0
        %v2926 = vadd.f32 0.0, %v2925
        %v2927 = vpop.f32.mrf.mxu0
        %v2928 = vpop.f32.mrf.mxu0
        %2929 = vdwg.mxu0
        %2930 = vmatprep.subr.bf16.mxu0 0
        %2931 = vmatpush1.bf16.msra.mxu0 0
        %2932 = vmatprep.subr.bf16.mxu0 0
        %2933 = vmatpush1.bf16.msra.mxu0 0
        %2934 = vmatprep.subr.bf16.mxu0 0
        %2935 = vmatpush1.bf16.msra.mxu0 0
        %2936 = vmatprep.subr.bf16.mxu0 0
        %2937 = vmatpush1.bf16.msra.mxu0 0
        %2938 = vmatprep.subr.bf16.mxu0 0
        %2939 = vmatpush1.bf16.msra.mxu0 0
        %2940 = vmatprep.subr.bf16.mxu0 0
        %2941 = vmatpush1.bf16.msra.mxu0 0
        %2942 = vmatprep.subr.bf16.mxu0 %v2711
        %2943 = vmatpush1.bf16.msra.mxu0 %v2708
        %2944 = vmatprep.subr.bf16.mxu0 %v2649
        %2945 = vmatpush1.bf16.msra.mxu0 %v2648
        %2946 = vmatprep.subr.bf16.mxu0 0
        %2947 = vmatpush2.bf16.msra.mxu0 0
        %2948 = vmatprep.subr.bf16.mxu0 0
        %2949 = vmatpush2.bf16.msra.mxu0 0
        %2950 = vmatprep.subr.bf16.mxu0 0
        %2951 = vmatpush2.bf16.msra.mxu0 0
        %2952 = vmatprep.subr.bf16.mxu0 0
        %2953 = vmatpush2.bf16.msra.mxu0 0
        %2954 = vmatprep.subr.bf16.mxu0 0
        %2955 = vmatpush2.bf16.msra.mxu0 0
        %2956 = vmatprep.subr.bf16.mxu0 0
        %2957 = vmatpush2.bf16.msra.mxu0 0
        %2958 = vmatprep.subr.bf16.mxu0 0
        %2959 = vmatpush2.bf16.msra.mxu0 0
        %2960 = vmatprep.subr.bf16.mxu0 0
        %2961 = vmatpush2.bf16.msra.mxu0 0
        %2962 = vmatprep.mubr.bf16.mxu0 0
        %2963 = vmatmul.mubr.bf16.gmra.mxu0 %v2673
        %v2964 = vpop.f32.mrf.mxu0
        %v2965 = vadd.f32 0.0, %v2964
        %v2966 = vpop.f32.mrf.mxu0
        %v2967 = vadd.f32 0.0, %v2966
        %v2968 = vpop.f32.mrf.mxu0
        %v2969 = vpop.f32.mrf.mxu0
        %2970 = vdwg.mxu0
        %2971 = vmatprep.subr.bf16.mxu0 0
        %2972 = vmatpush1.bf16.msra.mxu0 0
        %2973 = vmatprep.subr.bf16.mxu0 0
        %2974 = vmatpush1.bf16.msra.mxu0 0
        %2975 = vmatprep.subr.bf16.mxu0 0
        %2976 = vmatpush1.bf16.msra.mxu0 0
        %2977 = vmatprep.subr.bf16.mxu0 0
        %2978 = vmatpush1.bf16.msra.mxu0 0
        %2979 = vmatprep.subr.bf16.mxu0 0
        %2980 = vmatpush1.bf16.msra.mxu0 0
        %2981 = vmatprep.subr.bf16.mxu0 0
        %2982 = vmatpush1.bf16.msra.mxu0 0
        %2983 = vmatprep.subr.bf16.mxu0 %v2717
        %2984 = vmatpush1.bf16.msra.mxu0 %v2714
        %2985 = vmatprep.subr.bf16.mxu0 %v2651
        %2986 = vmatpush1.bf16.msra.mxu0 %v2650
        %2987 = vmatprep.subr.bf16.mxu0 0
        %2988 = vmatpush2.bf16.msra.mxu0 0
        %2989 = vmatprep.subr.bf16.mxu0 0
        %2990 = vmatpush2.bf16.msra.mxu0 0
        %2991 = vmatprep.subr.bf16.mxu0 0
        %2992 = vmatpush2.bf16.msra.mxu0 0
        %2993 = vmatprep.subr.bf16.mxu0 0
        %2994 = vmatpush2.bf16.msra.mxu0 0
        %2995 = vmatprep.subr.bf16.mxu0 0
        %2996 = vmatpush2.bf16.msra.mxu0 0
        %2997 = vmatprep.subr.bf16.mxu0 0
        %2998 = vmatpush2.bf16.msra.mxu0 0
        %2999 = vmatprep.subr.bf16.mxu0 0
        %3000 = vmatpush2.bf16.msra.mxu0 0
        %3001 = vmatprep.subr.bf16.mxu0 0
        %3002 = vmatpush2.bf16.msra.mxu0 0
        %3003 = vmatprep.mubr.bf16.mxu0 0
        %3004 = vmatmul.mubr.bf16.gmra.mxu0 %v2673
        %v3005 = vpop.f32.mrf.mxu0
        %v3006 = vadd.f32 0.0, %v3005
        %v3007 = vpop.f32.mrf.mxu0
        %v3008 = vadd.f32 0.0, %v3007
        %v3009 = vpop.f32.mrf.mxu0
        %v3010 = vpop.f32.mrf.mxu0
        %3011 = vdwg.mxu0
        %3012 = vmatprep.subr.bf16.mxu0 0
        %3013 = vmatpush1.bf16.msra.mxu0 0
        %3014 = vmatprep.subr.bf16.mxu0 0
        %3015 = vmatpush1.bf16.msra.mxu0 0
        %3016 = vmatprep.subr.bf16.mxu0 0
        %3017 = vmatpush1.bf16.msra.mxu0 0
        %3018 = vmatprep.subr.bf16.mxu0 0
        %3019 = vmatpush1.bf16.msra.mxu0 0
        %3020 = vmatprep.subr.bf16.mxu0 0
        %3021 = vmatpush1.bf16.msra.mxu0 0
        %3022 = vmatprep.subr.bf16.mxu0 0
        %3023 = vmatpush1.bf16.msra.mxu0 0
        %3024 = vmatprep.subr.bf16.mxu0 %v2723
        %3025 = vmatpush1.bf16.msra.mxu0 %v2720
        %3026 = vmatprep.subr.bf16.mxu0 %v2653
        %3027 = vmatpush1.bf16.msra.mxu0 %v2652
        %3028 = vmatprep.subr.bf16.mxu0 0
        %3029 = vmatpush2.bf16.msra.mxu0 0
        %3030 = vmatprep.subr.bf16.mxu0 0
        %3031 = vmatpush2.bf16.msra.mxu0 0
        %3032 = vmatprep.subr.bf16.mxu0 0
        %3033 = vmatpush2.bf16.msra.mxu0 0
        %3034 = vmatprep.subr.bf16.mxu0 0
        %3035 = vmatpush2.bf16.msra.mxu0 0
        %3036 = vmatprep.subr.bf16.mxu0 0
        %3037 = vmatpush2.bf16.msra.mxu0 0
        %3038 = vmatprep.subr.bf16.mxu0 0
        %3039 = vmatpush2.bf16.msra.mxu0 0
        %3040 = vmatprep.subr.bf16.mxu0 0
        %3041 = vmatpush2.bf16.msra.mxu0 0
        %3042 = vmatprep.subr.bf16.mxu0 0
        %3043 = vmatpush2.bf16.msra.mxu0 0
        %3044 = vmatprep.mubr.bf16.mxu0 0
        %3045 = vmatmul.mubr.bf16.gmra.mxu0 %v2673
        %v3046 = vpop.f32.mrf.mxu0
        %v3047 = vadd.f32 0.0, %v3046
        %v3048 = vpop.f32.mrf.mxu0
        %v3049 = vadd.f32 0.0, %v3048
        %v3050 = vpop.f32.mrf.mxu0
        %v3051 = vpop.f32.mrf.mxu0
        %3052 = vdwg.mxu0
        %v3053 = vpack.c.bf16 %v2760, %v2760
        %v3054 = vpack.c.bf16 %v2762, %v2762
        %v3055 = vpack.c.bf16 %v2801, %v2801
        %v3056 = vpack.c.bf16 %v2803, %v2803
        %v3057 = vpack.c.bf16 %v2842, %v2842
        %v3058 = vpack.c.bf16 %v2844, %v2844
        %v3059 = vpack.c.bf16 %v2883, %v2883
        %v3060 = vpack.c.bf16 %v2885, %v2885
        %v3061 = vpack.c.bf16 %v2924, %v2924
        %v3062 = vpack.c.bf16 %v2926, %v2926
        %v3063 = vpack.c.bf16 %v2965, %v2965
        %v3064 = vpack.c.bf16 %v2967, %v2967
        %v3065 = vpack.c.bf16 %v3006, %v3006
        %v3066 = vpack.c.bf16 %v3008, %v3008
        %v3067 = vpack.c.bf16 %v3047, %v3047
        %v3068 = vpack.c.bf16 %v3049, %v3049
        %v3069 = vld [vmem:[#allocation8] sm:$0xff]
        %v3070 = vld [vmem:[#allocation8 + $0x8] sm:$0xff]
        %v3071 = vld [vmem:[#allocation8 + $0x10] sm:$0xff]
        %v3072 = vld [vmem:[#allocation8 + $0x18] sm:$0xff]
        %v3073 = vld [vmem:[#allocation8 + $0x20] sm:$0xff]
        %v3074 = vld [vmem:[#allocation8 + $0x28] sm:$0xff]
        %v3075 = vld [vmem:[#allocation8 + $0x30] sm:$0xff]
        %v3076 = vld [vmem:[#allocation8 + $0x38] sm:$0xff]
        %v3077 = vld [vmem:[#allocation8 + $0x40] sm:$0xff]
        %v3078 = vld [vmem:[#allocation8 + $0x48] sm:$0xff]
        %v3079 = vld [vmem:[#allocation8 + $0x50] sm:$0xff]
        %v3080 = vld [vmem:[#allocation8 + $0x58] sm:$0xff]
        %v3081 = vld [vmem:[#allocation8 + $0x60] sm:$0xff]
        %v3082 = vld [vmem:[#allocation8 + $0x68] sm:$0xff]
        %v3083 = vld [vmem:[#allocation8 + $0x70] sm:$0xff]
        %v3084 = vld [vmem:[#allocation8 + $0x78] sm:$0xff]
        %v3085 = vld [vmem:[#allocation8 + $0x80] sm:$0xff]
        %v3086 = vld [vmem:[#allocation8 + $0x88] sm:$0xff]
        %v3087 = vld [vmem:[#allocation8 + $0x90] sm:$0xff]
        %v3088 = vld [vmem:[#allocation8 + $0x98] sm:$0xff]
        %v3089 = vld [vmem:[#allocation8 + $0xa0] sm:$0xff]
        %v3090 = vld [vmem:[#allocation8 + $0xa8] sm:$0xff]
        %v3091 = vld [vmem:[#allocation8 + $0xb0] sm:$0xff]
        %v3092 = vld [vmem:[#allocation8 + $0xb8] sm:$0xff]
        %v3093 = vld [vmem:[#allocation8 + $0xc0] sm:$0xff]
        %v3094 = vld [vmem:[#allocation8 + $0xc8] sm:$0xff]
        %v3095 = vld [vmem:[#allocation8 + $0xd0] sm:$0xff]
        %v3096 = vld [vmem:[#allocation8 + $0xd8] sm:$0xff]
        %v3097 = vld [vmem:[#allocation8 + $0xe0] sm:$0xff]
        %v3098 = vld [vmem:[#allocation8 + $0xe8] sm:$0xff]
        %v3099 = vld [vmem:[#allocation8 + $0xf0] sm:$0xff]
        %v3100 = vld [vmem:[#allocation8 + $0xf8] sm:$0xff]
        %v3101 = vld [vmem:[#allocation8 + $0x100] sm:$0xff]
        %v3102 = vld [vmem:[#allocation8 + $0x108] sm:$0xff]
        %v3103 = vld [vmem:[#allocation8 + $0x110] sm:$0xff]
        %v3104 = vld [vmem:[#allocation8 + $0x118] sm:$0xff]
        %v3105 = vld [vmem:[#allocation8 + $0x120] sm:$0xff]
        %v3106 = vld [vmem:[#allocation8 + $0x128] sm:$0xff]
        %v3107 = vld [vmem:[#allocation8 + $0x130] sm:$0xff]
        %v3108 = vld [vmem:[#allocation8 + $0x138] sm:$0xff]
        %v3109 = vld [vmem:[#allocation8 + $0x140] sm:$0xff]
        %v3110 = vld [vmem:[#allocation8 + $0x148] sm:$0xff]
        %v3111 = vld [vmem:[#allocation8 + $0x150] sm:$0xff]
        %v3112 = vld [vmem:[#allocation8 + $0x158] sm:$0xff]
        %v3113 = vld [vmem:[#allocation8 + $0x160] sm:$0xff]
        %v3114 = vld [vmem:[#allocation8 + $0x168] sm:$0xff]
        %v3115 = vld [vmem:[#allocation8 + $0x170] sm:$0xff]
        %v3116 = vld [vmem:[#allocation8 + $0x178] sm:$0xff]
        %v3117 = vld [vmem:[#allocation8 + $0x180] sm:$0xff]
        %v3118 = vld [vmem:[#allocation8 + $0x188] sm:$0xff]
        %v3119 = vld [vmem:[#allocation8 + $0x190] sm:$0xff]
        %v3120 = vld [vmem:[#allocation8 + $0x198] sm:$0xff]
        %v3121 = vld [vmem:[#allocation8 + $0x1a0] sm:$0xff]
        %v3122 = vld [vmem:[#allocation8 + $0x1a8] sm:$0xff]
        %v3123 = vld [vmem:[#allocation8 + $0x1b0] sm:$0xff]
        %v3124 = vld [vmem:[#allocation8 + $0x1b8] sm:$0xff]
        %v3125 = vld [vmem:[#allocation8 + $0x1c0] sm:$0xff]
        %v3126 = vld [vmem:[#allocation8 + $0x1c8] sm:$0xff]
        %v3127 = vld [vmem:[#allocation8 + $0x1d0] sm:$0xff]
        %v3128 = vld [vmem:[#allocation8 + $0x1d8] sm:$0xff]
        %v3129 = vld [vmem:[#allocation8 + $0x1e0] sm:$0xff]
        %v3130 = vld [vmem:[#allocation8 + $0x1e8] sm:$0xff]
        %v3131 = vld [vmem:[#allocation8 + $0x1f0] sm:$0xff]
        %v3132 = vld [vmem:[#allocation8 + $0x1f8] sm:$0xff]
        %v3133 = vld [vmem:[#allocation8 + $0x200] sm:$0xff]
        %v3134 = vld [vmem:[#allocation8 + $0x208] sm:$0xff]
        %v3135 = vld [vmem:[#allocation8 + $0x210] sm:$0xff]
        %v3136 = vld [vmem:[#allocation8 + $0x218] sm:$0xff]
        %v3137 = vld [vmem:[#allocation8 + $0x220] sm:$0xff]
        %v3138 = vld [vmem:[#allocation8 + $0x228] sm:$0xff]
        %v3139 = vld [vmem:[#allocation8 + $0x230] sm:$0xff]
        %v3140 = vld [vmem:[#allocation8 + $0x238] sm:$0xff]
        %v3141 = vld [vmem:[#allocation8 + $0x240] sm:$0xff]
        %v3142 = vld [vmem:[#allocation8 + $0x248] sm:$0xff]
        %v3143 = vld [vmem:[#allocation8 + $0x250] sm:$0xff]
        %v3144 = vld [vmem:[#allocation8 + $0x258] sm:$0xff]
        %v3145 = vld [vmem:[#allocation8 + $0x260] sm:$0xff]
        %v3146 = vld [vmem:[#allocation8 + $0x268] sm:$0xff]
        %v3147 = vld [vmem:[#allocation8 + $0x270] sm:$0xff]
        %v3148 = vld [vmem:[#allocation8 + $0x278] sm:$0xff]
        %v3149 = vld [vmem:[#allocation8 + $0x280] sm:$0xff]
        %v3150 = vld [vmem:[#allocation8 + $0x288] sm:$0xff]
        %v3151 = vld [vmem:[#allocation8 + $0x290] sm:$0xff]
        %v3152 = vld [vmem:[#allocation8 + $0x298] sm:$0xff]
        %v3153 = vld [vmem:[#allocation8 + $0x2a0] sm:$0xff]
        %v3154 = vld [vmem:[#allocation8 + $0x2a8] sm:$0xff]
        %v3155 = vld [vmem:[#allocation8 + $0x2b0] sm:$0xff]
        %v3156 = vld [vmem:[#allocation8 + $0x2b8] sm:$0xff]
        %v3157 = vld [vmem:[#allocation8 + $0x2c0] sm:$0xff]
        %v3158 = vld [vmem:[#allocation8 + $0x2c8] sm:$0xff]
        %v3159 = vld [vmem:[#allocation8 + $0x2d0] sm:$0xff]
        %v3160 = vld [vmem:[#allocation8 + $0x2d8] sm:$0xff]
        %v3161 = vld [vmem:[#allocation8 + $0x2e0] sm:$0xff]
        %v3162 = vld [vmem:[#allocation8 + $0x2e8] sm:$0xff]
        %v3163 = vld [vmem:[#allocation8 + $0x2f0] sm:$0xff]
        %v3164 = vld [vmem:[#allocation8 + $0x2f8] sm:$0xff]
        %v3165 = vld [vmem:[#allocation8 + $0x300] sm:$0xff]
        %v3166 = vld [vmem:[#allocation8 + $0x308] sm:$0xff]
        %v3167 = vld [vmem:[#allocation8 + $0x310] sm:$0xff]
        %v3168 = vld [vmem:[#allocation8 + $0x318] sm:$0xff]
        %v3169 = vld [vmem:[#allocation8 + $0x320] sm:$0xff]
        %v3170 = vld [vmem:[#allocation8 + $0x328] sm:$0xff]
        %v3171 = vld [vmem:[#allocation8 + $0x330] sm:$0xff]
        %v3172 = vld [vmem:[#allocation8 + $0x338] sm:$0xff]
        %v3173 = vld [vmem:[#allocation8 + $0x340] sm:$0xff]
        %v3174 = vld [vmem:[#allocation8 + $0x348] sm:$0xff]
        %v3175 = vld [vmem:[#allocation8 + $0x350] sm:$0xff]
        %v3176 = vld [vmem:[#allocation8 + $0x358] sm:$0xff]
        %v3177 = vld [vmem:[#allocation8 + $0x360] sm:$0xff]
        %v3178 = vld [vmem:[#allocation8 + $0x368] sm:$0xff]
        %v3179 = vld [vmem:[#allocation8 + $0x370] sm:$0xff]
        %v3180 = vld [vmem:[#allocation8 + $0x378] sm:$0xff]
        %v3181 = vld [vmem:[#allocation8 + $0x380] sm:$0xff]
        %v3182 = vld [vmem:[#allocation8 + $0x388] sm:$0xff]
        %v3183 = vld [vmem:[#allocation8 + $0x390] sm:$0xff]
        %v3184 = vld [vmem:[#allocation8 + $0x398] sm:$0xff]
        %v3185 = vld [vmem:[#allocation8 + $0x3a0] sm:$0xff]
        %v3186 = vld [vmem:[#allocation8 + $0x3a8] sm:$0xff]
        %v3187 = vld [vmem:[#allocation8 + $0x3b0] sm:$0xff]
        %v3188 = vld [vmem:[#allocation8 + $0x3b8] sm:$0xff]
        %v3189 = vld [vmem:[#allocation8 + $0x3c0] sm:$0xff]
        %v3190 = vld [vmem:[#allocation8 + $0x3c8] sm:$0xff]
        %v3191 = vld [vmem:[#allocation8 + $0x3d0] sm:$0xff]
        %v3192 = vld [vmem:[#allocation8 + $0x3d8] sm:$0xff]
        %v3193 = vld [vmem:[#allocation8 + $0x3e0] sm:$0xff]
        %v3194 = vld [vmem:[#allocation8 + $0x3e8] sm:$0xff]
        %v3195 = vld [vmem:[#allocation8 + $0x3f0] sm:$0xff]
        %v3196 = vld [vmem:[#allocation8 + $0x3f8] sm:$0xff]
        %v3197 = vld [vmem:[#allocation8 + $0x400] sm:$0xff]
        %v3198 = vld [vmem:[#allocation8 + $0x408] sm:$0xff]
        %v3199 = vld [vmem:[#allocation8 + $0x410] sm:$0xff]
        %v3200 = vld [vmem:[#allocation8 + $0x418] sm:$0xff]
        %v3201 = vld [vmem:[#allocation8 + $0x420] sm:$0xff]
        %v3202 = vld [vmem:[#allocation8 + $0x428] sm:$0xff]
        %v3203 = vld [vmem:[#allocation8 + $0x430] sm:$0xff]
        %v3204 = vld [vmem:[#allocation8 + $0x438] sm:$0xff]
        %v3205 = vld [vmem:[#allocation8 + $0x440] sm:$0xff]
        %v3206 = vld [vmem:[#allocation8 + $0x448] sm:$0xff]
        %v3207 = vld [vmem:[#allocation8 + $0x450] sm:$0xff]
        %v3208 = vld [vmem:[#allocation8 + $0x458] sm:$0xff]
        %v3209 = vld [vmem:[#allocation8 + $0x460] sm:$0xff]
        %v3210 = vld [vmem:[#allocation8 + $0x468] sm:$0xff]
        %v3211 = vld [vmem:[#allocation8 + $0x470] sm:$0xff]
        %v3212 = vld [vmem:[#allocation8 + $0x478] sm:$0xff]
        %v3213 = vld [vmem:[#allocation8 + $0x480] sm:$0xff]
        %v3214 = vld [vmem:[#allocation8 + $0x488] sm:$0xff]
        %v3215 = vld [vmem:[#allocation8 + $0x490] sm:$0xff]
        %v3216 = vld [vmem:[#allocation8 + $0x498] sm:$0xff]
        %v3217 = vld [vmem:[#allocation8 + $0x4a0] sm:$0xff]
        %v3218 = vld [vmem:[#allocation8 + $0x4a8] sm:$0xff]
        %v3219 = vld [vmem:[#allocation8 + $0x4b0] sm:$0xff]
        %v3220 = vld [vmem:[#allocation8 + $0x4b8] sm:$0xff]
        %v3221 = vld [vmem:[#allocation8 + $0x4c0] sm:$0xff]
        %v3222 = vld [vmem:[#allocation8 + $0x4c8] sm:$0xff]
        %v3223 = vld [vmem:[#allocation8 + $0x4d0] sm:$0xff]
        %v3224 = vld [vmem:[#allocation8 + $0x4d8] sm:$0xff]
        %v3225 = vld [vmem:[#allocation8 + $0x4e0] sm:$0xff]
        %v3226 = vld [vmem:[#allocation8 + $0x4e8] sm:$0xff]
        %v3227 = vld [vmem:[#allocation8 + $0x4f0] sm:$0xff]
        %v3228 = vld [vmem:[#allocation8 + $0x4f8] sm:$0xff]
        %v3229 = vld [vmem:[#allocation8 + $0x500] sm:$0xff]
        %v3230 = vld [vmem:[#allocation8 + $0x508] sm:$0xff]
        %v3231 = vld [vmem:[#allocation8 + $0x510] sm:$0xff]
        %v3232 = vld [vmem:[#allocation8 + $0x518] sm:$0xff]
        %v3233 = vld [vmem:[#allocation8 + $0x520] sm:$0xff]
        %v3234 = vld [vmem:[#allocation8 + $0x528] sm:$0xff]
        %v3235 = vld [vmem:[#allocation8 + $0x530] sm:$0xff]
        %v3236 = vld [vmem:[#allocation8 + $0x538] sm:$0xff]
        %v3237 = vld [vmem:[#allocation8 + $0x540] sm:$0xff]
        %v3238 = vld [vmem:[#allocation8 + $0x548] sm:$0xff]
        %v3239 = vld [vmem:[#allocation8 + $0x550] sm:$0xff]
        %v3240 = vld [vmem:[#allocation8 + $0x558] sm:$0xff]
        %v3241 = vld [vmem:[#allocation8 + $0x560] sm:$0xff]
        %v3242 = vld [vmem:[#allocation8 + $0x568] sm:$0xff]
        %v3243 = vld [vmem:[#allocation8 + $0x570] sm:$0xff]
        %v3244 = vld [vmem:[#allocation8 + $0x578] sm:$0xff]
        %v3245 = vld [vmem:[#allocation8 + $0x580] sm:$0xff]
        %v3246 = vld [vmem:[#allocation8 + $0x588] sm:$0xff]
        %v3247 = vld [vmem:[#allocation8 + $0x590] sm:$0xff]
        %v3248 = vld [vmem:[#allocation8 + $0x598] sm:$0xff]
        %v3249 = vld [vmem:[#allocation8 + $0x5a0] sm:$0xff]
        %v3250 = vld [vmem:[#allocation8 + $0x5a8] sm:$0xff]
        %v3251 = vld [vmem:[#allocation8 + $0x5b0] sm:$0xff]
        %v3252 = vld [vmem:[#allocation8 + $0x5b8] sm:$0xff]
        %v3253 = vld [vmem:[#allocation8 + $0x5c0] sm:$0xff]
        %v3254 = vld [vmem:[#allocation8 + $0x5c8] sm:$0xff]
        %v3255 = vld [vmem:[#allocation8 + $0x5d0] sm:$0xff]
        %v3256 = vld [vmem:[#allocation8 + $0x5d8] sm:$0xff]
        %v3257 = vld [vmem:[#allocation8 + $0x5e0] sm:$0xff]
        %v3258 = vld [vmem:[#allocation8 + $0x5e8] sm:$0xff]
        %v3259 = vld [vmem:[#allocation8 + $0x5f0] sm:$0xff]
        %v3260 = vld [vmem:[#allocation8 + $0x5f8] sm:$0xff]
        %v3261 = vld [vmem:[#allocation8 + $0x600] sm:$0xff]
        %v3262 = vld [vmem:[#allocation8 + $0x608] sm:$0xff]
        %v3263 = vld [vmem:[#allocation8 + $0x610] sm:$0xff]
        %v3264 = vld [vmem:[#allocation8 + $0x618] sm:$0xff]
        %v3265 = vld [vmem:[#allocation8 + $0x620] sm:$0xff]
        %v3266 = vld [vmem:[#allocation8 + $0x628] sm:$0xff]
        %v3267 = vld [vmem:[#allocation8 + $0x630] sm:$0xff]
        %v3268 = vld [vmem:[#allocation8 + $0x638] sm:$0xff]
        %v3269 = vld [vmem:[#allocation8 + $0x640] sm:$0xff]
        %v3270 = vld [vmem:[#allocation8 + $0x648] sm:$0xff]
        %v3271 = vld [vmem:[#allocation8 + $0x650] sm:$0xff]
        %v3272 = vld [vmem:[#allocation8 + $0x658] sm:$0xff]
        %v3273 = vld [vmem:[#allocation8 + $0x660] sm:$0xff]
        %v3274 = vld [vmem:[#allocation8 + $0x668] sm:$0xff]
        %v3275 = vld [vmem:[#allocation8 + $0x670] sm:$0xff]
        %v3276 = vld [vmem:[#allocation8 + $0x678] sm:$0xff]
        %v3277 = vld [vmem:[#allocation8 + $0x680] sm:$0xff]
        %v3278 = vld [vmem:[#allocation8 + $0x688] sm:$0xff]
        %v3279 = vld [vmem:[#allocation8 + $0x690] sm:$0xff]
        %v3280 = vld [vmem:[#allocation8 + $0x698] sm:$0xff]
        %v3281 = vld [vmem:[#allocation8 + $0x6a0] sm:$0xff]
        %v3282 = vld [vmem:[#allocation8 + $0x6a8] sm:$0xff]
        %v3283 = vld [vmem:[#allocation8 + $0x6b0] sm:$0xff]
        %v3284 = vld [vmem:[#allocation8 + $0x6b8] sm:$0xff]
        %v3285 = vld [vmem:[#allocation8 + $0x6c0] sm:$0xff]
        %v3286 = vld [vmem:[#allocation8 + $0x6c8] sm:$0xff]
        %v3287 = vld [vmem:[#allocation8 + $0x6d0] sm:$0xff]
        %v3288 = vld [vmem:[#allocation8 + $0x6d8] sm:$0xff]
        %v3289 = vld [vmem:[#allocation8 + $0x6e0] sm:$0xff]
        %v3290 = vld [vmem:[#allocation8 + $0x6e8] sm:$0xff]
        %v3291 = vld [vmem:[#allocation8 + $0x6f0] sm:$0xff]
        %v3292 = vld [vmem:[#allocation8 + $0x6f8] sm:$0xff]
        %v3293 = vld [vmem:[#allocation8 + $0x700] sm:$0xff]
        %v3294 = vld [vmem:[#allocation8 + $0x708] sm:$0xff]
        %v3295 = vld [vmem:[#allocation8 + $0x710] sm:$0xff]
        %v3296 = vld [vmem:[#allocation8 + $0x718] sm:$0xff]
        %v3297 = vld [vmem:[#allocation8 + $0x720] sm:$0xff]
        %v3298 = vld [vmem:[#allocation8 + $0x728] sm:$0xff]
        %v3299 = vld [vmem:[#allocation8 + $0x730] sm:$0xff]
        %v3300 = vld [vmem:[#allocation8 + $0x738] sm:$0xff]
        %v3301 = vld [vmem:[#allocation8 + $0x740] sm:$0xff]
        %v3302 = vld [vmem:[#allocation8 + $0x748] sm:$0xff]
        %v3303 = vld [vmem:[#allocation8 + $0x750] sm:$0xff]
        %v3304 = vld [vmem:[#allocation8 + $0x758] sm:$0xff]
        %v3305 = vld [vmem:[#allocation8 + $0x760] sm:$0xff]
        %v3306 = vld [vmem:[#allocation8 + $0x768] sm:$0xff]
        %v3307 = vld [vmem:[#allocation8 + $0x770] sm:$0xff]
        %v3308 = vld [vmem:[#allocation8 + $0x778] sm:$0xff]
        %v3309 = vld [vmem:[#allocation8 + $0x780] sm:$0xff]
        %v3310 = vld [vmem:[#allocation8 + $0x788] sm:$0xff]
        %v3311 = vld [vmem:[#allocation8 + $0x790] sm:$0xff]
        %v3312 = vld [vmem:[#allocation8 + $0x798] sm:$0xff]
        %v3313 = vld [vmem:[#allocation8 + $0x7a0] sm:$0xff]
        %v3314 = vld [vmem:[#allocation8 + $0x7a8] sm:$0xff]
        %v3315 = vld [vmem:[#allocation8 + $0x7b0] sm:$0xff]
        %v3316 = vld [vmem:[#allocation8 + $0x7b8] sm:$0xff]
        %v3317 = vld [vmem:[#allocation8 + $0x7c0] sm:$0xff]
        %v3318 = vld [vmem:[#allocation8 + $0x7c8] sm:$0xff]
        %v3319 = vld [vmem:[#allocation8 + $0x7d0] sm:$0xff]
        %v3320 = vld [vmem:[#allocation8 + $0x7d8] sm:$0xff]
        %v3321 = vld [vmem:[#allocation8 + $0x7e0] sm:$0xff]
        %v3322 = vld [vmem:[#allocation8 + $0x7e8] sm:$0xff]
        %v3323 = vld [vmem:[#allocation8 + $0x7f0] sm:$0xff]
        %v3324 = vld [vmem:[#allocation8 + $0x7f8] sm:$0xff]
        %v3325 = vld [vmem:[#allocation8 + $0x800] sm:$0xff]
        %v3326 = vld [vmem:[#allocation8 + $0x808] sm:$0xff]
        %v3327 = vld [vmem:[#allocation8 + $0x810] sm:$0xff]
        %v3328 = vld [vmem:[#allocation8 + $0x818] sm:$0xff]
        %v3329 = vld [vmem:[#allocation8 + $0x820] sm:$0xff]
        %v3330 = vld [vmem:[#allocation8 + $0x828] sm:$0xff]
        %v3331 = vld [vmem:[#allocation8 + $0x830] sm:$0xff]
        %v3332 = vld [vmem:[#allocation8 + $0x838] sm:$0xff]
        %v3333 = vld [vmem:[#allocation8 + $0x840] sm:$0xff]
        %v3334 = vld [vmem:[#allocation8 + $0x848] sm:$0xff]
        %v3335 = vld [vmem:[#allocation8 + $0x850] sm:$0xff]
        %v3336 = vld [vmem:[#allocation8 + $0x858] sm:$0xff]
        %v3337 = vld [vmem:[#allocation8 + $0x860] sm:$0xff]
        %v3338 = vld [vmem:[#allocation8 + $0x868] sm:$0xff]
        %v3339 = vld [vmem:[#allocation8 + $0x870] sm:$0xff]
        %v3340 = vld [vmem:[#allocation8 + $0x878] sm:$0xff]
        %v3341 = vld [vmem:[#allocation8 + $0x880] sm:$0xff]
        %v3342 = vld [vmem:[#allocation8 + $0x888] sm:$0xff]
        %v3343 = vld [vmem:[#allocation8 + $0x890] sm:$0xff]
        %v3344 = vld [vmem:[#allocation8 + $0x898] sm:$0xff]
        %v3345 = vld [vmem:[#allocation8 + $0x8a0] sm:$0xff]
        %v3346 = vld [vmem:[#allocation8 + $0x8a8] sm:$0xff]
        %v3347 = vld [vmem:[#allocation8 + $0x8b0] sm:$0xff]
        %v3348 = vld [vmem:[#allocation8 + $0x8b8] sm:$0xff]
        %v3349 = vld [vmem:[#allocation8 + $0x8c0] sm:$0xff]
        %v3350 = vld [vmem:[#allocation8 + $0x8c8] sm:$0xff]
        %v3351 = vld [vmem:[#allocation8 + $0x8d0] sm:$0xff]
        %v3352 = vld [vmem:[#allocation8 + $0x8d8] sm:$0xff]
        %v3353 = vld [vmem:[#allocation8 + $0x8e0] sm:$0xff]
        %v3354 = vld [vmem:[#allocation8 + $0x8e8] sm:$0xff]
        %v3355 = vld [vmem:[#allocation8 + $0x8f0] sm:$0xff]
        %v3356 = vld [vmem:[#allocation8 + $0x8f8] sm:$0xff]
        %v3357 = vld [vmem:[#allocation8 + $0x900] sm:$0xff]
        %v3358 = vld [vmem:[#allocation8 + $0x908] sm:$0xff]
        %v3359 = vld [vmem:[#allocation8 + $0x910] sm:$0xff]
        %v3360 = vld [vmem:[#allocation8 + $0x918] sm:$0xff]
        %v3361 = vld [vmem:[#allocation8 + $0x920] sm:$0xff]
        %v3362 = vld [vmem:[#allocation8 + $0x928] sm:$0xff]
        %v3363 = vld [vmem:[#allocation8 + $0x930] sm:$0xff]
        %v3364 = vld [vmem:[#allocation8 + $0x938] sm:$0xff]
        %v3365 = vld [vmem:[#allocation8 + $0x940] sm:$0xff]
        %v3366 = vld [vmem:[#allocation8 + $0x948] sm:$0xff]
        %v3367 = vld [vmem:[#allocation8 + $0x950] sm:$0xff]
        %v3368 = vld [vmem:[#allocation8 + $0x958] sm:$0xff]
        %v3369 = vld [vmem:[#allocation8 + $0x960] sm:$0xff]
        %v3370 = vld [vmem:[#allocation8 + $0x968] sm:$0xff]
        %v3371 = vld [vmem:[#allocation8 + $0x970] sm:$0xff]
        %v3372 = vld [vmem:[#allocation8 + $0x978] sm:$0xff]
        %v3373 = vld [vmem:[#allocation8 + $0x980] sm:$0xff]
        %v3374 = vld [vmem:[#allocation8 + $0x988] sm:$0xff]
        %v3375 = vld [vmem:[#allocation8 + $0x990] sm:$0xff]
        %v3376 = vld [vmem:[#allocation8 + $0x998] sm:$0xff]
        %v3377 = vld [vmem:[#allocation8 + $0x9a0] sm:$0xff]
        %v3378 = vld [vmem:[#allocation8 + $0x9a8] sm:$0xff]
        %v3379 = vld [vmem:[#allocation8 + $0x9b0] sm:$0xff]
        %v3380 = vld [vmem:[#allocation8 + $0x9b8] sm:$0xff]
        %v3381 = vld [vmem:[#allocation8 + $0x9c0] sm:$0xff]
        %v3382 = vld [vmem:[#allocation8 + $0x9c8] sm:$0xff]
        %v3383 = vld [vmem:[#allocation8 + $0x9d0] sm:$0xff]
        %v3384 = vld [vmem:[#allocation8 + $0x9d8] sm:$0xff]
        %v3385 = vld [vmem:[#allocation8 + $0x9e0] sm:$0xff]
        %v3386 = vld [vmem:[#allocation8 + $0x9e8] sm:$0xff]
        %v3387 = vld [vmem:[#allocation8 + $0x9f0] sm:$0xff]
        %v3388 = vld [vmem:[#allocation8 + $0x9f8] sm:$0xff]
        %v3389 = vld [vmem:[#allocation8 + $0xa00] sm:$0xff]
        %v3390 = vld [vmem:[#allocation8 + $0xa08] sm:$0xff]
        %v3391 = vld [vmem:[#allocation8 + $0xa10] sm:$0xff]
        %v3392 = vld [vmem:[#allocation8 + $0xa18] sm:$0xff]
        %v3393 = vld [vmem:[#allocation8 + $0xa20] sm:$0xff]
        %v3394 = vld [vmem:[#allocation8 + $0xa28] sm:$0xff]
        %v3395 = vld [vmem:[#allocation8 + $0xa30] sm:$0xff]
        %v3396 = vld [vmem:[#allocation8 + $0xa38] sm:$0xff]
        %v3397 = vld [vmem:[#allocation8 + $0xa40] sm:$0xff]
        %v3398 = vld [vmem:[#allocation8 + $0xa48] sm:$0xff]
        %v3399 = vld [vmem:[#allocation8 + $0xa50] sm:$0xff]
        %v3400 = vld [vmem:[#allocation8 + $0xa58] sm:$0xff]
        %v3401 = vld [vmem:[#allocation8 + $0xa60] sm:$0xff]
        %v3402 = vld [vmem:[#allocation8 + $0xa68] sm:$0xff]
        %v3403 = vld [vmem:[#allocation8 + $0xa70] sm:$0xff]
        %v3404 = vld [vmem:[#allocation8 + $0xa78] sm:$0xff]
        %v3405 = vld [vmem:[#allocation8 + $0xa80] sm:$0xff]
        %v3406 = vld [vmem:[#allocation8 + $0xa88] sm:$0xff]
        %v3407 = vld [vmem:[#allocation8 + $0xa90] sm:$0xff]
        %v3408 = vld [vmem:[#allocation8 + $0xa98] sm:$0xff]
        %v3409 = vld [vmem:[#allocation8 + $0xaa0] sm:$0xff]
        %v3410 = vld [vmem:[#allocation8 + $0xaa8] sm:$0xff]
        %v3411 = vld [vmem:[#allocation8 + $0xab0] sm:$0xff]
        %v3412 = vld [vmem:[#allocation8 + $0xab8] sm:$0xff]
        %v3413 = vld [vmem:[#allocation8 + $0xac0] sm:$0xff]
        %v3414 = vld [vmem:[#allocation8 + $0xac8] sm:$0xff]
        %v3415 = vld [vmem:[#allocation8 + $0xad0] sm:$0xff]
        %v3416 = vld [vmem:[#allocation8 + $0xad8] sm:$0xff]
        %v3417 = vld [vmem:[#allocation8 + $0xae0] sm:$0xff]
        %v3418 = vld [vmem:[#allocation8 + $0xae8] sm:$0xff]
        %v3419 = vld [vmem:[#allocation8 + $0xaf0] sm:$0xff]
        %v3420 = vld [vmem:[#allocation8 + $0xaf8] sm:$0xff]
        %v3421 = vld [vmem:[#allocation8 + $0xb00] sm:$0xff]
        %v3422 = vld [vmem:[#allocation8 + $0xb08] sm:$0xff]
        %v3423 = vld [vmem:[#allocation8 + $0xb10] sm:$0xff]
        %v3424 = vld [vmem:[#allocation8 + $0xb18] sm:$0xff]
        %v3425 = vld [vmem:[#allocation8 + $0xb20] sm:$0xff]
        %v3426 = vld [vmem:[#allocation8 + $0xb28] sm:$0xff]
        %v3427 = vld [vmem:[#allocation8 + $0xb30] sm:$0xff]
        %v3428 = vld [vmem:[#allocation8 + $0xb38] sm:$0xff]
        %v3429 = vld [vmem:[#allocation8 + $0xb40] sm:$0xff]
        %v3430 = vld [vmem:[#allocation8 + $0xb48] sm:$0xff]
        %v3431 = vld [vmem:[#allocation8 + $0xb50] sm:$0xff]
        %v3432 = vld [vmem:[#allocation8 + $0xb58] sm:$0xff]
        %v3433 = vld [vmem:[#allocation8 + $0xb60] sm:$0xff]
        %v3434 = vld [vmem:[#allocation8 + $0xb68] sm:$0xff]
        %v3435 = vld [vmem:[#allocation8 + $0xb70] sm:$0xff]
        %v3436 = vld [vmem:[#allocation8 + $0xb78] sm:$0xff]
        %v3437 = vld [vmem:[#allocation8 + $0xb80] sm:$0xff]
        %v3438 = vld [vmem:[#allocation8 + $0xb88] sm:$0xff]
        %v3439 = vld [vmem:[#allocation8 + $0xb90] sm:$0xff]
        %v3440 = vld [vmem:[#allocation8 + $0xb98] sm:$0xff]
        %v3441 = vld [vmem:[#allocation8 + $0xba0] sm:$0xff]
        %v3442 = vld [vmem:[#allocation8 + $0xba8] sm:$0xff]
        %v3443 = vld [vmem:[#allocation8 + $0xbb0] sm:$0xff]
        %v3444 = vld [vmem:[#allocation8 + $0xbb8] sm:$0xff]
        %v3445 = vld [vmem:[#allocation8 + $0xbc0] sm:$0xff]
        %v3446 = vld [vmem:[#allocation8 + $0xbc8] sm:$0xff]
        %v3447 = vld [vmem:[#allocation8 + $0xbd0] sm:$0xff]
        %v3448 = vld [vmem:[#allocation8 + $0xbd8] sm:$0xff]
        %v3449 = vld [vmem:[#allocation8 + $0xbe0] sm:$0xff]
        %v3450 = vld [vmem:[#allocation8 + $0xbe8] sm:$0xff]
        %v3451 = vld [vmem:[#allocation8 + $0xbf0] sm:$0xff]
        %v3452 = vld [vmem:[#allocation8 + $0xbf8] sm:$0xff]
        %v3453 = vld [vmem:[#allocation8 + $0xc00] sm:$0xff]
        %v3454 = vld [vmem:[#allocation8 + $0xc08] sm:$0xff]
        %v3455 = vld [vmem:[#allocation8 + $0xc10] sm:$0xff]
        %v3456 = vld [vmem:[#allocation8 + $0xc18] sm:$0xff]
        %v3457 = vld [vmem:[#allocation8 + $0xc20] sm:$0xff]
        %v3458 = vld [vmem:[#allocation8 + $0xc28] sm:$0xff]
        %v3459 = vld [vmem:[#allocation8 + $0xc30] sm:$0xff]
        %v3460 = vld [vmem:[#allocation8 + $0xc38] sm:$0xff]
        %v3461 = vld [vmem:[#allocation8 + $0xc40] sm:$0xff]
        %v3462 = vld [vmem:[#allocation8 + $0xc48] sm:$0xff]
        %v3463 = vld [vmem:[#allocation8 + $0xc50] sm:$0xff]
        %v3464 = vld [vmem:[#allocation8 + $0xc58] sm:$0xff]
        %v3465 = vld [vmem:[#allocation8 + $0xc60] sm:$0xff]
        %v3466 = vld [vmem:[#allocation8 + $0xc68] sm:$0xff]
        %v3467 = vld [vmem:[#allocation8 + $0xc70] sm:$0xff]
        %v3468 = vld [vmem:[#allocation8 + $0xc78] sm:$0xff]
        %v3469 = vld [vmem:[#allocation8 + $0xc80] sm:$0xff]
        %v3470 = vld [vmem:[#allocation8 + $0xc88] sm:$0xff]
        %v3471 = vld [vmem:[#allocation8 + $0xc90] sm:$0xff]
        %v3472 = vld [vmem:[#allocation8 + $0xc98] sm:$0xff]
        %v3473 = vld [vmem:[#allocation8 + $0xca0] sm:$0xff]
        %v3474 = vld [vmem:[#allocation8 + $0xca8] sm:$0xff]
        %v3475 = vld [vmem:[#allocation8 + $0xcb0] sm:$0xff]
        %v3476 = vld [vmem:[#allocation8 + $0xcb8] sm:$0xff]
        %v3477 = vld [vmem:[#allocation8 + $0xcc0] sm:$0xff]
        %v3478 = vld [vmem:[#allocation8 + $0xcc8] sm:$0xff]
        %v3479 = vld [vmem:[#allocation8 + $0xcd0] sm:$0xff]
        %v3480 = vld [vmem:[#allocation8 + $0xcd8] sm:$0xff]
        %v3481 = vld [vmem:[#allocation8 + $0xce0] sm:$0xff]
        %v3482 = vld [vmem:[#allocation8 + $0xce8] sm:$0xff]
        %v3483 = vld [vmem:[#allocation8 + $0xcf0] sm:$0xff]
        %v3484 = vld [vmem:[#allocation8 + $0xcf8] sm:$0xff]
        %v3485 = vld [vmem:[#allocation8 + $0xd00] sm:$0xff]
        %v3486 = vld [vmem:[#allocation8 + $0xd08] sm:$0xff]
        %v3487 = vld [vmem:[#allocation8 + $0xd10] sm:$0xff]
        %v3488 = vld [vmem:[#allocation8 + $0xd18] sm:$0xff]
        %v3489 = vld [vmem:[#allocation8 + $0xd20] sm:$0xff]
        %v3490 = vld [vmem:[#allocation8 + $0xd28] sm:$0xff]
        %v3491 = vld [vmem:[#allocation8 + $0xd30] sm:$0xff]
        %v3492 = vld [vmem:[#allocation8 + $0xd38] sm:$0xff]
        %v3493 = vld [vmem:[#allocation8 + $0xd40] sm:$0xff]
        %v3494 = vld [vmem:[#allocation8 + $0xd48] sm:$0xff]
        %v3495 = vld [vmem:[#allocation8 + $0xd50] sm:$0xff]
        %v3496 = vld [vmem:[#allocation8 + $0xd58] sm:$0xff]
        %v3497 = vld [vmem:[#allocation8 + $0xd60] sm:$0xff]
        %v3498 = vld [vmem:[#allocation8 + $0xd68] sm:$0xff]
        %v3499 = vld [vmem:[#allocation8 + $0xd70] sm:$0xff]
        %v3500 = vld [vmem:[#allocation8 + $0xd78] sm:$0xff]
        %v3501 = vld [vmem:[#allocation8 + $0xd80] sm:$0xff]
        %v3502 = vld [vmem:[#allocation8 + $0xd88] sm:$0xff]
        %v3503 = vld [vmem:[#allocation8 + $0xd90] sm:$0xff]
        %v3504 = vld [vmem:[#allocation8 + $0xd98] sm:$0xff]
        %v3505 = vld [vmem:[#allocation8 + $0xda0] sm:$0xff]
        %v3506 = vld [vmem:[#allocation8 + $0xda8] sm:$0xff]
        %v3507 = vld [vmem:[#allocation8 + $0xdb0] sm:$0xff]
        %v3508 = vld [vmem:[#allocation8 + $0xdb8] sm:$0xff]
        %v3509 = vld [vmem:[#allocation8 + $0xdc0] sm:$0xff]
        %v3510 = vld [vmem:[#allocation8 + $0xdc8] sm:$0xff]
        %v3511 = vld [vmem:[#allocation8 + $0xdd0] sm:$0xff]
        %v3512 = vld [vmem:[#allocation8 + $0xdd8] sm:$0xff]
        %v3513 = vld [vmem:[#allocation8 + $0xde0] sm:$0xff]
        %v3514 = vld [vmem:[#allocation8 + $0xde8] sm:$0xff]
        %v3515 = vld [vmem:[#allocation8 + $0xdf0] sm:$0xff]
        %v3516 = vld [vmem:[#allocation8 + $0xdf8] sm:$0xff]
        %v3517 = vld [vmem:[#allocation8 + $0xe00] sm:$0xff]
        %v3518 = vld [vmem:[#allocation8 + $0xe08] sm:$0xff]
        %v3519 = vld [vmem:[#allocation8 + $0xe10] sm:$0xff]
        %v3520 = vld [vmem:[#allocation8 + $0xe18] sm:$0xff]
        %v3521 = vld [vmem:[#allocation8 + $0xe20] sm:$0xff]
        %v3522 = vld [vmem:[#allocation8 + $0xe28] sm:$0xff]
        %v3523 = vld [vmem:[#allocation8 + $0xe30] sm:$0xff]
        %v3524 = vld [vmem:[#allocation8 + $0xe38] sm:$0xff]
        %v3525 = vld [vmem:[#allocation8 + $0xe40] sm:$0xff]
        %v3526 = vld [vmem:[#allocation8 + $0xe48] sm:$0xff]
        %v3527 = vld [vmem:[#allocation8 + $0xe50] sm:$0xff]
        %v3528 = vld [vmem:[#allocation8 + $0xe58] sm:$0xff]
        %v3529 = vld [vmem:[#allocation8 + $0xe60] sm:$0xff]
        %v3530 = vld [vmem:[#allocation8 + $0xe68] sm:$0xff]
        %v3531 = vld [vmem:[#allocation8 + $0xe70] sm:$0xff]
        %v3532 = vld [vmem:[#allocation8 + $0xe78] sm:$0xff]
        %v3533 = vld [vmem:[#allocation8 + $0xe80] sm:$0xff]
        %v3534 = vld [vmem:[#allocation8 + $0xe88] sm:$0xff]
        %v3535 = vld [vmem:[#allocation8 + $0xe90] sm:$0xff]
        %v3536 = vld [vmem:[#allocation8 + $0xe98] sm:$0xff]
        %v3537 = vld [vmem:[#allocation8 + $0xea0] sm:$0xff]
        %v3538 = vld [vmem:[#allocation8 + $0xea8] sm:$0xff]
        %v3539 = vld [vmem:[#allocation8 + $0xeb0] sm:$0xff]
        %v3540 = vld [vmem:[#allocation8 + $0xeb8] sm:$0xff]
        %v3541 = vld [vmem:[#allocation8 + $0xec0] sm:$0xff]
        %v3542 = vld [vmem:[#allocation8 + $0xec8] sm:$0xff]
        %v3543 = vld [vmem:[#allocation8 + $0xed0] sm:$0xff]
        %v3544 = vld [vmem:[#allocation8 + $0xed8] sm:$0xff]
        %v3545 = vld [vmem:[#allocation8 + $0xee0] sm:$0xff]
        %v3546 = vld [vmem:[#allocation8 + $0xee8] sm:$0xff]
        %v3547 = vld [vmem:[#allocation8 + $0xef0] sm:$0xff]
        %v3548 = vld [vmem:[#allocation8 + $0xef8] sm:$0xff]
        %v3549 = vld [vmem:[#allocation8 + $0xf00] sm:$0xff]
        %v3550 = vld [vmem:[#allocation8 + $0xf08] sm:$0xff]
        %v3551 = vld [vmem:[#allocation8 + $0xf10] sm:$0xff]
        %v3552 = vld [vmem:[#allocation8 + $0xf18] sm:$0xff]
        %v3553 = vld [vmem:[#allocation8 + $0xf20] sm:$0xff]
        %v3554 = vld [vmem:[#allocation8 + $0xf28] sm:$0xff]
        %v3555 = vld [vmem:[#allocation8 + $0xf30] sm:$0xff]
        %v3556 = vld [vmem:[#allocation8 + $0xf38] sm:$0xff]
        %v3557 = vld [vmem:[#allocation8 + $0xf40] sm:$0xff]
        %v3558 = vld [vmem:[#allocation8 + $0xf48] sm:$0xff]
        %v3559 = vld [vmem:[#allocation8 + $0xf50] sm:$0xff]
        %v3560 = vld [vmem:[#allocation8 + $0xf58] sm:$0xff]
        %v3561 = vld [vmem:[#allocation8 + $0xf60] sm:$0xff]
        %v3562 = vld [vmem:[#allocation8 + $0xf68] sm:$0xff]
        %v3563 = vld [vmem:[#allocation8 + $0xf70] sm:$0xff]
        %v3564 = vld [vmem:[#allocation8 + $0xf78] sm:$0xff]
        %v3565 = vld [vmem:[#allocation8 + $0xf80] sm:$0xff]
        %v3566 = vld [vmem:[#allocation8 + $0xf88] sm:$0xff]
        %v3567 = vld [vmem:[#allocation8 + $0xf90] sm:$0xff]
        %v3568 = vld [vmem:[#allocation8 + $0xf98] sm:$0xff]
        %v3569 = vld [vmem:[#allocation8 + $0xfa0] sm:$0xff]
        %v3570 = vld [vmem:[#allocation8 + $0xfa8] sm:$0xff]
        %v3571 = vld [vmem:[#allocation8 + $0xfb0] sm:$0xff]
        %v3572 = vld [vmem:[#allocation8 + $0xfb8] sm:$0xff]
        %v3573 = vld [vmem:[#allocation8 + $0xfc0] sm:$0xff]
        %v3574 = vld [vmem:[#allocation8 + $0xfc8] sm:$0xff]
        %v3575 = vld [vmem:[#allocation8 + $0xfd0] sm:$0xff]
        %v3576 = vld [vmem:[#allocation8 + $0xfd8] sm:$0xff]
        %v3577 = vld [vmem:[#allocation8 + $0xfe0] sm:$0xff]
        %v3578 = vld [vmem:[#allocation8 + $0xfe8] sm:$0xff]
        %v3579 = vld [vmem:[#allocation8 + $0xff0] sm:$0xff]
        %v3580 = vld [vmem:[#allocation8 + $0xff8] sm:$0xff]
        %v3581 = vld [vmem:[%s2] sm:$0xff]
        %3583 = vset.pattern.permute.xlu0 0
        %3584 = vperm.xlu0 %3583, %v3581
        %v3585 = vpop.permute.xlu0 %3584
        %v4099 = vunpack.c.l.b16 %v3069
        %v4100 = vunpack.c.h.b16 %v3069
        %v4101 = vunpack.c.l.b16 %v3070
        %v4102 = vunpack.c.h.b16 %v3070
        %v4103 = vunpack.c.l.b16 %v3071
        %v4104 = vunpack.c.h.b16 %v3071
        %v4105 = vunpack.c.l.b16 %v3072
        %v4106 = vunpack.c.h.b16 %v3072
        %v4107 = vunpack.c.l.b16 %v3073
        %v4108 = vunpack.c.h.b16 %v3073
        %v4109 = vunpack.c.l.b16 %v3074
        %v4110 = vunpack.c.h.b16 %v3074
        %v4111 = vunpack.c.l.b16 %v3075
        %v4112 = vunpack.c.h.b16 %v3075
        %v4113 = vunpack.c.l.b16 %v3076
        %v4114 = vunpack.c.h.b16 %v3076
        %v4115 = vunpack.c.l.b16 %v3077
        %v4116 = vunpack.c.h.b16 %v3077
        %v4117 = vunpack.c.l.b16 %v3078
        %v4118 = vunpack.c.h.b16 %v3078
        %v4119 = vunpack.c.l.b16 %v3079
        %v4120 = vunpack.c.h.b16 %v3079
        %v4121 = vunpack.c.l.b16 %v3080
        %v4122 = vunpack.c.h.b16 %v3080
        %v4123 = vunpack.c.l.b16 %v3081
        %v4124 = vunpack.c.h.b16 %v3081
        %v4125 = vunpack.c.l.b16 %v3082
        %v4126 = vunpack.c.h.b16 %v3082
        %v4127 = vunpack.c.l.b16 %v3083
        %v4128 = vunpack.c.h.b16 %v3083
        %v4129 = vunpack.c.l.b16 %v3084
        %v4130 = vunpack.c.h.b16 %v3084
        %v4131 = vunpack.c.l.b16 %v3085
        %v4132 = vunpack.c.h.b16 %v3085
        %v4133 = vunpack.c.l.b16 %v3086
        %v4134 = vunpack.c.h.b16 %v3086
        %v4135 = vunpack.c.l.b16 %v3087
        %v4136 = vunpack.c.h.b16 %v3087
        %v4137 = vunpack.c.l.b16 %v3088
        %v4138 = vunpack.c.h.b16 %v3088
        %v4139 = vunpack.c.l.b16 %v3089
        %v4140 = vunpack.c.h.b16 %v3089
        %v4141 = vunpack.c.l.b16 %v3090
        %v4142 = vunpack.c.h.b16 %v3090
        %v4143 = vunpack.c.l.b16 %v3091
        %v4144 = vunpack.c.h.b16 %v3091
        %v4145 = vunpack.c.l.b16 %v3092
        %v4146 = vunpack.c.h.b16 %v3092
        %v4147 = vunpack.c.l.b16 %v3093
        %v4148 = vunpack.c.h.b16 %v3093
        %v4149 = vunpack.c.l.b16 %v3094
        %v4150 = vunpack.c.h.b16 %v3094
        %v4151 = vunpack.c.l.b16 %v3095
        %v4152 = vunpack.c.h.b16 %v3095
        %v4153 = vunpack.c.l.b16 %v3096
        %v4154 = vunpack.c.h.b16 %v3096
        %v4155 = vunpack.c.l.b16 %v3097
        %v4156 = vunpack.c.h.b16 %v3097
        %v4157 = vunpack.c.l.b16 %v3098
        %v4158 = vunpack.c.h.b16 %v3098
        %v4159 = vunpack.c.l.b16 %v3099
        %v4160 = vunpack.c.h.b16 %v3099
        %v4161 = vunpack.c.l.b16 %v3100
        %v4162 = vunpack.c.h.b16 %v3100
        %v4163 = vunpack.c.l.b16 %v3101
        %v4164 = vunpack.c.h.b16 %v3101
        %v4165 = vunpack.c.l.b16 %v3102
        %v4166 = vunpack.c.h.b16 %v3102
        %v4167 = vunpack.c.l.b16 %v3103
        %v4168 = vunpack.c.h.b16 %v3103
        %v4169 = vunpack.c.l.b16 %v3104
        %v4170 = vunpack.c.h.b16 %v3104
        %v4171 = vunpack.c.l.b16 %v3105
        %v4172 = vunpack.c.h.b16 %v3105
        %v4173 = vunpack.c.l.b16 %v3106
        %v4174 = vunpack.c.h.b16 %v3106
        %v4175 = vunpack.c.l.b16 %v3107
        %v4176 = vunpack.c.h.b16 %v3107
        %v4177 = vunpack.c.l.b16 %v3108
        %v4178 = vunpack.c.h.b16 %v3108
        %v4179 = vunpack.c.l.b16 %v3109
        %v4180 = vunpack.c.h.b16 %v3109
        %v4181 = vunpack.c.l.b16 %v3110
        %v4182 = vunpack.c.h.b16 %v3110
        %v4183 = vunpack.c.l.b16 %v3111
        %v4184 = vunpack.c.h.b16 %v3111
        %v4185 = vunpack.c.l.b16 %v3112
        %v4186 = vunpack.c.h.b16 %v3112
        %v4187 = vunpack.c.l.b16 %v3113
        %v4188 = vunpack.c.h.b16 %v3113
        %v4189 = vunpack.c.l.b16 %v3114
        %v4190 = vunpack.c.h.b16 %v3114
        %v4191 = vunpack.c.l.b16 %v3115
        %v4192 = vunpack.c.h.b16 %v3115
        %v4193 = vunpack.c.l.b16 %v3116
        %v4194 = vunpack.c.h.b16 %v3116
        %v4195 = vunpack.c.l.b16 %v3117
        %v4196 = vunpack.c.h.b16 %v3117
        %v4197 = vunpack.c.l.b16 %v3118
        %v4198 = vunpack.c.h.b16 %v3118
        %v4199 = vunpack.c.l.b16 %v3119
        %v4200 = vunpack.c.h.b16 %v3119
        %v4201 = vunpack.c.l.b16 %v3120
        %v4202 = vunpack.c.h.b16 %v3120
        %v4203 = vunpack.c.l.b16 %v3121
        %v4204 = vunpack.c.h.b16 %v3121
        %v4205 = vunpack.c.l.b16 %v3122
        %v4206 = vunpack.c.h.b16 %v3122
        %v4207 = vunpack.c.l.b16 %v3123
        %v4208 = vunpack.c.h.b16 %v3123
        %v4209 = vunpack.c.l.b16 %v3124
        %v4210 = vunpack.c.h.b16 %v3124
        %v4211 = vunpack.c.l.b16 %v3125
        %v4212 = vunpack.c.h.b16 %v3125
        %v4213 = vunpack.c.l.b16 %v3126
        %v4214 = vunpack.c.h.b16 %v3126
        %v4215 = vunpack.c.l.b16 %v3127
        %v4216 = vunpack.c.h.b16 %v3127
        %v4217 = vunpack.c.l.b16 %v3128
        %v4218 = vunpack.c.h.b16 %v3128
        %v4219 = vunpack.c.l.b16 %v3129
        %v4220 = vunpack.c.h.b16 %v3129
        %v4221 = vunpack.c.l.b16 %v3130
        %v4222 = vunpack.c.h.b16 %v3130
        %v4223 = vunpack.c.l.b16 %v3131
        %v4224 = vunpack.c.h.b16 %v3131
        %v4225 = vunpack.c.l.b16 %v3132
        %v4226 = vunpack.c.h.b16 %v3132
        %v4227 = vunpack.c.l.b16 %v3133
        %v4228 = vunpack.c.h.b16 %v3133
        %v4229 = vunpack.c.l.b16 %v3134
        %v4230 = vunpack.c.h.b16 %v3134
        %v4231 = vunpack.c.l.b16 %v3135
        %v4232 = vunpack.c.h.b16 %v3135
        %v4233 = vunpack.c.l.b16 %v3136
        %v4234 = vunpack.c.h.b16 %v3136
        %v4235 = vunpack.c.l.b16 %v3137
        %v4236 = vunpack.c.h.b16 %v3137
        %v4237 = vunpack.c.l.b16 %v3138
        %v4238 = vunpack.c.h.b16 %v3138
        %v4239 = vunpack.c.l.b16 %v3139
        %v4240 = vunpack.c.h.b16 %v3139
        %v4241 = vunpack.c.l.b16 %v3140
        %v4242 = vunpack.c.h.b16 %v3140
        %v4243 = vunpack.c.l.b16 %v3141
        %v4244 = vunpack.c.h.b16 %v3141
        %v4245 = vunpack.c.l.b16 %v3142
        %v4246 = vunpack.c.h.b16 %v3142
        %v4247 = vunpack.c.l.b16 %v3143
        %v4248 = vunpack.c.h.b16 %v3143
        %v4249 = vunpack.c.l.b16 %v3144
        %v4250 = vunpack.c.h.b16 %v3144
        %v4251 = vunpack.c.l.b16 %v3145
        %v4252 = vunpack.c.h.b16 %v3145
        %v4253 = vunpack.c.l.b16 %v3146
        %v4254 = vunpack.c.h.b16 %v3146
        %v4255 = vunpack.c.l.b16 %v3147
        %v4256 = vunpack.c.h.b16 %v3147
        %v4257 = vunpack.c.l.b16 %v3148
        %v4258 = vunpack.c.h.b16 %v3148
        %v4259 = vunpack.c.l.b16 %v3149
        %v4260 = vunpack.c.h.b16 %v3149
        %v4261 = vunpack.c.l.b16 %v3150
        %v4262 = vunpack.c.h.b16 %v3150
        %v4263 = vunpack.c.l.b16 %v3151
        %v4264 = vunpack.c.h.b16 %v3151
        %v4265 = vunpack.c.l.b16 %v3152
        %v4266 = vunpack.c.h.b16 %v3152
        %v4267 = vunpack.c.l.b16 %v3153
        %v4268 = vunpack.c.h.b16 %v3153
        %v4269 = vunpack.c.l.b16 %v3154
        %v4270 = vunpack.c.h.b16 %v3154
        %v4271 = vunpack.c.l.b16 %v3155
        %v4272 = vunpack.c.h.b16 %v3155
        %v4273 = vunpack.c.l.b16 %v3156
        %v4274 = vunpack.c.h.b16 %v3156
        %v4275 = vunpack.c.l.b16 %v3157
        %v4276 = vunpack.c.h.b16 %v3157
        %v4277 = vunpack.c.l.b16 %v3158
        %v4278 = vunpack.c.h.b16 %v3158
        %v4279 = vunpack.c.l.b16 %v3159
        %v4280 = vunpack.c.h.b16 %v3159
        %v4281 = vunpack.c.l.b16 %v3160
        %v4282 = vunpack.c.h.b16 %v3160
        %v4283 = vunpack.c.l.b16 %v3161
        %v4284 = vunpack.c.h.b16 %v3161
        %v4285 = vunpack.c.l.b16 %v3162
        %v4286 = vunpack.c.h.b16 %v3162
        %v4287 = vunpack.c.l.b16 %v3163
        %v4288 = vunpack.c.h.b16 %v3163
        %v4289 = vunpack.c.l.b16 %v3164
        %v4290 = vunpack.c.h.b16 %v3164
        %v4291 = vunpack.c.l.b16 %v3165
        %v4292 = vunpack.c.h.b16 %v3165
        %v4293 = vunpack.c.l.b16 %v3166
        %v4294 = vunpack.c.h.b16 %v3166
        %v4295 = vunpack.c.l.b16 %v3167
        %v4296 = vunpack.c.h.b16 %v3167
        %v4297 = vunpack.c.l.b16 %v3168
        %v4298 = vunpack.c.h.b16 %v3168
        %v4299 = vunpack.c.l.b16 %v3169
        %v4300 = vunpack.c.h.b16 %v3169
        %v4301 = vunpack.c.l.b16 %v3170
        %v4302 = vunpack.c.h.b16 %v3170
        %v4303 = vunpack.c.l.b16 %v3171
        %v4304 = vunpack.c.h.b16 %v3171
        %v4305 = vunpack.c.l.b16 %v3172
        %v4306 = vunpack.c.h.b16 %v3172
        %v4307 = vunpack.c.l.b16 %v3173
        %v4308 = vunpack.c.h.b16 %v3173
        %v4309 = vunpack.c.l.b16 %v3174
        %v4310 = vunpack.c.h.b16 %v3174
        %v4311 = vunpack.c.l.b16 %v3175
        %v4312 = vunpack.c.h.b16 %v3175
        %v4313 = vunpack.c.l.b16 %v3176
        %v4314 = vunpack.c.h.b16 %v3176
        %v4315 = vunpack.c.l.b16 %v3177
        %v4316 = vunpack.c.h.b16 %v3177
        %v4317 = vunpack.c.l.b16 %v3178
        %v4318 = vunpack.c.h.b16 %v3178
        %v4319 = vunpack.c.l.b16 %v3179
        %v4320 = vunpack.c.h.b16 %v3179
        %v4321 = vunpack.c.l.b16 %v3180
        %v4322 = vunpack.c.h.b16 %v3180
        %v4323 = vunpack.c.l.b16 %v3181
        %v4324 = vunpack.c.h.b16 %v3181
        %v4325 = vunpack.c.l.b16 %v3182
        %v4326 = vunpack.c.h.b16 %v3182
        %v4327 = vunpack.c.l.b16 %v3183
        %v4328 = vunpack.c.h.b16 %v3183
        %v4329 = vunpack.c.l.b16 %v3184
        %v4330 = vunpack.c.h.b16 %v3184
        %v4331 = vunpack.c.l.b16 %v3185
        %v4332 = vunpack.c.h.b16 %v3185
        %v4333 = vunpack.c.l.b16 %v3186
        %v4334 = vunpack.c.h.b16 %v3186
        %v4335 = vunpack.c.l.b16 %v3187
        %v4336 = vunpack.c.h.b16 %v3187
        %v4337 = vunpack.c.l.b16 %v3188
        %v4338 = vunpack.c.h.b16 %v3188
        %v4339 = vunpack.c.l.b16 %v3189
        %v4340 = vunpack.c.h.b16 %v3189
        %v4341 = vunpack.c.l.b16 %v3190
        %v4342 = vunpack.c.h.b16 %v3190
        %v4343 = vunpack.c.l.b16 %v3191
        %v4344 = vunpack.c.h.b16 %v3191
        %v4345 = vunpack.c.l.b16 %v3192
        %v4346 = vunpack.c.h.b16 %v3192
        %v4347 = vunpack.c.l.b16 %v3193
        %v4348 = vunpack.c.h.b16 %v3193
        %v4349 = vunpack.c.l.b16 %v3194
        %v4350 = vunpack.c.h.b16 %v3194
        %v4351 = vunpack.c.l.b16 %v3195
        %v4352 = vunpack.c.h.b16 %v3195
        %v4353 = vunpack.c.l.b16 %v3196
        %v4354 = vunpack.c.h.b16 %v3196
        %v4355 = vunpack.c.l.b16 %v3197
        %v4356 = vunpack.c.h.b16 %v3197
        %v4357 = vunpack.c.l.b16 %v3198
        %v4358 = vunpack.c.h.b16 %v3198
        %v4359 = vunpack.c.l.b16 %v3199
        %v4360 = vunpack.c.h.b16 %v3199
        %v4361 = vunpack.c.l.b16 %v3200
        %v4362 = vunpack.c.h.b16 %v3200
        %v4363 = vunpack.c.l.b16 %v3201
        %v4364 = vunpack.c.h.b16 %v3201
        %v4365 = vunpack.c.l.b16 %v3202
        %v4366 = vunpack.c.h.b16 %v3202
        %v4367 = vunpack.c.l.b16 %v3203
        %v4368 = vunpack.c.h.b16 %v3203
        %v4369 = vunpack.c.l.b16 %v3204
        %v4370 = vunpack.c.h.b16 %v3204
        %v4371 = vunpack.c.l.b16 %v3205
        %v4372 = vunpack.c.h.b16 %v3205
        %v4373 = vunpack.c.l.b16 %v3206
        %v4374 = vunpack.c.h.b16 %v3206
        %v4375 = vunpack.c.l.b16 %v3207
        %v4376 = vunpack.c.h.b16 %v3207
        %v4377 = vunpack.c.l.b16 %v3208
        %v4378 = vunpack.c.h.b16 %v3208
        %v4379 = vunpack.c.l.b16 %v3209
        %v4380 = vunpack.c.h.b16 %v3209
        %v4381 = vunpack.c.l.b16 %v3210
        %v4382 = vunpack.c.h.b16 %v3210
        %v4383 = vunpack.c.l.b16 %v3211
        %v4384 = vunpack.c.h.b16 %v3211
        %v4385 = vunpack.c.l.b16 %v3212
        %v4386 = vunpack.c.h.b16 %v3212
        %v4387 = vunpack.c.l.b16 %v3213
        %v4388 = vunpack.c.h.b16 %v3213
        %v4389 = vunpack.c.l.b16 %v3214
        %v4390 = vunpack.c.h.b16 %v3214
        %v4391 = vunpack.c.l.b16 %v3215
        %v4392 = vunpack.c.h.b16 %v3215
        %v4393 = vunpack.c.l.b16 %v3216
        %v4394 = vunpack.c.h.b16 %v3216
        %v4395 = vunpack.c.l.b16 %v3217
        %v4396 = vunpack.c.h.b16 %v3217
        %v4397 = vunpack.c.l.b16 %v3218
        %v4398 = vunpack.c.h.b16 %v3218
        %v4399 = vunpack.c.l.b16 %v3219
        %v4400 = vunpack.c.h.b16 %v3219
        %v4401 = vunpack.c.l.b16 %v3220
        %v4402 = vunpack.c.h.b16 %v3220
        %v4403 = vunpack.c.l.b16 %v3221
        %v4404 = vunpack.c.h.b16 %v3221
        %v4405 = vunpack.c.l.b16 %v3222
        %v4406 = vunpack.c.h.b16 %v3222
        %v4407 = vunpack.c.l.b16 %v3223
        %v4408 = vunpack.c.h.b16 %v3223
        %v4409 = vunpack.c.l.b16 %v3224
        %v4410 = vunpack.c.h.b16 %v3224
        %v4411 = vunpack.c.l.b16 %v3225
        %v4412 = vunpack.c.h.b16 %v3225
        %v4413 = vunpack.c.l.b16 %v3226
        %v4414 = vunpack.c.h.b16 %v3226
        %v4415 = vunpack.c.l.b16 %v3227
        %v4416 = vunpack.c.h.b16 %v3227
        %v4417 = vunpack.c.l.b16 %v3228
        %v4418 = vunpack.c.h.b16 %v3228
        %v4419 = vunpack.c.l.b16 %v3229
        %v4420 = vunpack.c.h.b16 %v3229
        %v4421 = vunpack.c.l.b16 %v3230
        %v4422 = vunpack.c.h.b16 %v3230
        %v4423 = vunpack.c.l.b16 %v3231
        %v4424 = vunpack.c.h.b16 %v3231
        %v4425 = vunpack.c.l.b16 %v3232
        %v4426 = vunpack.c.h.b16 %v3232
        %v4427 = vunpack.c.l.b16 %v3233
        %v4428 = vunpack.c.h.b16 %v3233
        %v4429 = vunpack.c.l.b16 %v3234
        %v4430 = vunpack.c.h.b16 %v3234
        %v4431 = vunpack.c.l.b16 %v3235
        %v4432 = vunpack.c.h.b16 %v3235
        %v4433 = vunpack.c.l.b16 %v3236
        %v4434 = vunpack.c.h.b16 %v3236
        %v4435 = vunpack.c.l.b16 %v3237
        %v4436 = vunpack.c.h.b16 %v3237
        %v4437 = vunpack.c.l.b16 %v3238
        %v4438 = vunpack.c.h.b16 %v3238
        %v4439 = vunpack.c.l.b16 %v3239
        %v4440 = vunpack.c.h.b16 %v3239
        %v4441 = vunpack.c.l.b16 %v3240
        %v4442 = vunpack.c.h.b16 %v3240
        %v4443 = vunpack.c.l.b16 %v3241
        %v4444 = vunpack.c.h.b16 %v3241
        %v4445 = vunpack.c.l.b16 %v3242
        %v4446 = vunpack.c.h.b16 %v3242
        %v4447 = vunpack.c.l.b16 %v3243
        %v4448 = vunpack.c.h.b16 %v3243
        %v4449 = vunpack.c.l.b16 %v3244
        %v4450 = vunpack.c.h.b16 %v3244
        %v4451 = vunpack.c.l.b16 %v3245
        %v4452 = vunpack.c.h.b16 %v3245
        %v4453 = vunpack.c.l.b16 %v3246
        %v4454 = vunpack.c.h.b16 %v3246
        %v4455 = vunpack.c.l.b16 %v3247
        %v4456 = vunpack.c.h.b16 %v3247
        %v4457 = vunpack.c.l.b16 %v3248
        %v4458 = vunpack.c.h.b16 %v3248
        %v4459 = vunpack.c.l.b16 %v3249
        %v4460 = vunpack.c.h.b16 %v3249
        %v4461 = vunpack.c.l.b16 %v3250
        %v4462 = vunpack.c.h.b16 %v3250
        %v4463 = vunpack.c.l.b16 %v3251
        %v4464 = vunpack.c.h.b16 %v3251
        %v4465 = vunpack.c.l.b16 %v3252
        %v4466 = vunpack.c.h.b16 %v3252
        %v4467 = vunpack.c.l.b16 %v3253
        %v4468 = vunpack.c.h.b16 %v3253
        %v4469 = vunpack.c.l.b16 %v3254
        %v4470 = vunpack.c.h.b16 %v3254
        %v4471 = vunpack.c.l.b16 %v3255
        %v4472 = vunpack.c.h.b16 %v3255
        %v4473 = vunpack.c.l.b16 %v3256
        %v4474 = vunpack.c.h.b16 %v3256
        %v4475 = vunpack.c.l.b16 %v3257
        %v4476 = vunpack.c.h.b16 %v3257
        %v4477 = vunpack.c.l.b16 %v3258
        %v4478 = vunpack.c.h.b16 %v3258
        %v4479 = vunpack.c.l.b16 %v3259
        %v4480 = vunpack.c.h.b16 %v3259
        %v4481 = vunpack.c.l.b16 %v3260
        %v4482 = vunpack.c.h.b16 %v3260
        %v4483 = vunpack.c.l.b16 %v3261
        %v4484 = vunpack.c.h.b16 %v3261
        %v4485 = vunpack.c.l.b16 %v3262
        %v4486 = vunpack.c.h.b16 %v3262
        %v4487 = vunpack.c.l.b16 %v3263
        %v4488 = vunpack.c.h.b16 %v3263
        %v4489 = vunpack.c.l.b16 %v3264
        %v4490 = vunpack.c.h.b16 %v3264
        %v4491 = vunpack.c.l.b16 %v3265
        %v4492 = vunpack.c.h.b16 %v3265
        %v4493 = vunpack.c.l.b16 %v3266
        %v4494 = vunpack.c.h.b16 %v3266
        %v4495 = vunpack.c.l.b16 %v3267
        %v4496 = vunpack.c.h.b16 %v3267
        %v4497 = vunpack.c.l.b16 %v3268
        %v4498 = vunpack.c.h.b16 %v3268
        %v4499 = vunpack.c.l.b16 %v3269
        %v4500 = vunpack.c.h.b16 %v3269
        %v4501 = vunpack.c.l.b16 %v3270
        %v4502 = vunpack.c.h.b16 %v3270
        %v4503 = vunpack.c.l.b16 %v3271
        %v4504 = vunpack.c.h.b16 %v3271
        %v4505 = vunpack.c.l.b16 %v3272
        %v4506 = vunpack.c.h.b16 %v3272
        %v4507 = vunpack.c.l.b16 %v3273
        %v4508 = vunpack.c.h.b16 %v3273
        %v4509 = vunpack.c.l.b16 %v3274
        %v4510 = vunpack.c.h.b16 %v3274
        %v4511 = vunpack.c.l.b16 %v3275
        %v4512 = vunpack.c.h.b16 %v3275
        %v4513 = vunpack.c.l.b16 %v3276
        %v4514 = vunpack.c.h.b16 %v3276
        %v4515 = vunpack.c.l.b16 %v3277
        %v4516 = vunpack.c.h.b16 %v3277
        %v4517 = vunpack.c.l.b16 %v3278
        %v4518 = vunpack.c.h.b16 %v3278
        %v4519 = vunpack.c.l.b16 %v3279
        %v4520 = vunpack.c.h.b16 %v3279
        %v4521 = vunpack.c.l.b16 %v3280
        %v4522 = vunpack.c.h.b16 %v3280
        %v4523 = vunpack.c.l.b16 %v3281
        %v4524 = vunpack.c.h.b16 %v3281
        %v4525 = vunpack.c.l.b16 %v3282
        %v4526 = vunpack.c.h.b16 %v3282
        %v4527 = vunpack.c.l.b16 %v3283
        %v4528 = vunpack.c.h.b16 %v3283
        %v4529 = vunpack.c.l.b16 %v3284
        %v4530 = vunpack.c.h.b16 %v3284
        %v4531 = vunpack.c.l.b16 %v3285
        %v4532 = vunpack.c.h.b16 %v3285
        %v4533 = vunpack.c.l.b16 %v3286
        %v4534 = vunpack.c.h.b16 %v3286
        %v4535 = vunpack.c.l.b16 %v3287
        %v4536 = vunpack.c.h.b16 %v3287
        %v4537 = vunpack.c.l.b16 %v3288
        %v4538 = vunpack.c.h.b16 %v3288
        %v4539 = vunpack.c.l.b16 %v3289
        %v4540 = vunpack.c.h.b16 %v3289
        %v4541 = vunpack.c.l.b16 %v3290
        %v4542 = vunpack.c.h.b16 %v3290
        %v4543 = vunpack.c.l.b16 %v3291
        %v4544 = vunpack.c.h.b16 %v3291
        %v4545 = vunpack.c.l.b16 %v3292
        %v4546 = vunpack.c.h.b16 %v3292
        %v4547 = vunpack.c.l.b16 %v3293
        %v4548 = vunpack.c.h.b16 %v3293
        %v4549 = vunpack.c.l.b16 %v3294
        %v4550 = vunpack.c.h.b16 %v3294
        %v4551 = vunpack.c.l.b16 %v3295
        %v4552 = vunpack.c.h.b16 %v3295
        %v4553 = vunpack.c.l.b16 %v3296
        %v4554 = vunpack.c.h.b16 %v3296
        %v4555 = vunpack.c.l.b16 %v3297
        %v4556 = vunpack.c.h.b16 %v3297
        %v4557 = vunpack.c.l.b16 %v3298
        %v4558 = vunpack.c.h.b16 %v3298
        %v4559 = vunpack.c.l.b16 %v3299
        %v4560 = vunpack.c.h.b16 %v3299
        %v4561 = vunpack.c.l.b16 %v3300
        %v4562 = vunpack.c.h.b16 %v3300
        %v4563 = vunpack.c.l.b16 %v3301
        %v4564 = vunpack.c.h.b16 %v3301
        %v4565 = vunpack.c.l.b16 %v3302
        %v4566 = vunpack.c.h.b16 %v3302
        %v4567 = vunpack.c.l.b16 %v3303
        %v4568 = vunpack.c.h.b16 %v3303
        %v4569 = vunpack.c.l.b16 %v3304
        %v4570 = vunpack.c.h.b16 %v3304
        %v4571 = vunpack.c.l.b16 %v3305
        %v4572 = vunpack.c.h.b16 %v3305
        %v4573 = vunpack.c.l.b16 %v3306
        %v4574 = vunpack.c.h.b16 %v3306
        %v4575 = vunpack.c.l.b16 %v3307
        %v4576 = vunpack.c.h.b16 %v3307
        %v4577 = vunpack.c.l.b16 %v3308
        %v4578 = vunpack.c.h.b16 %v3308
        %v4579 = vunpack.c.l.b16 %v3309
        %v4580 = vunpack.c.h.b16 %v3309
        %v4581 = vunpack.c.l.b16 %v3310
        %v4582 = vunpack.c.h.b16 %v3310
        %v4583 = vunpack.c.l.b16 %v3311
        %v4584 = vunpack.c.h.b16 %v3311
        %v4585 = vunpack.c.l.b16 %v3312
        %v4586 = vunpack.c.h.b16 %v3312
        %v4587 = vunpack.c.l.b16 %v3313
        %v4588 = vunpack.c.h.b16 %v3313
        %v4589 = vunpack.c.l.b16 %v3314
        %v4590 = vunpack.c.h.b16 %v3314
        %v4591 = vunpack.c.l.b16 %v3315
        %v4592 = vunpack.c.h.b16 %v3315
        %v4593 = vunpack.c.l.b16 %v3316
        %v4594 = vunpack.c.h.b16 %v3316
        %v4595 = vunpack.c.l.b16 %v3317
        %v4596 = vunpack.c.h.b16 %v3317
        %v4597 = vunpack.c.l.b16 %v3318
        %v4598 = vunpack.c.h.b16 %v3318
        %v4599 = vunpack.c.l.b16 %v3319
        %v4600 = vunpack.c.h.b16 %v3319
        %v4601 = vunpack.c.l.b16 %v3320
        %v4602 = vunpack.c.h.b16 %v3320
        %v4603 = vunpack.c.l.b16 %v3321
        %v4604 = vunpack.c.h.b16 %v3321
        %v4605 = vunpack.c.l.b16 %v3322
        %v4606 = vunpack.c.h.b16 %v3322
        %v4607 = vunpack.c.l.b16 %v3323
        %v4608 = vunpack.c.h.b16 %v3323
        %v4609 = vunpack.c.l.b16 %v3324
        %v4610 = vunpack.c.h.b16 %v3324
        %v4611 = vunpack.c.l.b16 %v3325
        %v4612 = vunpack.c.h.b16 %v3325
        %v4613 = vunpack.c.l.b16 %v3326
        %v4614 = vunpack.c.h.b16 %v3326
        %v4615 = vunpack.c.l.b16 %v3327
        %v4616 = vunpack.c.h.b16 %v3327
        %v4617 = vunpack.c.l.b16 %v3328
        %v4618 = vunpack.c.h.b16 %v3328
        %v4619 = vunpack.c.l.b16 %v3329
        %v4620 = vunpack.c.h.b16 %v3329
        %v4621 = vunpack.c.l.b16 %v3330
        %v4622 = vunpack.c.h.b16 %v3330
        %v4623 = vunpack.c.l.b16 %v3331
        %v4624 = vunpack.c.h.b16 %v3331
        %v4625 = vunpack.c.l.b16 %v3332
        %v4626 = vunpack.c.h.b16 %v3332
        %v4627 = vunpack.c.l.b16 %v3333
        %v4628 = vunpack.c.h.b16 %v3333
        %v4629 = vunpack.c.l.b16 %v3334
        %v4630 = vunpack.c.h.b16 %v3334
        %v4631 = vunpack.c.l.b16 %v3335
        %v4632 = vunpack.c.h.b16 %v3335
        %v4633 = vunpack.c.l.b16 %v3336
        %v4634 = vunpack.c.h.b16 %v3336
        %v4635 = vunpack.c.l.b16 %v3337
        %v4636 = vunpack.c.h.b16 %v3337
        %v4637 = vunpack.c.l.b16 %v3338
        %v4638 = vunpack.c.h.b16 %v3338
        %v4639 = vunpack.c.l.b16 %v3339
        %v4640 = vunpack.c.h.b16 %v3339
        %v4641 = vunpack.c.l.b16 %v3340
        %v4642 = vunpack.c.h.b16 %v3340
        %v4643 = vunpack.c.l.b16 %v3341
        %v4644 = vunpack.c.h.b16 %v3341
        %v4645 = vunpack.c.l.b16 %v3342
        %v4646 = vunpack.c.h.b16 %v3342
        %v4647 = vunpack.c.l.b16 %v3343
        %v4648 = vunpack.c.h.b16 %v3343
        %v4649 = vunpack.c.l.b16 %v3344
        %v4650 = vunpack.c.h.b16 %v3344
        %v4651 = vunpack.c.l.b16 %v3345
        %v4652 = vunpack.c.h.b16 %v3345
        %v4653 = vunpack.c.l.b16 %v3346
        %v4654 = vunpack.c.h.b16 %v3346
        %v4655 = vunpack.c.l.b16 %v3347
        %v4656 = vunpack.c.h.b16 %v3347
        %v4657 = vunpack.c.l.b16 %v3348
        %v4658 = vunpack.c.h.b16 %v3348
        %v4659 = vunpack.c.l.b16 %v3349
        %v4660 = vunpack.c.h.b16 %v3349
        %v4661 = vunpack.c.l.b16 %v3350
        %v4662 = vunpack.c.h.b16 %v3350
        %v4663 = vunpack.c.l.b16 %v3351
        %v4664 = vunpack.c.h.b16 %v3351
        %v4665 = vunpack.c.l.b16 %v3352
        %v4666 = vunpack.c.h.b16 %v3352
        %v4667 = vunpack.c.l.b16 %v3353
        %v4668 = vunpack.c.h.b16 %v3353
        %v4669 = vunpack.c.l.b16 %v3354
        %v4670 = vunpack.c.h.b16 %v3354
        %v4671 = vunpack.c.l.b16 %v3355
        %v4672 = vunpack.c.h.b16 %v3355
        %v4673 = vunpack.c.l.b16 %v3356
        %v4674 = vunpack.c.h.b16 %v3356
        %v4675 = vunpack.c.l.b16 %v3357
        %v4676 = vunpack.c.h.b16 %v3357
        %v4677 = vunpack.c.l.b16 %v3358
        %v4678 = vunpack.c.h.b16 %v3358
        %v4679 = vunpack.c.l.b16 %v3359
        %v4680 = vunpack.c.h.b16 %v3359
        %v4681 = vunpack.c.l.b16 %v3360
        %v4682 = vunpack.c.h.b16 %v3360
        %v4683 = vunpack.c.l.b16 %v3361
        %v4684 = vunpack.c.h.b16 %v3361
        %v4685 = vunpack.c.l.b16 %v3362
        %v4686 = vunpack.c.h.b16 %v3362
        %v4687 = vunpack.c.l.b16 %v3363
        %v4688 = vunpack.c.h.b16 %v3363
        %v4689 = vunpack.c.l.b16 %v3364
        %v4690 = vunpack.c.h.b16 %v3364
        %v4691 = vunpack.c.l.b16 %v3365
        %v4692 = vunpack.c.h.b16 %v3365
        %v4693 = vunpack.c.l.b16 %v3366
        %v4694 = vunpack.c.h.b16 %v3366
        %v4695 = vunpack.c.l.b16 %v3367
        %v4696 = vunpack.c.h.b16 %v3367
        %v4697 = vunpack.c.l.b16 %v3368
        %v4698 = vunpack.c.h.b16 %v3368
        %v4699 = vunpack.c.l.b16 %v3369
        %v4700 = vunpack.c.h.b16 %v3369
        %v4701 = vunpack.c.l.b16 %v3370
        %v4702 = vunpack.c.h.b16 %v3370
        %v4703 = vunpack.c.l.b16 %v3371
        %v4704 = vunpack.c.h.b16 %v3371
        %v4705 = vunpack.c.l.b16 %v3372
        %v4706 = vunpack.c.h.b16 %v3372
        %v4707 = vunpack.c.l.b16 %v3373
        %v4708 = vunpack.c.h.b16 %v3373
        %v4709 = vunpack.c.l.b16 %v3374
        %v4710 = vunpack.c.h.b16 %v3374
        %v4711 = vunpack.c.l.b16 %v3375
        %v4712 = vunpack.c.h.b16 %v3375
        %v4713 = vunpack.c.l.b16 %v3376
        %v4714 = vunpack.c.h.b16 %v3376
        %v4715 = vunpack.c.l.b16 %v3377
        %v4716 = vunpack.c.h.b16 %v3377
        %v4717 = vunpack.c.l.b16 %v3378
        %v4718 = vunpack.c.h.b16 %v3378
        %v4719 = vunpack.c.l.b16 %v3379
        %v4720 = vunpack.c.h.b16 %v3379
        %v4721 = vunpack.c.l.b16 %v3380
        %v4722 = vunpack.c.h.b16 %v3380
        %v4723 = vunpack.c.l.b16 %v3381
        %v4724 = vunpack.c.h.b16 %v3381
        %v4725 = vunpack.c.l.b16 %v3382
        %v4726 = vunpack.c.h.b16 %v3382
        %v4727 = vunpack.c.l.b16 %v3383
        %v4728 = vunpack.c.h.b16 %v3383
        %v4729 = vunpack.c.l.b16 %v3384
        %v4730 = vunpack.c.h.b16 %v3384
        %v4731 = vunpack.c.l.b16 %v3385
        %v4732 = vunpack.c.h.b16 %v3385
        %v4733 = vunpack.c.l.b16 %v3386
        %v4734 = vunpack.c.h.b16 %v3386
        %v4735 = vunpack.c.l.b16 %v3387
        %v4736 = vunpack.c.h.b16 %v3387
        %v4737 = vunpack.c.l.b16 %v3388
        %v4738 = vunpack.c.h.b16 %v3388
        %v4739 = vunpack.c.l.b16 %v3389
        %v4740 = vunpack.c.h.b16 %v3389
        %v4741 = vunpack.c.l.b16 %v3390
        %v4742 = vunpack.c.h.b16 %v3390
        %v4743 = vunpack.c.l.b16 %v3391
        %v4744 = vunpack.c.h.b16 %v3391
        %v4745 = vunpack.c.l.b16 %v3392
        %v4746 = vunpack.c.h.b16 %v3392
        %v4747 = vunpack.c.l.b16 %v3393
        %v4748 = vunpack.c.h.b16 %v3393
        %v4749 = vunpack.c.l.b16 %v3394
        %v4750 = vunpack.c.h.b16 %v3394
        %v4751 = vunpack.c.l.b16 %v3395
        %v4752 = vunpack.c.h.b16 %v3395
        %v4753 = vunpack.c.l.b16 %v3396
        %v4754 = vunpack.c.h.b16 %v3396
        %v4755 = vunpack.c.l.b16 %v3397
        %v4756 = vunpack.c.h.b16 %v3397
        %v4757 = vunpack.c.l.b16 %v3398
        %v4758 = vunpack.c.h.b16 %v3398
        %v4759 = vunpack.c.l.b16 %v3399
        %v4760 = vunpack.c.h.b16 %v3399
        %v4761 = vunpack.c.l.b16 %v3400
        %v4762 = vunpack.c.h.b16 %v3400
        %v4763 = vunpack.c.l.b16 %v3401
        %v4764 = vunpack.c.h.b16 %v3401
        %v4765 = vunpack.c.l.b16 %v3402
        %v4766 = vunpack.c.h.b16 %v3402
        %v4767 = vunpack.c.l.b16 %v3403
        %v4768 = vunpack.c.h.b16 %v3403
        %v4769 = vunpack.c.l.b16 %v3404
        %v4770 = vunpack.c.h.b16 %v3404
        %v4771 = vunpack.c.l.b16 %v3405
        %v4772 = vunpack.c.h.b16 %v3405
        %v4773 = vunpack.c.l.b16 %v3406
        %v4774 = vunpack.c.h.b16 %v3406
        %v4775 = vunpack.c.l.b16 %v3407
        %v4776 = vunpack.c.h.b16 %v3407
        %v4777 = vunpack.c.l.b16 %v3408
        %v4778 = vunpack.c.h.b16 %v3408
        %v4779 = vunpack.c.l.b16 %v3409
        %v4780 = vunpack.c.h.b16 %v3409
        %v4781 = vunpack.c.l.b16 %v3410
        %v4782 = vunpack.c.h.b16 %v3410
        %v4783 = vunpack.c.l.b16 %v3411
        %v4784 = vunpack.c.h.b16 %v3411
        %v4785 = vunpack.c.l.b16 %v3412
        %v4786 = vunpack.c.h.b16 %v3412
        %v4787 = vunpack.c.l.b16 %v3413
        %v4788 = vunpack.c.h.b16 %v3413
        %v4789 = vunpack.c.l.b16 %v3414
        %v4790 = vunpack.c.h.b16 %v3414
        %v4791 = vunpack.c.l.b16 %v3415
        %v4792 = vunpack.c.h.b16 %v3415
        %v4793 = vunpack.c.l.b16 %v3416
        %v4794 = vunpack.c.h.b16 %v3416
        %v4795 = vunpack.c.l.b16 %v3417
        %v4796 = vunpack.c.h.b16 %v3417
        %v4797 = vunpack.c.l.b16 %v3418
        %v4798 = vunpack.c.h.b16 %v3418
        %v4799 = vunpack.c.l.b16 %v3419
        %v4800 = vunpack.c.h.b16 %v3419
        %v4801 = vunpack.c.l.b16 %v3420
        %v4802 = vunpack.c.h.b16 %v3420
        %v4803 = vunpack.c.l.b16 %v3421
        %v4804 = vunpack.c.h.b16 %v3421
        %v4805 = vunpack.c.l.b16 %v3422
        %v4806 = vunpack.c.h.b16 %v3422
        %v4807 = vunpack.c.l.b16 %v3423
        %v4808 = vunpack.c.h.b16 %v3423
        %v4809 = vunpack.c.l.b16 %v3424
        %v4810 = vunpack.c.h.b16 %v3424
        %v4811 = vunpack.c.l.b16 %v3425
        %v4812 = vunpack.c.h.b16 %v3425
        %v4813 = vunpack.c.l.b16 %v3426
        %v4814 = vunpack.c.h.b16 %v3426
        %v4815 = vunpack.c.l.b16 %v3427
        %v4816 = vunpack.c.h.b16 %v3427
        %v4817 = vunpack.c.l.b16 %v3428
        %v4818 = vunpack.c.h.b16 %v3428
        %v4819 = vunpack.c.l.b16 %v3429
        %v4820 = vunpack.c.h.b16 %v3429
        %v4821 = vunpack.c.l.b16 %v3430
        %v4822 = vunpack.c.h.b16 %v3430
        %v4823 = vunpack.c.l.b16 %v3431
        %v4824 = vunpack.c.h.b16 %v3431
        %v4825 = vunpack.c.l.b16 %v3432
        %v4826 = vunpack.c.h.b16 %v3432
        %v4827 = vunpack.c.l.b16 %v3433
        %v4828 = vunpack.c.h.b16 %v3433
        %v4829 = vunpack.c.l.b16 %v3434
        %v4830 = vunpack.c.h.b16 %v3434
        %v4831 = vunpack.c.l.b16 %v3435
        %v4832 = vunpack.c.h.b16 %v3435
        %v4833 = vunpack.c.l.b16 %v3436
        %v4834 = vunpack.c.h.b16 %v3436
        %v4835 = vunpack.c.l.b16 %v3437
        %v4836 = vunpack.c.h.b16 %v3437
        %v4837 = vunpack.c.l.b16 %v3438
        %v4838 = vunpack.c.h.b16 %v3438
        %v4839 = vunpack.c.l.b16 %v3439
        %v4840 = vunpack.c.h.b16 %v3439
        %v4841 = vunpack.c.l.b16 %v3440
        %v4842 = vunpack.c.h.b16 %v3440
        %v4843 = vunpack.c.l.b16 %v3441
        %v4844 = vunpack.c.h.b16 %v3441
        %v4845 = vunpack.c.l.b16 %v3442
        %v4846 = vunpack.c.h.b16 %v3442
        %v4847 = vunpack.c.l.b16 %v3443
        %v4848 = vunpack.c.h.b16 %v3443
        %v4849 = vunpack.c.l.b16 %v3444
        %v4850 = vunpack.c.h.b16 %v3444
        %v4851 = vunpack.c.l.b16 %v3445
        %v4852 = vunpack.c.h.b16 %v3445
        %v4853 = vunpack.c.l.b16 %v3446
        %v4854 = vunpack.c.h.b16 %v3446
        %v4855 = vunpack.c.l.b16 %v3447
        %v4856 = vunpack.c.h.b16 %v3447
        %v4857 = vunpack.c.l.b16 %v3448
        %v4858 = vunpack.c.h.b16 %v3448
        %v4859 = vunpack.c.l.b16 %v3449
        %v4860 = vunpack.c.h.b16 %v3449
        %v4861 = vunpack.c.l.b16 %v3450
        %v4862 = vunpack.c.h.b16 %v3450
        %v4863 = vunpack.c.l.b16 %v3451
        %v4864 = vunpack.c.h.b16 %v3451
        %v4865 = vunpack.c.l.b16 %v3452
        %v4866 = vunpack.c.h.b16 %v3452
        %v4867 = vunpack.c.l.b16 %v3453
        %v4868 = vunpack.c.h.b16 %v3453
        %v4869 = vunpack.c.l.b16 %v3454
        %v4870 = vunpack.c.h.b16 %v3454
        %v4871 = vunpack.c.l.b16 %v3455
        %v4872 = vunpack.c.h.b16 %v3455
        %v4873 = vunpack.c.l.b16 %v3456
        %v4874 = vunpack.c.h.b16 %v3456
        %v4875 = vunpack.c.l.b16 %v3457
        %v4876 = vunpack.c.h.b16 %v3457
        %v4877 = vunpack.c.l.b16 %v3458
        %v4878 = vunpack.c.h.b16 %v3458
        %v4879 = vunpack.c.l.b16 %v3459
        %v4880 = vunpack.c.h.b16 %v3459
        %v4881 = vunpack.c.l.b16 %v3460
        %v4882 = vunpack.c.h.b16 %v3460
        %v4883 = vunpack.c.l.b16 %v3461
        %v4884 = vunpack.c.h.b16 %v3461
        %v4885 = vunpack.c.l.b16 %v3462
        %v4886 = vunpack.c.h.b16 %v3462
        %v4887 = vunpack.c.l.b16 %v3463
        %v4888 = vunpack.c.h.b16 %v3463
        %v4889 = vunpack.c.l.b16 %v3464
        %v4890 = vunpack.c.h.b16 %v3464
        %v4891 = vunpack.c.l.b16 %v3465
        %v4892 = vunpack.c.h.b16 %v3465
        %v4893 = vunpack.c.l.b16 %v3466
        %v4894 = vunpack.c.h.b16 %v3466
        %v4895 = vunpack.c.l.b16 %v3467
        %v4896 = vunpack.c.h.b16 %v3467
        %v4897 = vunpack.c.l.b16 %v3468
        %v4898 = vunpack.c.h.b16 %v3468
        %v4899 = vunpack.c.l.b16 %v3469
        %v4900 = vunpack.c.h.b16 %v3469
        %v4901 = vunpack.c.l.b16 %v3470
        %v4902 = vunpack.c.h.b16 %v3470
        %v4903 = vunpack.c.l.b16 %v3471
        %v4904 = vunpack.c.h.b16 %v3471
        %v4905 = vunpack.c.l.b16 %v3472
        %v4906 = vunpack.c.h.b16 %v3472
        %v4907 = vunpack.c.l.b16 %v3473
        %v4908 = vunpack.c.h.b16 %v3473
        %v4909 = vunpack.c.l.b16 %v3474
        %v4910 = vunpack.c.h.b16 %v3474
        %v4911 = vunpack.c.l.b16 %v3475
        %v4912 = vunpack.c.h.b16 %v3475
        %v4913 = vunpack.c.l.b16 %v3476
        %v4914 = vunpack.c.h.b16 %v3476
        %v4915 = vunpack.c.l.b16 %v3477
        %v4916 = vunpack.c.h.b16 %v3477
        %v4917 = vunpack.c.l.b16 %v3478
        %v4918 = vunpack.c.h.b16 %v3478
        %v4919 = vunpack.c.l.b16 %v3479
        %v4920 = vunpack.c.h.b16 %v3479
        %v4921 = vunpack.c.l.b16 %v3480
        %v4922 = vunpack.c.h.b16 %v3480
        %v4923 = vunpack.c.l.b16 %v3481
        %v4924 = vunpack.c.h.b16 %v3481
        %v4925 = vunpack.c.l.b16 %v3482
        %v4926 = vunpack.c.h.b16 %v3482
        %v4927 = vunpack.c.l.b16 %v3483
        %v4928 = vunpack.c.h.b16 %v3483
        %v4929 = vunpack.c.l.b16 %v3484
        %v4930 = vunpack.c.h.b16 %v3484
        %v4931 = vunpack.c.l.b16 %v3485
        %v4932 = vunpack.c.h.b16 %v3485
        %v4933 = vunpack.c.l.b16 %v3486
        %v4934 = vunpack.c.h.b16 %v3486
        %v4935 = vunpack.c.l.b16 %v3487
        %v4936 = vunpack.c.h.b16 %v3487
        %v4937 = vunpack.c.l.b16 %v3488
        %v4938 = vunpack.c.h.b16 %v3488
        %v4939 = vunpack.c.l.b16 %v3489
        %v4940 = vunpack.c.h.b16 %v3489
        %v4941 = vunpack.c.l.b16 %v3490
        %v4942 = vunpack.c.h.b16 %v3490
        %v4943 = vunpack.c.l.b16 %v3491
        %v4944 = vunpack.c.h.b16 %v3491
        %v4945 = vunpack.c.l.b16 %v3492
        %v4946 = vunpack.c.h.b16 %v3492
        %v4947 = vunpack.c.l.b16 %v3493
        %v4948 = vunpack.c.h.b16 %v3493
        %v4949 = vunpack.c.l.b16 %v3494
        %v4950 = vunpack.c.h.b16 %v3494
        %v4951 = vunpack.c.l.b16 %v3495
        %v4952 = vunpack.c.h.b16 %v3495
        %v4953 = vunpack.c.l.b16 %v3496
        %v4954 = vunpack.c.h.b16 %v3496
        %v4955 = vunpack.c.l.b16 %v3497
        %v4956 = vunpack.c.h.b16 %v3497
        %v4957 = vunpack.c.l.b16 %v3498
        %v4958 = vunpack.c.h.b16 %v3498
        %v4959 = vunpack.c.l.b16 %v3499
        %v4960 = vunpack.c.h.b16 %v3499
        %v4961 = vunpack.c.l.b16 %v3500
        %v4962 = vunpack.c.h.b16 %v3500
        %v4963 = vunpack.c.l.b16 %v3501
        %v4964 = vunpack.c.h.b16 %v3501
        %v4965 = vunpack.c.l.b16 %v3502
        %v4966 = vunpack.c.h.b16 %v3502
        %v4967 = vunpack.c.l.b16 %v3503
        %v4968 = vunpack.c.h.b16 %v3503
        %v4969 = vunpack.c.l.b16 %v3504
        %v4970 = vunpack.c.h.b16 %v3504
        %v4971 = vunpack.c.l.b16 %v3505
        %v4972 = vunpack.c.h.b16 %v3505
        %v4973 = vunpack.c.l.b16 %v3506
        %v4974 = vunpack.c.h.b16 %v3506
        %v4975 = vunpack.c.l.b16 %v3507
        %v4976 = vunpack.c.h.b16 %v3507
        %v4977 = vunpack.c.l.b16 %v3508
        %v4978 = vunpack.c.h.b16 %v3508
        %v4979 = vunpack.c.l.b16 %v3509
        %v4980 = vunpack.c.h.b16 %v3509
        %v4981 = vunpack.c.l.b16 %v3510
        %v4982 = vunpack.c.h.b16 %v3510
        %v4983 = vunpack.c.l.b16 %v3511
        %v4984 = vunpack.c.h.b16 %v3511
        %v4985 = vunpack.c.l.b16 %v3512
        %v4986 = vunpack.c.h.b16 %v3512
        %v4987 = vunpack.c.l.b16 %v3513
        %v4988 = vunpack.c.h.b16 %v3513
        %v4989 = vunpack.c.l.b16 %v3514
        %v4990 = vunpack.c.h.b16 %v3514
        %v4991 = vunpack.c.l.b16 %v3515
        %v4992 = vunpack.c.h.b16 %v3515
        %v4993 = vunpack.c.l.b16 %v3516
        %v4994 = vunpack.c.h.b16 %v3516
        %v4995 = vunpack.c.l.b16 %v3517
        %v4996 = vunpack.c.h.b16 %v3517
        %v4997 = vunpack.c.l.b16 %v3518
        %v4998 = vunpack.c.h.b16 %v3518
        %v4999 = vunpack.c.l.b16 %v3519
        %v5000 = vunpack.c.h.b16 %v3519
        %v5001 = vunpack.c.l.b16 %v3520
        %v5002 = vunpack.c.h.b16 %v3520
        %v5003 = vunpack.c.l.b16 %v3521
        %v5004 = vunpack.c.h.b16 %v3521
        %v5005 = vunpack.c.l.b16 %v3522
        %v5006 = vunpack.c.h.b16 %v3522
        %v5007 = vunpack.c.l.b16 %v3523
        %v5008 = vunpack.c.h.b16 %v3523
        %v5009 = vunpack.c.l.b16 %v3524
        %v5010 = vunpack.c.h.b16 %v3524
        %v5011 = vunpack.c.l.b16 %v3525
        %v5012 = vunpack.c.h.b16 %v3525
        %v5013 = vunpack.c.l.b16 %v3526
        %v5014 = vunpack.c.h.b16 %v3526
        %v5015 = vunpack.c.l.b16 %v3527
        %v5016 = vunpack.c.h.b16 %v3527
        %v5017 = vunpack.c.l.b16 %v3528
        %v5018 = vunpack.c.h.b16 %v3528
        %v5019 = vunpack.c.l.b16 %v3529
        %v5020 = vunpack.c.h.b16 %v3529
        %v5021 = vunpack.c.l.b16 %v3530
        %v5022 = vunpack.c.h.b16 %v3530
        %v5023 = vunpack.c.l.b16 %v3531
        %v5024 = vunpack.c.h.b16 %v3531
        %v5025 = vunpack.c.l.b16 %v3532
        %v5026 = vunpack.c.h.b16 %v3532
        %v5027 = vunpack.c.l.b16 %v3533
        %v5028 = vunpack.c.h.b16 %v3533
        %v5029 = vunpack.c.l.b16 %v3534
        %v5030 = vunpack.c.h.b16 %v3534
        %v5031 = vunpack.c.l.b16 %v3535
        %v5032 = vunpack.c.h.b16 %v3535
        %v5033 = vunpack.c.l.b16 %v3536
        %v5034 = vunpack.c.h.b16 %v3536
        %v5035 = vunpack.c.l.b16 %v3537
        %v5036 = vunpack.c.h.b16 %v3537
        %v5037 = vunpack.c.l.b16 %v3538
        %v5038 = vunpack.c.h.b16 %v3538
        %v5039 = vunpack.c.l.b16 %v3539
        %v5040 = vunpack.c.h.b16 %v3539
        %v5041 = vunpack.c.l.b16 %v3540
        %v5042 = vunpack.c.h.b16 %v3540
        %v5043 = vunpack.c.l.b16 %v3541
        %v5044 = vunpack.c.h.b16 %v3541
        %v5045 = vunpack.c.l.b16 %v3542
        %v5046 = vunpack.c.h.b16 %v3542
        %v5047 = vunpack.c.l.b16 %v3543
        %v5048 = vunpack.c.h.b16 %v3543
        %v5049 = vunpack.c.l.b16 %v3544
        %v5050 = vunpack.c.h.b16 %v3544
        %v5051 = vunpack.c.l.b16 %v3545
        %v5052 = vunpack.c.h.b16 %v3545
        %v5053 = vunpack.c.l.b16 %v3546
        %v5054 = vunpack.c.h.b16 %v3546
        %v5055 = vunpack.c.l.b16 %v3547
        %v5056 = vunpack.c.h.b16 %v3547
        %v5057 = vunpack.c.l.b16 %v3548
        %v5058 = vunpack.c.h.b16 %v3548
        %v5059 = vunpack.c.l.b16 %v3549
        %v5060 = vunpack.c.h.b16 %v3549
        %v5061 = vunpack.c.l.b16 %v3550
        %v5062 = vunpack.c.h.b16 %v3550
        %v5063 = vunpack.c.l.b16 %v3551
        %v5064 = vunpack.c.h.b16 %v3551
        %v5065 = vunpack.c.l.b16 %v3552
        %v5066 = vunpack.c.h.b16 %v3552
        %v5067 = vunpack.c.l.b16 %v3553
        %v5068 = vunpack.c.h.b16 %v3553
        %v5069 = vunpack.c.l.b16 %v3554
        %v5070 = vunpack.c.h.b16 %v3554
        %v5071 = vunpack.c.l.b16 %v3555
        %v5072 = vunpack.c.h.b16 %v3555
        %v5073 = vunpack.c.l.b16 %v3556
        %v5074 = vunpack.c.h.b16 %v3556
        %v5075 = vunpack.c.l.b16 %v3557
        %v5076 = vunpack.c.h.b16 %v3557
        %v5077 = vunpack.c.l.b16 %v3558
        %v5078 = vunpack.c.h.b16 %v3558
        %v5079 = vunpack.c.l.b16 %v3559
        %v5080 = vunpack.c.h.b16 %v3559
        %v5081 = vunpack.c.l.b16 %v3560
        %v5082 = vunpack.c.h.b16 %v3560
        %v5083 = vunpack.c.l.b16 %v3561
        %v5084 = vunpack.c.h.b16 %v3561
        %v5085 = vunpack.c.l.b16 %v3562
        %v5086 = vunpack.c.h.b16 %v3562
        %v5087 = vunpack.c.l.b16 %v3563
        %v5088 = vunpack.c.h.b16 %v3563
        %v5089 = vunpack.c.l.b16 %v3564
        %v5090 = vunpack.c.h.b16 %v3564
        %v5091 = vunpack.c.l.b16 %v3565
        %v5092 = vunpack.c.h.b16 %v3565
        %v5093 = vunpack.c.l.b16 %v3566
        %v5094 = vunpack.c.h.b16 %v3566
        %v5095 = vunpack.c.l.b16 %v3567
        %v5096 = vunpack.c.h.b16 %v3567
        %v5097 = vunpack.c.l.b16 %v3568
        %v5098 = vunpack.c.h.b16 %v3568
        %v5099 = vunpack.c.l.b16 %v3569
        %v5100 = vunpack.c.h.b16 %v3569
        %v5101 = vunpack.c.l.b16 %v3570
        %v5102 = vunpack.c.h.b16 %v3570
        %v5103 = vunpack.c.l.b16 %v3571
        %v5104 = vunpack.c.h.b16 %v3571
        %v5105 = vunpack.c.l.b16 %v3572
        %v5106 = vunpack.c.h.b16 %v3572
        %v5107 = vunpack.c.l.b16 %v3573
        %v5108 = vunpack.c.h.b16 %v3573
        %v5109 = vunpack.c.l.b16 %v3574
        %v5110 = vunpack.c.h.b16 %v3574
        %v5111 = vunpack.c.l.b16 %v3575
        %v5112 = vunpack.c.h.b16 %v3575
        %v5113 = vunpack.c.l.b16 %v3576
        %v5114 = vunpack.c.h.b16 %v3576
        %v5115 = vunpack.c.l.b16 %v3577
        %v5116 = vunpack.c.h.b16 %v3577
        %v5117 = vunpack.c.l.b16 %v3578
        %v5118 = vunpack.c.h.b16 %v3578
        %v5119 = vunpack.c.l.b16 %v3579
        %v5120 = vunpack.c.h.b16 %v3579
        %v5121 = vunpack.c.l.b16 %v3580
        %v5122 = vunpack.c.h.b16 %v3580
        %v5123 = vpack.c.b16 %v4103, %v4099
        %v5124 = vpack.c.b16 %v4104, %v4100
        %v5125 = vpack.c.b16 %v4105, %v4101
        %v5126 = vpack.c.b16 %v4106, %v4102
        %v5127 = vpack.c.b16 %v4111, %v4107
        %v5128 = vpack.c.b16 %v4112, %v4108
        %v5129 = vpack.c.b16 %v4113, %v4109
        %v5130 = vpack.c.b16 %v4114, %v4110
        %v5131 = vpack.c.b16 %v4119, %v4115
        %v5132 = vpack.c.b16 %v4120, %v4116
        %v5133 = vpack.c.b16 %v4121, %v4117
        %v5134 = vpack.c.b16 %v4122, %v4118
        %v5135 = vpack.c.b16 %v4127, %v4123
        %v5136 = vpack.c.b16 %v4128, %v4124
        %v5137 = vpack.c.b16 %v4129, %v4125
        %v5138 = vpack.c.b16 %v4130, %v4126
        %v5139 = vpack.c.b16 %v4135, %v4131
        %v5140 = vpack.c.b16 %v4136, %v4132
        %v5141 = vpack.c.b16 %v4137, %v4133
        %v5142 = vpack.c.b16 %v4138, %v4134
        %v5143 = vpack.c.b16 %v4143, %v4139
        %v5144 = vpack.c.b16 %v4144, %v4140
        %v5145 = vpack.c.b16 %v4145, %v4141
        %v5146 = vpack.c.b16 %v4146, %v4142
        %v5147 = vpack.c.b16 %v4151, %v4147
        %v5148 = vpack.c.b16 %v4152, %v4148
        %v5149 = vpack.c.b16 %v4153, %v4149
        %v5150 = vpack.c.b16 %v4154, %v4150
        %v5151 = vpack.c.b16 %v4159, %v4155
        %v5152 = vpack.c.b16 %v4160, %v4156
        %v5153 = vpack.c.b16 %v4161, %v4157
        %v5154 = vpack.c.b16 %v4162, %v4158
        %v5155 = vpack.c.b16 %v4167, %v4163
        %v5156 = vpack.c.b16 %v4168, %v4164
        %v5157 = vpack.c.b16 %v4169, %v4165
        %v5158 = vpack.c.b16 %v4170, %v4166
        %v5159 = vpack.c.b16 %v4175, %v4171
        %v5160 = vpack.c.b16 %v4176, %v4172
        %v5161 = vpack.c.b16 %v4177, %v4173
        %v5162 = vpack.c.b16 %v4178, %v4174
        %v5163 = vpack.c.b16 %v4183, %v4179
        %v5164 = vpack.c.b16 %v4184, %v4180
        %v5165 = vpack.c.b16 %v4185, %v4181
        %v5166 = vpack.c.b16 %v4186, %v4182
        %v5167 = vpack.c.b16 %v4191, %v4187
        %v5168 = vpack.c.b16 %v4192, %v4188
        %v5169 = vpack.c.b16 %v4193, %v4189
        %v5170 = vpack.c.b16 %v4194, %v4190
        %v5171 = vpack.c.b16 %v4199, %v4195
        %v5172 = vpack.c.b16 %v4200, %v4196
        %v5173 = vpack.c.b16 %v4201, %v4197
        %v5174 = vpack.c.b16 %v4202, %v4198
        %v5175 = vpack.c.b16 %v4207, %v4203
        %v5176 = vpack.c.b16 %v4208, %v4204
        %v5177 = vpack.c.b16 %v4209, %v4205
        %v5178 = vpack.c.b16 %v4210, %v4206
        %v5179 = vpack.c.b16 %v4215, %v4211
        %v5180 = vpack.c.b16 %v4216, %v4212
        %v5181 = vpack.c.b16 %v4217, %v4213
        %v5182 = vpack.c.b16 %v4218, %v4214
        %v5183 = vpack.c.b16 %v4223, %v4219
        %v5184 = vpack.c.b16 %v4224, %v4220
        %v5185 = vpack.c.b16 %v4225, %v4221
        %v5186 = vpack.c.b16 %v4226, %v4222
        %v5187 = vpack.c.b16 %v4231, %v4227
        %v5188 = vpack.c.b16 %v4232, %v4228
        %v5189 = vpack.c.b16 %v4233, %v4229
        %v5190 = vpack.c.b16 %v4234, %v4230
        %v5191 = vpack.c.b16 %v4239, %v4235
        %v5192 = vpack.c.b16 %v4240, %v4236
        %v5193 = vpack.c.b16 %v4241, %v4237
        %v5194 = vpack.c.b16 %v4242, %v4238
        %v5195 = vpack.c.b16 %v4247, %v4243
        %v5196 = vpack.c.b16 %v4248, %v4244
        %v5197 = vpack.c.b16 %v4249, %v4245
        %v5198 = vpack.c.b16 %v4250, %v4246
        %v5199 = vpack.c.b16 %v4255, %v4251
        %v5200 = vpack.c.b16 %v4256, %v4252
        %v5201 = vpack.c.b16 %v4257, %v4253
        %v5202 = vpack.c.b16 %v4258, %v4254
        %v5203 = vpack.c.b16 %v4263, %v4259
        %v5204 = vpack.c.b16 %v4264, %v4260
        %v5205 = vpack.c.b16 %v4265, %v4261
        %v5206 = vpack.c.b16 %v4266, %v4262
        %v5207 = vpack.c.b16 %v4271, %v4267
        %v5208 = vpack.c.b16 %v4272, %v4268
        %v5209 = vpack.c.b16 %v4273, %v4269
        %v5210 = vpack.c.b16 %v4274, %v4270
        %v5211 = vpack.c.b16 %v4279, %v4275
        %v5212 = vpack.c.b16 %v4280, %v4276
        %v5213 = vpack.c.b16 %v4281, %v4277
        %v5214 = vpack.c.b16 %v4282, %v4278
        %v5215 = vpack.c.b16 %v4287, %v4283
        %v5216 = vpack.c.b16 %v4288, %v4284
        %v5217 = vpack.c.b16 %v4289, %v4285
        %v5218 = vpack.c.b16 %v4290, %v4286
        %v5219 = vpack.c.b16 %v4295, %v4291
        %v5220 = vpack.c.b16 %v4296, %v4292
        %v5221 = vpack.c.b16 %v4297, %v4293
        %v5222 = vpack.c.b16 %v4298, %v4294
        %v5223 = vpack.c.b16 %v4303, %v4299
        %v5224 = vpack.c.b16 %v4304, %v4300
        %v5225 = vpack.c.b16 %v4305, %v4301
        %v5226 = vpack.c.b16 %v4306, %v4302
        %v5227 = vpack.c.b16 %v4311, %v4307
        %v5228 = vpack.c.b16 %v4312, %v4308
        %v5229 = vpack.c.b16 %v4313, %v4309
        %v5230 = vpack.c.b16 %v4314, %v4310
        %v5231 = vpack.c.b16 %v4319, %v4315
        %v5232 = vpack.c.b16 %v4320, %v4316
        %v5233 = vpack.c.b16 %v4321, %v4317
        %v5234 = vpack.c.b16 %v4322, %v4318
        %v5235 = vpack.c.b16 %v4327, %v4323
        %v5236 = vpack.c.b16 %v4328, %v4324
        %v5237 = vpack.c.b16 %v4329, %v4325
        %v5238 = vpack.c.b16 %v4330, %v4326
        %v5239 = vpack.c.b16 %v4335, %v4331
        %v5240 = vpack.c.b16 %v4336, %v4332
        %v5241 = vpack.c.b16 %v4337, %v4333
        %v5242 = vpack.c.b16 %v4338, %v4334
        %v5243 = vpack.c.b16 %v4343, %v4339
        %v5244 = vpack.c.b16 %v4344, %v4340
        %v5245 = vpack.c.b16 %v4345, %v4341
        %v5246 = vpack.c.b16 %v4346, %v4342
        %v5247 = vpack.c.b16 %v4351, %v4347
        %v5248 = vpack.c.b16 %v4352, %v4348
        %v5249 = vpack.c.b16 %v4353, %v4349
        %v5250 = vpack.c.b16 %v4354, %v4350
        %v5251 = vpack.c.b16 %v4359, %v4355
        %v5252 = vpack.c.b16 %v4360, %v4356
        %v5253 = vpack.c.b16 %v4361, %v4357
        %v5254 = vpack.c.b16 %v4362, %v4358
        %v5255 = vpack.c.b16 %v4367, %v4363
        %v5256 = vpack.c.b16 %v4368, %v4364
        %v5257 = vpack.c.b16 %v4369, %v4365
        %v5258 = vpack.c.b16 %v4370, %v4366
        %v5259 = vpack.c.b16 %v4375, %v4371
        %v5260 = vpack.c.b16 %v4376, %v4372
        %v5261 = vpack.c.b16 %v4377, %v4373
        %v5262 = vpack.c.b16 %v4378, %v4374
        %v5263 = vpack.c.b16 %v4383, %v4379
        %v5264 = vpack.c.b16 %v4384, %v4380
        %v5265 = vpack.c.b16 %v4385, %v4381
        %v5266 = vpack.c.b16 %v4386, %v4382
        %v5267 = vpack.c.b16 %v4391, %v4387
        %v5268 = vpack.c.b16 %v4392, %v4388
        %v5269 = vpack.c.b16 %v4393, %v4389
        %v5270 = vpack.c.b16 %v4394, %v4390
        %v5271 = vpack.c.b16 %v4399, %v4395
        %v5272 = vpack.c.b16 %v4400, %v4396
        %v5273 = vpack.c.b16 %v4401, %v4397
        %v5274 = vpack.c.b16 %v4402, %v4398
        %v5275 = vpack.c.b16 %v4407, %v4403
        %v5276 = vpack.c.b16 %v4408, %v4404
        %v5277 = vpack.c.b16 %v4409, %v4405
        %v5278 = vpack.c.b16 %v4410, %v4406
        %v5279 = vpack.c.b16 %v4415, %v4411
        %v5280 = vpack.c.b16 %v4416, %v4412
        %v5281 = vpack.c.b16 %v4417, %v4413
        %v5282 = vpack.c.b16 %v4418, %v4414
        %v5283 = vpack.c.b16 %v4423, %v4419
        %v5284 = vpack.c.b16 %v4424, %v4420
        %v5285 = vpack.c.b16 %v4425, %v4421
        %v5286 = vpack.c.b16 %v4426, %v4422
        %v5287 = vpack.c.b16 %v4431, %v4427
        %v5288 = vpack.c.b16 %v4432, %v4428
        %v5289 = vpack.c.b16 %v4433, %v4429
        %v5290 = vpack.c.b16 %v4434, %v4430
        %v5291 = vpack.c.b16 %v4439, %v4435
        %v5292 = vpack.c.b16 %v4440, %v4436
        %v5293 = vpack.c.b16 %v4441, %v4437
        %v5294 = vpack.c.b16 %v4442, %v4438
        %v5295 = vpack.c.b16 %v4447, %v4443
        %v5296 = vpack.c.b16 %v4448, %v4444
        %v5297 = vpack.c.b16 %v4449, %v4445
        %v5298 = vpack.c.b16 %v4450, %v4446
        %v5299 = vpack.c.b16 %v4455, %v4451
        %v5300 = vpack.c.b16 %v4456, %v4452
        %v5301 = vpack.c.b16 %v4457, %v4453
        %v5302 = vpack.c.b16 %v4458, %v4454
        %v5303 = vpack.c.b16 %v4463, %v4459
        %v5304 = vpack.c.b16 %v4464, %v4460
        %v5305 = vpack.c.b16 %v4465, %v4461
        %v5306 = vpack.c.b16 %v4466, %v4462
        %v5307 = vpack.c.b16 %v4471, %v4467
        %v5308 = vpack.c.b16 %v4472, %v4468
        %v5309 = vpack.c.b16 %v4473, %v4469
        %v5310 = vpack.c.b16 %v4474, %v4470
        %v5311 = vpack.c.b16 %v4479, %v4475
        %v5312 = vpack.c.b16 %v4480, %v4476
        %v5313 = vpack.c.b16 %v4481, %v4477
        %v5314 = vpack.c.b16 %v4482, %v4478
        %v5315 = vpack.c.b16 %v4487, %v4483
        %v5316 = vpack.c.b16 %v4488, %v4484
        %v5317 = vpack.c.b16 %v4489, %v4485
        %v5318 = vpack.c.b16 %v4490, %v4486
        %v5319 = vpack.c.b16 %v4495, %v4491
        %v5320 = vpack.c.b16 %v4496, %v4492
        %v5321 = vpack.c.b16 %v4497, %v4493
        %v5322 = vpack.c.b16 %v4498, %v4494
        %v5323 = vpack.c.b16 %v4503, %v4499
        %v5324 = vpack.c.b16 %v4504, %v4500
        %v5325 = vpack.c.b16 %v4505, %v4501
        %v5326 = vpack.c.b16 %v4506, %v4502
        %v5327 = vpack.c.b16 %v4511, %v4507
        %v5328 = vpack.c.b16 %v4512, %v4508
        %v5329 = vpack.c.b16 %v4513, %v4509
        %v5330 = vpack.c.b16 %v4514, %v4510
        %v5331 = vpack.c.b16 %v4519, %v4515
        %v5332 = vpack.c.b16 %v4520, %v4516
        %v5333 = vpack.c.b16 %v4521, %v4517
        %v5334 = vpack.c.b16 %v4522, %v4518
        %v5335 = vpack.c.b16 %v4527, %v4523
        %v5336 = vpack.c.b16 %v4528, %v4524
        %v5337 = vpack.c.b16 %v4529, %v4525
        %v5338 = vpack.c.b16 %v4530, %v4526
        %v5339 = vpack.c.b16 %v4535, %v4531
        %v5340 = vpack.c.b16 %v4536, %v4532
        %v5341 = vpack.c.b16 %v4537, %v4533
        %v5342 = vpack.c.b16 %v4538, %v4534
        %v5343 = vpack.c.b16 %v4543, %v4539
        %v5344 = vpack.c.b16 %v4544, %v4540
        %v5345 = vpack.c.b16 %v4545, %v4541
        %v5346 = vpack.c.b16 %v4546, %v4542
        %v5347 = vpack.c.b16 %v4551, %v4547
        %v5348 = vpack.c.b16 %v4552, %v4548
        %v5349 = vpack.c.b16 %v4553, %v4549
        %v5350 = vpack.c.b16 %v4554, %v4550
        %v5351 = vpack.c.b16 %v4559, %v4555
        %v5352 = vpack.c.b16 %v4560, %v4556
        %v5353 = vpack.c.b16 %v4561, %v4557
        %v5354 = vpack.c.b16 %v4562, %v4558
        %v5355 = vpack.c.b16 %v4567, %v4563
        %v5356 = vpack.c.b16 %v4568, %v4564
        %v5357 = vpack.c.b16 %v4569, %v4565
        %v5358 = vpack.c.b16 %v4570, %v4566
        %v5359 = vpack.c.b16 %v4575, %v4571
        %v5360 = vpack.c.b16 %v4576, %v4572
        %v5361 = vpack.c.b16 %v4577, %v4573
        %v5362 = vpack.c.b16 %v4578, %v4574
        %v5363 = vpack.c.b16 %v4583, %v4579
        %v5364 = vpack.c.b16 %v4584, %v4580
        %v5365 = vpack.c.b16 %v4585, %v4581
        %v5366 = vpack.c.b16 %v4586, %v4582
        %v5367 = vpack.c.b16 %v4591, %v4587
        %v5368 = vpack.c.b16 %v4592, %v4588
        %v5369 = vpack.c.b16 %v4593, %v4589
        %v5370 = vpack.c.b16 %v4594, %v4590
        %v5371 = vpack.c.b16 %v4599, %v4595
        %v5372 = vpack.c.b16 %v4600, %v4596
        %v5373 = vpack.c.b16 %v4601, %v4597
        %v5374 = vpack.c.b16 %v4602, %v4598
        %v5375 = vpack.c.b16 %v4607, %v4603
        %v5376 = vpack.c.b16 %v4608, %v4604
        %v5377 = vpack.c.b16 %v4609, %v4605
        %v5378 = vpack.c.b16 %v4610, %v4606
        %v5379 = vpack.c.b16 %v4615, %v4611
        %v5380 = vpack.c.b16 %v4616, %v4612
        %v5381 = vpack.c.b16 %v4617, %v4613
        %v5382 = vpack.c.b16 %v4618, %v4614
        %v5383 = vpack.c.b16 %v4623, %v4619
        %v5384 = vpack.c.b16 %v4624, %v4620
        %v5385 = vpack.c.b16 %v4625, %v4621
        %v5386 = vpack.c.b16 %v4626, %v4622
        %v5387 = vpack.c.b16 %v4631, %v4627
        %v5388 = vpack.c.b16 %v4632, %v4628
        %v5389 = vpack.c.b16 %v4633, %v4629
        %v5390 = vpack.c.b16 %v4634, %v4630
        %v5391 = vpack.c.b16 %v4639, %v4635
        %v5392 = vpack.c.b16 %v4640, %v4636
        %v5393 = vpack.c.b16 %v4641, %v4637
        %v5394 = vpack.c.b16 %v4642, %v4638
        %v5395 = vpack.c.b16 %v4647, %v4643
        %v5396 = vpack.c.b16 %v4648, %v4644
        %v5397 = vpack.c.b16 %v4649, %v4645
        %v5398 = vpack.c.b16 %v4650, %v4646
        %v5399 = vpack.c.b16 %v4655, %v4651
        %v5400 = vpack.c.b16 %v4656, %v4652
        %v5401 = vpack.c.b16 %v4657, %v4653
        %v5402 = vpack.c.b16 %v4658, %v4654
        %v5403 = vpack.c.b16 %v4663, %v4659
        %v5404 = vpack.c.b16 %v4664, %v4660
        %v5405 = vpack.c.b16 %v4665, %v4661
        %v5406 = vpack.c.b16 %v4666, %v4662
        %v5407 = vpack.c.b16 %v4671, %v4667
        %v5408 = vpack.c.b16 %v4672, %v4668
        %v5409 = vpack.c.b16 %v4673, %v4669
        %v5410 = vpack.c.b16 %v4674, %v4670
        %v5411 = vpack.c.b16 %v4679, %v4675
        %v5412 = vpack.c.b16 %v4680, %v4676
        %v5413 = vpack.c.b16 %v4681, %v4677
        %v5414 = vpack.c.b16 %v4682, %v4678
        %v5415 = vpack.c.b16 %v4687, %v4683
        %v5416 = vpack.c.b16 %v4688, %v4684
        %v5417 = vpack.c.b16 %v4689, %v4685
        %v5418 = vpack.c.b16 %v4690, %v4686
        %v5419 = vpack.c.b16 %v4695, %v4691
        %v5420 = vpack.c.b16 %v4696, %v4692
        %v5421 = vpack.c.b16 %v4697, %v4693
        %v5422 = vpack.c.b16 %v4698, %v4694
        %v5423 = vpack.c.b16 %v4703, %v4699
        %v5424 = vpack.c.b16 %v4704, %v4700
        %v5425 = vpack.c.b16 %v4705, %v4701
        %v5426 = vpack.c.b16 %v4706, %v4702
        %v5427 = vpack.c.b16 %v4711, %v4707
        %v5428 = vpack.c.b16 %v4712, %v4708
        %v5429 = vpack.c.b16 %v4713, %v4709
        %v5430 = vpack.c.b16 %v4714, %v4710
        %v5431 = vpack.c.b16 %v4719, %v4715
        %v5432 = vpack.c.b16 %v4720, %v4716
        %v5433 = vpack.c.b16 %v4721, %v4717
        %v5434 = vpack.c.b16 %v4722, %v4718
        %v5435 = vpack.c.b16 %v4727, %v4723
        %v5436 = vpack.c.b16 %v4728, %v4724
        %v5437 = vpack.c.b16 %v4729, %v4725
        %v5438 = vpack.c.b16 %v4730, %v4726
        %v5439 = vpack.c.b16 %v4735, %v4731
        %v5440 = vpack.c.b16 %v4736, %v4732
        %v5441 = vpack.c.b16 %v4737, %v4733
        %v5442 = vpack.c.b16 %v4738, %v4734
        %v5443 = vpack.c.b16 %v4743, %v4739
        %v5444 = vpack.c.b16 %v4744, %v4740
        %v5445 = vpack.c.b16 %v4745, %v4741
        %v5446 = vpack.c.b16 %v4746, %v4742
        %v5447 = vpack.c.b16 %v4751, %v4747
        %v5448 = vpack.c.b16 %v4752, %v4748
        %v5449 = vpack.c.b16 %v4753, %v4749
        %v5450 = vpack.c.b16 %v4754, %v4750
        %v5451 = vpack.c.b16 %v4759, %v4755
        %v5452 = vpack.c.b16 %v4760, %v4756
        %v5453 = vpack.c.b16 %v4761, %v4757
        %v5454 = vpack.c.b16 %v4762, %v4758
        %v5455 = vpack.c.b16 %v4767, %v4763
        %v5456 = vpack.c.b16 %v4768, %v4764
        %v5457 = vpack.c.b16 %v4769, %v4765
        %v5458 = vpack.c.b16 %v4770, %v4766
        %v5459 = vpack.c.b16 %v4775, %v4771
        %v5460 = vpack.c.b16 %v4776, %v4772
        %v5461 = vpack.c.b16 %v4777, %v4773
        %v5462 = vpack.c.b16 %v4778, %v4774
        %v5463 = vpack.c.b16 %v4783, %v4779
        %v5464 = vpack.c.b16 %v4784, %v4780
        %v5465 = vpack.c.b16 %v4785, %v4781
        %v5466 = vpack.c.b16 %v4786, %v4782
        %v5467 = vpack.c.b16 %v4791, %v4787
        %v5468 = vpack.c.b16 %v4792, %v4788
        %v5469 = vpack.c.b16 %v4793, %v4789
        %v5470 = vpack.c.b16 %v4794, %v4790
        %v5471 = vpack.c.b16 %v4799, %v4795
        %v5472 = vpack.c.b16 %v4800, %v4796
        %v5473 = vpack.c.b16 %v4801, %v4797
        %v5474 = vpack.c.b16 %v4802, %v4798
        %v5475 = vpack.c.b16 %v4807, %v4803
        %v5476 = vpack.c.b16 %v4808, %v4804
        %v5477 = vpack.c.b16 %v4809, %v4805
        %v5478 = vpack.c.b16 %v4810, %v4806
        %v5479 = vpack.c.b16 %v4815, %v4811
        %v5480 = vpack.c.b16 %v4816, %v4812
        %v5481 = vpack.c.b16 %v4817, %v4813
        %v5482 = vpack.c.b16 %v4818, %v4814
        %v5483 = vpack.c.b16 %v4823, %v4819
        %v5484 = vpack.c.b16 %v4824, %v4820
        %v5485 = vpack.c.b16 %v4825, %v4821
        %v5486 = vpack.c.b16 %v4826, %v4822
        %v5487 = vpack.c.b16 %v4831, %v4827
        %v5488 = vpack.c.b16 %v4832, %v4828
        %v5489 = vpack.c.b16 %v4833, %v4829
        %v5490 = vpack.c.b16 %v4834, %v4830
        %v5491 = vpack.c.b16 %v4839, %v4835
        %v5492 = vpack.c.b16 %v4840, %v4836
        %v5493 = vpack.c.b16 %v4841, %v4837
        %v5494 = vpack.c.b16 %v4842, %v4838
        %v5495 = vpack.c.b16 %v4847, %v4843
        %v5496 = vpack.c.b16 %v4848, %v4844
        %v5497 = vpack.c.b16 %v4849, %v4845
        %v5498 = vpack.c.b16 %v4850, %v4846
        %v5499 = vpack.c.b16 %v4855, %v4851
        %v5500 = vpack.c.b16 %v4856, %v4852
        %v5501 = vpack.c.b16 %v4857, %v4853
        %v5502 = vpack.c.b16 %v4858, %v4854
        %v5503 = vpack.c.b16 %v4863, %v4859
        %v5504 = vpack.c.b16 %v4864, %v4860
        %v5505 = vpack.c.b16 %v4865, %v4861
        %v5506 = vpack.c.b16 %v4866, %v4862
        %v5507 = vpack.c.b16 %v4871, %v4867
        %v5508 = vpack.c.b16 %v4872, %v4868
        %v5509 = vpack.c.b16 %v4873, %v4869
        %v5510 = vpack.c.b16 %v4874, %v4870
        %v5511 = vpack.c.b16 %v4879, %v4875
        %v5512 = vpack.c.b16 %v4880, %v4876
        %v5513 = vpack.c.b16 %v4881, %v4877
        %v5514 = vpack.c.b16 %v4882, %v4878
        %v5515 = vpack.c.b16 %v4887, %v4883
        %v5516 = vpack.c.b16 %v4888, %v4884
        %v5517 = vpack.c.b16 %v4889, %v4885
        %v5518 = vpack.c.b16 %v4890, %v4886
        %v5519 = vpack.c.b16 %v4895, %v4891
        %v5520 = vpack.c.b16 %v4896, %v4892
        %v5521 = vpack.c.b16 %v4897, %v4893
        %v5522 = vpack.c.b16 %v4898, %v4894
        %v5523 = vpack.c.b16 %v4903, %v4899
        %v5524 = vpack.c.b16 %v4904, %v4900
        %v5525 = vpack.c.b16 %v4905, %v4901
        %v5526 = vpack.c.b16 %v4906, %v4902
        %v5527 = vpack.c.b16 %v4911, %v4907
        %v5528 = vpack.c.b16 %v4912, %v4908
        %v5529 = vpack.c.b16 %v4913, %v4909
        %v5530 = vpack.c.b16 %v4914, %v4910
        %v5531 = vpack.c.b16 %v4919, %v4915
        %v5532 = vpack.c.b16 %v4920, %v4916
        %v5533 = vpack.c.b16 %v4921, %v4917
        %v5534 = vpack.c.b16 %v4922, %v4918
        %v5535 = vpack.c.b16 %v4927, %v4923
        %v5536 = vpack.c.b16 %v4928, %v4924
        %v5537 = vpack.c.b16 %v4929, %v4925
        %v5538 = vpack.c.b16 %v4930, %v4926
        %v5539 = vpack.c.b16 %v4935, %v4931
        %v5540 = vpack.c.b16 %v4936, %v4932
        %v5541 = vpack.c.b16 %v4937, %v4933
        %v5542 = vpack.c.b16 %v4938, %v4934
        %v5543 = vpack.c.b16 %v4943, %v4939
        %v5544 = vpack.c.b16 %v4944, %v4940
        %v5545 = vpack.c.b16 %v4945, %v4941
        %v5546 = vpack.c.b16 %v4946, %v4942
        %v5547 = vpack.c.b16 %v4951, %v4947
        %v5548 = vpack.c.b16 %v4952, %v4948
        %v5549 = vpack.c.b16 %v4953, %v4949
        %v5550 = vpack.c.b16 %v4954, %v4950
        %v5551 = vpack.c.b16 %v4959, %v4955
        %v5552 = vpack.c.b16 %v4960, %v4956
        %v5553 = vpack.c.b16 %v4961, %v4957
        %v5554 = vpack.c.b16 %v4962, %v4958
        %v5555 = vpack.c.b16 %v4967, %v4963
        %v5556 = vpack.c.b16 %v4968, %v4964
        %v5557 = vpack.c.b16 %v4969, %v4965
        %v5558 = vpack.c.b16 %v4970, %v4966
        %v5559 = vpack.c.b16 %v4975, %v4971
        %v5560 = vpack.c.b16 %v4976, %v4972
        %v5561 = vpack.c.b16 %v4977, %v4973
        %v5562 = vpack.c.b16 %v4978, %v4974
        %v5563 = vpack.c.b16 %v4983, %v4979
        %v5564 = vpack.c.b16 %v4984, %v4980
        %v5565 = vpack.c.b16 %v4985, %v4981
        %v5566 = vpack.c.b16 %v4986, %v4982
        %v5567 = vpack.c.b16 %v4991, %v4987
        %v5568 = vpack.c.b16 %v4992, %v4988
        %v5569 = vpack.c.b16 %v4993, %v4989
        %v5570 = vpack.c.b16 %v4994, %v4990
        %v5571 = vpack.c.b16 %v4999, %v4995
        %v5572 = vpack.c.b16 %v5000, %v4996
        %v5573 = vpack.c.b16 %v5001, %v4997
        %v5574 = vpack.c.b16 %v5002, %v4998
        %v5575 = vpack.c.b16 %v5007, %v5003
        %v5576 = vpack.c.b16 %v5008, %v5004
        %v5577 = vpack.c.b16 %v5009, %v5005
        %v5578 = vpack.c.b16 %v5010, %v5006
        %v5579 = vpack.c.b16 %v5015, %v5011
        %v5580 = vpack.c.b16 %v5016, %v5012
        %v5581 = vpack.c.b16 %v5017, %v5013
        %v5582 = vpack.c.b16 %v5018, %v5014
        %v5583 = vpack.c.b16 %v5023, %v5019
        %v5584 = vpack.c.b16 %v5024, %v5020
        %v5585 = vpack.c.b16 %v5025, %v5021
        %v5586 = vpack.c.b16 %v5026, %v5022
        %v5587 = vpack.c.b16 %v5031, %v5027
        %v5588 = vpack.c.b16 %v5032, %v5028
        %v5589 = vpack.c.b16 %v5033, %v5029
        %v5590 = vpack.c.b16 %v5034, %v5030
        %v5591 = vpack.c.b16 %v5039, %v5035
        %v5592 = vpack.c.b16 %v5040, %v5036
        %v5593 = vpack.c.b16 %v5041, %v5037
        %v5594 = vpack.c.b16 %v5042, %v5038
        %v5595 = vpack.c.b16 %v5047, %v5043
        %v5596 = vpack.c.b16 %v5048, %v5044
        %v5597 = vpack.c.b16 %v5049, %v5045
        %v5598 = vpack.c.b16 %v5050, %v5046
        %v5599 = vpack.c.b16 %v5055, %v5051
        %v5600 = vpack.c.b16 %v5056, %v5052
        %v5601 = vpack.c.b16 %v5057, %v5053
        %v5602 = vpack.c.b16 %v5058, %v5054
        %v5603 = vpack.c.b16 %v5063, %v5059
        %v5604 = vpack.c.b16 %v5064, %v5060
        %v5605 = vpack.c.b16 %v5065, %v5061
        %v5606 = vpack.c.b16 %v5066, %v5062
        %v5607 = vpack.c.b16 %v5071, %v5067
        %v5608 = vpack.c.b16 %v5072, %v5068
        %v5609 = vpack.c.b16 %v5073, %v5069
        %v5610 = vpack.c.b16 %v5074, %v5070
        %v5611 = vpack.c.b16 %v5079, %v5075
        %v5612 = vpack.c.b16 %v5080, %v5076
        %v5613 = vpack.c.b16 %v5081, %v5077
        %v5614 = vpack.c.b16 %v5082, %v5078
        %v5615 = vpack.c.b16 %v5087, %v5083
        %v5616 = vpack.c.b16 %v5088, %v5084
        %v5617 = vpack.c.b16 %v5089, %v5085
        %v5618 = vpack.c.b16 %v5090, %v5086
        %v5619 = vpack.c.b16 %v5095, %v5091
        %v5620 = vpack.c.b16 %v5096, %v5092
        %v5621 = vpack.c.b16 %v5097, %v5093
        %v5622 = vpack.c.b16 %v5098, %v5094
        %v5623 = vpack.c.b16 %v5103, %v5099
        %v5624 = vpack.c.b16 %v5104, %v5100
        %v5625 = vpack.c.b16 %v5105, %v5101
        %v5626 = vpack.c.b16 %v5106, %v5102
        %v5627 = vpack.c.b16 %v5111, %v5107
        %v5628 = vpack.c.b16 %v5112, %v5108
        %v5629 = vpack.c.b16 %v5113, %v5109
        %v5630 = vpack.c.b16 %v5114, %v5110
        %v5631 = vpack.c.b16 %v5119, %v5115
        %v5632 = vpack.c.b16 %v5120, %v5116
        %v5633 = vpack.c.b16 %v5121, %v5117
        %v5634 = vpack.c.b16 %v5122, %v5118
        %6147 = vmatprep.subr.bf16.mxu0 %v5152
        %6148 = vmatpush1.bf16.msra.mxu0 %v5151
        %6149 = vmatprep.subr.bf16.mxu0 %v5148
        %6150 = vmatpush1.bf16.msra.mxu0 %v5147
        %6151 = vmatprep.subr.bf16.mxu0 %v5144
        %6152 = vmatpush1.bf16.msra.mxu0 %v5143
        %6153 = vmatprep.subr.bf16.mxu0 %v5140
        %6154 = vmatpush1.bf16.msra.mxu0 %v5139
        %6155 = vmatprep.subr.bf16.mxu0 %v5136
        %6156 = vmatpush1.bf16.msra.mxu0 %v5135
        %6157 = vmatprep.subr.bf16.mxu0 %v5132
        %6158 = vmatpush1.bf16.msra.mxu0 %v5131
        %6159 = vmatprep.subr.bf16.mxu0 %v5128
        %6160 = vmatpush1.bf16.msra.mxu0 %v5127
        %6161 = vmatprep.subr.bf16.mxu0 %v5124
        %6162 = vmatpush1.bf16.msra.mxu0 %v5123
        %6163 = vmatprep.subr.bf16.mxu0 %v5184
        %6164 = vmatpush2.bf16.msra.mxu0 %v5183
        %6165 = vmatprep.subr.bf16.mxu0 %v5180
        %6166 = vmatpush2.bf16.msra.mxu0 %v5179
        %6167 = vmatprep.subr.bf16.mxu0 %v5176
        %6168 = vmatpush2.bf16.msra.mxu0 %v5175
        %6169 = vmatprep.subr.bf16.mxu0 %v5172
        %6170 = vmatpush2.bf16.msra.mxu0 %v5171
        %6171 = vmatprep.subr.bf16.mxu0 %v5168
        %6172 = vmatpush2.bf16.msra.mxu0 %v5167
        %6173 = vmatprep.subr.bf16.mxu0 %v5164
        %6174 = vmatpush2.bf16.msra.mxu0 %v5163
        %6175 = vmatprep.subr.bf16.mxu0 %v5160
        %6176 = vmatpush2.bf16.msra.mxu0 %v5159
        %6177 = vmatprep.subr.bf16.mxu0 %v5156
        %6178 = vmatpush2.bf16.msra.mxu0 %v5155
        %6179 = vmatprep.mubr.bf16.mxu0 %v3054
        %6180 = vmatmul.mubr.bf16.gmra.mxu0 %v3053
        %v6181 = vpop.f32.mrf.mxu0
        %v6182 = vadd.f32 %v3585, %v6181
        %v6183 = vpop.f32.mrf.mxu0
        %v6184 = vadd.f32 %v3585, %v6183
        %v6185 = vpop.f32.mrf.mxu0
        %v6186 = vpop.f32.mrf.mxu0
        %6187 = vdwg.mxu0
        %6188 = vmatprep.subr.bf16.mxu0 %v5216
        %6189 = vmatpush1.bf16.msra.mxu0 %v5215
        %6190 = vmatprep.subr.bf16.mxu0 %v5212
        %6191 = vmatpush1.bf16.msra.mxu0 %v5211
        %6192 = vmatprep.subr.bf16.mxu0 %v5208
        %6193 = vmatpush1.bf16.msra.mxu0 %v5207
        %6194 = vmatprep.subr.bf16.mxu0 %v5204
        %6195 = vmatpush1.bf16.msra.mxu0 %v5203
        %6196 = vmatprep.subr.bf16.mxu0 %v5200
        %6197 = vmatpush1.bf16.msra.mxu0 %v5199
        %6198 = vmatprep.subr.bf16.mxu0 %v5196
        %6199 = vmatpush1.bf16.msra.mxu0 %v5195
        %6200 = vmatprep.subr.bf16.mxu0 %v5192
        %6201 = vmatpush1.bf16.msra.mxu0 %v5191
        %6202 = vmatprep.subr.bf16.mxu0 %v5188
        %6203 = vmatpush1.bf16.msra.mxu0 %v5187
        %6204 = vmatprep.subr.bf16.mxu0 %v5248
        %6205 = vmatpush2.bf16.msra.mxu0 %v5247
        %6206 = vmatprep.subr.bf16.mxu0 %v5244
        %6207 = vmatpush2.bf16.msra.mxu0 %v5243
        %6208 = vmatprep.subr.bf16.mxu0 %v5240
        %6209 = vmatpush2.bf16.msra.mxu0 %v5239
        %6210 = vmatprep.subr.bf16.mxu0 %v5236
        %6211 = vmatpush2.bf16.msra.mxu0 %v5235
        %6212 = vmatprep.subr.bf16.mxu0 %v5232
        %6213 = vmatpush2.bf16.msra.mxu0 %v5231
        %6214 = vmatprep.subr.bf16.mxu0 %v5228
        %6215 = vmatpush2.bf16.msra.mxu0 %v5227
        %6216 = vmatprep.subr.bf16.mxu0 %v5224
        %6217 = vmatpush2.bf16.msra.mxu0 %v5223
        %6218 = vmatprep.subr.bf16.mxu0 %v5220
        %6219 = vmatpush2.bf16.msra.mxu0 %v5219
        %6220 = vmatprep.mubr.bf16.mxu0 %v3056
        %6221 = vmatmul.mubr.bf16.gmra.mxu0 %v3055
        %v6222 = vpop.f32.mrf.mxu0
        %v6223 = vadd.f32 %v6182, %v6222
        %v6224 = vpop.f32.mrf.mxu0
        %v6225 = vadd.f32 %v6184, %v6224
        %v6226 = vpop.f32.mrf.mxu0
        %v6227 = vpop.f32.mrf.mxu0
        %6228 = vdwg.mxu0
        %6229 = vmatprep.subr.bf16.mxu0 %v5280
        %6230 = vmatpush1.bf16.msra.mxu0 %v5279
        %6231 = vmatprep.subr.bf16.mxu0 %v5276
        %6232 = vmatpush1.bf16.msra.mxu0 %v5275
        %6233 = vmatprep.subr.bf16.mxu0 %v5272
        %6234 = vmatpush1.bf16.msra.mxu0 %v5271
        %6235 = vmatprep.subr.bf16.mxu0 %v5268
        %6236 = vmatpush1.bf16.msra.mxu0 %v5267
        %6237 = vmatprep.subr.bf16.mxu0 %v5264
        %6238 = vmatpush1.bf16.msra.mxu0 %v5263
        %6239 = vmatprep.subr.bf16.mxu0 %v5260
        %6240 = vmatpush1.bf16.msra.mxu0 %v5259
        %6241 = vmatprep.subr.bf16.mxu0 %v5256
        %6242 = vmatpush1.bf16.msra.mxu0 %v5255
        %6243 = vmatprep.subr.bf16.mxu0 %v5252
        %6244 = vmatpush1.bf16.msra.mxu0 %v5251
        %6245 = vmatprep.subr.bf16.mxu0 %v5312
        %6246 = vmatpush2.bf16.msra.mxu0 %v5311
        %6247 = vmatprep.subr.bf16.mxu0 %v5308
        %6248 = vmatpush2.bf16.msra.mxu0 %v5307
        %6249 = vmatprep.subr.bf16.mxu0 %v5304
        %6250 = vmatpush2.bf16.msra.mxu0 %v5303
        %6251 = vmatprep.subr.bf16.mxu0 %v5300
        %6252 = vmatpush2.bf16.msra.mxu0 %v5299
        %6253 = vmatprep.subr.bf16.mxu0 %v5296
        %6254 = vmatpush2.bf16.msra.mxu0 %v5295
        %6255 = vmatprep.subr.bf16.mxu0 %v5292
        %6256 = vmatpush2.bf16.msra.mxu0 %v5291
        %6257 = vmatprep.subr.bf16.mxu0 %v5288
        %6258 = vmatpush2.bf16.msra.mxu0 %v5287
        %6259 = vmatprep.subr.bf16.mxu0 %v5284
        %6260 = vmatpush2.bf16.msra.mxu0 %v5283
        %6261 = vmatprep.mubr.bf16.mxu0 %v3058
        %6262 = vmatmul.mubr.bf16.gmra.mxu0 %v3057
        %v6263 = vpop.f32.mrf.mxu0
        %v6264 = vadd.f32 %v6223, %v6263
        %v6265 = vpop.f32.mrf.mxu0
        %v6266 = vadd.f32 %v6225, %v6265
        %v6267 = vpop.f32.mrf.mxu0
        %v6268 = vpop.f32.mrf.mxu0
        %6269 = vdwg.mxu0
        %6270 = vmatprep.subr.bf16.mxu0 %v5344
        %6271 = vmatpush1.bf16.msra.mxu0 %v5343
        %6272 = vmatprep.subr.bf16.mxu0 %v5340
        %6273 = vmatpush1.bf16.msra.mxu0 %v5339
        %6274 = vmatprep.subr.bf16.mxu0 %v5336
        %6275 = vmatpush1.bf16.msra.mxu0 %v5335
        %6276 = vmatprep.subr.bf16.mxu0 %v5332
        %6277 = vmatpush1.bf16.msra.mxu0 %v5331
        %6278 = vmatprep.subr.bf16.mxu0 %v5328
        %6279 = vmatpush1.bf16.msra.mxu0 %v5327
        %6280 = vmatprep.subr.bf16.mxu0 %v5324
        %6281 = vmatpush1.bf16.msra.mxu0 %v5323
        %6282 = vmatprep.subr.bf16.mxu0 %v5320
        %6283 = vmatpush1.bf16.msra.mxu0 %v5319
        %6284 = vmatprep.subr.bf16.mxu0 %v5316
        %6285 = vmatpush1.bf16.msra.mxu0 %v5315
        %6286 = vmatprep.subr.bf16.mxu0 %v5376
        %6287 = vmatpush2.bf16.msra.mxu0 %v5375
        %6288 = vmatprep.subr.bf16.mxu0 %v5372
        %6289 = vmatpush2.bf16.msra.mxu0 %v5371
        %6290 = vmatprep.subr.bf16.mxu0 %v5368
        %6291 = vmatpush2.bf16.msra.mxu0 %v5367
        %6292 = vmatprep.subr.bf16.mxu0 %v5364
        %6293 = vmatpush2.bf16.msra.mxu0 %v5363
        %6294 = vmatprep.subr.bf16.mxu0 %v5360
        %6295 = vmatpush2.bf16.msra.mxu0 %v5359
        %6296 = vmatprep.subr.bf16.mxu0 %v5356
        %6297 = vmatpush2.bf16.msra.mxu0 %v5355
        %6298 = vmatprep.subr.bf16.mxu0 %v5352
        %6299 = vmatpush2.bf16.msra.mxu0 %v5351
        %6300 = vmatprep.subr.bf16.mxu0 %v5348
        %6301 = vmatpush2.bf16.msra.mxu0 %v5347
        %6302 = vmatprep.mubr.bf16.mxu0 %v3060
        %6303 = vmatmul.mubr.bf16.gmra.mxu0 %v3059
        %v6304 = vpop.f32.mrf.mxu0
        %v6305 = vadd.f32 %v6264, %v6304
        %v6306 = vpop.f32.mrf.mxu0
        %v6307 = vadd.f32 %v6266, %v6306
        %v6308 = vpop.f32.mrf.mxu0
        %v6309 = vpop.f32.mrf.mxu0
        %6310 = vdwg.mxu0
        %6311 = vmatprep.subr.bf16.mxu0 %v5408
        %6312 = vmatpush1.bf16.msra.mxu0 %v5407
        %6313 = vmatprep.subr.bf16.mxu0 %v5404
        %6314 = vmatpush1.bf16.msra.mxu0 %v5403
        %6315 = vmatprep.subr.bf16.mxu0 %v5400
        %6316 = vmatpush1.bf16.msra.mxu0 %v5399
        %6317 = vmatprep.subr.bf16.mxu0 %v5396
        %6318 = vmatpush1.bf16.msra.mxu0 %v5395
        %6319 = vmatprep.subr.bf16.mxu0 %v5392
        %6320 = vmatpush1.bf16.msra.mxu0 %v5391
        %6321 = vmatprep.subr.bf16.mxu0 %v5388
        %6322 = vmatpush1.bf16.msra.mxu0 %v5387
        %6323 = vmatprep.subr.bf16.mxu0 %v5384
        %6324 = vmatpush1.bf16.msra.mxu0 %v5383
        %6325 = vmatprep.subr.bf16.mxu0 %v5380
        %6326 = vmatpush1.bf16.msra.mxu0 %v5379
        %6327 = vmatprep.subr.bf16.mxu0 %v5440
        %6328 = vmatpush2.bf16.msra.mxu0 %v5439
        %6329 = vmatprep.subr.bf16.mxu0 %v5436
        %6330 = vmatpush2.bf16.msra.mxu0 %v5435
        %6331 = vmatprep.subr.bf16.mxu0 %v5432
        %6332 = vmatpush2.bf16.msra.mxu0 %v5431
        %6333 = vmatprep.subr.bf16.mxu0 %v5428
        %6334 = vmatpush2.bf16.msra.mxu0 %v5427
        %6335 = vmatprep.subr.bf16.mxu0 %v5424
        %6336 = vmatpush2.bf16.msra.mxu0 %v5423
        %6337 = vmatprep.subr.bf16.mxu0 %v5420
        %6338 = vmatpush2.bf16.msra.mxu0 %v5419
        %6339 = vmatprep.subr.bf16.mxu0 %v5416
        %6340 = vmatpush2.bf16.msra.mxu0 %v5415
        %6341 = vmatprep.subr.bf16.mxu0 %v5412
        %6342 = vmatpush2.bf16.msra.mxu0 %v5411
        %6343 = vmatprep.mubr.bf16.mxu0 %v3062
        %6344 = vmatmul.mubr.bf16.gmra.mxu0 %v3061
        %v6345 = vpop.f32.mrf.mxu0
        %v6346 = vadd.f32 %v6305, %v6345
        %v6347 = vpop.f32.mrf.mxu0
        %v6348 = vadd.f32 %v6307, %v6347
        %v6349 = vpop.f32.mrf.mxu0
        %v6350 = vpop.f32.mrf.mxu0
        %6351 = vdwg.mxu0
        %6352 = vmatprep.subr.bf16.mxu0 %v5472
        %6353 = vmatpush1.bf16.msra.mxu0 %v5471
        %6354 = vmatprep.subr.bf16.mxu0 %v5468
        %6355 = vmatpush1.bf16.msra.mxu0 %v5467
        %6356 = vmatprep.subr.bf16.mxu0 %v5464
        %6357 = vmatpush1.bf16.msra.mxu0 %v5463
        %6358 = vmatprep.subr.bf16.mxu0 %v5460
        %6359 = vmatpush1.bf16.msra.mxu0 %v5459
        %6360 = vmatprep.subr.bf16.mxu0 %v5456
        %6361 = vmatpush1.bf16.msra.mxu0 %v5455
        %6362 = vmatprep.subr.bf16.mxu0 %v5452
        %6363 = vmatpush1.bf16.msra.mxu0 %v5451
        %6364 = vmatprep.subr.bf16.mxu0 %v5448
        %6365 = vmatpush1.bf16.msra.mxu0 %v5447
        %6366 = vmatprep.subr.bf16.mxu0 %v5444
        %6367 = vmatpush1.bf16.msra.mxu0 %v5443
        %6368 = vmatprep.subr.bf16.mxu0 %v5504
        %6369 = vmatpush2.bf16.msra.mxu0 %v5503
        %6370 = vmatprep.subr.bf16.mxu0 %v5500
        %6371 = vmatpush2.bf16.msra.mxu0 %v5499
        %6372 = vmatprep.subr.bf16.mxu0 %v5496
        %6373 = vmatpush2.bf16.msra.mxu0 %v5495
        %6374 = vmatprep.subr.bf16.mxu0 %v5492
        %6375 = vmatpush2.bf16.msra.mxu0 %v5491
        %6376 = vmatprep.subr.bf16.mxu0 %v5488
        %6377 = vmatpush2.bf16.msra.mxu0 %v5487
        %6378 = vmatprep.subr.bf16.mxu0 %v5484
        %6379 = vmatpush2.bf16.msra.mxu0 %v5483
        %6380 = vmatprep.subr.bf16.mxu0 %v5480
        %6381 = vmatpush2.bf16.msra.mxu0 %v5479
        %6382 = vmatprep.subr.bf16.mxu0 %v5476
        %6383 = vmatpush2.bf16.msra.mxu0 %v5475
        %6384 = vmatprep.mubr.bf16.mxu0 %v3064
        %6385 = vmatmul.mubr.bf16.gmra.mxu0 %v3063
        %v6386 = vpop.f32.mrf.mxu0
        %v6387 = vadd.f32 %v6346, %v6386
        %v6388 = vpop.f32.mrf.mxu0
        %v6389 = vadd.f32 %v6348, %v6388
        %v6390 = vpop.f32.mrf.mxu0
        %v6391 = vpop.f32.mrf.mxu0
        %6392 = vdwg.mxu0
        %6393 = vmatprep.subr.bf16.mxu0 %v5536
        %6394 = vmatpush1.bf16.msra.mxu0 %v5535
        %6395 = vmatprep.subr.bf16.mxu0 %v5532
        %6396 = vmatpush1.bf16.msra.mxu0 %v5531
        %6397 = vmatprep.subr.bf16.mxu0 %v5528
        %6398 = vmatpush1.bf16.msra.mxu0 %v5527
        %6399 = vmatprep.subr.bf16.mxu0 %v5524
        %6400 = vmatpush1.bf16.msra.mxu0 %v5523
        %6401 = vmatprep.subr.bf16.mxu0 %v5520
        %6402 = vmatpush1.bf16.msra.mxu0 %v5519
        %6403 = vmatprep.subr.bf16.mxu0 %v5516
        %6404 = vmatpush1.bf16.msra.mxu0 %v5515
        %6405 = vmatprep.subr.bf16.mxu0 %v5512
        %6406 = vmatpush1.bf16.msra.mxu0 %v5511
        %6407 = vmatprep.subr.bf16.mxu0 %v5508
        %6408 = vmatpush1.bf16.msra.mxu0 %v5507
        %6409 = vmatprep.subr.bf16.mxu0 %v5568
        %6410 = vmatpush2.bf16.msra.mxu0 %v5567
        %6411 = vmatprep.subr.bf16.mxu0 %v5564
        %6412 = vmatpush2.bf16.msra.mxu0 %v5563
        %6413 = vmatprep.subr.bf16.mxu0 %v5560
        %6414 = vmatpush2.bf16.msra.mxu0 %v5559
        %6415 = vmatprep.subr.bf16.mxu0 %v5556
        %6416 = vmatpush2.bf16.msra.mxu0 %v5555
        %6417 = vmatprep.subr.bf16.mxu0 %v5552
        %6418 = vmatpush2.bf16.msra.mxu0 %v5551
        %6419 = vmatprep.subr.bf16.mxu0 %v5548
        %6420 = vmatpush2.bf16.msra.mxu0 %v5547
        %6421 = vmatprep.subr.bf16.mxu0 %v5544
        %6422 = vmatpush2.bf16.msra.mxu0 %v5543
        %6423 = vmatprep.subr.bf16.mxu0 %v5540
        %6424 = vmatpush2.bf16.msra.mxu0 %v5539
        %6425 = vmatprep.mubr.bf16.mxu0 %v3066
        %6426 = vmatmul.mubr.bf16.gmra.mxu0 %v3065
        %v6427 = vpop.f32.mrf.mxu0
        %v6428 = vadd.f32 %v6387, %v6427
        %v6429 = vpop.f32.mrf.mxu0
        %v6430 = vadd.f32 %v6389, %v6429
        %v6431 = vpop.f32.mrf.mxu0
        %v6432 = vpop.f32.mrf.mxu0
        %6433 = vdwg.mxu0
        %6434 = vmatprep.subr.bf16.mxu0 %v5600
        %6435 = vmatpush1.bf16.msra.mxu0 %v5599
        %6436 = vmatprep.subr.bf16.mxu0 %v5596
        %6437 = vmatpush1.bf16.msra.mxu0 %v5595
        %6438 = vmatprep.subr.bf16.mxu0 %v5592
        %6439 = vmatpush1.bf16.msra.mxu0 %v5591
        %6440 = vmatprep.subr.bf16.mxu0 %v5588
        %6441 = vmatpush1.bf16.msra.mxu0 %v5587
        %6442 = vmatprep.subr.bf16.mxu0 %v5584
        %6443 = vmatpush1.bf16.msra.mxu0 %v5583
        %6444 = vmatprep.subr.bf16.mxu0 %v5580
        %6445 = vmatpush1.bf16.msra.mxu0 %v5579
        %6446 = vmatprep.subr.bf16.mxu0 %v5576
        %6447 = vmatpush1.bf16.msra.mxu0 %v5575
        %6448 = vmatprep.subr.bf16.mxu0 %v5572
        %6449 = vmatpush1.bf16.msra.mxu0 %v5571
        %6450 = vmatprep.subr.bf16.mxu0 %v5632
        %6451 = vmatpush2.bf16.msra.mxu0 %v5631
        %6452 = vmatprep.subr.bf16.mxu0 %v5628
        %6453 = vmatpush2.bf16.msra.mxu0 %v5627
        %6454 = vmatprep.subr.bf16.mxu0 %v5624
        %6455 = vmatpush2.bf16.msra.mxu0 %v5623
        %6456 = vmatprep.subr.bf16.mxu0 %v5620
        %6457 = vmatpush2.bf16.msra.mxu0 %v5619
        %6458 = vmatprep.subr.bf16.mxu0 %v5616
        %6459 = vmatpush2.bf16.msra.mxu0 %v5615
        %6460 = vmatprep.subr.bf16.mxu0 %v5612
        %6461 = vmatpush2.bf16.msra.mxu0 %v5611
        %6462 = vmatprep.subr.bf16.mxu0 %v5608
        %6463 = vmatpush2.bf16.msra.mxu0 %v5607
        %6464 = vmatprep.subr.bf16.mxu0 %v5604
        %6465 = vmatpush2.bf16.msra.mxu0 %v5603
        %6466 = vmatprep.mubr.bf16.mxu0 %v3068
        %6467 = vmatmul.mubr.bf16.gmra.mxu0 %v3067
        %v6468 = vpop.f32.mrf.mxu0
        %v6469 = vadd.f32 %v6428, %v6468
        %v6470 = vpop.f32.mrf.mxu0
        %v6471 = vadd.f32 %v6430, %v6470
        %v6472 = vpop.f32.mrf.mxu0
        %v6473 = vpop.f32.mrf.mxu0
        %6474 = vdwg.mxu0
        %6475 = vmatprep.subr.bf16.mxu0 %v5154
        %6476 = vmatpush1.bf16.msra.mxu0 %v5153
        %6477 = vmatprep.subr.bf16.mxu0 %v5150
        %6478 = vmatpush1.bf16.msra.mxu0 %v5149
        %6479 = vmatprep.subr.bf16.mxu0 %v5146
        %6480 = vmatpush1.bf16.msra.mxu0 %v5145
        %6481 = vmatprep.subr.bf16.mxu0 %v5142
        %6482 = vmatpush1.bf16.msra.mxu0 %v5141
        %6483 = vmatprep.subr.bf16.mxu0 %v5138
        %6484 = vmatpush1.bf16.msra.mxu0 %v5137
        %6485 = vmatprep.subr.bf16.mxu0 %v5134
        %6486 = vmatpush1.bf16.msra.mxu0 %v5133
        %6487 = vmatprep.subr.bf16.mxu0 %v5130
        %6488 = vmatpush1.bf16.msra.mxu0 %v5129
        %6489 = vmatprep.subr.bf16.mxu0 %v5126
        %6490 = vmatpush1.bf16.msra.mxu0 %v5125
        %6491 = vmatprep.subr.bf16.mxu0 %v5186
        %6492 = vmatpush2.bf16.msra.mxu0 %v5185
        %6493 = vmatprep.subr.bf16.mxu0 %v5182
        %6494 = vmatpush2.bf16.msra.mxu0 %v5181
        %6495 = vmatprep.subr.bf16.mxu0 %v5178
        %6496 = vmatpush2.bf16.msra.mxu0 %v5177
        %6497 = vmatprep.subr.bf16.mxu0 %v5174
        %6498 = vmatpush2.bf16.msra.mxu0 %v5173
        %6499 = vmatprep.subr.bf16.mxu0 %v5170
        %6500 = vmatpush2.bf16.msra.mxu0 %v5169
        %6501 = vmatprep.subr.bf16.mxu0 %v5166
        %6502 = vmatpush2.bf16.msra.mxu0 %v5165
        %6503 = vmatprep.subr.bf16.mxu0 %v5162
        %6504 = vmatpush2.bf16.msra.mxu0 %v5161
        %6505 = vmatprep.subr.bf16.mxu0 %v5158
        %6506 = vmatpush2.bf16.msra.mxu0 %v5157
        %6507 = vmatprep.mubr.bf16.mxu0 %v3054
        %6508 = vmatmul.mubr.bf16.gmra.mxu0 %v3053
        %v6509 = vpop.f32.mrf.mxu0
        %v6510 = vadd.f32 %v3585, %v6509
        %v6511 = vpop.f32.mrf.mxu0
        %v6512 = vadd.f32 %v3585, %v6511
        %v6513 = vpop.f32.mrf.mxu0
        %v6514 = vpop.f32.mrf.mxu0
        %6515 = vdwg.mxu0
        %6516 = vmatprep.subr.bf16.mxu0 %v5218
        %6517 = vmatpush1.bf16.msra.mxu0 %v5217
        %6518 = vmatprep.subr.bf16.mxu0 %v5214
        %6519 = vmatpush1.bf16.msra.mxu0 %v5213
        %6520 = vmatprep.subr.bf16.mxu0 %v5210
        %6521 = vmatpush1.bf16.msra.mxu0 %v5209
        %6522 = vmatprep.subr.bf16.mxu0 %v5206
        %6523 = vmatpush1.bf16.msra.mxu0 %v5205
        %6524 = vmatprep.subr.bf16.mxu0 %v5202
        %6525 = vmatpush1.bf16.msra.mxu0 %v5201
        %6526 = vmatprep.subr.bf16.mxu0 %v5198
        %6527 = vmatpush1.bf16.msra.mxu0 %v5197
        %6528 = vmatprep.subr.bf16.mxu0 %v5194
        %6529 = vmatpush1.bf16.msra.mxu0 %v5193
        %6530 = vmatprep.subr.bf16.mxu0 %v5190
        %6531 = vmatpush1.bf16.msra.mxu0 %v5189
        %6532 = vmatprep.subr.bf16.mxu0 %v5250
        %6533 = vmatpush2.bf16.msra.mxu0 %v5249
        %6534 = vmatprep.subr.bf16.mxu0 %v5246
        %6535 = vmatpush2.bf16.msra.mxu0 %v5245
        %6536 = vmatprep.subr.bf16.mxu0 %v5242
        %6537 = vmatpush2.bf16.msra.mxu0 %v5241
        %6538 = vmatprep.subr.bf16.mxu0 %v5238
        %6539 = vmatpush2.bf16.msra.mxu0 %v5237
        %6540 = vmatprep.subr.bf16.mxu0 %v5234
        %6541 = vmatpush2.bf16.msra.mxu0 %v5233
        %6542 = vmatprep.subr.bf16.mxu0 %v5230
        %6543 = vmatpush2.bf16.msra.mxu0 %v5229
        %6544 = vmatprep.subr.bf16.mxu0 %v5226
        %6545 = vmatpush2.bf16.msra.mxu0 %v5225
        %6546 = vmatprep.subr.bf16.mxu0 %v5222
        %6547 = vmatpush2.bf16.msra.mxu0 %v5221
        %6548 = vmatprep.mubr.bf16.mxu0 %v3056
        %6549 = vmatmul.mubr.bf16.gmra.mxu0 %v3055
        %v6550 = vpop.f32.mrf.mxu0
        %v6551 = vadd.f32 %v6510, %v6550
        %v6552 = vpop.f32.mrf.mxu0
        %v6553 = vadd.f32 %v6512, %v6552
        %v6554 = vpop.f32.mrf.mxu0
        %v6555 = vpop.f32.mrf.mxu0
        %6556 = vdwg.mxu0
        %6557 = vmatprep.subr.bf16.mxu0 %v5282
        %6558 = vmatpush1.bf16.msra.mxu0 %v5281
        %6559 = vmatprep.subr.bf16.mxu0 %v5278
        %6560 = vmatpush1.bf16.msra.mxu0 %v5277
        %6561 = vmatprep.subr.bf16.mxu0 %v5274
        %6562 = vmatpush1.bf16.msra.mxu0 %v5273
        %6563 = vmatprep.subr.bf16.mxu0 %v5270
        %6564 = vmatpush1.bf16.msra.mxu0 %v5269
        %6565 = vmatprep.subr.bf16.mxu0 %v5266
        %6566 = vmatpush1.bf16.msra.mxu0 %v5265
        %6567 = vmatprep.subr.bf16.mxu0 %v5262
        %6568 = vmatpush1.bf16.msra.mxu0 %v5261
        %6569 = vmatprep.subr.bf16.mxu0 %v5258
        %6570 = vmatpush1.bf16.msra.mxu0 %v5257
        %6571 = vmatprep.subr.bf16.mxu0 %v5254
        %6572 = vmatpush1.bf16.msra.mxu0 %v5253
        %6573 = vmatprep.subr.bf16.mxu0 %v5314
        %6574 = vmatpush2.bf16.msra.mxu0 %v5313
        %6575 = vmatprep.subr.bf16.mxu0 %v5310
        %6576 = vmatpush2.bf16.msra.mxu0 %v5309
        %6577 = vmatprep.subr.bf16.mxu0 %v5306
        %6578 = vmatpush2.bf16.msra.mxu0 %v5305
        %6579 = vmatprep.subr.bf16.mxu0 %v5302
        %6580 = vmatpush2.bf16.msra.mxu0 %v5301
        %6581 = vmatprep.subr.bf16.mxu0 %v5298
        %6582 = vmatpush2.bf16.msra.mxu0 %v5297
        %6583 = vmatprep.subr.bf16.mxu0 %v5294
        %6584 = vmatpush2.bf16.msra.mxu0 %v5293
        %6585 = vmatprep.subr.bf16.mxu0 %v5290
        %6586 = vmatpush2.bf16.msra.mxu0 %v5289
        %6587 = vmatprep.subr.bf16.mxu0 %v5286
        %6588 = vmatpush2.bf16.msra.mxu0 %v5285
        %6589 = vmatprep.mubr.bf16.mxu0 %v3058
        %6590 = vmatmul.mubr.bf16.gmra.mxu0 %v3057
        %v6591 = vpop.f32.mrf.mxu0
        %v6592 = vadd.f32 %v6551, %v6591
        %v6593 = vpop.f32.mrf.mxu0
        %v6594 = vadd.f32 %v6553, %v6593
        %v6595 = vpop.f32.mrf.mxu0
        %v6596 = vpop.f32.mrf.mxu0
        %6597 = vdwg.mxu0
        %6598 = vmatprep.subr.bf16.mxu0 %v5346
        %6599 = vmatpush1.bf16.msra.mxu0 %v5345
        %6600 = vmatprep.subr.bf16.mxu0 %v5342
        %6601 = vmatpush1.bf16.msra.mxu0 %v5341
        %6602 = vmatprep.subr.bf16.mxu0 %v5338
        %6603 = vmatpush1.bf16.msra.mxu0 %v5337
        %6604 = vmatprep.subr.bf16.mxu0 %v5334
        %6605 = vmatpush1.bf16.msra.mxu0 %v5333
        %6606 = vmatprep.subr.bf16.mxu0 %v5330
        %6607 = vmatpush1.bf16.msra.mxu0 %v5329
        %6608 = vmatprep.subr.bf16.mxu0 %v5326
        %6609 = vmatpush1.bf16.msra.mxu0 %v5325
        %6610 = vmatprep.subr.bf16.mxu0 %v5322
        %6611 = vmatpush1.bf16.msra.mxu0 %v5321
        %6612 = vmatprep.subr.bf16.mxu0 %v5318
        %6613 = vmatpush1.bf16.msra.mxu0 %v5317
        %6614 = vmatprep.subr.bf16.mxu0 %v5378
        %6615 = vmatpush2.bf16.msra.mxu0 %v5377
        %6616 = vmatprep.subr.bf16.mxu0 %v5374
        %6617 = vmatpush2.bf16.msra.mxu0 %v5373
        %6618 = vmatprep.subr.bf16.mxu0 %v5370
        %6619 = vmatpush2.bf16.msra.mxu0 %v5369
        %6620 = vmatprep.subr.bf16.mxu0 %v5366
        %6621 = vmatpush2.bf16.msra.mxu0 %v5365
        %6622 = vmatprep.subr.bf16.mxu0 %v5362
        %6623 = vmatpush2.bf16.msra.mxu0 %v5361
        %6624 = vmatprep.subr.bf16.mxu0 %v5358
        %6625 = vmatpush2.bf16.msra.mxu0 %v5357
        %6626 = vmatprep.subr.bf16.mxu0 %v5354
        %6627 = vmatpush2.bf16.msra.mxu0 %v5353
        %6628 = vmatprep.subr.bf16.mxu0 %v5350
        %6629 = vmatpush2.bf16.msra.mxu0 %v5349
        %6630 = vmatprep.mubr.bf16.mxu0 %v3060
        %6631 = vmatmul.mubr.bf16.gmra.mxu0 %v3059
        %v6632 = vpop.f32.mrf.mxu0
        %v6633 = vadd.f32 %v6592, %v6632
        %v6634 = vpop.f32.mrf.mxu0
        %v6635 = vadd.f32 %v6594, %v6634
        %v6636 = vpop.f32.mrf.mxu0
        %v6637 = vpop.f32.mrf.mxu0
        %6638 = vdwg.mxu0
        %6639 = vmatprep.subr.bf16.mxu0 %v5410
        %6640 = vmatpush1.bf16.msra.mxu0 %v5409
        %6641 = vmatprep.subr.bf16.mxu0 %v5406
        %6642 = vmatpush1.bf16.msra.mxu0 %v5405
        %6643 = vmatprep.subr.bf16.mxu0 %v5402
        %6644 = vmatpush1.bf16.msra.mxu0 %v5401
        %6645 = vmatprep.subr.bf16.mxu0 %v5398
        %6646 = vmatpush1.bf16.msra.mxu0 %v5397
        %6647 = vmatprep.subr.bf16.mxu0 %v5394
        %6648 = vmatpush1.bf16.msra.mxu0 %v5393
        %6649 = vmatprep.subr.bf16.mxu0 %v5390
        %6650 = vmatpush1.bf16.msra.mxu0 %v5389
        %6651 = vmatprep.subr.bf16.mxu0 %v5386
        %6652 = vmatpush1.bf16.msra.mxu0 %v5385
        %6653 = vmatprep.subr.bf16.mxu0 %v5382
        %6654 = vmatpush1.bf16.msra.mxu0 %v5381
        %6655 = vmatprep.subr.bf16.mxu0 %v5442
        %6656 = vmatpush2.bf16.msra.mxu0 %v5441
        %6657 = vmatprep.subr.bf16.mxu0 %v5438
        %6658 = vmatpush2.bf16.msra.mxu0 %v5437
        %6659 = vmatprep.subr.bf16.mxu0 %v5434
        %6660 = vmatpush2.bf16.msra.mxu0 %v5433
        %6661 = vmatprep.subr.bf16.mxu0 %v5430
        %6662 = vmatpush2.bf16.msra.mxu0 %v5429
        %6663 = vmatprep.subr.bf16.mxu0 %v5426
        %6664 = vmatpush2.bf16.msra.mxu0 %v5425
        %6665 = vmatprep.subr.bf16.mxu0 %v5422
        %6666 = vmatpush2.bf16.msra.mxu0 %v5421
        %6667 = vmatprep.subr.bf16.mxu0 %v5418
        %6668 = vmatpush2.bf16.msra.mxu0 %v5417
        %6669 = vmatprep.subr.bf16.mxu0 %v5414
        %6670 = vmatpush2.bf16.msra.mxu0 %v5413
        %6671 = vmatprep.mubr.bf16.mxu0 %v3062
        %6672 = vmatmul.mubr.bf16.gmra.mxu0 %v3061
        %v6673 = vpop.f32.mrf.mxu0
        %v6674 = vadd.f32 %v6633, %v6673
        %v6675 = vpop.f32.mrf.mxu0
        %v6676 = vadd.f32 %v6635, %v6675
        %v6677 = vpop.f32.mrf.mxu0
        %v6678 = vpop.f32.mrf.mxu0
        %6679 = vdwg.mxu0
        %6680 = vmatprep.subr.bf16.mxu0 %v5474
        %6681 = vmatpush1.bf16.msra.mxu0 %v5473
        %6682 = vmatprep.subr.bf16.mxu0 %v5470
        %6683 = vmatpush1.bf16.msra.mxu0 %v5469
        %6684 = vmatprep.subr.bf16.mxu0 %v5466
        %6685 = vmatpush1.bf16.msra.mxu0 %v5465
        %6686 = vmatprep.subr.bf16.mxu0 %v5462
        %6687 = vmatpush1.bf16.msra.mxu0 %v5461
        %6688 = vmatprep.subr.bf16.mxu0 %v5458
        %6689 = vmatpush1.bf16.msra.mxu0 %v5457
        %6690 = vmatprep.subr.bf16.mxu0 %v5454
        %6691 = vmatpush1.bf16.msra.mxu0 %v5453
        %6692 = vmatprep.subr.bf16.mxu0 %v5450
        %6693 = vmatpush1.bf16.msra.mxu0 %v5449
        %6694 = vmatprep.subr.bf16.mxu0 %v5446
        %6695 = vmatpush1.bf16.msra.mxu0 %v5445
        %6696 = vmatprep.subr.bf16.mxu0 %v5506
        %6697 = vmatpush2.bf16.msra.mxu0 %v5505
        %6698 = vmatprep.subr.bf16.mxu0 %v5502
        %6699 = vmatpush2.bf16.msra.mxu0 %v5501
        %6700 = vmatprep.subr.bf16.mxu0 %v5498
        %6701 = vmatpush2.bf16.msra.mxu0 %v5497
        %6702 = vmatprep.subr.bf16.mxu0 %v5494
        %6703 = vmatpush2.bf16.msra.mxu0 %v5493
        %6704 = vmatprep.subr.bf16.mxu0 %v5490
        %6705 = vmatpush2.bf16.msra.mxu0 %v5489
        %6706 = vmatprep.subr.bf16.mxu0 %v5486
        %6707 = vmatpush2.bf16.msra.mxu0 %v5485
        %6708 = vmatprep.subr.bf16.mxu0 %v5482
        %6709 = vmatpush2.bf16.msra.mxu0 %v5481
        %6710 = vmatprep.subr.bf16.mxu0 %v5478
        %6711 = vmatpush2.bf16.msra.mxu0 %v5477
        %6712 = vmatprep.mubr.bf16.mxu0 %v3064
        %6713 = vmatmul.mubr.bf16.gmra.mxu0 %v3063
        %v6714 = vpop.f32.mrf.mxu0
        %v6715 = vadd.f32 %v6674, %v6714
        %v6716 = vpop.f32.mrf.mxu0
        %v6717 = vadd.f32 %v6676, %v6716
        %v6718 = vpop.f32.mrf.mxu0
        %v6719 = vpop.f32.mrf.mxu0
        %6720 = vdwg.mxu0
        %6721 = vmatprep.subr.bf16.mxu0 %v5538
        %6722 = vmatpush1.bf16.msra.mxu0 %v5537
        %6723 = vmatprep.subr.bf16.mxu0 %v5534
        %6724 = vmatpush1.bf16.msra.mxu0 %v5533
        %6725 = vmatprep.subr.bf16.mxu0 %v5530
        %6726 = vmatpush1.bf16.msra.mxu0 %v5529
        %6727 = vmatprep.subr.bf16.mxu0 %v5526
        %6728 = vmatpush1.bf16.msra.mxu0 %v5525
        %6729 = vmatprep.subr.bf16.mxu0 %v5522
        %6730 = vmatpush1.bf16.msra.mxu0 %v5521
        %6731 = vmatprep.subr.bf16.mxu0 %v5518
        %6732 = vmatpush1.bf16.msra.mxu0 %v5517
        %6733 = vmatprep.subr.bf16.mxu0 %v5514
        %6734 = vmatpush1.bf16.msra.mxu0 %v5513
        %6735 = vmatprep.subr.bf16.mxu0 %v5510
        %6736 = vmatpush1.bf16.msra.mxu0 %v5509
        %6737 = vmatprep.subr.bf16.mxu0 %v5570
        %6738 = vmatpush2.bf16.msra.mxu0 %v5569
        %6739 = vmatprep.subr.bf16.mxu0 %v5566
        %6740 = vmatpush2.bf16.msra.mxu0 %v5565
        %6741 = vmatprep.subr.bf16.mxu0 %v5562
        %6742 = vmatpush2.bf16.msra.mxu0 %v5561
        %6743 = vmatprep.subr.bf16.mxu0 %v5558
        %6744 = vmatpush2.bf16.msra.mxu0 %v5557
        %6745 = vmatprep.subr.bf16.mxu0 %v5554
        %6746 = vmatpush2.bf16.msra.mxu0 %v5553
        %6747 = vmatprep.subr.bf16.mxu0 %v5550
        %6748 = vmatpush2.bf16.msra.mxu0 %v5549
        %6749 = vmatprep.subr.bf16.mxu0 %v5546
        %6750 = vmatpush2.bf16.msra.mxu0 %v5545
        %6751 = vmatprep.subr.bf16.mxu0 %v5542
        %6752 = vmatpush2.bf16.msra.mxu0 %v5541
        %6753 = vmatprep.mubr.bf16.mxu0 %v3066
        %6754 = vmatmul.mubr.bf16.gmra.mxu0 %v3065
        %v6755 = vpop.f32.mrf.mxu0
        %v6756 = vadd.f32 %v6715, %v6755
        %v6757 = vpop.f32.mrf.mxu0
        %v6758 = vadd.f32 %v6717, %v6757
        %v6759 = vpop.f32.mrf.mxu0
        %v6760 = vpop.f32.mrf.mxu0
        %6761 = vdwg.mxu0
        %6762 = vmatprep.subr.bf16.mxu0 %v5602
        %6763 = vmatpush1.bf16.msra.mxu0 %v5601
        %6764 = vmatprep.subr.bf16.mxu0 %v5598
        %6765 = vmatpush1.bf16.msra.mxu0 %v5597
        %6766 = vmatprep.subr.bf16.mxu0 %v5594
        %6767 = vmatpush1.bf16.msra.mxu0 %v5593
        %6768 = vmatprep.subr.bf16.mxu0 %v5590
        %6769 = vmatpush1.bf16.msra.mxu0 %v5589
        %6770 = vmatprep.subr.bf16.mxu0 %v5586
        %6771 = vmatpush1.bf16.msra.mxu0 %v5585
        %6772 = vmatprep.subr.bf16.mxu0 %v5582
        %6773 = vmatpush1.bf16.msra.mxu0 %v5581
        %6774 = vmatprep.subr.bf16.mxu0 %v5578
        %6775 = vmatpush1.bf16.msra.mxu0 %v5577
        %6776 = vmatprep.subr.bf16.mxu0 %v5574
        %6777 = vmatpush1.bf16.msra.mxu0 %v5573
        %6778 = vmatprep.subr.bf16.mxu0 %v5634
        %6779 = vmatpush2.bf16.msra.mxu0 %v5633
        %6780 = vmatprep.subr.bf16.mxu0 %v5630
        %6781 = vmatpush2.bf16.msra.mxu0 %v5629
        %6782 = vmatprep.subr.bf16.mxu0 %v5626
        %6783 = vmatpush2.bf16.msra.mxu0 %v5625
        %6784 = vmatprep.subr.bf16.mxu0 %v5622
        %6785 = vmatpush2.bf16.msra.mxu0 %v5621
        %6786 = vmatprep.subr.bf16.mxu0 %v5618
        %6787 = vmatpush2.bf16.msra.mxu0 %v5617
        %6788 = vmatprep.subr.bf16.mxu0 %v5614
        %6789 = vmatpush2.bf16.msra.mxu0 %v5613
        %6790 = vmatprep.subr.bf16.mxu0 %v5610
        %6791 = vmatpush2.bf16.msra.mxu0 %v5609
        %6792 = vmatprep.subr.bf16.mxu0 %v5606
        %6793 = vmatpush2.bf16.msra.mxu0 %v5605
        %6794 = vmatprep.mubr.bf16.mxu0 %v3068
        %6795 = vmatmul.mubr.bf16.gmra.mxu0 %v3067
        %v6796 = vpop.f32.mrf.mxu0
        %v6797 = vadd.f32 %v6756, %v6796
        %v6798 = vpop.f32.mrf.mxu0
        %v6799 = vadd.f32 %v6758, %v6798
        %v6800 = vpop.f32.mrf.mxu0
        %v6801 = vpop.f32.mrf.mxu0
        %6802 = vdwg.mxu0
        %v6803 = vmax.f32 %v6469, 0.0
        %v6804 = vmax.f32 %v6471, 0.0
        %v6805 = vmax.f32 %v6797, 0.0
        %v6806 = vmax.f32 %v6799, 0.0
        %v6807 = vpack.c.bf16 %v6803, %v6803
        %v6808 = vpack.c.bf16 %v6804, %v6804
        %v6809 = vpack.c.bf16 %v6805, %v6805
        %v6810 = vpack.c.bf16 %v6806, %v6806
        %v6811 = vld [vmem:[%s5] sm:$0xf]
        %v6812 = vld [vmem:[%s5 + $0x4] sm:$0xf]
        %v6813 = vld [vmem:[%s5 + $0x8] sm:$0xf]
        %v6814 = vld [vmem:[%s6] sm:$0xff]
        %v6815 = vld [vmem:[%s6 + $0x8] sm:$0xff]
        %v6816 = vld [vmem:[%s6 + $0x10] sm:$0xff]
        %6818 = vset.pattern.permute.xlu0 0
        %6819 = vperm.xlu0 %6818, %v6814
        %v6820 = vpop.permute.xlu0 %6819
        %6823 = vset.pattern.permute.xlu0 0
        %6824 = vperm.xlu0 %6823, %v6815
        %v6825 = vpop.permute.xlu0 %6824
        %6828 = vset.pattern.permute.xlu0 0
        %6829 = vperm.xlu0 %6828, %v6816
        %v6830 = vpop.permute.xlu0 %6829
        %v6835 = vunpack.c.l.b16 %v6811
        %v6836 = vunpack.c.l.b16 %v6812
        %v6837 = vunpack.c.l.b16 %v6813
        %v6838 = vpack.c.b16 %v6836, %v6835
        %v6839 = vpack.c.b16 %v6837, %v6837
        %vm6840 = vcmask 64512
        %v6842 = vsel %vm6840, %v6838, 0
        %v6845 = vsel %vm6840, %v6839, 0
        %v6848 = vsel %vm2570, %v6807, 0
        %v6851 = vsel %vm2570, %v6808, 0
        %v6854 = vsel %vm2570, %v6809, 0
        %v6857 = vsel %vm2570, %v6810, 0
        %6859 = vmatprep.subr.bf16.mxu0 0
        %6860 = vmatpush1.bf16.msra.mxu0 0
        %6861 = vmatprep.subr.bf16.mxu0 0
        %6862 = vmatpush1.bf16.msra.mxu0 0
        %6863 = vmatprep.subr.bf16.mxu0 0
        %6864 = vmatpush1.bf16.msra.mxu0 0
        %6865 = vmatprep.subr.bf16.mxu0 0
        %6866 = vmatpush1.bf16.msra.mxu0 0
        %6867 = vmatprep.subr.bf16.mxu0 0
        %6868 = vmatpush1.bf16.msra.mxu0 0
        %6869 = vmatprep.subr.bf16.mxu0 0
        %6870 = vmatpush1.bf16.msra.mxu0 0
        %6871 = vmatprep.subr.bf16.mxu0 0
        %6872 = vmatpush1.bf16.msra.mxu0 0
        %6873 = vmatprep.subr.bf16.mxu0 %v6851
        %6874 = vmatpush1.bf16.msra.mxu0 %v6848
        %6875 = vmatprep.subr.bf16.mxu0 0
        %6876 = vmatpush2.bf16.msra.mxu0 0
        %6877 = vmatprep.subr.bf16.mxu0 0
        %6878 = vmatpush2.bf16.msra.mxu0 0
        %6879 = vmatprep.subr.bf16.mxu0 0
        %6880 = vmatpush2.bf16.msra.mxu0 0
        %6881 = vmatprep.subr.bf16.mxu0 0
        %6882 = vmatpush2.bf16.msra.mxu0 0
        %6883 = vmatprep.subr.bf16.mxu0 0
        %6884 = vmatpush2.bf16.msra.mxu0 0
        %6885 = vmatprep.subr.bf16.mxu0 0
        %6886 = vmatpush2.bf16.msra.mxu0 0
        %6887 = vmatprep.subr.bf16.mxu0 0
        %6888 = vmatpush2.bf16.msra.mxu0 0
        %6889 = vmatprep.subr.bf16.mxu0 0
        %6890 = vmatpush2.bf16.msra.mxu0 0
        %6891 = vmatprep.mubr.bf16.mxu0 0
        %6892 = vmatmul.mubr.bf16.gmra.mxu0 %v6842
        %v6893 = vpop.f32.mrf.mxu0
        %v6894 = vadd.f32 %v6820, %v6893
        %v6895 = vpop.f32.mrf.mxu0
        %v6896 = vadd.f32 %v6820, %v6895
        %v6897 = vpop.f32.mrf.mxu0
        %v6898 = vadd.f32 %v6825, %v6897
        %v6899 = vpop.f32.mrf.mxu0
        %v6900 = vadd.f32 %v6825, %v6899
        %6901 = vmatprep.mubr.bf16.mxu0 0
        %6902 = vmatmul.mubr.bf16.gmra.mxu0 %v6845
        %v6903 = vpop.f32.mrf.mxu0
        %v6904 = vadd.f32 %v6830, %v6903
        %v6905 = vpop.f32.mrf.mxu0
        %v6906 = vadd.f32 %v6830, %v6905
        %v6907 = vpop.f32.mrf.mxu0
        %v6908 = vpop.f32.mrf.mxu0
        %6909 = vdwg.mxu0
        %6910 = vmatprep.subr.bf16.mxu0 0
        %6911 = vmatpush1.bf16.msra.mxu0 0
        %6912 = vmatprep.subr.bf16.mxu0 0
        %6913 = vmatpush1.bf16.msra.mxu0 0
        %6914 = vmatprep.subr.bf16.mxu0 0
        %6915 = vmatpush1.bf16.msra.mxu0 0
        %6916 = vmatprep.subr.bf16.mxu0 0
        %6917 = vmatpush1.bf16.msra.mxu0 0
        %6918 = vmatprep.subr.bf16.mxu0 0
        %6919 = vmatpush1.bf16.msra.mxu0 0
        %6920 = vmatprep.subr.bf16.mxu0 0
        %6921 = vmatpush1.bf16.msra.mxu0 0
        %6922 = vmatprep.subr.bf16.mxu0 0
        %6923 = vmatpush1.bf16.msra.mxu0 0
        %6924 = vmatprep.subr.bf16.mxu0 %v6857
        %6925 = vmatpush1.bf16.msra.mxu0 %v6854
        %6926 = vmatprep.subr.bf16.mxu0 0
        %6927 = vmatpush2.bf16.msra.mxu0 0
        %6928 = vmatprep.subr.bf16.mxu0 0
        %6929 = vmatpush2.bf16.msra.mxu0 0
        %6930 = vmatprep.subr.bf16.mxu0 0
        %6931 = vmatpush2.bf16.msra.mxu0 0
        %6932 = vmatprep.subr.bf16.mxu0 0
        %6933 = vmatpush2.bf16.msra.mxu0 0
        %6934 = vmatprep.subr.bf16.mxu0 0
        %6935 = vmatpush2.bf16.msra.mxu0 0
        %6936 = vmatprep.subr.bf16.mxu0 0
        %6937 = vmatpush2.bf16.msra.mxu0 0
        %6938 = vmatprep.subr.bf16.mxu0 0
        %6939 = vmatpush2.bf16.msra.mxu0 0
        %6940 = vmatprep.subr.bf16.mxu0 0
        %6941 = vmatpush2.bf16.msra.mxu0 0
        %6942 = vmatprep.mubr.bf16.mxu0 0
        %6943 = vmatmul.mubr.bf16.gmra.mxu0 %v6842
        %v6944 = vpop.f32.mrf.mxu0
        %v6945 = vadd.f32 %v6820, %v6944
        %v6946 = vpop.f32.mrf.mxu0
        %v6947 = vadd.f32 %v6820, %v6946
        %v6948 = vpop.f32.mrf.mxu0
        %v6949 = vadd.f32 %v6825, %v6948
        %v6950 = vpop.f32.mrf.mxu0
        %v6951 = vadd.f32 %v6825, %v6950
        %6952 = vmatprep.mubr.bf16.mxu0 0
        %6953 = vmatmul.mubr.bf16.gmra.mxu0 %v6845
        %v6954 = vpop.f32.mrf.mxu0
        %v6955 = vadd.f32 %v6830, %v6954
        %v6956 = vpop.f32.mrf.mxu0
        %v6957 = vadd.f32 %v6830, %v6956
        %v6958 = vpop.f32.mrf.mxu0
        %v6959 = vpop.f32.mrf.mxu0
        %6960 = vdwg.mxu0
        %v6961 = vmax.f32 %v6894, 0.0
        %v6962 = vmax.f32 %v6896, 0.0
        %v6963 = vmax.f32 %v6945, 0.0
        %v6964 = vmax.f32 %v6947, 0.0
        %v6965 = vmax.f32 %v6898, 0.0
        %v6966 = vmax.f32 %v6900, 0.0
        %v6967 = vmax.f32 %v6949, 0.0
        %v6968 = vmax.f32 %v6951, 0.0
        %v6969 = vmax.f32 %v6904, 0.0
        %v6970 = vmax.f32 %v6906, 0.0
        %v6971 = vmax.f32 %v6955, 0.0
        %v6972 = vmax.f32 %v6957, 0.0
        %6973 = vrot.lane.b32.xlu0 %v6961, 9
        %v6974 = vpop.permute.xlu0 %6973
        %6975 = vrot.lane.b32.xlu0 %v6965, 9
        %v6976 = vpop.permute.xlu0 %6975
        %6977 = vrot.lane.b32.xlu0 %v6969, 9
        %v6978 = vpop.permute.xlu0 %6977
        %6979 = vrot.lane.b32.xlu0 %v6962, 9
        %v6980 = vpop.permute.xlu0 %6979
        %6981 = vrot.lane.b32.xlu0 %v6966, 9
        %v6982 = vpop.permute.xlu0 %6981
        %6983 = vrot.lane.b32.xlu0 %v6970, 9
        %v6984 = vpop.permute.xlu0 %6983
        %6985 = vrot.lane.b32.xlu0 %v6963, 9
        %v6986 = vpop.permute.xlu0 %6985
        %6987 = vrot.lane.b32.xlu0 %v6967, 9
        %v6988 = vpop.permute.xlu0 %6987
        %6989 = vrot.lane.b32.xlu0 %v6971, 9
        %v6990 = vpop.permute.xlu0 %6989
        %6991 = vrot.lane.b32.xlu0 %v6964, 9
        %v6992 = vpop.permute.xlu0 %6991
        %6993 = vrot.lane.b32.xlu0 %v6968, 9
        %v6994 = vpop.permute.xlu0 %6993
        %6995 = vrot.lane.b32.xlu0 %v6972, 9
        %v6996 = vpop.permute.xlu0 %6995
        %vm6997 = vcmp.lt.s32.totalorder %v1047, 9
        %v6998 = vsel %vm6997, %v6986, %v6992
        %v6999 = vsel %vm6997, %v6988, %v6994
        %v7000 = vsel %vm6997, %v6990, %v6996
        %v7001 = vsel %vm6997, %v6980, %v6986
        %v7002 = vsel %vm6997, %v6982, %v6988
        %v7003 = vsel %vm6997, %v6984, %v6990
        %v7004 = vsel %vm6997, %v6974, %v6980
        %v7005 = vsel %vm6997, %v6976, %v6982
        %v7006 = vsel %vm6997, %v6978, %v6984
        %v7007 = vsel %vm6997, %v6992, %v6974
        %v7008 = vsel %vm6997, %v6994, %v6976
        %v7009 = vsel %vm6997, %v6996, %v6978
        %v7010 = vld [vmem:[#allocation10] sm:$0xf]
        %v7012 = vlaneseq
        %v7013 = vshrl.u32 %v7012, 7
        %v7014 = vsub.s32 0, %v7013
        %v7015 = vrot.slane %v7010, %v7014
        %v7016 = vlaneseq
        %v7017 = vshrl.u32 %v7016, 7
        %v7018 = vsub.s32 1, %v7017
        %v7019 = vrot.slane %v7010, %v7018
        %v7020 = vlaneseq
        %v7021 = vshrl.u32 %v7020, 7
        %v7022 = vsub.s32 2, %v7021
        %v7023 = vrot.slane %v7010, %v7022
        %v7024 = vlaneseq
        %v7025 = vshrl.u32 %v7024, 7
        %v7026 = vsub.s32 3, %v7025
        %v7027 = vrot.slane %v7010, %v7026
        %v7032 = vmul.f32 %v7007, %v7015
        %v7033 = vmul.f32 %v7004, %v7019
        %v7034 = vmul.f32 %v7001, %v7023
        %v7035 = vmul.f32 %v6998, %v7027
        %v7036 = vmul.f32 %v7008, %v7015
        %v7037 = vmul.f32 %v7005, %v7019
        %v7038 = vmul.f32 %v7002, %v7023
        %v7039 = vmul.f32 %v6999, %v7027
        %v7040 = vmul.f32 %v7009, %v7015
        %v7041 = vmul.f32 %v7006, %v7019
        %v7042 = vmul.f32 %v7003, %v7023
        %v7043 = vmul.f32 %v7000, %v7027
        %7044 = vrot.lane.b32.xlu0 %v6961, 8
        %v7045 = vpop.permute.xlu0 %7044
        %7046 = vrot.lane.b32.xlu0 %v6965, 8
        %v7047 = vpop.permute.xlu0 %7046
        %7048 = vrot.lane.b32.xlu0 %v6969, 8
        %v7049 = vpop.permute.xlu0 %7048
        %7050 = vrot.lane.b32.xlu0 %v6962, 8
        %v7051 = vpop.permute.xlu0 %7050
        %7052 = vrot.lane.b32.xlu0 %v6966, 8
        %v7053 = vpop.permute.xlu0 %7052
        %7054 = vrot.lane.b32.xlu0 %v6970, 8
        %v7055 = vpop.permute.xlu0 %7054
        %7056 = vrot.lane.b32.xlu0 %v6963, 8
        %v7057 = vpop.permute.xlu0 %7056
        %7058 = vrot.lane.b32.xlu0 %v6967, 8
        %v7059 = vpop.permute.xlu0 %7058
        %7060 = vrot.lane.b32.xlu0 %v6971, 8
        %v7061 = vpop.permute.xlu0 %7060
        %7062 = vrot.lane.b32.xlu0 %v6964, 8
        %v7063 = vpop.permute.xlu0 %7062
        %7064 = vrot.lane.b32.xlu0 %v6968, 8
        %v7065 = vpop.permute.xlu0 %7064
        %7066 = vrot.lane.b32.xlu0 %v6972, 8
        %v7067 = vpop.permute.xlu0 %7066
        %vm7068 = vcmp.lt.s32.totalorder %v1047, 8
        %v7069 = vsel %vm7068, %v7057, %v7063
        %v7070 = vsel %vm7068, %v7059, %v7065
        %v7071 = vsel %vm7068, %v7061, %v7067
        %v7072 = vsel %vm7068, %v7051, %v7057
        %v7073 = vsel %vm7068, %v7053, %v7059
        %v7074 = vsel %vm7068, %v7055, %v7061
        %v7075 = vsel %vm7068, %v7045, %v7051
        %v7076 = vsel %vm7068, %v7047, %v7053
        %v7077 = vsel %vm7068, %v7049, %v7055
        %v7078 = vsel %vm7068, %v7063, %v7045
        %v7079 = vsel %vm7068, %v7065, %v7047
        %v7080 = vsel %vm7068, %v7067, %v7049
        %s7081 = scalar_lea.vmem [#allocation10], 4
        %v7082 = vld [vmem:[%s7081] sm:$0xf]
        %v7084 = vlaneseq
        %v7085 = vshrl.u32 %v7084, 7
        %v7086 = vsub.s32 0, %v7085
        %v7087 = vrot.slane %v7082, %v7086
        %v7088 = vlaneseq
        %v7089 = vshrl.u32 %v7088, 7
        %v7090 = vsub.s32 1, %v7089
        %v7091 = vrot.slane %v7082, %v7090
        %v7092 = vlaneseq
        %v7093 = vshrl.u32 %v7092, 7
        %v7094 = vsub.s32 2, %v7093
        %v7095 = vrot.slane %v7082, %v7094
        %v7096 = vlaneseq
        %v7097 = vshrl.u32 %v7096, 7
        %v7098 = vsub.s32 3, %v7097
        %v7099 = vrot.slane %v7082, %v7098
        %v7104 = vmul.f32 %v7078, %v7087
        %v7105 = vmul.f32 %v7075, %v7091
        %v7106 = vmul.f32 %v7072, %v7095
        %v7107 = vmul.f32 %v7069, %v7099
        %v7108 = vmul.f32 %v7079, %v7087
        %v7109 = vmul.f32 %v7076, %v7091
        %v7110 = vmul.f32 %v7073, %v7095
        %v7111 = vmul.f32 %v7070, %v7099
        %v7112 = vmul.f32 %v7080, %v7087
        %v7113 = vmul.f32 %v7077, %v7091
        %v7114 = vmul.f32 %v7074, %v7095
        %v7115 = vmul.f32 %v7071, %v7099
        %7116 = vrot.lane.b32.xlu0 %v6961, 7
        %v7117 = vpop.permute.xlu0 %7116
        %7118 = vrot.lane.b32.xlu0 %v6965, 7
        %v7119 = vpop.permute.xlu0 %7118
        %7120 = vrot.lane.b32.xlu0 %v6969, 7
        %v7121 = vpop.permute.xlu0 %7120
        %7122 = vrot.lane.b32.xlu0 %v6962, 7
        %v7123 = vpop.permute.xlu0 %7122
        %7124 = vrot.lane.b32.xlu0 %v6966, 7
        %v7125 = vpop.permute.xlu0 %7124
        %7126 = vrot.lane.b32.xlu0 %v6970, 7
        %v7127 = vpop.permute.xlu0 %7126
        %7128 = vrot.lane.b32.xlu0 %v6963, 7
        %v7129 = vpop.permute.xlu0 %7128
        %7130 = vrot.lane.b32.xlu0 %v6967, 7
        %v7131 = vpop.permute.xlu0 %7130
        %7132 = vrot.lane.b32.xlu0 %v6971, 7
        %v7133 = vpop.permute.xlu0 %7132
        %7134 = vrot.lane.b32.xlu0 %v6964, 7
        %v7135 = vpop.permute.xlu0 %7134
        %7136 = vrot.lane.b32.xlu0 %v6968, 7
        %v7137 = vpop.permute.xlu0 %7136
        %7138 = vrot.lane.b32.xlu0 %v6972, 7
        %v7139 = vpop.permute.xlu0 %7138
        %vm7140 = vcmp.lt.s32.totalorder %v1047, 7
        %v7141 = vsel %vm7140, %v7129, %v7135
        %v7142 = vsel %vm7140, %v7131, %v7137
        %v7143 = vsel %vm7140, %v7133, %v7139
        %v7144 = vsel %vm7140, %v7123, %v7129
        %v7145 = vsel %vm7140, %v7125, %v7131
        %v7146 = vsel %vm7140, %v7127, %v7133
        %v7147 = vsel %vm7140, %v7117, %v7123
        %v7148 = vsel %vm7140, %v7119, %v7125
        %v7149 = vsel %vm7140, %v7121, %v7127
        %v7150 = vsel %vm7140, %v7135, %v7117
        %v7151 = vsel %vm7140, %v7137, %v7119
        %v7152 = vsel %vm7140, %v7139, %v7121
        %s7153 = scalar_lea.vmem [#allocation10], 8
        %v7154 = vld [vmem:[%s7153] sm:$0xf]
        %v7156 = vlaneseq
        %v7157 = vshrl.u32 %v7156, 7
        %v7158 = vsub.s32 0, %v7157
        %v7159 = vrot.slane %v7154, %v7158
        %v7160 = vlaneseq
        %v7161 = vshrl.u32 %v7160, 7
        %v7162 = vsub.s32 1, %v7161
        %v7163 = vrot.slane %v7154, %v7162
        %v7164 = vlaneseq
        %v7165 = vshrl.u32 %v7164, 7
        %v7166 = vsub.s32 2, %v7165
        %v7167 = vrot.slane %v7154, %v7166
        %v7168 = vlaneseq
        %v7169 = vshrl.u32 %v7168, 7
        %v7170 = vsub.s32 3, %v7169
        %v7171 = vrot.slane %v7154, %v7170
        %v7176 = vmul.f32 %v7150, %v7159
        %v7177 = vmul.f32 %v7147, %v7163
        %v7178 = vmul.f32 %v7144, %v7167
        %v7179 = vmul.f32 %v7141, %v7171
        %v7180 = vmul.f32 %v7151, %v7159
        %v7181 = vmul.f32 %v7148, %v7163
        %v7182 = vmul.f32 %v7145, %v7167
        %v7183 = vmul.f32 %v7142, %v7171
        %v7184 = vmul.f32 %v7152, %v7159
        %v7185 = vmul.f32 %v7149, %v7163
        %v7186 = vmul.f32 %v7146, %v7167
        %v7187 = vmul.f32 %v7143, %v7171
        %7188 = vrot.lane.b32.xlu0 %v6961, 1
        %v7189 = vpop.permute.xlu0 %7188
        %7190 = vrot.lane.b32.xlu0 %v6965, 1
        %v7191 = vpop.permute.xlu0 %7190
        %7192 = vrot.lane.b32.xlu0 %v6969, 1
        %v7193 = vpop.permute.xlu0 %7192
        %7194 = vrot.lane.b32.xlu0 %v6962, 1
        %v7195 = vpop.permute.xlu0 %7194
        %7196 = vrot.lane.b32.xlu0 %v6966, 1
        %v7197 = vpop.permute.xlu0 %7196
        %7198 = vrot.lane.b32.xlu0 %v6970, 1
        %v7199 = vpop.permute.xlu0 %7198
        %7200 = vrot.lane.b32.xlu0 %v6963, 1
        %v7201 = vpop.permute.xlu0 %7200
        %7202 = vrot.lane.b32.xlu0 %v6967, 1
        %v7203 = vpop.permute.xlu0 %7202
        %7204 = vrot.lane.b32.xlu0 %v6971, 1
        %v7205 = vpop.permute.xlu0 %7204
        %7206 = vrot.lane.b32.xlu0 %v6964, 1
        %v7207 = vpop.permute.xlu0 %7206
        %7208 = vrot.lane.b32.xlu0 %v6968, 1
        %v7209 = vpop.permute.xlu0 %7208
        %7210 = vrot.lane.b32.xlu0 %v6972, 1
        %v7211 = vpop.permute.xlu0 %7210
        %v7212 = vsel %vm1497, %v7201, %v7207
        %v7213 = vsel %vm1497, %v7203, %v7209
        %v7214 = vsel %vm1497, %v7205, %v7211
        %v7215 = vsel %vm1497, %v7195, %v7201
        %v7216 = vsel %vm1497, %v7197, %v7203
        %v7217 = vsel %vm1497, %v7199, %v7205
        %v7218 = vsel %vm1497, %v7189, %v7195
        %v7219 = vsel %vm1497, %v7191, %v7197
        %v7220 = vsel %vm1497, %v7193, %v7199
        %v7221 = vsel %vm1497, %v7207, %v7189
        %v7222 = vsel %vm1497, %v7209, %v7191
        %v7223 = vsel %vm1497, %v7211, %v7193
        %s7224 = scalar_lea.vmem [#allocation10], 12
        %v7225 = vld [vmem:[%s7224] sm:$0xf]
        %v7227 = vlaneseq
        %v7228 = vshrl.u32 %v7227, 7
        %v7229 = vsub.s32 0, %v7228
        %v7230 = vrot.slane %v7225, %v7229
        %v7231 = vlaneseq
        %v7232 = vshrl.u32 %v7231, 7
        %v7233 = vsub.s32 1, %v7232
        %v7234 = vrot.slane %v7225, %v7233
        %v7235 = vlaneseq
        %v7236 = vshrl.u32 %v7235, 7
        %v7237 = vsub.s32 2, %v7236
        %v7238 = vrot.slane %v7225, %v7237
        %v7239 = vlaneseq
        %v7240 = vshrl.u32 %v7239, 7
        %v7241 = vsub.s32 3, %v7240
        %v7242 = vrot.slane %v7225, %v7241
        %v7247 = vmul.f32 %v7221, %v7230
        %v7248 = vmul.f32 %v7218, %v7234
        %v7249 = vmul.f32 %v7215, %v7238
        %v7250 = vmul.f32 %v7212, %v7242
        %v7251 = vmul.f32 %v7222, %v7230
        %v7252 = vmul.f32 %v7219, %v7234
        %v7253 = vmul.f32 %v7216, %v7238
        %v7254 = vmul.f32 %v7213, %v7242
        %v7255 = vmul.f32 %v7223, %v7230
        %v7256 = vmul.f32 %v7220, %v7234
        %v7257 = vmul.f32 %v7217, %v7238
        %v7258 = vmul.f32 %v7214, %v7242
        %7259 = vrot.lane.b32.xlu0 %v6961, 127
        %v7260 = vpop.permute.xlu0 %7259
        %7261 = vrot.lane.b32.xlu0 %v6965, 127
        %v7262 = vpop.permute.xlu0 %7261
        %7263 = vrot.lane.b32.xlu0 %v6969, 127
        %v7264 = vpop.permute.xlu0 %7263
        %7265 = vrot.lane.b32.xlu0 %v6962, 127
        %v7266 = vpop.permute.xlu0 %7265
        %7267 = vrot.lane.b32.xlu0 %v6966, 127
        %v7268 = vpop.permute.xlu0 %7267
        %7269 = vrot.lane.b32.xlu0 %v6970, 127
        %v7270 = vpop.permute.xlu0 %7269
        %7271 = vrot.lane.b32.xlu0 %v6963, 127
        %v7272 = vpop.permute.xlu0 %7271
        %7273 = vrot.lane.b32.xlu0 %v6967, 127
        %v7274 = vpop.permute.xlu0 %7273
        %7275 = vrot.lane.b32.xlu0 %v6971, 127
        %v7276 = vpop.permute.xlu0 %7275
        %7277 = vrot.lane.b32.xlu0 %v6964, 127
        %v7278 = vpop.permute.xlu0 %7277
        %7279 = vrot.lane.b32.xlu0 %v6968, 127
        %v7280 = vpop.permute.xlu0 %7279
        %7281 = vrot.lane.b32.xlu0 %v6972, 127
        %v7282 = vpop.permute.xlu0 %7281
        %v7283 = vsel %vm1647, %v7272, %v7278
        %v7284 = vsel %vm1647, %v7274, %v7280
        %v7285 = vsel %vm1647, %v7276, %v7282
        %v7286 = vsel %vm1647, %v7266, %v7272
        %v7287 = vsel %vm1647, %v7268, %v7274
        %v7288 = vsel %vm1647, %v7270, %v7276
        %v7289 = vsel %vm1647, %v7260, %v7266
        %v7290 = vsel %vm1647, %v7262, %v7268
        %v7291 = vsel %vm1647, %v7264, %v7270
        %v7292 = vsel %vm1647, %v7278, %v7260
        %v7293 = vsel %vm1647, %v7280, %v7262
        %v7294 = vsel %vm1647, %v7282, %v7264
        %s7295 = scalar_lea.vmem [#allocation10], 20
        %v7296 = vld [vmem:[%s7295] sm:$0xf]
        %v7298 = vlaneseq
        %v7299 = vshrl.u32 %v7298, 7
        %v7300 = vsub.s32 0, %v7299
        %v7301 = vrot.slane %v7296, %v7300
        %v7302 = vlaneseq
        %v7303 = vshrl.u32 %v7302, 7
        %v7304 = vsub.s32 1, %v7303
        %v7305 = vrot.slane %v7296, %v7304
        %v7306 = vlaneseq
        %v7307 = vshrl.u32 %v7306, 7
        %v7308 = vsub.s32 2, %v7307
        %v7309 = vrot.slane %v7296, %v7308
        %v7310 = vlaneseq
        %v7311 = vshrl.u32 %v7310, 7
        %v7312 = vsub.s32 3, %v7311
        %v7313 = vrot.slane %v7296, %v7312
        %v7318 = vmul.f32 %v7289, %v7301
        %v7319 = vmul.f32 %v7286, %v7305
        %v7320 = vmul.f32 %v7283, %v7309
        %v7321 = vmul.f32 %v7292, %v7313
        %v7322 = vmul.f32 %v7290, %v7301
        %v7323 = vmul.f32 %v7287, %v7305
        %v7324 = vmul.f32 %v7284, %v7309
        %v7325 = vmul.f32 %v7293, %v7313
        %v7326 = vmul.f32 %v7291, %v7301
        %v7327 = vmul.f32 %v7288, %v7305
        %v7328 = vmul.f32 %v7285, %v7309
        %v7329 = vmul.f32 %v7294, %v7313
        %7330 = vrot.lane.b32.xlu0 %v6961, 121
        %v7331 = vpop.permute.xlu0 %7330
        %7332 = vrot.lane.b32.xlu0 %v6965, 121
        %v7333 = vpop.permute.xlu0 %7332
        %7334 = vrot.lane.b32.xlu0 %v6969, 121
        %v7335 = vpop.permute.xlu0 %7334
        %7336 = vrot.lane.b32.xlu0 %v6962, 121
        %v7337 = vpop.permute.xlu0 %7336
        %7338 = vrot.lane.b32.xlu0 %v6966, 121
        %v7339 = vpop.permute.xlu0 %7338
        %7340 = vrot.lane.b32.xlu0 %v6970, 121
        %v7341 = vpop.permute.xlu0 %7340
        %7342 = vrot.lane.b32.xlu0 %v6963, 121
        %v7343 = vpop.permute.xlu0 %7342
        %7344 = vrot.lane.b32.xlu0 %v6967, 121
        %v7345 = vpop.permute.xlu0 %7344
        %7346 = vrot.lane.b32.xlu0 %v6971, 121
        %v7347 = vpop.permute.xlu0 %7346
        %7348 = vrot.lane.b32.xlu0 %v6964, 121
        %v7349 = vpop.permute.xlu0 %7348
        %7350 = vrot.lane.b32.xlu0 %v6968, 121
        %v7351 = vpop.permute.xlu0 %7350
        %7352 = vrot.lane.b32.xlu0 %v6972, 121
        %v7353 = vpop.permute.xlu0 %7352
        %vm7354 = vcmp.lt.s32.totalorder %v1047, 121
        %v7355 = vsel %vm7354, %v7343, %v7349
        %v7356 = vsel %vm7354, %v7345, %v7351
        %v7357 = vsel %vm7354, %v7347, %v7353
        %v7358 = vsel %vm7354, %v7337, %v7343
        %v7359 = vsel %vm7354, %v7339, %v7345
        %v7360 = vsel %vm7354, %v7341, %v7347
        %v7361 = vsel %vm7354, %v7331, %v7337
        %v7362 = vsel %vm7354, %v7333, %v7339
        %v7363 = vsel %vm7354, %v7335, %v7341
        %v7364 = vsel %vm7354, %v7349, %v7331
        %v7365 = vsel %vm7354, %v7351, %v7333
        %v7366 = vsel %vm7354, %v7353, %v7335
        %s7367 = scalar_lea.vmem [#allocation10], 24
        %v7368 = vld [vmem:[%s7367] sm:$0xf]
        %v7370 = vlaneseq
        %v7371 = vshrl.u32 %v7370, 7
        %v7372 = vsub.s32 0, %v7371
        %v7373 = vrot.slane %v7368, %v7372
        %v7374 = vlaneseq
        %v7375 = vshrl.u32 %v7374, 7
        %v7376 = vsub.s32 1, %v7375
        %v7377 = vrot.slane %v7368, %v7376
        %v7378 = vlaneseq
        %v7379 = vshrl.u32 %v7378, 7
        %v7380 = vsub.s32 2, %v7379
        %v7381 = vrot.slane %v7368, %v7380
        %v7382 = vlaneseq
        %v7383 = vshrl.u32 %v7382, 7
        %v7384 = vsub.s32 3, %v7383
        %v7385 = vrot.slane %v7368, %v7384
        %v7390 = vmul.f32 %v7361, %v7373
        %v7391 = vmul.f32 %v7358, %v7377
        %v7392 = vmul.f32 %v7355, %v7381
        %v7393 = vmul.f32 %v7364, %v7385
        %v7394 = vmul.f32 %v7362, %v7373
        %v7395 = vmul.f32 %v7359, %v7377
        %v7396 = vmul.f32 %v7356, %v7381
        %v7397 = vmul.f32 %v7365, %v7385
        %v7398 = vmul.f32 %v7363, %v7373
        %v7399 = vmul.f32 %v7360, %v7377
        %v7400 = vmul.f32 %v7357, %v7381
        %v7401 = vmul.f32 %v7366, %v7385
        %7402 = vrot.lane.b32.xlu0 %v6961, 120
        %v7403 = vpop.permute.xlu0 %7402
        %7404 = vrot.lane.b32.xlu0 %v6965, 120
        %v7405 = vpop.permute.xlu0 %7404
        %7406 = vrot.lane.b32.xlu0 %v6969, 120
        %v7407 = vpop.permute.xlu0 %7406
        %7408 = vrot.lane.b32.xlu0 %v6962, 120
        %v7409 = vpop.permute.xlu0 %7408
        %7410 = vrot.lane.b32.xlu0 %v6966, 120
        %v7411 = vpop.permute.xlu0 %7410
        %7412 = vrot.lane.b32.xlu0 %v6970, 120
        %v7413 = vpop.permute.xlu0 %7412
        %7414 = vrot.lane.b32.xlu0 %v6963, 120
        %v7415 = vpop.permute.xlu0 %7414
        %7416 = vrot.lane.b32.xlu0 %v6967, 120
        %v7417 = vpop.permute.xlu0 %7416
        %7418 = vrot.lane.b32.xlu0 %v6971, 120
        %v7419 = vpop.permute.xlu0 %7418
        %7420 = vrot.lane.b32.xlu0 %v6964, 120
        %v7421 = vpop.permute.xlu0 %7420
        %7422 = vrot.lane.b32.xlu0 %v6968, 120
        %v7423 = vpop.permute.xlu0 %7422
        %7424 = vrot.lane.b32.xlu0 %v6972, 120
        %v7425 = vpop.permute.xlu0 %7424
        %vm7426 = vcmp.lt.s32.totalorder %v1047, 120
        %v7427 = vsel %vm7426, %v7415, %v7421
        %v7428 = vsel %vm7426, %v7417, %v7423
        %v7429 = vsel %vm7426, %v7419, %v7425
        %v7430 = vsel %vm7426, %v7409, %v7415
        %v7431 = vsel %vm7426, %v7411, %v7417
        %v7432 = vsel %vm7426, %v7413, %v7419
        %v7433 = vsel %vm7426, %v7403, %v7409
        %v7434 = vsel %vm7426, %v7405, %v7411
        %v7435 = vsel %vm7426, %v7407, %v7413
        %v7436 = vsel %vm7426, %v7421, %v7403
        %v7437 = vsel %vm7426, %v7423, %v7405
        %v7438 = vsel %vm7426, %v7425, %v7407
        %s7439 = scalar_lea.vmem [#allocation10], 28
        %v7440 = vld [vmem:[%s7439] sm:$0xf]
        %v7442 = vlaneseq
        %v7443 = vshrl.u32 %v7442, 7
        %v7444 = vsub.s32 0, %v7443
        %v7445 = vrot.slane %v7440, %v7444
        %v7446 = vlaneseq
        %v7447 = vshrl.u32 %v7446, 7
        %v7448 = vsub.s32 1, %v7447
        %v7449 = vrot.slane %v7440, %v7448
        %v7450 = vlaneseq
        %v7451 = vshrl.u32 %v7450, 7
        %v7452 = vsub.s32 2, %v7451
        %v7453 = vrot.slane %v7440, %v7452
        %v7454 = vlaneseq
        %v7455 = vshrl.u32 %v7454, 7
        %v7456 = vsub.s32 3, %v7455
        %v7457 = vrot.slane %v7440, %v7456
        %v7462 = vmul.f32 %v7433, %v7445
        %v7463 = vmul.f32 %v7430, %v7449
        %v7464 = vmul.f32 %v7427, %v7453
        %v7465 = vmul.f32 %v7436, %v7457
        %v7466 = vmul.f32 %v7434, %v7445
        %v7467 = vmul.f32 %v7431, %v7449
        %v7468 = vmul.f32 %v7428, %v7453
        %v7469 = vmul.f32 %v7437, %v7457
        %v7470 = vmul.f32 %v7435, %v7445
        %v7471 = vmul.f32 %v7432, %v7449
        %v7472 = vmul.f32 %v7429, %v7453
        %v7473 = vmul.f32 %v7438, %v7457
        %7474 = vrot.lane.b32.xlu0 %v6961, 119
        %v7475 = vpop.permute.xlu0 %7474
        %7476 = vrot.lane.b32.xlu0 %v6965, 119
        %v7477 = vpop.permute.xlu0 %7476
        %7478 = vrot.lane.b32.xlu0 %v6969, 119
        %v7479 = vpop.permute.xlu0 %7478
        %7480 = vrot.lane.b32.xlu0 %v6962, 119
        %v7481 = vpop.permute.xlu0 %7480
        %7482 = vrot.lane.b32.xlu0 %v6966, 119
        %v7483 = vpop.permute.xlu0 %7482
        %7484 = vrot.lane.b32.xlu0 %v6970, 119
        %v7485 = vpop.permute.xlu0 %7484
        %7486 = vrot.lane.b32.xlu0 %v6963, 119
        %v7487 = vpop.permute.xlu0 %7486
        %7488 = vrot.lane.b32.xlu0 %v6967, 119
        %v7489 = vpop.permute.xlu0 %7488
        %7490 = vrot.lane.b32.xlu0 %v6971, 119
        %v7491 = vpop.permute.xlu0 %7490
        %7492 = vrot.lane.b32.xlu0 %v6964, 119
        %v7493 = vpop.permute.xlu0 %7492
        %7494 = vrot.lane.b32.xlu0 %v6968, 119
        %v7495 = vpop.permute.xlu0 %7494
        %7496 = vrot.lane.b32.xlu0 %v6972, 119
        %v7497 = vpop.permute.xlu0 %7496
        %vm7498 = vcmp.lt.s32.totalorder %v1047, 119
        %v7499 = vsel %vm7498, %v7487, %v7493
        %v7500 = vsel %vm7498, %v7489, %v7495
        %v7501 = vsel %vm7498, %v7491, %v7497
        %v7502 = vsel %vm7498, %v7481, %v7487
        %v7503 = vsel %vm7498, %v7483, %v7489
        %v7504 = vsel %vm7498, %v7485, %v7491
        %v7505 = vsel %vm7498, %v7475, %v7481
        %v7506 = vsel %vm7498, %v7477, %v7483
        %v7507 = vsel %vm7498, %v7479, %v7485
        %v7508 = vsel %vm7498, %v7493, %v7475
        %v7509 = vsel %vm7498, %v7495, %v7477
        %v7510 = vsel %vm7498, %v7497, %v7479
        %s7511 = scalar_lea.vmem [#allocation10], 32
        %v7512 = vld [vmem:[%s7511] sm:$0xf]
        %v7514 = vlaneseq
        %v7515 = vshrl.u32 %v7514, 7
        %v7516 = vsub.s32 0, %v7515
        %v7517 = vrot.slane %v7512, %v7516
        %v7518 = vlaneseq
        %v7519 = vshrl.u32 %v7518, 7
        %v7520 = vsub.s32 1, %v7519
        %v7521 = vrot.slane %v7512, %v7520
        %v7522 = vlaneseq
        %v7523 = vshrl.u32 %v7522, 7
        %v7524 = vsub.s32 2, %v7523
        %v7525 = vrot.slane %v7512, %v7524
        %v7526 = vlaneseq
        %v7527 = vshrl.u32 %v7526, 7
        %v7528 = vsub.s32 3, %v7527
        %v7529 = vrot.slane %v7512, %v7528
        %v7534 = vmul.f32 %v7505, %v7517
        %v7535 = vmul.f32 %v7502, %v7521
        %v7536 = vmul.f32 %v7499, %v7525
        %v7537 = vmul.f32 %v7508, %v7529
        %v7538 = vmul.f32 %v7506, %v7517
        %v7539 = vmul.f32 %v7503, %v7521
        %v7540 = vmul.f32 %v7500, %v7525
        %v7541 = vmul.f32 %v7509, %v7529
        %v7542 = vmul.f32 %v7507, %v7517
        %v7543 = vmul.f32 %v7504, %v7521
        %v7544 = vmul.f32 %v7501, %v7525
        %v7545 = vmul.f32 %v7510, %v7529
        %v7546 = vld [vmem:[%s7] sm:$0xff]
        %v7547 = vld [vmem:[%s7 + $0x8] sm:$0xff]
        %v7548 = vld [vmem:[%s7 + $0x10] sm:$0xff]
        %7550 = vset.pattern.permute.xlu0 0
        %7551 = vperm.xlu0 %7550, %v7546
        %v7552 = vpop.permute.xlu0 %7551
        %7555 = vset.pattern.permute.xlu0 0
        %7556 = vperm.xlu0 %7555, %v7547
        %v7557 = vpop.permute.xlu0 %7556
        %7560 = vset.pattern.permute.xlu0 0
        %7561 = vperm.xlu0 %7560, %v7548
        %v7562 = vpop.permute.xlu0 %7561
        %v7564 = vmul.f32 %v7032, %v7552
        %v7565 = vmul.f32 %v7033, %v7552
        %v7566 = vmul.f32 %v7034, %v7552
        %v7567 = vmul.f32 %v7035, %v7552
        %v7568 = vmul.f32 %v7036, %v7557
        %v7569 = vmul.f32 %v7037, %v7557
        %v7570 = vmul.f32 %v7038, %v7557
        %v7571 = vmul.f32 %v7039, %v7557
        %v7572 = vmul.f32 %v7040, %v7562
        %v7573 = vmul.f32 %v7041, %v7562
        %v7574 = vmul.f32 %v7042, %v7562
        %v7575 = vmul.f32 %v7043, %v7562
        %s7576 = scalar_lea.vmem %s7, 24
        %v7577 = vld [vmem:[%s7576] sm:$0xff]
        %v7578 = vld [vmem:[%s7576 + $0x8] sm:$0xff]
        %v7579 = vld [vmem:[%s7576 + $0x10] sm:$0xff]
        %7581 = vset.pattern.permute.xlu0 0
        %7582 = vperm.xlu0 %7581, %v7577
        %v7583 = vpop.permute.xlu0 %7582
        %7586 = vset.pattern.permute.xlu0 0
        %7587 = vperm.xlu0 %7586, %v7578
        %v7588 = vpop.permute.xlu0 %7587
        %7591 = vset.pattern.permute.xlu0 0
        %7592 = vperm.xlu0 %7591, %v7579
        %v7593 = vpop.permute.xlu0 %7592
        %v7595 = vmul.f32 %v7104, %v7583
        %v7596 = vmul.f32 %v7105, %v7583
        %v7597 = vmul.f32 %v7106, %v7583
        %v7598 = vmul.f32 %v7107, %v7583
        %v7599 = vmul.f32 %v7108, %v7588
        %v7600 = vmul.f32 %v7109, %v7588
        %v7601 = vmul.f32 %v7110, %v7588
        %v7602 = vmul.f32 %v7111, %v7588
        %v7603 = vmul.f32 %v7112, %v7593
        %v7604 = vmul.f32 %v7113, %v7593
        %v7605 = vmul.f32 %v7114, %v7593
        %v7606 = vmul.f32 %v7115, %v7593
        %v7607 = vadd.f32 %v7564, %v7595
        %v7608 = vadd.f32 %v7565, %v7596
        %v7609 = vadd.f32 %v7566, %v7597
        %v7610 = vadd.f32 %v7567, %v7598
        %v7611 = vadd.f32 %v7568, %v7599
        %v7612 = vadd.f32 %v7569, %v7600
        %v7613 = vadd.f32 %v7570, %v7601
        %v7614 = vadd.f32 %v7571, %v7602
        %v7615 = vadd.f32 %v7572, %v7603
        %v7616 = vadd.f32 %v7573, %v7604
        %v7617 = vadd.f32 %v7574, %v7605
        %v7618 = vadd.f32 %v7575, %v7606
        %s7619 = scalar_lea.vmem %s7, 48
        %v7620 = vld [vmem:[%s7619] sm:$0xff]
        %v7621 = vld [vmem:[%s7619 + $0x8] sm:$0xff]
        %v7622 = vld [vmem:[%s7619 + $0x10] sm:$0xff]
        %7624 = vset.pattern.permute.xlu0 0
        %7625 = vperm.xlu0 %7624, %v7620
        %v7626 = vpop.permute.xlu0 %7625
        %7629 = vset.pattern.permute.xlu0 0
        %7630 = vperm.xlu0 %7629, %v7621
        %v7631 = vpop.permute.xlu0 %7630
        %7634 = vset.pattern.permute.xlu0 0
        %7635 = vperm.xlu0 %7634, %v7622
        %v7636 = vpop.permute.xlu0 %7635
        %v7638 = vmul.f32 %v7176, %v7626
        %v7639 = vmul.f32 %v7177, %v7626
        %v7640 = vmul.f32 %v7178, %v7626
        %v7641 = vmul.f32 %v7179, %v7626
        %v7642 = vmul.f32 %v7180, %v7631
        %v7643 = vmul.f32 %v7181, %v7631
        %v7644 = vmul.f32 %v7182, %v7631
        %v7645 = vmul.f32 %v7183, %v7631
        %v7646 = vmul.f32 %v7184, %v7636
        %v7647 = vmul.f32 %v7185, %v7636
        %v7648 = vmul.f32 %v7186, %v7636
        %v7649 = vmul.f32 %v7187, %v7636
        %v7650 = vadd.f32 %v7607, %v7638
        %v7651 = vadd.f32 %v7608, %v7639
        %v7652 = vadd.f32 %v7609, %v7640
        %v7653 = vadd.f32 %v7610, %v7641
        %v7654 = vadd.f32 %v7611, %v7642
        %v7655 = vadd.f32 %v7612, %v7643
        %v7656 = vadd.f32 %v7613, %v7644
        %v7657 = vadd.f32 %v7614, %v7645
        %v7658 = vadd.f32 %v7615, %v7646
        %v7659 = vadd.f32 %v7616, %v7647
        %v7660 = vadd.f32 %v7617, %v7648
        %v7661 = vadd.f32 %v7618, %v7649
        %s7662 = scalar_lea.vmem %s7, 72
        %v7663 = vld [vmem:[%s7662] sm:$0xff]
        %v7664 = vld [vmem:[%s7662 + $0x8] sm:$0xff]
        %v7665 = vld [vmem:[%s7662 + $0x10] sm:$0xff]
        %7667 = vset.pattern.permute.xlu0 0
        %7668 = vperm.xlu0 %7667, %v7663
        %v7669 = vpop.permute.xlu0 %7668
        %7672 = vset.pattern.permute.xlu0 0
        %7673 = vperm.xlu0 %7672, %v7664
        %v7674 = vpop.permute.xlu0 %7673
        %7677 = vset.pattern.permute.xlu0 0
        %7678 = vperm.xlu0 %7677, %v7665
        %v7679 = vpop.permute.xlu0 %7678
        %v7681 = vmul.f32 %v7247, %v7669
        %v7682 = vmul.f32 %v7248, %v7669
        %v7683 = vmul.f32 %v7249, %v7669
        %v7684 = vmul.f32 %v7250, %v7669
        %v7685 = vmul.f32 %v7251, %v7674
        %v7686 = vmul.f32 %v7252, %v7674
        %v7687 = vmul.f32 %v7253, %v7674
        %v7688 = vmul.f32 %v7254, %v7674
        %v7689 = vmul.f32 %v7255, %v7679
        %v7690 = vmul.f32 %v7256, %v7679
        %v7691 = vmul.f32 %v7257, %v7679
        %v7692 = vmul.f32 %v7258, %v7679
        %v7693 = vadd.f32 %v7650, %v7681
        %v7694 = vadd.f32 %v7651, %v7682
        %v7695 = vadd.f32 %v7652, %v7683
        %v7696 = vadd.f32 %v7653, %v7684
        %v7697 = vadd.f32 %v7654, %v7685
        %v7698 = vadd.f32 %v7655, %v7686
        %v7699 = vadd.f32 %v7656, %v7687
        %v7700 = vadd.f32 %v7657, %v7688
        %v7701 = vadd.f32 %v7658, %v7689
        %v7702 = vadd.f32 %v7659, %v7690
        %v7703 = vadd.f32 %v7660, %v7691
        %v7704 = vadd.f32 %v7661, %v7692
        %s7705 = scalar_lea.vmem %s7, 96
        %v7706 = vld [vmem:[%s7705] sm:$0xff]
        %v7707 = vld [vmem:[%s7705 + $0x8] sm:$0xff]
        %v7708 = vld [vmem:[%s7705 + $0x10] sm:$0xff]
        %7710 = vset.pattern.permute.xlu0 0
        %7711 = vperm.xlu0 %7710, %v7706
        %v7712 = vpop.permute.xlu0 %7711
        %7715 = vset.pattern.permute.xlu0 0
        %7716 = vperm.xlu0 %7715, %v7707
        %v7717 = vpop.permute.xlu0 %7716
        %7720 = vset.pattern.permute.xlu0 0
        %7721 = vperm.xlu0 %7720, %v7708
        %v7722 = vpop.permute.xlu0 %7721
        %v7724 = vmul.f32 %v6961, %v7712
        %v7725 = vmul.f32 %v6962, %v7712
        %v7726 = vmul.f32 %v6963, %v7712
        %v7727 = vmul.f32 %v6964, %v7712
        %v7728 = vmul.f32 %v6965, %v7717
        %v7729 = vmul.f32 %v6966, %v7717
        %v7730 = vmul.f32 %v6967, %v7717
        %v7731 = vmul.f32 %v6968, %v7717
        %v7732 = vmul.f32 %v6969, %v7722
        %v7733 = vmul.f32 %v6970, %v7722
        %v7734 = vmul.f32 %v6971, %v7722
        %v7735 = vmul.f32 %v6972, %v7722
        %v7736 = vadd.f32 %v7693, %v7724
        %v7737 = vadd.f32 %v7694, %v7725
        %v7738 = vadd.f32 %v7695, %v7726
        %v7739 = vadd.f32 %v7696, %v7727
        %v7740 = vadd.f32 %v7697, %v7728
        %v7741 = vadd.f32 %v7698, %v7729
        %v7742 = vadd.f32 %v7699, %v7730
        %v7743 = vadd.f32 %v7700, %v7731
        %v7744 = vadd.f32 %v7701, %v7732
        %v7745 = vadd.f32 %v7702, %v7733
        %v7746 = vadd.f32 %v7703, %v7734
        %v7747 = vadd.f32 %v7704, %v7735
        %s7748 = scalar_lea.vmem %s7, 120
        %v7749 = vld [vmem:[%s7748] sm:$0xff]
        %v7750 = vld [vmem:[%s7748 + $0x8] sm:$0xff]
        %v7751 = vld [vmem:[%s7748 + $0x10] sm:$0xff]
        %7753 = vset.pattern.permute.xlu0 0
        %7754 = vperm.xlu0 %7753, %v7749
        %v7755 = vpop.permute.xlu0 %7754
        %7758 = vset.pattern.permute.xlu0 0
        %7759 = vperm.xlu0 %7758, %v7750
        %v7760 = vpop.permute.xlu0 %7759
        %7763 = vset.pattern.permute.xlu0 0
        %7764 = vperm.xlu0 %7763, %v7751
        %v7765 = vpop.permute.xlu0 %7764
        %v7767 = vmul.f32 %v7318, %v7755
        %v7768 = vmul.f32 %v7319, %v7755
        %v7769 = vmul.f32 %v7320, %v7755
        %v7770 = vmul.f32 %v7321, %v7755
        %v7771 = vmul.f32 %v7322, %v7760
        %v7772 = vmul.f32 %v7323, %v7760
        %v7773 = vmul.f32 %v7324, %v7760
        %v7774 = vmul.f32 %v7325, %v7760
        %v7775 = vmul.f32 %v7326, %v7765
        %v7776 = vmul.f32 %v7327, %v7765
        %v7777 = vmul.f32 %v7328, %v7765
        %v7778 = vmul.f32 %v7329, %v7765
        %v7779 = vadd.f32 %v7736, %v7767
        %v7780 = vadd.f32 %v7737, %v7768
        %v7781 = vadd.f32 %v7738, %v7769
        %v7782 = vadd.f32 %v7739, %v7770
        %v7783 = vadd.f32 %v7740, %v7771
        %v7784 = vadd.f32 %v7741, %v7772
        %v7785 = vadd.f32 %v7742, %v7773
        %v7786 = vadd.f32 %v7743, %v7774
        %v7787 = vadd.f32 %v7744, %v7775
        %v7788 = vadd.f32 %v7745, %v7776
        %v7789 = vadd.f32 %v7746, %v7777
        %v7790 = vadd.f32 %v7747, %v7778
        %s7791 = scalar_lea.vmem %s7, 144
        %v7792 = vld [vmem:[%s7791] sm:$0xff]
        %v7793 = vld [vmem:[%s7791 + $0x8] sm:$0xff]
        %v7794 = vld [vmem:[%s7791 + $0x10] sm:$0xff]
        %7796 = vset.pattern.permute.xlu0 0
        %7797 = vperm.xlu0 %7796, %v7792
        %v7798 = vpop.permute.xlu0 %7797
        %7801 = vset.pattern.permute.xlu0 0
        %7802 = vperm.xlu0 %7801, %v7793
        %v7803 = vpop.permute.xlu0 %7802
        %7806 = vset.pattern.permute.xlu0 0
        %7807 = vperm.xlu0 %7806, %v7794
        %v7808 = vpop.permute.xlu0 %7807
        %v7810 = vmul.f32 %v7390, %v7798
        %v7811 = vmul.f32 %v7391, %v7798
        %v7812 = vmul.f32 %v7392, %v7798
        %v7813 = vmul.f32 %v7393, %v7798
        %v7814 = vmul.f32 %v7394, %v7803
        %v7815 = vmul.f32 %v7395, %v7803
        %v7816 = vmul.f32 %v7396, %v7803
        %v7817 = vmul.f32 %v7397, %v7803
        %v7818 = vmul.f32 %v7398, %v7808
        %v7819 = vmul.f32 %v7399, %v7808
        %v7820 = vmul.f32 %v7400, %v7808
        %v7821 = vmul.f32 %v7401, %v7808
        %v7822 = vadd.f32 %v7779, %v7810
        %v7823 = vadd.f32 %v7780, %v7811
        %v7824 = vadd.f32 %v7781, %v7812
        %v7825 = vadd.f32 %v7782, %v7813
        %v7826 = vadd.f32 %v7783, %v7814
        %v7827 = vadd.f32 %v7784, %v7815
        %v7828 = vadd.f32 %v7785, %v7816
        %v7829 = vadd.f32 %v7786, %v7817
        %v7830 = vadd.f32 %v7787, %v7818
        %v7831 = vadd.f32 %v7788, %v7819
        %v7832 = vadd.f32 %v7789, %v7820
        %v7833 = vadd.f32 %v7790, %v7821
        %s7834 = scalar_lea.vmem %s7, 168
        %v7835 = vld [vmem:[%s7834] sm:$0xff]
        %v7836 = vld [vmem:[%s7834 + $0x8] sm:$0xff]
        %v7837 = vld [vmem:[%s7834 + $0x10] sm:$0xff]
        %7839 = vset.pattern.permute.xlu0 0
        %7840 = vperm.xlu0 %7839, %v7835
        %v7841 = vpop.permute.xlu0 %7840
        %7844 = vset.pattern.permute.xlu0 0
        %7845 = vperm.xlu0 %7844, %v7836
        %v7846 = vpop.permute.xlu0 %7845
        %7849 = vset.pattern.permute.xlu0 0
        %7850 = vperm.xlu0 %7849, %v7837
        %v7851 = vpop.permute.xlu0 %7850
        %v7853 = vmul.f32 %v7462, %v7841
        %v7854 = vmul.f32 %v7463, %v7841
        %v7855 = vmul.f32 %v7464, %v7841
        %v7856 = vmul.f32 %v7465, %v7841
        %v7857 = vmul.f32 %v7466, %v7846
        %v7858 = vmul.f32 %v7467, %v7846
        %v7859 = vmul.f32 %v7468, %v7846
        %v7860 = vmul.f32 %v7469, %v7846
        %v7861 = vmul.f32 %v7470, %v7851
        %v7862 = vmul.f32 %v7471, %v7851
        %v7863 = vmul.f32 %v7472, %v7851
        %v7864 = vmul.f32 %v7473, %v7851
        %v7865 = vadd.f32 %v7822, %v7853
        %v7866 = vadd.f32 %v7823, %v7854
        %v7867 = vadd.f32 %v7824, %v7855
        %v7868 = vadd.f32 %v7825, %v7856
        %v7869 = vadd.f32 %v7826, %v7857
        %v7870 = vadd.f32 %v7827, %v7858
        %v7871 = vadd.f32 %v7828, %v7859
        %v7872 = vadd.f32 %v7829, %v7860
        %v7873 = vadd.f32 %v7830, %v7861
        %v7874 = vadd.f32 %v7831, %v7862
        %v7875 = vadd.f32 %v7832, %v7863
        %v7876 = vadd.f32 %v7833, %v7864
        %s7877 = scalar_lea.vmem %s7, 192
        %v7878 = vld [vmem:[%s7877] sm:$0xff]
        %v7879 = vld [vmem:[%s7877 + $0x8] sm:$0xff]
        %v7880 = vld [vmem:[%s7877 + $0x10] sm:$0xff]
        %7882 = vset.pattern.permute.xlu0 0
        %7883 = vperm.xlu0 %7882, %v7878
        %v7884 = vpop.permute.xlu0 %7883
        %7887 = vset.pattern.permute.xlu0 0
        %7888 = vperm.xlu0 %7887, %v7879
        %v7889 = vpop.permute.xlu0 %7888
        %7892 = vset.pattern.permute.xlu0 0
        %7893 = vperm.xlu0 %7892, %v7880
        %v7894 = vpop.permute.xlu0 %7893
        %v7896 = vmul.f32 %v7534, %v7884
        %v7897 = vmul.f32 %v7535, %v7884
        %v7898 = vmul.f32 %v7536, %v7884
        %v7899 = vmul.f32 %v7537, %v7884
        %v7900 = vmul.f32 %v7538, %v7889
        %v7901 = vmul.f32 %v7539, %v7889
        %v7902 = vmul.f32 %v7540, %v7889
        %v7903 = vmul.f32 %v7541, %v7889
        %v7904 = vmul.f32 %v7542, %v7894
        %v7905 = vmul.f32 %v7543, %v7894
        %v7906 = vmul.f32 %v7544, %v7894
        %v7907 = vmul.f32 %v7545, %v7894
        %v7908 = vadd.f32 %v7865, %v7896
        %v7909 = vadd.f32 %v7866, %v7897
        %v7910 = vadd.f32 %v7867, %v7898
        %v7911 = vadd.f32 %v7868, %v7899
        %v7912 = vadd.f32 %v7869, %v7900
        %v7913 = vadd.f32 %v7870, %v7901
        %v7914 = vadd.f32 %v7871, %v7902
        %v7915 = vadd.f32 %v7872, %v7903
        %v7916 = vadd.f32 %v7873, %v7904
        %v7917 = vadd.f32 %v7874, %v7905
        %v7918 = vadd.f32 %v7875, %v7906
        %v7919 = vadd.f32 %v7876, %v7907
        %v7920 = vld [vmem:[%s8] sm:$0xff]
        %v7921 = vld [vmem:[%s8 + $0x8] sm:$0xff]
        %v7922 = vld [vmem:[%s8 + $0x10] sm:$0xff]
        %7924 = vset.pattern.permute.xlu0 0
        %7925 = vperm.xlu0 %7924, %v7920
        %v7926 = vpop.permute.xlu0 %7925
        %7929 = vset.pattern.permute.xlu0 0
        %7930 = vperm.xlu0 %7929, %v7921
        %v7931 = vpop.permute.xlu0 %7930
        %7934 = vset.pattern.permute.xlu0 0
        %7935 = vperm.xlu0 %7934, %v7922
        %v7936 = vpop.permute.xlu0 %7935
        %v7938 = vadd.f32 %v7908, %v7926
        %v7939 = vadd.f32 %v7909, %v7926
        %v7940 = vadd.f32 %v7910, %v7926
        %v7941 = vadd.f32 %v7911, %v7926
        %v7942 = vadd.f32 %v7912, %v7931
        %v7943 = vadd.f32 %v7913, %v7931
        %v7944 = vadd.f32 %v7914, %v7931
        %v7945 = vadd.f32 %v7915, %v7931
        %v7946 = vadd.f32 %v7916, %v7936
        %v7947 = vadd.f32 %v7917, %v7936
        %v7948 = vadd.f32 %v7918, %v7936
        %v7949 = vadd.f32 %v7919, %v7936
        %v7950 = vmax.f32 %v7938, 0.0
        %v7951 = vmax.f32 %v7939, 0.0
        %v7952 = vmax.f32 %v7940, 0.0
        %v7953 = vmax.f32 %v7941, 0.0
        %v7954 = vmax.f32 %v7942, 0.0
        %v7955 = vmax.f32 %v7943, 0.0
        %v7956 = vmax.f32 %v7944, 0.0
        %v7957 = vmax.f32 %v7945, 0.0
        %v7958 = vmax.f32 %v7946, 0.0
        %v7959 = vmax.f32 %v7947, 0.0
        %v7960 = vmax.f32 %v7948, 0.0
        %v7961 = vmax.f32 %v7949, 0.0
        %v7962 = vld [vmem:[#allocation11] sm:$0xf]
        %v7963 = vpack.c.bf16 %v7954, %v7950
        %v7964 = vpack.c.bf16 %v7955, %v7951
        %v7965 = vpack.c.bf16 %v7956, %v7952
        %v7966 = vpack.c.bf16 %v7957, %v7953
        %v7967 = vpack.c.bf16 %v7958, %v7958
        %v7968 = vpack.c.bf16 %v7959, %v7959
        %v7969 = vpack.c.bf16 %v7960, %v7960
        %v7970 = vpack.c.bf16 %v7961, %v7961
        %v7971 = vld [vmem:[%s11] sm:$0xff]
        %7973 = vset.pattern.permute.xlu0 0
        %7974 = vperm.xlu0 %7973, %v7971
        %v7975 = vpop.permute.xlu0 %7974
        %vm7977 = vcmask 195584
        %v7979 = vsel %vm7977, %v7962, 0
        %v7982 = vsel %vm2570, %v7967, 0
        %v7985 = vsel %vm2570, %v7968, 0
        %v7988 = vsel %vm2570, %v7969, 0
        %v7991 = vsel %vm2570, %v7970, 0
        %7993 = vmatprep.subr.bf16.mxu0 0
        %7994 = vmatpush1.bf16.msra.mxu0 0
        %7995 = vmatprep.subr.bf16.mxu0 0
        %7996 = vmatpush1.bf16.msra.mxu0 0
        %7997 = vmatprep.subr.bf16.mxu0 0
        %7998 = vmatpush1.bf16.msra.mxu0 0
        %7999 = vmatprep.subr.bf16.mxu0 0
        %8000 = vmatpush1.bf16.msra.mxu0 0
        %8001 = vmatprep.subr.bf16.mxu0 0
        %8002 = vmatpush1.bf16.msra.mxu0 0
        %8003 = vmatprep.subr.bf16.mxu0 0
        %8004 = vmatpush1.bf16.msra.mxu0 0
        %8005 = vmatprep.subr.bf16.mxu0 %v7985
        %8006 = vmatpush1.bf16.msra.mxu0 %v7982
        %8007 = vmatprep.subr.bf16.mxu0 %v7964
        %8008 = vmatpush1.bf16.msra.mxu0 %v7963
        %8009 = vmatprep.subr.bf16.mxu0 0
        %8010 = vmatpush2.bf16.msra.mxu0 0
        %8011 = vmatprep.subr.bf16.mxu0 0
        %8012 = vmatpush2.bf16.msra.mxu0 0
        %8013 = vmatprep.subr.bf16.mxu0 0
        %8014 = vmatpush2.bf16.msra.mxu0 0
        %8015 = vmatprep.subr.bf16.mxu0 0
        %8016 = vmatpush2.bf16.msra.mxu0 0
        %8017 = vmatprep.subr.bf16.mxu0 0
        %8018 = vmatpush2.bf16.msra.mxu0 0
        %8019 = vmatprep.subr.bf16.mxu0 0
        %8020 = vmatpush2.bf16.msra.mxu0 0
        %8021 = vmatprep.subr.bf16.mxu0 0
        %8022 = vmatpush2.bf16.msra.mxu0 0
        %8023 = vmatprep.subr.bf16.mxu0 0
        %8024 = vmatpush2.bf16.msra.mxu0 0
        %8025 = vmatprep.mubr.bf16.mxu0 0
        %8026 = vmatmul.mubr.bf16.gmra.mxu0 %v7979
        %v8027 = vpop.f32.mrf.mxu0
        %v8028 = vadd.f32 %v7975, %v8027
        %v8029 = vpop.f32.mrf.mxu0
        %v8030 = vadd.f32 %v7975, %v8029
        %v8031 = vpop.f32.mrf.mxu0
        %v8032 = vpop.f32.mrf.mxu0
        %8033 = vdwg.mxu0
        %8034 = vmatprep.subr.bf16.mxu0 0
        %8035 = vmatpush1.bf16.msra.mxu0 0
        %8036 = vmatprep.subr.bf16.mxu0 0
        %8037 = vmatpush1.bf16.msra.mxu0 0
        %8038 = vmatprep.subr.bf16.mxu0 0
        %8039 = vmatpush1.bf16.msra.mxu0 0
        %8040 = vmatprep.subr.bf16.mxu0 0
        %8041 = vmatpush1.bf16.msra.mxu0 0
        %8042 = vmatprep.subr.bf16.mxu0 0
        %8043 = vmatpush1.bf16.msra.mxu0 0
        %8044 = vmatprep.subr.bf16.mxu0 0
        %8045 = vmatpush1.bf16.msra.mxu0 0
        %8046 = vmatprep.subr.bf16.mxu0 %v7991
        %8047 = vmatpush1.bf16.msra.mxu0 %v7988
        %8048 = vmatprep.subr.bf16.mxu0 %v7966
        %8049 = vmatpush1.bf16.msra.mxu0 %v7965
        %8050 = vmatprep.subr.bf16.mxu0 0
        %8051 = vmatpush2.bf16.msra.mxu0 0
        %8052 = vmatprep.subr.bf16.mxu0 0
        %8053 = vmatpush2.bf16.msra.mxu0 0
        %8054 = vmatprep.subr.bf16.mxu0 0
        %8055 = vmatpush2.bf16.msra.mxu0 0
        %8056 = vmatprep.subr.bf16.mxu0 0
        %8057 = vmatpush2.bf16.msra.mxu0 0
        %8058 = vmatprep.subr.bf16.mxu0 0
        %8059 = vmatpush2.bf16.msra.mxu0 0
        %8060 = vmatprep.subr.bf16.mxu0 0
        %8061 = vmatpush2.bf16.msra.mxu0 0
        %8062 = vmatprep.subr.bf16.mxu0 0
        %8063 = vmatpush2.bf16.msra.mxu0 0
        %8064 = vmatprep.subr.bf16.mxu0 0
        %8065 = vmatpush2.bf16.msra.mxu0 0
        %8066 = vmatprep.mubr.bf16.mxu0 0
        %8067 = vmatmul.mubr.bf16.gmra.mxu0 %v7979
        %v8068 = vpop.f32.mrf.mxu0
        %v8069 = vadd.f32 %v7975, %v8068
        %v8070 = vpop.f32.mrf.mxu0
        %v8071 = vadd.f32 %v7975, %v8070
        %v8072 = vpop.f32.mrf.mxu0
        %v8073 = vpop.f32.mrf.mxu0
        %8074 = vdwg.mxu0
        %v8075 = vadd.f32 %v8028, %v6803
        %v8076 = vadd.f32 %v8030, %v6804
        %v8077 = vadd.f32 %v8069, %v6805
        %v8078 = vadd.f32 %v8071, %v6806
        %v8079 = vpack.c.bf16 %v8075, %v8075
        %v8080 = vpack.c.bf16 %v8076, %v8076
        %v8081 = vpack.c.bf16 %v8077, %v8077
        %v8082 = vpack.c.bf16 %v8078, %v8078
        %v8083 = vld [vmem:[%s12] sm:$0xf]
        %v8084 = vld [vmem:[%s12 + $0x4] sm:$0xf]
        %v8085 = vld [vmem:[%s12 + $0x8] sm:$0xf]
        %v8086 = vld [vmem:[%s13] sm:$0xff]
        %v8087 = vld [vmem:[%s13 + $0x8] sm:$0xff]
        %v8088 = vld [vmem:[%s13 + $0x10] sm:$0xff]
        %8090 = vset.pattern.permute.xlu0 0
        %8091 = vperm.xlu0 %8090, %v8086
        %v8092 = vpop.permute.xlu0 %8091
        %8095 = vset.pattern.permute.xlu0 0
        %8096 = vperm.xlu0 %8095, %v8087
        %v8097 = vpop.permute.xlu0 %8096
        %8100 = vset.pattern.permute.xlu0 0
        %8101 = vperm.xlu0 %8100, %v8088
        %v8102 = vpop.permute.xlu0 %8101
        %v8107 = vunpack.c.l.b16 %v8083
        %v8108 = vunpack.c.l.b16 %v8084
        %v8109 = vunpack.c.l.b16 %v8085
        %v8110 = vpack.c.b16 %v8108, %v8107
        %v8111 = vpack.c.b16 %v8109, %v8109
        %v8113 = vsel %vm6840, %v8110, 0
        %v8116 = vsel %vm6840, %v8111, 0
        %v8119 = vsel %vm2570, %v8079, 0
        %v8122 = vsel %vm2570, %v8080, 0
        %v8125 = vsel %vm2570, %v8081, 0
        %v8128 = vsel %vm2570, %v8082, 0
        %8130 = vmatprep.subr.bf16.mxu0 0
        %8131 = vmatpush1.bf16.msra.mxu0 0
        %8132 = vmatprep.subr.bf16.mxu0 0
        %8133 = vmatpush1.bf16.msra.mxu0 0
        %8134 = vmatprep.subr.bf16.mxu0 0
        %8135 = vmatpush1.bf16.msra.mxu0 0
        %8136 = vmatprep.subr.bf16.mxu0 0
        %8137 = vmatpush1.bf16.msra.mxu0 0
        %8138 = vmatprep.subr.bf16.mxu0 0
        %8139 = vmatpush1.bf16.msra.mxu0 0
        %8140 = vmatprep.subr.bf16.mxu0 0
        %8141 = vmatpush1.bf16.msra.mxu0 0
        %8142 = vmatprep.subr.bf16.mxu0 0
        %8143 = vmatpush1.bf16.msra.mxu0 0
        %8144 = vmatprep.subr.bf16.mxu0 %v8122
        %8145 = vmatpush1.bf16.msra.mxu0 %v8119
        %8146 = vmatprep.subr.bf16.mxu0 0
        %8147 = vmatpush2.bf16.msra.mxu0 0
        %8148 = vmatprep.subr.bf16.mxu0 0
        %8149 = vmatpush2.bf16.msra.mxu0 0
        %8150 = vmatprep.subr.bf16.mxu0 0
        %8151 = vmatpush2.bf16.msra.mxu0 0
        %8152 = vmatprep.subr.bf16.mxu0 0
        %8153 = vmatpush2.bf16.msra.mxu0 0
        %8154 = vmatprep.subr.bf16.mxu0 0
        %8155 = vmatpush2.bf16.msra.mxu0 0
        %8156 = vmatprep.subr.bf16.mxu0 0
        %8157 = vmatpush2.bf16.msra.mxu0 0
        %8158 = vmatprep.subr.bf16.mxu0 0
        %8159 = vmatpush2.bf16.msra.mxu0 0
        %8160 = vmatprep.subr.bf16.mxu0 0
        %8161 = vmatpush2.bf16.msra.mxu0 0
        %8162 = vmatprep.mubr.bf16.mxu0 0
        %8163 = vmatmul.mubr.bf16.gmra.mxu0 %v8113
        %v8164 = vpop.f32.mrf.mxu0
        %v8165 = vadd.f32 %v8092, %v8164
        %v8166 = vpop.f32.mrf.mxu0
        %v8167 = vadd.f32 %v8092, %v8166
        %v8168 = vpop.f32.mrf.mxu0
        %v8169 = vadd.f32 %v8097, %v8168
        %v8170 = vpop.f32.mrf.mxu0
        %v8171 = vadd.f32 %v8097, %v8170
        %8172 = vmatprep.mubr.bf16.mxu0 0
        %8173 = vmatmul.mubr.bf16.gmra.mxu0 %v8116
        %v8174 = vpop.f32.mrf.mxu0
        %v8175 = vadd.f32 %v8102, %v8174
        %v8176 = vpop.f32.mrf.mxu0
        %v8177 = vadd.f32 %v8102, %v8176
        %v8178 = vpop.f32.mrf.mxu0
        %v8179 = vpop.f32.mrf.mxu0
        %8180 = vdwg.mxu0
        %8181 = vmatprep.subr.bf16.mxu0 0
        %8182 = vmatpush1.bf16.msra.mxu0 0
        %8183 = vmatprep.subr.bf16.mxu0 0
        %8184 = vmatpush1.bf16.msra.mxu0 0
        %8185 = vmatprep.subr.bf16.mxu0 0
        %8186 = vmatpush1.bf16.msra.mxu0 0
        %8187 = vmatprep.subr.bf16.mxu0 0
        %8188 = vmatpush1.bf16.msra.mxu0 0
        %8189 = vmatprep.subr.bf16.mxu0 0
        %8190 = vmatpush1.bf16.msra.mxu0 0
        %8191 = vmatprep.subr.bf16.mxu0 0
        %8192 = vmatpush1.bf16.msra.mxu0 0
        %8193 = vmatprep.subr.bf16.mxu0 0
        %8194 = vmatpush1.bf16.msra.mxu0 0
        %8195 = vmatprep.subr.bf16.mxu0 %v8128
        %8196 = vmatpush1.bf16.msra.mxu0 %v8125
        %8197 = vmatprep.subr.bf16.mxu0 0
        %8198 = vmatpush2.bf16.msra.mxu0 0
        %8199 = vmatprep.subr.bf16.mxu0 0
        %8200 = vmatpush2.bf16.msra.mxu0 0
        %8201 = vmatprep.subr.bf16.mxu0 0
        %8202 = vmatpush2.bf16.msra.mxu0 0
        %8203 = vmatprep.subr.bf16.mxu0 0
        %8204 = vmatpush2.bf16.msra.mxu0 0
        %8205 = vmatprep.subr.bf16.mxu0 0
        %8206 = vmatpush2.bf16.msra.mxu0 0
        %8207 = vmatprep.subr.bf16.mxu0 0
        %8208 = vmatpush2.bf16.msra.mxu0 0
        %8209 = vmatprep.subr.bf16.mxu0 0
        %8210 = vmatpush2.bf16.msra.mxu0 0
        %8211 = vmatprep.subr.bf16.mxu0 0
        %8212 = vmatpush2.bf16.msra.mxu0 0
        %8213 = vmatprep.mubr.bf16.mxu0 0
        %8214 = vmatmul.mubr.bf16.gmra.mxu0 %v8113
        %v8215 = vpop.f32.mrf.mxu0
        %v8216 = vadd.f32 %v8092, %v8215
        %v8217 = vpop.f32.mrf.mxu0
        %v8218 = vadd.f32 %v8092, %v8217
        %v8219 = vpop.f32.mrf.mxu0
        %v8220 = vadd.f32 %v8097, %v8219
        %v8221 = vpop.f32.mrf.mxu0
        %v8222 = vadd.f32 %v8097, %v8221
        %8223 = vmatprep.mubr.bf16.mxu0 0
        %8224 = vmatmul.mubr.bf16.gmra.mxu0 %v8116
        %v8225 = vpop.f32.mrf.mxu0
        %v8226 = vadd.f32 %v8102, %v8225
        %v8227 = vpop.f32.mrf.mxu0
        %v8228 = vadd.f32 %v8102, %v8227
        %v8229 = vpop.f32.mrf.mxu0
        %v8230 = vpop.f32.mrf.mxu0
        %8231 = vdwg.mxu0
        %v8232 = vmax.f32 %v8165, 0.0
        %v8233 = vmax.f32 %v8167, 0.0
        %v8234 = vmax.f32 %v8216, 0.0
        %v8235 = vmax.f32 %v8218, 0.0
        %v8236 = vmax.f32 %v8169, 0.0
        %v8237 = vmax.f32 %v8171, 0.0
        %v8238 = vmax.f32 %v8220, 0.0
        %v8239 = vmax.f32 %v8222, 0.0
        %v8240 = vmax.f32 %v8175, 0.0
        %v8241 = vmax.f32 %v8177, 0.0
        %v8242 = vmax.f32 %v8226, 0.0
        %v8243 = vmax.f32 %v8228, 0.0
        %8244 = vrot.lane.b32.xlu0 %v8232, 9
        %v8245 = vpop.permute.xlu0 %8244
        %8246 = vrot.lane.b32.xlu0 %v8236, 9
        %v8247 = vpop.permute.xlu0 %8246
        %8248 = vrot.lane.b32.xlu0 %v8240, 9
        %v8249 = vpop.permute.xlu0 %8248
        %8250 = vrot.lane.b32.xlu0 %v8233, 9
        %v8251 = vpop.permute.xlu0 %8250
        %8252 = vrot.lane.b32.xlu0 %v8237, 9
        %v8253 = vpop.permute.xlu0 %8252
        %8254 = vrot.lane.b32.xlu0 %v8241, 9
        %v8255 = vpop.permute.xlu0 %8254
        %8256 = vrot.lane.b32.xlu0 %v8234, 9
        %v8257 = vpop.permute.xlu0 %8256
        %8258 = vrot.lane.b32.xlu0 %v8238, 9
        %v8259 = vpop.permute.xlu0 %8258
        %8260 = vrot.lane.b32.xlu0 %v8242, 9
        %v8261 = vpop.permute.xlu0 %8260
        %8262 = vrot.lane.b32.xlu0 %v8235, 9
        %v8263 = vpop.permute.xlu0 %8262
        %8264 = vrot.lane.b32.xlu0 %v8239, 9
        %v8265 = vpop.permute.xlu0 %8264
        %8266 = vrot.lane.b32.xlu0 %v8243, 9
        %v8267 = vpop.permute.xlu0 %8266
        %v8268 = vsel %vm6997, %v8257, %v8263
        %v8269 = vsel %vm6997, %v8259, %v8265
        %v8270 = vsel %vm6997, %v8261, %v8267
        %v8271 = vsel %vm6997, %v8251, %v8257
        %v8272 = vsel %vm6997, %v8253, %v8259
        %v8273 = vsel %vm6997, %v8255, %v8261
        %v8274 = vsel %vm6997, %v8245, %v8251
        %v8275 = vsel %vm6997, %v8247, %v8253
        %v8276 = vsel %vm6997, %v8249, %v8255
        %v8277 = vsel %vm6997, %v8263, %v8245
        %v8278 = vsel %vm6997, %v8265, %v8247
        %v8279 = vsel %vm6997, %v8267, %v8249
        %v8280 = vld [vmem:[#allocation13] sm:$0xf]
        %v8282 = vlaneseq
        %v8283 = vshrl.u32 %v8282, 7
        %v8284 = vsub.s32 0, %v8283
        %v8285 = vrot.slane %v8280, %v8284
        %v8286 = vlaneseq
        %v8287 = vshrl.u32 %v8286, 7
        %v8288 = vsub.s32 1, %v8287
        %v8289 = vrot.slane %v8280, %v8288
        %v8290 = vlaneseq
        %v8291 = vshrl.u32 %v8290, 7
        %v8292 = vsub.s32 2, %v8291
        %v8293 = vrot.slane %v8280, %v8292
        %v8294 = vlaneseq
        %v8295 = vshrl.u32 %v8294, 7
        %v8296 = vsub.s32 3, %v8295
        %v8297 = vrot.slane %v8280, %v8296
        %v8302 = vmul.f32 %v8277, %v8285
        %v8303 = vmul.f32 %v8274, %v8289
        %v8304 = vmul.f32 %v8271, %v8293
        %v8305 = vmul.f32 %v8268, %v8297
        %v8306 = vmul.f32 %v8278, %v8285
        %v8307 = vmul.f32 %v8275, %v8289
        %v8308 = vmul.f32 %v8272, %v8293
        %v8309 = vmul.f32 %v8269, %v8297
        %v8310 = vmul.f32 %v8279, %v8285
        %v8311 = vmul.f32 %v8276, %v8289
        %v8312 = vmul.f32 %v8273, %v8293
        %v8313 = vmul.f32 %v8270, %v8297
        %8314 = vrot.lane.b32.xlu0 %v8232, 8
        %v8315 = vpop.permute.xlu0 %8314
        %8316 = vrot.lane.b32.xlu0 %v8236, 8
        %v8317 = vpop.permute.xlu0 %8316
        %8318 = vrot.lane.b32.xlu0 %v8240, 8
        %v8319 = vpop.permute.xlu0 %8318
        %8320 = vrot.lane.b32.xlu0 %v8233, 8
        %v8321 = vpop.permute.xlu0 %8320
        %8322 = vrot.lane.b32.xlu0 %v8237, 8
        %v8323 = vpop.permute.xlu0 %8322
        %8324 = vrot.lane.b32.xlu0 %v8241, 8
        %v8325 = vpop.permute.xlu0 %8324
        %8326 = vrot.lane.b32.xlu0 %v8234, 8
        %v8327 = vpop.permute.xlu0 %8326
        %8328 = vrot.lane.b32.xlu0 %v8238, 8
        %v8329 = vpop.permute.xlu0 %8328
        %8330 = vrot.lane.b32.xlu0 %v8242, 8
        %v8331 = vpop.permute.xlu0 %8330
        %8332 = vrot.lane.b32.xlu0 %v8235, 8
        %v8333 = vpop.permute.xlu0 %8332
        %8334 = vrot.lane.b32.xlu0 %v8239, 8
        %v8335 = vpop.permute.xlu0 %8334
        %8336 = vrot.lane.b32.xlu0 %v8243, 8
        %v8337 = vpop.permute.xlu0 %8336
        %v8338 = vsel %vm7068, %v8327, %v8333
        %v8339 = vsel %vm7068, %v8329, %v8335
        %v8340 = vsel %vm7068, %v8331, %v8337
        %v8341 = vsel %vm7068, %v8321, %v8327
        %v8342 = vsel %vm7068, %v8323, %v8329
        %v8343 = vsel %vm7068, %v8325, %v8331
        %v8344 = vsel %vm7068, %v8315, %v8321
        %v8345 = vsel %vm7068, %v8317, %v8323
        %v8346 = vsel %vm7068, %v8319, %v8325
        %v8347 = vsel %vm7068, %v8333, %v8315
        %v8348 = vsel %vm7068, %v8335, %v8317
        %v8349 = vsel %vm7068, %v8337, %v8319
        %s8350 = scalar_lea.vmem [#allocation13], 4
        %v8351 = vld [vmem:[%s8350] sm:$0xf]
        %v8353 = vlaneseq
        %v8354 = vshrl.u32 %v8353, 7
        %v8355 = vsub.s32 0, %v8354
        %v8356 = vrot.slane %v8351, %v8355
        %v8357 = vlaneseq
        %v8358 = vshrl.u32 %v8357, 7
        %v8359 = vsub.s32 1, %v8358
        %v8360 = vrot.slane %v8351, %v8359
        %v8361 = vlaneseq
        %v8362 = vshrl.u32 %v8361, 7
        %v8363 = vsub.s32 2, %v8362
        %v8364 = vrot.slane %v8351, %v8363
        %v8365 = vlaneseq
        %v8366 = vshrl.u32 %v8365, 7
        %v8367 = vsub.s32 3, %v8366
        %v8368 = vrot.slane %v8351, %v8367
        %v8373 = vmul.f32 %v8347, %v8356
        %v8374 = vmul.f32 %v8344, %v8360
        %v8375 = vmul.f32 %v8341, %v8364
        %v8376 = vmul.f32 %v8338, %v8368
        %v8377 = vmul.f32 %v8348, %v8356
        %v8378 = vmul.f32 %v8345, %v8360
        %v8379 = vmul.f32 %v8342, %v8364
        %v8380 = vmul.f32 %v8339, %v8368
        %v8381 = vmul.f32 %v8349, %v8356
        %v8382 = vmul.f32 %v8346, %v8360
        %v8383 = vmul.f32 %v8343, %v8364
        %v8384 = vmul.f32 %v8340, %v8368
        %8385 = vrot.lane.b32.xlu0 %v8232, 7
        %v8386 = vpop.permute.xlu0 %8385
        %8387 = vrot.lane.b32.xlu0 %v8236, 7
        %v8388 = vpop.permute.xlu0 %8387
        %8389 = vrot.lane.b32.xlu0 %v8240, 7
        %v8390 = vpop.permute.xlu0 %8389
        %8391 = vrot.lane.b32.xlu0 %v8233, 7
        %v8392 = vpop.permute.xlu0 %8391
        %8393 = vrot.lane.b32.xlu0 %v8237, 7
        %v8394 = vpop.permute.xlu0 %8393
        %8395 = vrot.lane.b32.xlu0 %v8241, 7
        %v8396 = vpop.permute.xlu0 %8395
        %8397 = vrot.lane.b32.xlu0 %v8234, 7
        %v8398 = vpop.permute.xlu0 %8397
        %8399 = vrot.lane.b32.xlu0 %v8238, 7
        %v8400 = vpop.permute.xlu0 %8399
        %8401 = vrot.lane.b32.xlu0 %v8242, 7
        %v8402 = vpop.permute.xlu0 %8401
        %8403 = vrot.lane.b32.xlu0 %v8235, 7
        %v8404 = vpop.permute.xlu0 %8403
        %8405 = vrot.lane.b32.xlu0 %v8239, 7
        %v8406 = vpop.permute.xlu0 %8405
        %8407 = vrot.lane.b32.xlu0 %v8243, 7
        %v8408 = vpop.permute.xlu0 %8407
        %v8409 = vsel %vm7140, %v8398, %v8404
        %v8410 = vsel %vm7140, %v8400, %v8406
        %v8411 = vsel %vm7140, %v8402, %v8408
        %v8412 = vsel %vm7140, %v8392, %v8398
        %v8413 = vsel %vm7140, %v8394, %v8400
        %v8414 = vsel %vm7140, %v8396, %v8402
        %v8415 = vsel %vm7140, %v8386, %v8392
        %v8416 = vsel %vm7140, %v8388, %v8394
        %v8417 = vsel %vm7140, %v8390, %v8396
        %v8418 = vsel %vm7140, %v8404, %v8386
        %v8419 = vsel %vm7140, %v8406, %v8388
        %v8420 = vsel %vm7140, %v8408, %v8390
        %s8421 = scalar_lea.vmem [#allocation13], 8
        %v8422 = vld [vmem:[%s8421] sm:$0xf]
        %v8424 = vlaneseq
        %v8425 = vshrl.u32 %v8424, 7
        %v8426 = vsub.s32 0, %v8425
        %v8427 = vrot.slane %v8422, %v8426
        %v8428 = vlaneseq
        %v8429 = vshrl.u32 %v8428, 7
        %v8430 = vsub.s32 1, %v8429
        %v8431 = vrot.slane %v8422, %v8430
        %v8432 = vlaneseq
        %v8433 = vshrl.u32 %v8432, 7
        %v8434 = vsub.s32 2, %v8433
        %v8435 = vrot.slane %v8422, %v8434
        %v8436 = vlaneseq
        %v8437 = vshrl.u32 %v8436, 7
        %v8438 = vsub.s32 3, %v8437
        %v8439 = vrot.slane %v8422, %v8438
        %v8444 = vmul.f32 %v8418, %v8427
        %v8445 = vmul.f32 %v8415, %v8431
        %v8446 = vmul.f32 %v8412, %v8435
        %v8447 = vmul.f32 %v8409, %v8439
        %v8448 = vmul.f32 %v8419, %v8427
        %v8449 = vmul.f32 %v8416, %v8431
        %v8450 = vmul.f32 %v8413, %v8435
        %v8451 = vmul.f32 %v8410, %v8439
        %v8452 = vmul.f32 %v8420, %v8427
        %v8453 = vmul.f32 %v8417, %v8431
        %v8454 = vmul.f32 %v8414, %v8435
        %v8455 = vmul.f32 %v8411, %v8439
        %8456 = vrot.lane.b32.xlu0 %v8232, 1
        %v8457 = vpop.permute.xlu0 %8456
        %8458 = vrot.lane.b32.xlu0 %v8236, 1
        %v8459 = vpop.permute.xlu0 %8458
        %8460 = vrot.lane.b32.xlu0 %v8240, 1
        %v8461 = vpop.permute.xlu0 %8460
        %8462 = vrot.lane.b32.xlu0 %v8233, 1
        %v8463 = vpop.permute.xlu0 %8462
        %8464 = vrot.lane.b32.xlu0 %v8237, 1
        %v8465 = vpop.permute.xlu0 %8464
        %8466 = vrot.lane.b32.xlu0 %v8241, 1
        %v8467 = vpop.permute.xlu0 %8466
        %8468 = vrot.lane.b32.xlu0 %v8234, 1
        %v8469 = vpop.permute.xlu0 %8468
        %8470 = vrot.lane.b32.xlu0 %v8238, 1
        %v8471 = vpop.permute.xlu0 %8470
        %8472 = vrot.lane.b32.xlu0 %v8242, 1
        %v8473 = vpop.permute.xlu0 %8472
        %8474 = vrot.lane.b32.xlu0 %v8235, 1
        %v8475 = vpop.permute.xlu0 %8474
        %8476 = vrot.lane.b32.xlu0 %v8239, 1
        %v8477 = vpop.permute.xlu0 %8476
        %8478 = vrot.lane.b32.xlu0 %v8243, 1
        %v8479 = vpop.permute.xlu0 %8478
        %v8480 = vsel %vm1497, %v8469, %v8475
        %v8481 = vsel %vm1497, %v8471, %v8477
        %v8482 = vsel %vm1497, %v8473, %v8479
        %v8483 = vsel %vm1497, %v8463, %v8469
        %v8484 = vsel %vm1497, %v8465, %v8471
        %v8485 = vsel %vm1497, %v8467, %v8473
        %v8486 = vsel %vm1497, %v8457, %v8463
        %v8487 = vsel %vm1497, %v8459, %v8465
        %v8488 = vsel %vm1497, %v8461, %v8467
        %v8489 = vsel %vm1497, %v8475, %v8457
        %v8490 = vsel %vm1497, %v8477, %v8459
        %v8491 = vsel %vm1497, %v8479, %v8461
        %s8492 = scalar_lea.vmem [#allocation13], 12
        %v8493 = vld [vmem:[%s8492] sm:$0xf]
        %v8495 = vlaneseq
        %v8496 = vshrl.u32 %v8495, 7
        %v8497 = vsub.s32 0, %v8496
        %v8498 = vrot.slane %v8493, %v8497
        %v8499 = vlaneseq
        %v8500 = vshrl.u32 %v8499, 7
        %v8501 = vsub.s32 1, %v8500
        %v8502 = vrot.slane %v8493, %v8501
        %v8503 = vlaneseq
        %v8504 = vshrl.u32 %v8503, 7
        %v8505 = vsub.s32 2, %v8504
        %v8506 = vrot.slane %v8493, %v8505
        %v8507 = vlaneseq
        %v8508 = vshrl.u32 %v8507, 7
        %v8509 = vsub.s32 3, %v8508
        %v8510 = vrot.slane %v8493, %v8509
        %v8515 = vmul.f32 %v8489, %v8498
        %v8516 = vmul.f32 %v8486, %v8502
        %v8517 = vmul.f32 %v8483, %v8506
        %v8518 = vmul.f32 %v8480, %v8510
        %v8519 = vmul.f32 %v8490, %v8498
        %v8520 = vmul.f32 %v8487, %v8502
        %v8521 = vmul.f32 %v8484, %v8506
        %v8522 = vmul.f32 %v8481, %v8510
        %v8523 = vmul.f32 %v8491, %v8498
        %v8524 = vmul.f32 %v8488, %v8502
        %v8525 = vmul.f32 %v8485, %v8506
        %v8526 = vmul.f32 %v8482, %v8510
        %8527 = vrot.lane.b32.xlu0 %v8232, 127
        %v8528 = vpop.permute.xlu0 %8527
        %8529 = vrot.lane.b32.xlu0 %v8236, 127
        %v8530 = vpop.permute.xlu0 %8529
        %8531 = vrot.lane.b32.xlu0 %v8240, 127
        %v8532 = vpop.permute.xlu0 %8531
        %8533 = vrot.lane.b32.xlu0 %v8233, 127
        %v8534 = vpop.permute.xlu0 %8533
        %8535 = vrot.lane.b32.xlu0 %v8237, 127
        %v8536 = vpop.permute.xlu0 %8535
        %8537 = vrot.lane.b32.xlu0 %v8241, 127
        %v8538 = vpop.permute.xlu0 %8537
        %8539 = vrot.lane.b32.xlu0 %v8234, 127
        %v8540 = vpop.permute.xlu0 %8539
        %8541 = vrot.lane.b32.xlu0 %v8238, 127
        %v8542 = vpop.permute.xlu0 %8541
        %8543 = vrot.lane.b32.xlu0 %v8242, 127
        %v8544 = vpop.permute.xlu0 %8543
        %8545 = vrot.lane.b32.xlu0 %v8235, 127
        %v8546 = vpop.permute.xlu0 %8545
        %8547 = vrot.lane.b32.xlu0 %v8239, 127
        %v8548 = vpop.permute.xlu0 %8547
        %8549 = vrot.lane.b32.xlu0 %v8243, 127
        %v8550 = vpop.permute.xlu0 %8549
        %v8551 = vsel %vm1647, %v8540, %v8546
        %v8552 = vsel %vm1647, %v8542, %v8548
        %v8553 = vsel %vm1647, %v8544, %v8550
        %v8554 = vsel %vm1647, %v8534, %v8540
        %v8555 = vsel %vm1647, %v8536, %v8542
        %v8556 = vsel %vm1647, %v8538, %v8544
        %v8557 = vsel %vm1647, %v8528, %v8534
        %v8558 = vsel %vm1647, %v8530, %v8536
        %v8559 = vsel %vm1647, %v8532, %v8538
        %v8560 = vsel %vm1647, %v8546, %v8528
        %v8561 = vsel %vm1647, %v8548, %v8530
        %v8562 = vsel %vm1647, %v8550, %v8532
        %s8563 = scalar_lea.vmem [#allocation13], 20
        %v8564 = vld [vmem:[%s8563] sm:$0xf]
        %v8566 = vlaneseq
        %v8567 = vshrl.u32 %v8566, 7
        %v8568 = vsub.s32 0, %v8567
        %v8569 = vrot.slane %v8564, %v8568
        %v8570 = vlaneseq
        %v8571 = vshrl.u32 %v8570, 7
        %v8572 = vsub.s32 1, %v8571
        %v8573 = vrot.slane %v8564, %v8572
        %v8574 = vlaneseq
        %v8575 = vshrl.u32 %v8574, 7
        %v8576 = vsub.s32 2, %v8575
        %v8577 = vrot.slane %v8564, %v8576
        %v8578 = vlaneseq
        %v8579 = vshrl.u32 %v8578, 7
        %v8580 = vsub.s32 3, %v8579
        %v8581 = vrot.slane %v8564, %v8580
        %v8586 = vmul.f32 %v8557, %v8569
        %v8587 = vmul.f32 %v8554, %v8573
        %v8588 = vmul.f32 %v8551, %v8577
        %v8589 = vmul.f32 %v8560, %v8581
        %v8590 = vmul.f32 %v8558, %v8569
        %v8591 = vmul.f32 %v8555, %v8573
        %v8592 = vmul.f32 %v8552, %v8577
        %v8593 = vmul.f32 %v8561, %v8581
        %v8594 = vmul.f32 %v8559, %v8569
        %v8595 = vmul.f32 %v8556, %v8573
        %v8596 = vmul.f32 %v8553, %v8577
        %v8597 = vmul.f32 %v8562, %v8581
        %8598 = vrot.lane.b32.xlu0 %v8232, 121
        %v8599 = vpop.permute.xlu0 %8598
        %8600 = vrot.lane.b32.xlu0 %v8236, 121
        %v8601 = vpop.permute.xlu0 %8600
        %8602 = vrot.lane.b32.xlu0 %v8240, 121
        %v8603 = vpop.permute.xlu0 %8602
        %8604 = vrot.lane.b32.xlu0 %v8233, 121
        %v8605 = vpop.permute.xlu0 %8604
        %8606 = vrot.lane.b32.xlu0 %v8237, 121
        %v8607 = vpop.permute.xlu0 %8606
        %8608 = vrot.lane.b32.xlu0 %v8241, 121
        %v8609 = vpop.permute.xlu0 %8608
        %8610 = vrot.lane.b32.xlu0 %v8234, 121
        %v8611 = vpop.permute.xlu0 %8610
        %8612 = vrot.lane.b32.xlu0 %v8238, 121
        %v8613 = vpop.permute.xlu0 %8612
        %8614 = vrot.lane.b32.xlu0 %v8242, 121
        %v8615 = vpop.permute.xlu0 %8614
        %8616 = vrot.lane.b32.xlu0 %v8235, 121
        %v8617 = vpop.permute.xlu0 %8616
        %8618 = vrot.lane.b32.xlu0 %v8239, 121
        %v8619 = vpop.permute.xlu0 %8618
        %8620 = vrot.lane.b32.xlu0 %v8243, 121
        %v8621 = vpop.permute.xlu0 %8620
        %v8622 = vsel %vm7354, %v8611, %v8617
        %v8623 = vsel %vm7354, %v8613, %v8619
        %v8624 = vsel %vm7354, %v8615, %v8621
        %v8625 = vsel %vm7354, %v8605, %v8611
        %v8626 = vsel %vm7354, %v8607, %v8613
        %v8627 = vsel %vm7354, %v8609, %v8615
        %v8628 = vsel %vm7354, %v8599, %v8605
        %v8629 = vsel %vm7354, %v8601, %v8607
        %v8630 = vsel %vm7354, %v8603, %v8609
        %v8631 = vsel %vm7354, %v8617, %v8599
        %v8632 = vsel %vm7354, %v8619, %v8601
        %v8633 = vsel %vm7354, %v8621, %v8603
        %s8634 = scalar_lea.vmem [#allocation13], 24
        %v8635 = vld [vmem:[%s8634] sm:$0xf]
        %v8637 = vlaneseq
        %v8638 = vshrl.u32 %v8637, 7
        %v8639 = vsub.s32 0, %v8638
        %v8640 = vrot.slane %v8635, %v8639
        %v8641 = vlaneseq
        %v8642 = vshrl.u32 %v8641, 7
        %v8643 = vsub.s32 1, %v8642
        %v8644 = vrot.slane %v8635, %v8643
        %v8645 = vlaneseq
        %v8646 = vshrl.u32 %v8645, 7
        %v8647 = vsub.s32 2, %v8646
        %v8648 = vrot.slane %v8635, %v8647
        %v8649 = vlaneseq
        %v8650 = vshrl.u32 %v8649, 7
        %v8651 = vsub.s32 3, %v8650
        %v8652 = vrot.slane %v8635, %v8651
        %v8657 = vmul.f32 %v8628, %v8640
        %v8658 = vmul.f32 %v8625, %v8644
        %v8659 = vmul.f32 %v8622, %v8648
        %v8660 = vmul.f32 %v8631, %v8652
        %v8661 = vmul.f32 %v8629, %v8640
        %v8662 = vmul.f32 %v8626, %v8644
        %v8663 = vmul.f32 %v8623, %v8648
        %v8664 = vmul.f32 %v8632, %v8652
        %v8665 = vmul.f32 %v8630, %v8640
        %v8666 = vmul.f32 %v8627, %v8644
        %v8667 = vmul.f32 %v8624, %v8648
        %v8668 = vmul.f32 %v8633, %v8652
        %8669 = vrot.lane.b32.xlu0 %v8232, 120
        %v8670 = vpop.permute.xlu0 %8669
        %8671 = vrot.lane.b32.xlu0 %v8236, 120
        %v8672 = vpop.permute.xlu0 %8671
        %8673 = vrot.lane.b32.xlu0 %v8240, 120
        %v8674 = vpop.permute.xlu0 %8673
        %8675 = vrot.lane.b32.xlu0 %v8233, 120
        %v8676 = vpop.permute.xlu0 %8675
        %8677 = vrot.lane.b32.xlu0 %v8237, 120
        %v8678 = vpop.permute.xlu0 %8677
        %8679 = vrot.lane.b32.xlu0 %v8241, 120
        %v8680 = vpop.permute.xlu0 %8679
        %8681 = vrot.lane.b32.xlu0 %v8234, 120
        %v8682 = vpop.permute.xlu0 %8681
        %8683 = vrot.lane.b32.xlu0 %v8238, 120
        %v8684 = vpop.permute.xlu0 %8683
        %8685 = vrot.lane.b32.xlu0 %v8242, 120
        %v8686 = vpop.permute.xlu0 %8685
        %8687 = vrot.lane.b32.xlu0 %v8235, 120
        %v8688 = vpop.permute.xlu0 %8687
        %8689 = vrot.lane.b32.xlu0 %v8239, 120
        %v8690 = vpop.permute.xlu0 %8689
        %8691 = vrot.lane.b32.xlu0 %v8243, 120
        %v8692 = vpop.permute.xlu0 %8691
        %v8693 = vsel %vm7426, %v8682, %v8688
        %v8694 = vsel %vm7426, %v8684, %v8690
        %v8695 = vsel %vm7426, %v8686, %v8692
        %v8696 = vsel %vm7426, %v8676, %v8682
        %v8697 = vsel %vm7426, %v8678, %v8684
        %v8698 = vsel %vm7426, %v8680, %v8686
        %v8699 = vsel %vm7426, %v8670, %v8676
        %v8700 = vsel %vm7426, %v8672, %v8678
        %v8701 = vsel %vm7426, %v8674, %v8680
        %v8702 = vsel %vm7426, %v8688, %v8670
        %v8703 = vsel %vm7426, %v8690, %v8672
        %v8704 = vsel %vm7426, %v8692, %v8674
        %s8705 = scalar_lea.vmem [#allocation13], 28
        %v8706 = vld [vmem:[%s8705] sm:$0xf]
        %v8708 = vlaneseq
        %v8709 = vshrl.u32 %v8708, 7
        %v8710 = vsub.s32 0, %v8709
        %v8711 = vrot.slane %v8706, %v8710
        %v8712 = vlaneseq
        %v8713 = vshrl.u32 %v8712, 7
        %v8714 = vsub.s32 1, %v8713
        %v8715 = vrot.slane %v8706, %v8714
        %v8716 = vlaneseq
        %v8717 = vshrl.u32 %v8716, 7
        %v8718 = vsub.s32 2, %v8717
        %v8719 = vrot.slane %v8706, %v8718
        %v8720 = vlaneseq
        %v8721 = vshrl.u32 %v8720, 7
        %v8722 = vsub.s32 3, %v8721
        %v8723 = vrot.slane %v8706, %v8722
        %v8728 = vmul.f32 %v8699, %v8711
        %v8729 = vmul.f32 %v8696, %v8715
        %v8730 = vmul.f32 %v8693, %v8719
        %v8731 = vmul.f32 %v8702, %v8723
        %v8732 = vmul.f32 %v8700, %v8711
        %v8733 = vmul.f32 %v8697, %v8715
        %v8734 = vmul.f32 %v8694, %v8719
        %v8735 = vmul.f32 %v8703, %v8723
        %v8736 = vmul.f32 %v8701, %v8711
        %v8737 = vmul.f32 %v8698, %v8715
        %v8738 = vmul.f32 %v8695, %v8719
        %v8739 = vmul.f32 %v8704, %v8723
        %8740 = vrot.lane.b32.xlu0 %v8232, 119
        %v8741 = vpop.permute.xlu0 %8740
        %8742 = vrot.lane.b32.xlu0 %v8236, 119
        %v8743 = vpop.permute.xlu0 %8742
        %8744 = vrot.lane.b32.xlu0 %v8240, 119
        %v8745 = vpop.permute.xlu0 %8744
        %8746 = vrot.lane.b32.xlu0 %v8233, 119
        %v8747 = vpop.permute.xlu0 %8746
        %8748 = vrot.lane.b32.xlu0 %v8237, 119
        %v8749 = vpop.permute.xlu0 %8748
        %8750 = vrot.lane.b32.xlu0 %v8241, 119
        %v8751 = vpop.permute.xlu0 %8750
        %8752 = vrot.lane.b32.xlu0 %v8234, 119
        %v8753 = vpop.permute.xlu0 %8752
        %8754 = vrot.lane.b32.xlu0 %v8238, 119
        %v8755 = vpop.permute.xlu0 %8754
        %8756 = vrot.lane.b32.xlu0 %v8242, 119
        %v8757 = vpop.permute.xlu0 %8756
        %8758 = vrot.lane.b32.xlu0 %v8235, 119
        %v8759 = vpop.permute.xlu0 %8758
        %8760 = vrot.lane.b32.xlu0 %v8239, 119
        %v8761 = vpop.permute.xlu0 %8760
        %8762 = vrot.lane.b32.xlu0 %v8243, 119
        %v8763 = vpop.permute.xlu0 %8762
        %v8764 = vsel %vm7498, %v8753, %v8759
        %v8765 = vsel %vm7498, %v8755, %v8761
        %v8766 = vsel %vm7498, %v8757, %v8763
        %v8767 = vsel %vm7498, %v8747, %v8753
        %v8768 = vsel %vm7498, %v8749, %v8755
        %v8769 = vsel %vm7498, %v8751, %v8757
        %v8770 = vsel %vm7498, %v8741, %v8747
        %v8771 = vsel %vm7498, %v8743, %v8749
        %v8772 = vsel %vm7498, %v8745, %v8751
        %v8773 = vsel %vm7498, %v8759, %v8741
        %v8774 = vsel %vm7498, %v8761, %v8743
        %v8775 = vsel %vm7498, %v8763, %v8745
        %s8776 = scalar_lea.vmem [#allocation13], 32
        %v8777 = vld [vmem:[%s8776] sm:$0xf]
        %v8779 = vlaneseq
        %v8780 = vshrl.u32 %v8779, 7
        %v8781 = vsub.s32 0, %v8780
        %v8782 = vrot.slane %v8777, %v8781
        %v8783 = vlaneseq
        %v8784 = vshrl.u32 %v8783, 7
        %v8785 = vsub.s32 1, %v8784
        %v8786 = vrot.slane %v8777, %v8785
        %v8787 = vlaneseq
        %v8788 = vshrl.u32 %v8787, 7
        %v8789 = vsub.s32 2, %v8788
        %v8790 = vrot.slane %v8777, %v8789
        %v8791 = vlaneseq
        %v8792 = vshrl.u32 %v8791, 7
        %v8793 = vsub.s32 3, %v8792
        %v8794 = vrot.slane %v8777, %v8793
        %v8799 = vmul.f32 %v8770, %v8782
        %v8800 = vmul.f32 %v8767, %v8786
        %v8801 = vmul.f32 %v8764, %v8790
        %v8802 = vmul.f32 %v8773, %v8794
        %v8803 = vmul.f32 %v8771, %v8782
        %v8804 = vmul.f32 %v8768, %v8786
        %v8805 = vmul.f32 %v8765, %v8790
        %v8806 = vmul.f32 %v8774, %v8794
        %v8807 = vmul.f32 %v8772, %v8782
        %v8808 = vmul.f32 %v8769, %v8786
        %v8809 = vmul.f32 %v8766, %v8790
        %v8810 = vmul.f32 %v8775, %v8794
        %v8811 = vld [vmem:[%s14] sm:$0xff]
        %v8812 = vld [vmem:[%s14 + $0x8] sm:$0xff]
        %v8813 = vld [vmem:[%s14 + $0x10] sm:$0xff]
        %8815 = vset.pattern.permute.xlu0 0
        %8816 = vperm.xlu0 %8815, %v8811
        %v8817 = vpop.permute.xlu0 %8816
        %8820 = vset.pattern.permute.xlu0 0
        %8821 = vperm.xlu0 %8820, %v8812
        %v8822 = vpop.permute.xlu0 %8821
        %8825 = vset.pattern.permute.xlu0 0
        %8826 = vperm.xlu0 %8825, %v8813
        %v8827 = vpop.permute.xlu0 %8826
        %v8829 = vmul.f32 %v8302, %v8817
        %v8830 = vmul.f32 %v8303, %v8817
        %v8831 = vmul.f32 %v8304, %v8817
        %v8832 = vmul.f32 %v8305, %v8817
        %v8833 = vmul.f32 %v8306, %v8822
        %v8834 = vmul.f32 %v8307, %v8822
        %v8835 = vmul.f32 %v8308, %v8822
        %v8836 = vmul.f32 %v8309, %v8822
        %v8837 = vmul.f32 %v8310, %v8827
        %v8838 = vmul.f32 %v8311, %v8827
        %v8839 = vmul.f32 %v8312, %v8827
        %v8840 = vmul.f32 %v8313, %v8827
        %s8841 = scalar_lea.vmem %s14, 24
        %v8842 = vld [vmem:[%s8841] sm:$0xff]
        %v8843 = vld [vmem:[%s8841 + $0x8] sm:$0xff]
        %v8844 = vld [vmem:[%s8841 + $0x10] sm:$0xff]
        %8846 = vset.pattern.permute.xlu0 0
        %8847 = vperm.xlu0 %8846, %v8842
        %v8848 = vpop.permute.xlu0 %8847
        %8851 = vset.pattern.permute.xlu0 0
        %8852 = vperm.xlu0 %8851, %v8843
        %v8853 = vpop.permute.xlu0 %8852
        %8856 = vset.pattern.permute.xlu0 0
        %8857 = vperm.xlu0 %8856, %v8844
        %v8858 = vpop.permute.xlu0 %8857
        %v8860 = vmul.f32 %v8373, %v8848
        %v8861 = vmul.f32 %v8374, %v8848
        %v8862 = vmul.f32 %v8375, %v8848
        %v8863 = vmul.f32 %v8376, %v8848
        %v8864 = vmul.f32 %v8377, %v8853
        %v8865 = vmul.f32 %v8378, %v8853
        %v8866 = vmul.f32 %v8379, %v8853
        %v8867 = vmul.f32 %v8380, %v8853
        %v8868 = vmul.f32 %v8381, %v8858
        %v8869 = vmul.f32 %v8382, %v8858
        %v8870 = vmul.f32 %v8383, %v8858
        %v8871 = vmul.f32 %v8384, %v8858
        %v8872 = vadd.f32 %v8829, %v8860
        %v8873 = vadd.f32 %v8830, %v8861
        %v8874 = vadd.f32 %v8831, %v8862
        %v8875 = vadd.f32 %v8832, %v8863
        %v8876 = vadd.f32 %v8833, %v8864
        %v8877 = vadd.f32 %v8834, %v8865
        %v8878 = vadd.f32 %v8835, %v8866
        %v8879 = vadd.f32 %v8836, %v8867
        %v8880 = vadd.f32 %v8837, %v8868
        %v8881 = vadd.f32 %v8838, %v8869
        %v8882 = vadd.f32 %v8839, %v8870
        %v8883 = vadd.f32 %v8840, %v8871
        %s8884 = scalar_lea.vmem %s14, 48
        %v8885 = vld [vmem:[%s8884] sm:$0xff]
        %v8886 = vld [vmem:[%s8884 + $0x8] sm:$0xff]
        %v8887 = vld [vmem:[%s8884 + $0x10] sm:$0xff]
        %8889 = vset.pattern.permute.xlu0 0
        %8890 = vperm.xlu0 %8889, %v8885
        %v8891 = vpop.permute.xlu0 %8890
        %8894 = vset.pattern.permute.xlu0 0
        %8895 = vperm.xlu0 %8894, %v8886
        %v8896 = vpop.permute.xlu0 %8895
        %8899 = vset.pattern.permute.xlu0 0
        %8900 = vperm.xlu0 %8899, %v8887
        %v8901 = vpop.permute.xlu0 %8900
        %v8903 = vmul.f32 %v8444, %v8891
        %v8904 = vmul.f32 %v8445, %v8891
        %v8905 = vmul.f32 %v8446, %v8891
        %v8906 = vmul.f32 %v8447, %v8891
        %v8907 = vmul.f32 %v8448, %v8896
        %v8908 = vmul.f32 %v8449, %v8896
        %v8909 = vmul.f32 %v8450, %v8896
        %v8910 = vmul.f32 %v8451, %v8896
        %v8911 = vmul.f32 %v8452, %v8901
        %v8912 = vmul.f32 %v8453, %v8901
        %v8913 = vmul.f32 %v8454, %v8901
        %v8914 = vmul.f32 %v8455, %v8901
        %v8915 = vadd.f32 %v8872, %v8903
        %v8916 = vadd.f32 %v8873, %v8904
        %v8917 = vadd.f32 %v8874, %v8905
        %v8918 = vadd.f32 %v8875, %v8906
        %v8919 = vadd.f32 %v8876, %v8907
        %v8920 = vadd.f32 %v8877, %v8908
        %v8921 = vadd.f32 %v8878, %v8909
        %v8922 = vadd.f32 %v8879, %v8910
        %v8923 = vadd.f32 %v8880, %v8911
        %v8924 = vadd.f32 %v8881, %v8912
        %v8925 = vadd.f32 %v8882, %v8913
        %v8926 = vadd.f32 %v8883, %v8914
        %s8927 = scalar_lea.vmem %s14, 72
        %v8928 = vld [vmem:[%s8927] sm:$0xff]
        %v8929 = vld [vmem:[%s8927 + $0x8] sm:$0xff]
        %v8930 = vld [vmem:[%s8927 + $0x10] sm:$0xff]
        %8932 = vset.pattern.permute.xlu0 0
        %8933 = vperm.xlu0 %8932, %v8928
        %v8934 = vpop.permute.xlu0 %8933
        %8937 = vset.pattern.permute.xlu0 0
        %8938 = vperm.xlu0 %8937, %v8929
        %v8939 = vpop.permute.xlu0 %8938
        %8942 = vset.pattern.permute.xlu0 0
        %8943 = vperm.xlu0 %8942, %v8930
        %v8944 = vpop.permute.xlu0 %8943
        %v8946 = vmul.f32 %v8515, %v8934
        %v8947 = vmul.f32 %v8516, %v8934
        %v8948 = vmul.f32 %v8517, %v8934
        %v8949 = vmul.f32 %v8518, %v8934
        %v8950 = vmul.f32 %v8519, %v8939
        %v8951 = vmul.f32 %v8520, %v8939
        %v8952 = vmul.f32 %v8521, %v8939
        %v8953 = vmul.f32 %v8522, %v8939
        %v8954 = vmul.f32 %v8523, %v8944
        %v8955 = vmul.f32 %v8524, %v8944
        %v8956 = vmul.f32 %v8525, %v8944
        %v8957 = vmul.f32 %v8526, %v8944
        %v8958 = vadd.f32 %v8915, %v8946
        %v8959 = vadd.f32 %v8916, %v8947
        %v8960 = vadd.f32 %v8917, %v8948
        %v8961 = vadd.f32 %v8918, %v8949
        %v8962 = vadd.f32 %v8919, %v8950
        %v8963 = vadd.f32 %v8920, %v8951
        %v8964 = vadd.f32 %v8921, %v8952
        %v8965 = vadd.f32 %v8922, %v8953
        %v8966 = vadd.f32 %v8923, %v8954
        %v8967 = vadd.f32 %v8924, %v8955
        %v8968 = vadd.f32 %v8925, %v8956
        %v8969 = vadd.f32 %v8926, %v8957
        %s8970 = scalar_lea.vmem %s14, 96
        %v8971 = vld [vmem:[%s8970] sm:$0xff]
        %v8972 = vld [vmem:[%s8970 + $0x8] sm:$0xff]
        %v8973 = vld [vmem:[%s8970 + $0x10] sm:$0xff]
        %8975 = vset.pattern.permute.xlu0 0
        %8976 = vperm.xlu0 %8975, %v8971
        %v8977 = vpop.permute.xlu0 %8976
        %8980 = vset.pattern.permute.xlu0 0
        %8981 = vperm.xlu0 %8980, %v8972
        %v8982 = vpop.permute.xlu0 %8981
        %8985 = vset.pattern.permute.xlu0 0
        %8986 = vperm.xlu0 %8985, %v8973
        %v8987 = vpop.permute.xlu0 %8986
        %v8989 = vmul.f32 %v8232, %v8977
        %v8990 = vmul.f32 %v8233, %v8977
        %v8991 = vmul.f32 %v8234, %v8977
        %v8992 = vmul.f32 %v8235, %v8977
        %v8993 = vmul.f32 %v8236, %v8982
        %v8994 = vmul.f32 %v8237, %v8982
        %v8995 = vmul.f32 %v8238, %v8982
        %v8996 = vmul.f32 %v8239, %v8982
        %v8997 = vmul.f32 %v8240, %v8987
        %v8998 = vmul.f32 %v8241, %v8987
        %v8999 = vmul.f32 %v8242, %v8987
        %v9000 = vmul.f32 %v8243, %v8987
        %v9001 = vadd.f32 %v8958, %v8989
        %v9002 = vadd.f32 %v8959, %v8990
        %v9003 = vadd.f32 %v8960, %v8991
        %v9004 = vadd.f32 %v8961, %v8992
        %v9005 = vadd.f32 %v8962, %v8993
        %v9006 = vadd.f32 %v8963, %v8994
        %v9007 = vadd.f32 %v8964, %v8995
        %v9008 = vadd.f32 %v8965, %v8996
        %v9009 = vadd.f32 %v8966, %v8997
        %v9010 = vadd.f32 %v8967, %v8998
        %v9011 = vadd.f32 %v8968, %v8999
        %v9012 = vadd.f32 %v8969, %v9000
        %s9013 = scalar_lea.vmem %s14, 120
        %v9014 = vld [vmem:[%s9013] sm:$0xff]
        %v9015 = vld [vmem:[%s9013 + $0x8] sm:$0xff]
        %v9016 = vld [vmem:[%s9013 + $0x10] sm:$0xff]
        %9018 = vset.pattern.permute.xlu0 0
        %9019 = vperm.xlu0 %9018, %v9014
        %v9020 = vpop.permute.xlu0 %9019
        %9023 = vset.pattern.permute.xlu0 0
        %9024 = vperm.xlu0 %9023, %v9015
        %v9025 = vpop.permute.xlu0 %9024
        %9028 = vset.pattern.permute.xlu0 0
        %9029 = vperm.xlu0 %9028, %v9016
        %v9030 = vpop.permute.xlu0 %9029
        %v9032 = vmul.f32 %v8586, %v9020
        %v9033 = vmul.f32 %v8587, %v9020
        %v9034 = vmul.f32 %v8588, %v9020
        %v9035 = vmul.f32 %v8589, %v9020
        %v9036 = vmul.f32 %v8590, %v9025
        %v9037 = vmul.f32 %v8591, %v9025
        %v9038 = vmul.f32 %v8592, %v9025
        %v9039 = vmul.f32 %v8593, %v9025
        %v9040 = vmul.f32 %v8594, %v9030
        %v9041 = vmul.f32 %v8595, %v9030
        %v9042 = vmul.f32 %v8596, %v9030
        %v9043 = vmul.f32 %v8597, %v9030
        %v9044 = vadd.f32 %v9001, %v9032
        %v9045 = vadd.f32 %v9002, %v9033
        %v9046 = vadd.f32 %v9003, %v9034
        %v9047 = vadd.f32 %v9004, %v9035
        %v9048 = vadd.f32 %v9005, %v9036
        %v9049 = vadd.f32 %v9006, %v9037
        %v9050 = vadd.f32 %v9007, %v9038
        %v9051 = vadd.f32 %v9008, %v9039
        %v9052 = vadd.f32 %v9009, %v9040
        %v9053 = vadd.f32 %v9010, %v9041
        %v9054 = vadd.f32 %v9011, %v9042
        %v9055 = vadd.f32 %v9012, %v9043
        %s9056 = scalar_lea.vmem %s14, 144
        %v9057 = vld [vmem:[%s9056] sm:$0xff]
        %v9058 = vld [vmem:[%s9056 + $0x8] sm:$0xff]
        %v9059 = vld [vmem:[%s9056 + $0x10] sm:$0xff]
        %9061 = vset.pattern.permute.xlu0 0
        %9062 = vperm.xlu0 %9061, %v9057
        %v9063 = vpop.permute.xlu0 %9062
        %9066 = vset.pattern.permute.xlu0 0
        %9067 = vperm.xlu0 %9066, %v9058
        %v9068 = vpop.permute.xlu0 %9067
        %9071 = vset.pattern.permute.xlu0 0
        %9072 = vperm.xlu0 %9071, %v9059
        %v9073 = vpop.permute.xlu0 %9072
        %v9075 = vmul.f32 %v8657, %v9063
        %v9076 = vmul.f32 %v8658, %v9063
        %v9077 = vmul.f32 %v8659, %v9063
        %v9078 = vmul.f32 %v8660, %v9063
        %v9079 = vmul.f32 %v8661, %v9068
        %v9080 = vmul.f32 %v8662, %v9068
        %v9081 = vmul.f32 %v8663, %v9068
        %v9082 = vmul.f32 %v8664, %v9068
        %v9083 = vmul.f32 %v8665, %v9073
        %v9084 = vmul.f32 %v8666, %v9073
        %v9085 = vmul.f32 %v8667, %v9073
        %v9086 = vmul.f32 %v8668, %v9073
        %v9087 = vadd.f32 %v9044, %v9075
        %v9088 = vadd.f32 %v9045, %v9076
        %v9089 = vadd.f32 %v9046, %v9077
        %v9090 = vadd.f32 %v9047, %v9078
        %v9091 = vadd.f32 %v9048, %v9079
        %v9092 = vadd.f32 %v9049, %v9080
        %v9093 = vadd.f32 %v9050, %v9081
        %v9094 = vadd.f32 %v9051, %v9082
        %v9095 = vadd.f32 %v9052, %v9083
        %v9096 = vadd.f32 %v9053, %v9084
        %v9097 = vadd.f32 %v9054, %v9085
        %v9098 = vadd.f32 %v9055, %v9086
        %s9099 = scalar_lea.vmem %s14, 168
        %v9100 = vld [vmem:[%s9099] sm:$0xff]
        %v9101 = vld [vmem:[%s9099 + $0x8] sm:$0xff]
        %v9102 = vld [vmem:[%s9099 + $0x10] sm:$0xff]
        %9104 = vset.pattern.permute.xlu0 0
        %9105 = vperm.xlu0 %9104, %v9100
        %v9106 = vpop.permute.xlu0 %9105
        %9109 = vset.pattern.permute.xlu0 0
        %9110 = vperm.xlu0 %9109, %v9101
        %v9111 = vpop.permute.xlu0 %9110
        %9114 = vset.pattern.permute.xlu0 0
        %9115 = vperm.xlu0 %9114, %v9102
        %v9116 = vpop.permute.xlu0 %9115
        %v9118 = vmul.f32 %v8728, %v9106
        %v9119 = vmul.f32 %v8729, %v9106
        %v9120 = vmul.f32 %v8730, %v9106
        %v9121 = vmul.f32 %v8731, %v9106
        %v9122 = vmul.f32 %v8732, %v9111
        %v9123 = vmul.f32 %v8733, %v9111
        %v9124 = vmul.f32 %v8734, %v9111
        %v9125 = vmul.f32 %v8735, %v9111
        %v9126 = vmul.f32 %v8736, %v9116
        %v9127 = vmul.f32 %v8737, %v9116
        %v9128 = vmul.f32 %v8738, %v9116
        %v9129 = vmul.f32 %v8739, %v9116
        %v9130 = vadd.f32 %v9087, %v9118
        %v9131 = vadd.f32 %v9088, %v9119
        %v9132 = vadd.f32 %v9089, %v9120
        %v9133 = vadd.f32 %v9090, %v9121
        %v9134 = vadd.f32 %v9091, %v9122
        %v9135 = vadd.f32 %v9092, %v9123
        %v9136 = vadd.f32 %v9093, %v9124
        %v9137 = vadd.f32 %v9094, %v9125
        %v9138 = vadd.f32 %v9095, %v9126
        %v9139 = vadd.f32 %v9096, %v9127
        %v9140 = vadd.f32 %v9097, %v9128
        %v9141 = vadd.f32 %v9098, %v9129
        %s9142 = scalar_lea.vmem %s14, 192
        %v9143 = vld [vmem:[%s9142] sm:$0xff]
        %v9144 = vld [vmem:[%s9142 + $0x8] sm:$0xff]
        %v9145 = vld [vmem:[%s9142 + $0x10] sm:$0xff]
        %9147 = vset.pattern.permute.xlu0 0
        %9148 = vperm.xlu0 %9147, %v9143
        %v9149 = vpop.permute.xlu0 %9148
        %9152 = vset.pattern.permute.xlu0 0
        %9153 = vperm.xlu0 %9152, %v9144
        %v9154 = vpop.permute.xlu0 %9153
        %9157 = vset.pattern.permute.xlu0 0
        %9158 = vperm.xlu0 %9157, %v9145
        %v9159 = vpop.permute.xlu0 %9158
        %v9161 = vmul.f32 %v8799, %v9149
        %v9162 = vmul.f32 %v8800, %v9149
        %v9163 = vmul.f32 %v8801, %v9149
        %v9164 = vmul.f32 %v8802, %v9149
        %v9165 = vmul.f32 %v8803, %v9154
        %v9166 = vmul.f32 %v8804, %v9154
        %v9167 = vmul.f32 %v8805, %v9154
        %v9168 = vmul.f32 %v8806, %v9154
        %v9169 = vmul.f32 %v8807, %v9159
        %v9170 = vmul.f32 %v8808, %v9159
        %v9171 = vmul.f32 %v8809, %v9159
        %v9172 = vmul.f32 %v8810, %v9159
        %v9173 = vadd.f32 %v9130, %v9161
        %v9174 = vadd.f32 %v9131, %v9162
        %v9175 = vadd.f32 %v9132, %v9163
        %v9176 = vadd.f32 %v9133, %v9164
        %v9177 = vadd.f32 %v9134, %v9165
        %v9178 = vadd.f32 %v9135, %v9166
        %v9179 = vadd.f32 %v9136, %v9167
        %v9180 = vadd.f32 %v9137, %v9168
        %v9181 = vadd.f32 %v9138, %v9169
        %v9182 = vadd.f32 %v9139, %v9170
        %v9183 = vadd.f32 %v9140, %v9171
        %v9184 = vadd.f32 %v9141, %v9172
        %v9185 = vpack.c.bf16 %v9177, %v9173
        %v9186 = vpack.c.bf16 %v9178, %v9174
        %v9187 = vpack.c.bf16 %v9179, %v9175
        %v9188 = vpack.c.bf16 %v9180, %v9176
        %v9189 = vpack.c.bf16 %v9181, %v9181
        %v9190 = vpack.c.bf16 %v9182, %v9182
        %v9191 = vpack.c.bf16 %v9183, %v9183
        %v9192 = vpack.c.bf16 %v9184, %v9184
        %v9193 = vld [vmem:[#allocation14] sm:$0xf]
        %v9194 = vld [vmem:[#allocation14 + $0x4] sm:$0xf]
        %v9195 = vld [vmem:[#allocation14 + $0x8] sm:$0xf]
        %v9196 = vld [vmem:[#allocation14 + $0xc] sm:$0xf]
        %v9197 = vld [vmem:[#allocation14 + $0x10] sm:$0xf]
        %v9198 = vld [vmem:[#allocation14 + $0x14] sm:$0xf]
        %v9199 = vld [vmem:[#allocation14 + $0x18] sm:$0xf]
        %v9200 = vld [vmem:[#allocation14 + $0x1c] sm:$0xf]
        %v9201 = vld [vmem:[#allocation14 + $0x20] sm:$0xf]
        %v9202 = vld [vmem:[#allocation14 + $0x24] sm:$0xf]
        %v9203 = vld [vmem:[#allocation14 + $0x28] sm:$0xf]
        %v9204 = vld [vmem:[#allocation14 + $0x2c] sm:$0xf]
        %v9205 = vld [vmem:[#allocation14 + $0x30] sm:$0xf]
        %v9206 = vld [vmem:[#allocation14 + $0x34] sm:$0xf]
        %v9207 = vld [vmem:[#allocation14 + $0x38] sm:$0xf]
        %v9208 = vld [vmem:[#allocation14 + $0x3c] sm:$0xf]
        %v9209 = vld [vmem:[#allocation14 + $0x40] sm:$0xf]
        %v9210 = vld [vmem:[#allocation14 + $0x44] sm:$0xf]
        %v9211 = vld [vmem:[#allocation14 + $0x48] sm:$0xf]
        %v9212 = vld [vmem:[#allocation14 + $0x4c] sm:$0xf]
        %v9213 = vld [vmem:[#allocation14 + $0x50] sm:$0xf]
        %v9214 = vld [vmem:[#allocation14 + $0x54] sm:$0xf]
        %v9215 = vld [vmem:[#allocation14 + $0x58] sm:$0xf]
        %v9216 = vld [vmem:[#allocation14 + $0x5c] sm:$0xf]
        %v9217 = vld [vmem:[#allocation14 + $0x60] sm:$0xf]
        %v9218 = vld [vmem:[#allocation14 + $0x64] sm:$0xf]
        %v9219 = vld [vmem:[#allocation14 + $0x68] sm:$0xf]
        %v9220 = vld [vmem:[#allocation14 + $0x6c] sm:$0xf]
        %v9221 = vld [vmem:[#allocation14 + $0x70] sm:$0xf]
        %v9222 = vld [vmem:[#allocation14 + $0x74] sm:$0xf]
        %v9223 = vld [vmem:[#allocation14 + $0x78] sm:$0xf]
        %v9224 = vld [vmem:[#allocation14 + $0x7c] sm:$0xf]
        %v9225 = vld [vmem:[#allocation14 + $0x80] sm:$0xf]
        %v9226 = vld [vmem:[#allocation14 + $0x84] sm:$0xf]
        %v9227 = vld [vmem:[#allocation14 + $0x88] sm:$0xf]
        %v9228 = vld [vmem:[#allocation14 + $0x8c] sm:$0xf]
        %v9229 = vld [vmem:[#allocation14 + $0x90] sm:$0xf]
        %v9230 = vld [vmem:[#allocation14 + $0x94] sm:$0xf]
        %v9231 = vld [vmem:[#allocation14 + $0x98] sm:$0xf]
        %v9232 = vld [vmem:[#allocation14 + $0x9c] sm:$0xf]
        %v9233 = vld [vmem:[#allocation14 + $0xa0] sm:$0xf]
        %v9234 = vld [vmem:[#allocation14 + $0xa4] sm:$0xf]
        %v9235 = vld [vmem:[#allocation14 + $0xa8] sm:$0xf]
        %v9236 = vld [vmem:[#allocation14 + $0xac] sm:$0xf]
        %v9237 = vld [vmem:[#allocation14 + $0xb0] sm:$0xf]
        %v9238 = vld [vmem:[#allocation14 + $0xb4] sm:$0xf]
        %v9239 = vld [vmem:[#allocation14 + $0xb8] sm:$0xf]
        %v9240 = vld [vmem:[#allocation14 + $0xbc] sm:$0xf]
        %v9241 = vld [vmem:[#allocation14 + $0xc0] sm:$0xf]
        %v9242 = vld [vmem:[#allocation14 + $0xc4] sm:$0xf]
        %v9243 = vld [vmem:[#allocation14 + $0xc8] sm:$0xf]
        %v9244 = vld [vmem:[#allocation14 + $0xcc] sm:$0xf]
        %v9245 = vld [vmem:[#allocation14 + $0xd0] sm:$0xf]
        %v9246 = vld [vmem:[#allocation14 + $0xd4] sm:$0xf]
        %v9247 = vld [vmem:[#allocation14 + $0xd8] sm:$0xf]
        %v9248 = vld [vmem:[#allocation14 + $0xdc] sm:$0xf]
        %v9249 = vld [vmem:[#allocation14 + $0xe0] sm:$0xf]
        %v9250 = vld [vmem:[#allocation14 + $0xe4] sm:$0xf]
        %v9251 = vld [vmem:[#allocation14 + $0xe8] sm:$0xf]
        %v9252 = vld [vmem:[#allocation14 + $0xec] sm:$0xf]
        %v9253 = vld [vmem:[#allocation14 + $0xf0] sm:$0xf]
        %v9254 = vld [vmem:[#allocation14 + $0xf4] sm:$0xf]
        %v9255 = vld [vmem:[#allocation14 + $0xf8] sm:$0xf]
        %v9256 = vld [vmem:[#allocation14 + $0xfc] sm:$0xf]
        %v9257 = vld [vmem:[%s15] sm:$0xff]
        %v9258 = vld [vmem:[%s15 + $0x8] sm:$0xff]
        %v9259 = vld [vmem:[%s15 + $0x10] sm:$0xff]
        %9261 = vset.pattern.permute.xlu0 0
        %9262 = vperm.xlu0 %9261, %v9257
        %v9263 = vpop.permute.xlu0 %9262
        %9266 = vset.pattern.permute.xlu0 0
        %9267 = vperm.xlu0 %9266, %v9258
        %v9268 = vpop.permute.xlu0 %9267
        %9271 = vset.pattern.permute.xlu0 0
        %9272 = vperm.xlu0 %9271, %v9259
        %v9273 = vpop.permute.xlu0 %9272
        %v9339 = vunpack.c.l.b16 %v9193
        %v9340 = vunpack.c.l.b16 %v9194
        %v9341 = vunpack.c.l.b16 %v9195
        %v9342 = vunpack.c.l.b16 %v9196
        %v9343 = vunpack.c.l.b16 %v9197
        %v9344 = vunpack.c.l.b16 %v9198
        %v9345 = vunpack.c.l.b16 %v9199
        %v9346 = vunpack.c.l.b16 %v9200
        %v9347 = vunpack.c.l.b16 %v9201
        %v9348 = vunpack.c.l.b16 %v9202
        %v9349 = vunpack.c.l.b16 %v9203
        %v9350 = vunpack.c.l.b16 %v9204
        %v9351 = vunpack.c.l.b16 %v9205
        %v9352 = vunpack.c.l.b16 %v9206
        %v9353 = vunpack.c.l.b16 %v9207
        %v9354 = vunpack.c.l.b16 %v9208
        %v9355 = vunpack.c.l.b16 %v9209
        %v9356 = vunpack.c.l.b16 %v9210
        %v9357 = vunpack.c.l.b16 %v9211
        %v9358 = vunpack.c.l.b16 %v9212
        %v9359 = vunpack.c.l.b16 %v9213
        %v9360 = vunpack.c.l.b16 %v9214
        %v9361 = vunpack.c.l.b16 %v9215
        %v9362 = vunpack.c.l.b16 %v9216
        %v9363 = vunpack.c.l.b16 %v9217
        %v9364 = vunpack.c.l.b16 %v9218
        %v9365 = vunpack.c.l.b16 %v9219
        %v9366 = vunpack.c.l.b16 %v9220
        %v9367 = vunpack.c.l.b16 %v9221
        %v9368 = vunpack.c.l.b16 %v9222
        %v9369 = vunpack.c.l.b16 %v9223
        %v9370 = vunpack.c.l.b16 %v9224
        %v9371 = vunpack.c.l.b16 %v9225
        %v9372 = vunpack.c.l.b16 %v9226
        %v9373 = vunpack.c.l.b16 %v9227
        %v9374 = vunpack.c.l.b16 %v9228
        %v9375 = vunpack.c.l.b16 %v9229
        %v9376 = vunpack.c.l.b16 %v9230
        %v9377 = vunpack.c.l.b16 %v9231
        %v9378 = vunpack.c.l.b16 %v9232
        %v9379 = vunpack.c.l.b16 %v9233
        %v9380 = vunpack.c.l.b16 %v9234
        %v9381 = vunpack.c.l.b16 %v9235
        %v9382 = vunpack.c.l.b16 %v9236
        %v9383 = vunpack.c.l.b16 %v9237
        %v9384 = vunpack.c.l.b16 %v9238
        %v9385 = vunpack.c.l.b16 %v9239
        %v9386 = vunpack.c.l.b16 %v9240
        %v9387 = vunpack.c.l.b16 %v9241
        %v9388 = vunpack.c.l.b16 %v9242
        %v9389 = vunpack.c.l.b16 %v9243
        %v9390 = vunpack.c.l.b16 %v9244
        %v9391 = vunpack.c.l.b16 %v9245
        %v9392 = vunpack.c.l.b16 %v9246
        %v9393 = vunpack.c.l.b16 %v9247
        %v9394 = vunpack.c.l.b16 %v9248
        %v9395 = vunpack.c.l.b16 %v9249
        %v9396 = vunpack.c.l.b16 %v9250
        %v9397 = vunpack.c.l.b16 %v9251
        %v9398 = vunpack.c.l.b16 %v9252
        %v9399 = vunpack.c.l.b16 %v9253
        %v9400 = vunpack.c.l.b16 %v9254
        %v9401 = vunpack.c.l.b16 %v9255
        %v9402 = vunpack.c.l.b16 %v9256
        %v9403 = vpack.c.b16 %v9340, %v9339
        %v9404 = vpack.c.b16 %v9342, %v9341
        %v9405 = vpack.c.b16 %v9344, %v9343
        %v9406 = vpack.c.b16 %v9346, %v9345
        %v9407 = vpack.c.b16 %v9348, %v9347
        %v9408 = vpack.c.b16 %v9350, %v9349
        %v9409 = vpack.c.b16 %v9352, %v9351
        %v9410 = vpack.c.b16 %v9354, %v9353
        %v9411 = vpack.c.b16 %v9356, %v9355
        %v9412 = vpack.c.b16 %v9358, %v9357
        %v9413 = vpack.c.b16 %v9360, %v9359
        %v9414 = vpack.c.b16 %v9362, %v9361
        %v9415 = vpack.c.b16 %v9364, %v9363
        %v9416 = vpack.c.b16 %v9366, %v9365
        %v9417 = vpack.c.b16 %v9368, %v9367
        %v9418 = vpack.c.b16 %v9370, %v9369
        %v9419 = vpack.c.b16 %v9372, %v9371
        %v9420 = vpack.c.b16 %v9374, %v9373
        %v9421 = vpack.c.b16 %v9376, %v9375
        %v9422 = vpack.c.b16 %v9378, %v9377
        %v9423 = vpack.c.b16 %v9380, %v9379
        %v9424 = vpack.c.b16 %v9382, %v9381
        %v9425 = vpack.c.b16 %v9384, %v9383
        %v9426 = vpack.c.b16 %v9386, %v9385
        %v9427 = vpack.c.b16 %v9388, %v9387
        %v9428 = vpack.c.b16 %v9390, %v9389
        %v9429 = vpack.c.b16 %v9392, %v9391
        %v9430 = vpack.c.b16 %v9394, %v9393
        %v9431 = vpack.c.b16 %v9396, %v9395
        %v9432 = vpack.c.b16 %v9398, %v9397
        %v9433 = vpack.c.b16 %v9400, %v9399
        %v9434 = vpack.c.b16 %v9402, %v9401
        %9467 = vmatprep.subr.bf16.mxu0 0
        %9468 = vmatpush1.bf16.msra.mxu0 %v9410
        %9469 = vmatprep.subr.bf16.mxu0 0
        %9470 = vmatpush1.bf16.msra.mxu0 %v9409
        %9471 = vmatprep.subr.bf16.mxu0 0
        %9472 = vmatpush1.bf16.msra.mxu0 %v9408
        %9473 = vmatprep.subr.bf16.mxu0 0
        %9474 = vmatpush1.bf16.msra.mxu0 %v9407
        %9475 = vmatprep.subr.bf16.mxu0 0
        %9476 = vmatpush1.bf16.msra.mxu0 %v9406
        %9477 = vmatprep.subr.bf16.mxu0 0
        %9478 = vmatpush1.bf16.msra.mxu0 %v9405
        %9479 = vmatprep.subr.bf16.mxu0 0
        %9480 = vmatpush1.bf16.msra.mxu0 %v9404
        %9481 = vmatprep.subr.bf16.mxu0 0
        %9482 = vmatpush1.bf16.msra.mxu0 %v9403
        %9483 = vmatprep.subr.bf16.mxu0 0
        %9484 = vmatpush2.bf16.msra.mxu0 %v9418
        %9485 = vmatprep.subr.bf16.mxu0 0
        %9486 = vmatpush2.bf16.msra.mxu0 %v9417
        %9487 = vmatprep.subr.bf16.mxu0 0
        %9488 = vmatpush2.bf16.msra.mxu0 %v9416
        %9489 = vmatprep.subr.bf16.mxu0 0
        %9490 = vmatpush2.bf16.msra.mxu0 %v9415
        %9491 = vmatprep.subr.bf16.mxu0 0
        %9492 = vmatpush2.bf16.msra.mxu0 %v9414
        %9493 = vmatprep.subr.bf16.mxu0 0
        %9494 = vmatpush2.bf16.msra.mxu0 %v9413
        %9495 = vmatprep.subr.bf16.mxu0 0
        %9496 = vmatpush2.bf16.msra.mxu0 %v9412
        %9497 = vmatprep.subr.bf16.mxu0 0
        %9498 = vmatpush2.bf16.msra.mxu0 %v9411
        %9499 = vmatprep.mubr.bf16.mxu0 %v9186
        %9500 = vmatmul.mubr.bf16.gmra.mxu0 %v9185
        %v9501 = vpop.f32.mrf.mxu0
        %v9502 = vadd.f32 %v9263, %v9501
        %v9503 = vpop.f32.mrf.mxu0
        %v9504 = vpop.f32.mrf.mxu0
        %v9505 = vadd.f32 %v9268, %v9504
        %v9506 = vpop.f32.mrf.mxu0
        %9507 = vmatprep.mubr.bf16.mxu0 %v9190
        %9508 = vmatmul.mubr.bf16.gmra.mxu0 %v9189
        %v9509 = vpop.f32.mrf.mxu0
        %v9510 = vadd.f32 %v9273, %v9509
        %v9511 = vpop.f32.mrf.mxu0
        %v9512 = vpop.f32.mrf.mxu0
        %v9513 = vpop.f32.mrf.mxu0
        %9514 = vdwg.mxu0
        %9515 = vmatprep.subr.bf16.mxu0 0
        %9516 = vmatpush1.bf16.msra.mxu0 %v9426
        %9517 = vmatprep.subr.bf16.mxu0 0
        %9518 = vmatpush1.bf16.msra.mxu0 %v9425
        %9519 = vmatprep.subr.bf16.mxu0 0
        %9520 = vmatpush1.bf16.msra.mxu0 %v9424
        %9521 = vmatprep.subr.bf16.mxu0 0
        %9522 = vmatpush1.bf16.msra.mxu0 %v9423
        %9523 = vmatprep.subr.bf16.mxu0 0
        %9524 = vmatpush1.bf16.msra.mxu0 %v9422
        %9525 = vmatprep.subr.bf16.mxu0 0
        %9526 = vmatpush1.bf16.msra.mxu0 %v9421
        %9527 = vmatprep.subr.bf16.mxu0 0
        %9528 = vmatpush1.bf16.msra.mxu0 %v9420
        %9529 = vmatprep.subr.bf16.mxu0 0
        %9530 = vmatpush1.bf16.msra.mxu0 %v9419
        %9531 = vmatprep.subr.bf16.mxu0 0
        %9532 = vmatpush2.bf16.msra.mxu0 %v9434
        %9533 = vmatprep.subr.bf16.mxu0 0
        %9534 = vmatpush2.bf16.msra.mxu0 %v9433
        %9535 = vmatprep.subr.bf16.mxu0 0
        %9536 = vmatpush2.bf16.msra.mxu0 %v9432
        %9537 = vmatprep.subr.bf16.mxu0 0
        %9538 = vmatpush2.bf16.msra.mxu0 %v9431
        %9539 = vmatprep.subr.bf16.mxu0 0
        %9540 = vmatpush2.bf16.msra.mxu0 %v9430
        %9541 = vmatprep.subr.bf16.mxu0 0
        %9542 = vmatpush2.bf16.msra.mxu0 %v9429
        %9543 = vmatprep.subr.bf16.mxu0 0
        %9544 = vmatpush2.bf16.msra.mxu0 %v9428
        %9545 = vmatprep.subr.bf16.mxu0 0
        %9546 = vmatpush2.bf16.msra.mxu0 %v9427
        %9547 = vmatprep.mubr.bf16.mxu0 %v9188
        %9548 = vmatmul.mubr.bf16.gmra.mxu0 %v9187
        %v9549 = vpop.f32.mrf.mxu0
        %v9550 = vadd.f32 %v9502, %v9549
        %v9551 = vpop.f32.mrf.mxu0
        %v9552 = vpop.f32.mrf.mxu0
        %v9553 = vadd.f32 %v9505, %v9552
        %v9554 = vpop.f32.mrf.mxu0
        %9555 = vmatprep.mubr.bf16.mxu0 %v9192
        %9556 = vmatmul.mubr.bf16.gmra.mxu0 %v9191
        %v9557 = vpop.f32.mrf.mxu0
        %v9558 = vadd.f32 %v9510, %v9557
        %v9559 = vpop.f32.mrf.mxu0
        %v9560 = vpop.f32.mrf.mxu0
        %v9561 = vpop.f32.mrf.mxu0
        %9562 = vdwg.mxu0
        %v9563 = vmax.f32 %v9550, 0.0
        %v9564 = vmax.f32 %v9553, 0.0
        %v9565 = vmax.f32 %v9558, 0.0
        %v9566 = vld [vmem:[#allocation16] sm:$0xf]
        %v9567 = vld [vmem:[#allocation16 + $0x4] sm:$0xf]
        %v9568 = vpack.c.bf16 %v9564, %v9563
        %v9569 = vpack.c.bf16 %v9565, %v9565
        %v9570 = vld [vmem:[%s19] sm:$0xff]
        %v9571 = vld [vmem:[%s19 + $0x8] sm:$0xff]
        %9573 = vset.pattern.permute.xlu0 0
        %9574 = vperm.xlu0 %9573, %v9570
        %v9575 = vpop.permute.xlu0 %9574
        %9578 = vset.pattern.permute.xlu0 0
        %9579 = vperm.xlu0 %9578, %v9571
        %v9580 = vpop.permute.xlu0 %9579
        %v9584 = vunpack.c.l.b16 %v9566
        %v9585 = vunpack.c.l.b16 %v9567
        %v9586 = vpack.c.b16 %v9585, %v9584
        %v9588 = vsel %vm7977, %v9586, 0
        %v9591 = vsel %vm2570, %v9569, 0
        %9593 = vmatprep.subr.bf16.mxu0 0
        %9594 = vmatpush1.bf16.msra.mxu0 0
        %9595 = vmatprep.subr.bf16.mxu0 0
        %9596 = vmatpush1.bf16.msra.mxu0 0
        %9597 = vmatprep.subr.bf16.mxu0 0
        %9598 = vmatpush1.bf16.msra.mxu0 0
        %9599 = vmatprep.subr.bf16.mxu0 0
        %9600 = vmatpush1.bf16.msra.mxu0 0
        %9601 = vmatprep.subr.bf16.mxu0 0
        %9602 = vmatpush1.bf16.msra.mxu0 0
        %9603 = vmatprep.subr.bf16.mxu0 0
        %9604 = vmatpush1.bf16.msra.mxu0 0
        %9605 = vmatprep.subr.bf16.mxu0 0
        %9606 = vmatpush1.bf16.msra.mxu0 %v9591
        %9607 = vmatprep.subr.bf16.mxu0 0
        %9608 = vmatpush1.bf16.msra.mxu0 %v9568
        %9609 = vmatprep.subr.bf16.mxu0 0
        %9610 = vmatpush2.bf16.msra.mxu0 0
        %9611 = vmatprep.subr.bf16.mxu0 0
        %9612 = vmatpush2.bf16.msra.mxu0 0
        %9613 = vmatprep.subr.bf16.mxu0 0
        %9614 = vmatpush2.bf16.msra.mxu0 0
        %9615 = vmatprep.subr.bf16.mxu0 0
        %9616 = vmatpush2.bf16.msra.mxu0 0
        %9617 = vmatprep.subr.bf16.mxu0 0
        %9618 = vmatpush2.bf16.msra.mxu0 0
        %9619 = vmatprep.subr.bf16.mxu0 0
        %9620 = vmatpush2.bf16.msra.mxu0 0
        %9621 = vmatprep.subr.bf16.mxu0 0
        %9622 = vmatpush2.bf16.msra.mxu0 0
        %9623 = vmatprep.subr.bf16.mxu0 0
        %9624 = vmatpush2.bf16.msra.mxu0 0
        %9625 = vmatprep.mubr.bf16.mxu0 0
        %9626 = vmatmul.mubr.bf16.gmra.mxu0 %v9588
        %v9627 = vpop.f32.mrf.mxu0
        %v9628 = vadd.f32 %v9575, %v9627
        %v9629 = vpop.f32.mrf.mxu0
        %v9630 = vpop.f32.mrf.mxu0
        %v9631 = vadd.f32 %v9580, %v9630
        %v9632 = vpop.f32.mrf.mxu0
        %9633 = vdwg.mxu0
        %v9634 = vpack.c.bf16 %v9631, %v9628
        %v9635 = vld [vmem:[%s20] sm:$0xf]
        %v9636 = vld [vmem:[%s20 + $0x4] sm:$0xf]
        %v9637 = vld [vmem:[%s20 + $0x8] sm:$0xf]
        %v9638 = vld [vmem:[%s20 + $0xc] sm:$0xf]
        %v9639 = vld [vmem:[%s20 + $0x10] sm:$0xf]
        %v9640 = vld [vmem:[%s20 + $0x14] sm:$0xf]
        %v9641 = vld [vmem:[%s21] sm:$0xff]
        %v9642 = vld [vmem:[%s21 + $0x8] sm:$0xff]
        %v9643 = vld [vmem:[%s21 + $0x10] sm:$0xff]
        %v9644 = vld [vmem:[%s21 + $0x18] sm:$0xff]
        %v9645 = vld [vmem:[%s21 + $0x20] sm:$0xff]
        %v9646 = vld [vmem:[%s21 + $0x28] sm:$0xff]
        %9648 = vset.pattern.permute.xlu0 0
        %9649 = vperm.xlu0 %9648, %v9641
        %v9650 = vpop.permute.xlu0 %9649
        %9653 = vset.pattern.permute.xlu0 0
        %9654 = vperm.xlu0 %9653, %v9642
        %v9655 = vpop.permute.xlu0 %9654
        %9658 = vset.pattern.permute.xlu0 0
        %9659 = vperm.xlu0 %9658, %v9643
        %v9660 = vpop.permute.xlu0 %9659
        %9663 = vset.pattern.permute.xlu0 0
        %9664 = vperm.xlu0 %9663, %v9644
        %v9665 = vpop.permute.xlu0 %9664
        %9668 = vset.pattern.permute.xlu0 0
        %9669 = vperm.xlu0 %9668, %v9645
        %v9670 = vpop.permute.xlu0 %9669
        %9673 = vset.pattern.permute.xlu0 0
        %9674 = vperm.xlu0 %9673, %v9646
        %v9675 = vpop.permute.xlu0 %9674
        %v9683 = vunpack.c.l.b16 %v9635
        %v9684 = vunpack.c.l.b16 %v9636
        %v9685 = vunpack.c.l.b16 %v9637
        %v9686 = vunpack.c.l.b16 %v9638
        %v9687 = vunpack.c.l.b16 %v9639
        %v9688 = vunpack.c.l.b16 %v9640
        %v9689 = vpack.c.b16 %v9684, %v9683
        %v9690 = vpack.c.b16 %v9686, %v9685
        %v9691 = vpack.c.b16 %v9688, %v9687
        %vm9692 = vcmask 130048
        %v9694 = vsel %vm9692, %v9689, 0
        %v9697 = vsel %vm9692, %v9690, 0
        %v9700 = vsel %vm9692, %v9691, 0
        %9702 = vmatprep.subr.bf16.mxu0 0
        %9703 = vmatpush1.bf16.msra.mxu0 0
        %9704 = vmatprep.subr.bf16.mxu0 0
        %9705 = vmatpush1.bf16.msra.mxu0 0
        %9706 = vmatprep.subr.bf16.mxu0 0
        %9707 = vmatpush1.bf16.msra.mxu0 0
        %9708 = vmatprep.subr.bf16.mxu0 0
        %9709 = vmatpush1.bf16.msra.mxu0 0
        %9710 = vmatprep.subr.bf16.mxu0 0
        %9711 = vmatpush1.bf16.msra.mxu0 0
        %9712 = vmatprep.subr.bf16.mxu0 0
        %9713 = vmatpush1.bf16.msra.mxu0 0
        %9714 = vmatprep.subr.bf16.mxu0 0
        %9715 = vmatpush1.bf16.msra.mxu0 0
        %9716 = vmatprep.subr.bf16.mxu0 0
        %9717 = vmatpush1.bf16.msra.mxu0 %v9634
        %9718 = vmatprep.subr.bf16.mxu0 0
        %9719 = vmatpush2.bf16.msra.mxu0 0
        %9720 = vmatprep.subr.bf16.mxu0 0
        %9721 = vmatpush2.bf16.msra.mxu0 0
        %9722 = vmatprep.subr.bf16.mxu0 0
        %9723 = vmatpush2.bf16.msra.mxu0 0
        %9724 = vmatprep.subr.bf16.mxu0 0
        %9725 = vmatpush2.bf16.msra.mxu0 0
        %9726 = vmatprep.subr.bf16.mxu0 0
        %9727 = vmatpush2.bf16.msra.mxu0 0
        %9728 = vmatprep.subr.bf16.mxu0 0
        %9729 = vmatpush2.bf16.msra.mxu0 0
        %9730 = vmatprep.subr.bf16.mxu0 0
        %9731 = vmatpush2.bf16.msra.mxu0 0
        %9732 = vmatprep.subr.bf16.mxu0 0
        %9733 = vmatpush2.bf16.msra.mxu0 0
        %9734 = vmatprep.mubr.bf16.mxu0 0
        %9735 = vmatmul.mubr.bf16.gmra.mxu0 %v9694
        %v9736 = vpop.f32.mrf.mxu0
        %v9737 = vadd.f32 %v9650, %v9736
        %v9738 = vpop.f32.mrf.mxu0
        %v9739 = vpop.f32.mrf.mxu0
        %v9740 = vadd.f32 %v9655, %v9739
        %v9741 = vpop.f32.mrf.mxu0
        %9742 = vmatprep.mubr.bf16.mxu0 0
        %9743 = vmatmul.mubr.bf16.gmra.mxu0 %v9697
        %v9744 = vpop.f32.mrf.mxu0
        %v9745 = vadd.f32 %v9660, %v9744
        %v9746 = vpop.f32.mrf.mxu0
        %v9747 = vpop.f32.mrf.mxu0
        %v9748 = vadd.f32 %v9665, %v9747
        %v9749 = vpop.f32.mrf.mxu0
        %9750 = vmatprep.mubr.bf16.mxu0 0
        %9751 = vmatmul.mubr.bf16.gmra.mxu0 %v9700
        %v9752 = vpop.f32.mrf.mxu0
        %v9753 = vadd.f32 %v9670, %v9752
        %v9754 = vpop.f32.mrf.mxu0
        %v9755 = vpop.f32.mrf.mxu0
        %v9756 = vadd.f32 %v9675, %v9755
        %v9757 = vpop.f32.mrf.mxu0
        %9758 = vdwg.mxu0
        %v9759 = vmax.f32 %v9737, 0.0
        %v9760 = vmax.f32 %v9740, 0.0
        %v9761 = vmax.f32 %v9745, 0.0
        %v9762 = vmax.f32 %v9748, 0.0
        %v9763 = vmax.f32 %v9753, 0.0
        %v9764 = vmax.f32 %v9756, 0.0
        %9765 = vrot.lane.b32.xlu0 %v9759, 5
        %v9766 = vpop.permute.xlu0 %9765
        %9767 = vrot.lane.b32.xlu0 %v9760, 5
        %v9768 = vpop.permute.xlu0 %9767
        %9769 = vrot.lane.b32.xlu0 %v9761, 5
        %v9770 = vpop.permute.xlu0 %9769
        %9771 = vrot.lane.b32.xlu0 %v9762, 5
        %v9772 = vpop.permute.xlu0 %9771
        %9773 = vrot.lane.b32.xlu0 %v9763, 5
        %v9774 = vpop.permute.xlu0 %9773
        %9775 = vrot.lane.b32.xlu0 %v9764, 5
        %v9776 = vpop.permute.xlu0 %9775
        %v9777 = vld [vmem:[#allocation17] sm:$0x1]
        %v9779 = vlaneseq
        %v9780 = vshrl.u32 %v9779, 7
        %v9781 = vsub.s32 0, %v9780
        %v9782 = vrot.slane %v9777, %v9781
        %v9784 = vmul.f32 %v9766, %v9782
        %v9785 = vmul.f32 %v9768, %v9782
        %v9786 = vmul.f32 %v9770, %v9782
        %v9787 = vmul.f32 %v9772, %v9782
        %v9788 = vmul.f32 %v9774, %v9782
        %v9789 = vmul.f32 %v9776, %v9782
        %9790 = vrot.lane.b32.xlu0 %v9759, 4
        %v9791 = vpop.permute.xlu0 %9790
        %9792 = vrot.lane.b32.xlu0 %v9760, 4
        %v9793 = vpop.permute.xlu0 %9792
        %9794 = vrot.lane.b32.xlu0 %v9761, 4
        %v9795 = vpop.permute.xlu0 %9794
        %9796 = vrot.lane.b32.xlu0 %v9762, 4
        %v9797 = vpop.permute.xlu0 %9796
        %9798 = vrot.lane.b32.xlu0 %v9763, 4
        %v9799 = vpop.permute.xlu0 %9798
        %9800 = vrot.lane.b32.xlu0 %v9764, 4
        %v9801 = vpop.permute.xlu0 %9800
        %s9802 = scalar_lea.vmem [#allocation17], 1
        %v9803 = vld [vmem:[%s9802] sm:$0x1]
        %v9805 = vlaneseq
        %v9806 = vshrl.u32 %v9805, 7
        %v9807 = vsub.s32 0, %v9806
        %v9808 = vrot.slane %v9803, %v9807
        %v9810 = vmul.f32 %v9791, %v9808
        %v9811 = vmul.f32 %v9793, %v9808
        %v9812 = vmul.f32 %v9795, %v9808
        %v9813 = vmul.f32 %v9797, %v9808
        %v9814 = vmul.f32 %v9799, %v9808
        %v9815 = vmul.f32 %v9801, %v9808
        %9816 = vrot.lane.b32.xlu0 %v9759, 3
        %v9817 = vpop.permute.xlu0 %9816
        %9818 = vrot.lane.b32.xlu0 %v9760, 3
        %v9819 = vpop.permute.xlu0 %9818
        %9820 = vrot.lane.b32.xlu0 %v9761, 3
        %v9821 = vpop.permute.xlu0 %9820
        %9822 = vrot.lane.b32.xlu0 %v9762, 3
        %v9823 = vpop.permute.xlu0 %9822
        %9824 = vrot.lane.b32.xlu0 %v9763, 3
        %v9825 = vpop.permute.xlu0 %9824
        %9826 = vrot.lane.b32.xlu0 %v9764, 3
        %v9827 = vpop.permute.xlu0 %9826
        %s9828 = scalar_lea.vmem [#allocation17], 2
        %v9829 = vld [vmem:[%s9828] sm:$0x1]
        %v9831 = vlaneseq
        %v9832 = vshrl.u32 %v9831, 7
        %v9833 = vsub.s32 0, %v9832
        %v9834 = vrot.slane %v9829, %v9833
        %v9836 = vmul.f32 %v9817, %v9834
        %v9837 = vmul.f32 %v9819, %v9834
        %v9838 = vmul.f32 %v9821, %v9834
        %v9839 = vmul.f32 %v9823, %v9834
        %v9840 = vmul.f32 %v9825, %v9834
        %v9841 = vmul.f32 %v9827, %v9834
        %9842 = vrot.lane.b32.xlu0 %v9759, 1
        %v9843 = vpop.permute.xlu0 %9842
        %9844 = vrot.lane.b32.xlu0 %v9760, 1
        %v9845 = vpop.permute.xlu0 %9844
        %9846 = vrot.lane.b32.xlu0 %v9761, 1
        %v9847 = vpop.permute.xlu0 %9846
        %9848 = vrot.lane.b32.xlu0 %v9762, 1
        %v9849 = vpop.permute.xlu0 %9848
        %9850 = vrot.lane.b32.xlu0 %v9763, 1
        %v9851 = vpop.permute.xlu0 %9850
        %9852 = vrot.lane.b32.xlu0 %v9764, 1
        %v9853 = vpop.permute.xlu0 %9852
        %s9854 = scalar_lea.vmem [#allocation17], 3
        %v9855 = vld [vmem:[%s9854] sm:$0x1]
        %v9857 = vlaneseq
        %v9858 = vshrl.u32 %v9857, 7
        %v9859 = vsub.s32 0, %v9858
        %v9860 = vrot.slane %v9855, %v9859
        %v9862 = vmul.f32 %v9843, %v9860
        %v9863 = vmul.f32 %v9845, %v9860
        %v9864 = vmul.f32 %v9847, %v9860
        %v9865 = vmul.f32 %v9849, %v9860
        %v9866 = vmul.f32 %v9851, %v9860
        %v9867 = vmul.f32 %v9853, %v9860
        %9868 = vrot.lane.b32.xlu0 %v9759, 127
        %v9869 = vpop.permute.xlu0 %9868
        %9870 = vrot.lane.b32.xlu0 %v9760, 127
        %v9871 = vpop.permute.xlu0 %9870
        %9872 = vrot.lane.b32.xlu0 %v9761, 127
        %v9873 = vpop.permute.xlu0 %9872
        %9874 = vrot.lane.b32.xlu0 %v9762, 127
        %v9875 = vpop.permute.xlu0 %9874
        %9876 = vrot.lane.b32.xlu0 %v9763, 127
        %v9877 = vpop.permute.xlu0 %9876
        %9878 = vrot.lane.b32.xlu0 %v9764, 127
        %v9879 = vpop.permute.xlu0 %9878
        %s9880 = scalar_lea.vmem [#allocation17], 5
        %v9881 = vld [vmem:[%s9880] sm:$0x1]
        %v9883 = vlaneseq
        %v9884 = vshrl.u32 %v9883, 7
        %v9885 = vsub.s32 0, %v9884
        %v9886 = vrot.slane %v9881, %v9885
        %v9888 = vmul.f32 %v9869, %v9886
        %v9889 = vmul.f32 %v9871, %v9886
        %v9890 = vmul.f32 %v9873, %v9886
        %v9891 = vmul.f32 %v9875, %v9886
        %v9892 = vmul.f32 %v9877, %v9886
        %v9893 = vmul.f32 %v9879, %v9886
        %9894 = vrot.lane.b32.xlu0 %v9759, 125
        %v9895 = vpop.permute.xlu0 %9894
        %9896 = vrot.lane.b32.xlu0 %v9760, 125
        %v9897 = vpop.permute.xlu0 %9896
        %9898 = vrot.lane.b32.xlu0 %v9761, 125
        %v9899 = vpop.permute.xlu0 %9898
        %9900 = vrot.lane.b32.xlu0 %v9762, 125
        %v9901 = vpop.permute.xlu0 %9900
        %9902 = vrot.lane.b32.xlu0 %v9763, 125
        %v9903 = vpop.permute.xlu0 %9902
        %9904 = vrot.lane.b32.xlu0 %v9764, 125
        %v9905 = vpop.permute.xlu0 %9904
        %s9906 = scalar_lea.vmem [#allocation17], 6
        %v9907 = vld [vmem:[%s9906] sm:$0x1]
        %v9909 = vlaneseq
        %v9910 = vshrl.u32 %v9909, 7
        %v9911 = vsub.s32 0, %v9910
        %v9912 = vrot.slane %v9907, %v9911
        %v9914 = vmul.f32 %v9895, %v9912
        %v9915 = vmul.f32 %v9897, %v9912
        %v9916 = vmul.f32 %v9899, %v9912
        %v9917 = vmul.f32 %v9901, %v9912
        %v9918 = vmul.f32 %v9903, %v9912
        %v9919 = vmul.f32 %v9905, %v9912
        %9920 = vrot.lane.b32.xlu0 %v9759, 124
        %v9921 = vpop.permute.xlu0 %9920
        %9922 = vrot.lane.b32.xlu0 %v9760, 124
        %v9923 = vpop.permute.xlu0 %9922
        %9924 = vrot.lane.b32.xlu0 %v9761, 124
        %v9925 = vpop.permute.xlu0 %9924
        %9926 = vrot.lane.b32.xlu0 %v9762, 124
        %v9927 = vpop.permute.xlu0 %9926
        %9928 = vrot.lane.b32.xlu0 %v9763, 124
        %v9929 = vpop.permute.xlu0 %9928
        %9930 = vrot.lane.b32.xlu0 %v9764, 124
        %v9931 = vpop.permute.xlu0 %9930
        %s9932 = scalar_lea.vmem [#allocation17], 7
        %v9933 = vld [vmem:[%s9932] sm:$0x1]
        %v9935 = vlaneseq
        %v9936 = vshrl.u32 %v9935, 7
        %v9937 = vsub.s32 0, %v9936
        %v9938 = vrot.slane %v9933, %v9937
        %v9940 = vmul.f32 %v9921, %v9938
        %v9941 = vmul.f32 %v9923, %v9938
        %v9942 = vmul.f32 %v9925, %v9938
        %v9943 = vmul.f32 %v9927, %v9938
        %v9944 = vmul.f32 %v9929, %v9938
        %v9945 = vmul.f32 %v9931, %v9938
        %9946 = vrot.lane.b32.xlu0 %v9759, 123
        %v9947 = vpop.permute.xlu0 %9946
        %9948 = vrot.lane.b32.xlu0 %v9760, 123
        %v9949 = vpop.permute.xlu0 %9948
        %9950 = vrot.lane.b32.xlu0 %v9761, 123
        %v9951 = vpop.permute.xlu0 %9950
        %9952 = vrot.lane.b32.xlu0 %v9762, 123
        %v9953 = vpop.permute.xlu0 %9952
        %9954 = vrot.lane.b32.xlu0 %v9763, 123
        %v9955 = vpop.permute.xlu0 %9954
        %9956 = vrot.lane.b32.xlu0 %v9764, 123
        %v9957 = vpop.permute.xlu0 %9956
        %s9958 = scalar_lea.vmem [#allocation17], 8
        %v9959 = vld [vmem:[%s9958] sm:$0x1]
        %v9961 = vlaneseq
        %v9962 = vshrl.u32 %v9961, 7
        %v9963 = vsub.s32 0, %v9962
        %v9964 = vrot.slane %v9959, %v9963
        %v9966 = vmul.f32 %v9947, %v9964
        %v9967 = vmul.f32 %v9949, %v9964
        %v9968 = vmul.f32 %v9951, %v9964
        %v9969 = vmul.f32 %v9953, %v9964
        %v9970 = vmul.f32 %v9955, %v9964
        %v9971 = vmul.f32 %v9957, %v9964
        %v9972 = vld [vmem:[%s22] sm:$0xff]
        %v9973 = vld [vmem:[%s22 + $0x8] sm:$0xff]
        %v9974 = vld [vmem:[%s22 + $0x10] sm:$0xff]
        %v9975 = vld [vmem:[%s22 + $0x18] sm:$0xff]
        %v9976 = vld [vmem:[%s22 + $0x20] sm:$0xff]
        %v9977 = vld [vmem:[%s22 + $0x28] sm:$0xff]
        %9979 = vset.pattern.permute.xlu0 0
        %9980 = vperm.xlu0 %9979, %v9972
        %v9981 = vpop.permute.xlu0 %9980
        %9984 = vset.pattern.permute.xlu0 0
        %9985 = vperm.xlu0 %9984, %v9973
        %v9986 = vpop.permute.xlu0 %9985
        %9989 = vset.pattern.permute.xlu0 0
        %9990 = vperm.xlu0 %9989, %v9974
        %v9991 = vpop.permute.xlu0 %9990
        %9994 = vset.pattern.permute.xlu0 0
        %9995 = vperm.xlu0 %9994, %v9975
        %v9996 = vpop.permute.xlu0 %9995
        %9999 = vset.pattern.permute.xlu0 0
        %10000 = vperm.xlu0 %9999, %v9976
        %v10001 = vpop.permute.xlu0 %10000
        %10004 = vset.pattern.permute.xlu0 0
        %10005 = vperm.xlu0 %10004, %v9977
        %v10006 = vpop.permute.xlu0 %10005
        %v10008 = vmul.f32 %v9784, %v9981
        %v10009 = vmul.f32 %v9785, %v9986
        %v10010 = vmul.f32 %v9786, %v9991
        %v10011 = vmul.f32 %v9787, %v9996
        %v10012 = vmul.f32 %v9788, %v10001
        %v10013 = vmul.f32 %v9789, %v10006
        %s10014 = scalar_lea.vmem %s22, 48
        %v10015 = vld [vmem:[%s10014] sm:$0xff]
        %v10016 = vld [vmem:[%s10014 + $0x8] sm:$0xff]
        %v10017 = vld [vmem:[%s10014 + $0x10] sm:$0xff]
        %v10018 = vld [vmem:[%s10014 + $0x18] sm:$0xff]
        %v10019 = vld [vmem:[%s10014 + $0x20] sm:$0xff]
        %v10020 = vld [vmem:[%s10014 + $0x28] sm:$0xff]
        %10022 = vset.pattern.permute.xlu0 0
        %10023 = vperm.xlu0 %10022, %v10015
        %v10024 = vpop.permute.xlu0 %10023
        %10027 = vset.pattern.permute.xlu0 0
        %10028 = vperm.xlu0 %10027, %v10016
        %v10029 = vpop.permute.xlu0 %10028
        %10032 = vset.pattern.permute.xlu0 0
        %10033 = vperm.xlu0 %10032, %v10017
        %v10034 = vpop.permute.xlu0 %10033
        %10037 = vset.pattern.permute.xlu0 0
        %10038 = vperm.xlu0 %10037, %v10018
        %v10039 = vpop.permute.xlu0 %10038
        %10042 = vset.pattern.permute.xlu0 0
        %10043 = vperm.xlu0 %10042, %v10019
        %v10044 = vpop.permute.xlu0 %10043
        %10047 = vset.pattern.permute.xlu0 0
        %10048 = vperm.xlu0 %10047, %v10020
        %v10049 = vpop.permute.xlu0 %10048
        %v10051 = vmul.f32 %v9810, %v10024
        %v10052 = vmul.f32 %v9811, %v10029
        %v10053 = vmul.f32 %v9812, %v10034
        %v10054 = vmul.f32 %v9813, %v10039
        %v10055 = vmul.f32 %v9814, %v10044
        %v10056 = vmul.f32 %v9815, %v10049
        %v10057 = vadd.f32 %v10008, %v10051
        %v10058 = vadd.f32 %v10009, %v10052
        %v10059 = vadd.f32 %v10010, %v10053
        %v10060 = vadd.f32 %v10011, %v10054
        %v10061 = vadd.f32 %v10012, %v10055
        %v10062 = vadd.f32 %v10013, %v10056
        %s10063 = scalar_lea.vmem %s22, 96
        %v10064 = vld [vmem:[%s10063] sm:$0xff]
        %v10065 = vld [vmem:[%s10063 + $0x8] sm:$0xff]
        %v10066 = vld [vmem:[%s10063 + $0x10] sm:$0xff]
        %v10067 = vld [vmem:[%s10063 + $0x18] sm:$0xff]
        %v10068 = vld [vmem:[%s10063 + $0x20] sm:$0xff]
        %v10069 = vld [vmem:[%s10063 + $0x28] sm:$0xff]
        %10071 = vset.pattern.permute.xlu0 0
        %10072 = vperm.xlu0 %10071, %v10064
        %v10073 = vpop.permute.xlu0 %10072
        %10076 = vset.pattern.permute.xlu0 0
        %10077 = vperm.xlu0 %10076, %v10065
        %v10078 = vpop.permute.xlu0 %10077
        %10081 = vset.pattern.permute.xlu0 0
        %10082 = vperm.xlu0 %10081, %v10066
        %v10083 = vpop.permute.xlu0 %10082
        %10086 = vset.pattern.permute.xlu0 0
        %10087 = vperm.xlu0 %10086, %v10067
        %v10088 = vpop.permute.xlu0 %10087
        %10091 = vset.pattern.permute.xlu0 0
        %10092 = vperm.xlu0 %10091, %v10068
        %v10093 = vpop.permute.xlu0 %10092
        %10096 = vset.pattern.permute.xlu0 0
        %10097 = vperm.xlu0 %10096, %v10069
        %v10098 = vpop.permute.xlu0 %10097
        %v10100 = vmul.f32 %v9836, %v10073
        %v10101 = vmul.f32 %v9837, %v10078
        %v10102 = vmul.f32 %v9838, %v10083
        %v10103 = vmul.f32 %v9839, %v10088
        %v10104 = vmul.f32 %v9840, %v10093
        %v10105 = vmul.f32 %v9841, %v10098
        %v10106 = vadd.f32 %v10057, %v10100
        %v10107 = vadd.f32 %v10058, %v10101
        %v10108 = vadd.f32 %v10059, %v10102
        %v10109 = vadd.f32 %v10060, %v10103
        %v10110 = vadd.f32 %v10061, %v10104
        %v10111 = vadd.f32 %v10062, %v10105
        %s10112 = scalar_lea.vmem %s22, 144
        %v10113 = vld [vmem:[%s10112] sm:$0xff]
        %v10114 = vld [vmem:[%s10112 + $0x8] sm:$0xff]
        %v10115 = vld [vmem:[%s10112 + $0x10] sm:$0xff]
        %v10116 = vld [vmem:[%s10112 + $0x18] sm:$0xff]
        %v10117 = vld [vmem:[%s10112 + $0x20] sm:$0xff]
        %v10118 = vld [vmem:[%s10112 + $0x28] sm:$0xff]
        %10120 = vset.pattern.permute.xlu0 0
        %10121 = vperm.xlu0 %10120, %v10113
        %v10122 = vpop.permute.xlu0 %10121
        %10125 = vset.pattern.permute.xlu0 0
        %10126 = vperm.xlu0 %10125, %v10114
        %v10127 = vpop.permute.xlu0 %10126
        %10130 = vset.pattern.permute.xlu0 0
        %10131 = vperm.xlu0 %10130, %v10115
        %v10132 = vpop.permute.xlu0 %10131
        %10135 = vset.pattern.permute.xlu0 0
        %10136 = vperm.xlu0 %10135, %v10116
        %v10137 = vpop.permute.xlu0 %10136
        %10140 = vset.pattern.permute.xlu0 0
        %10141 = vperm.xlu0 %10140, %v10117
        %v10142 = vpop.permute.xlu0 %10141
        %10145 = vset.pattern.permute.xlu0 0
        %10146 = vperm.xlu0 %10145, %v10118
        %v10147 = vpop.permute.xlu0 %10146
        %v10149 = vmul.f32 %v9862, %v10122
        %v10150 = vmul.f32 %v9863, %v10127
        %v10151 = vmul.f32 %v9864, %v10132
        %v10152 = vmul.f32 %v9865, %v10137
        %v10153 = vmul.f32 %v9866, %v10142
        %v10154 = vmul.f32 %v9867, %v10147
        %v10155 = vadd.f32 %v10106, %v10149
        %v10156 = vadd.f32 %v10107, %v10150
        %v10157 = vadd.f32 %v10108, %v10151
        %v10158 = vadd.f32 %v10109, %v10152
        %v10159 = vadd.f32 %v10110, %v10153
        %v10160 = vadd.f32 %v10111, %v10154
        %s10161 = scalar_lea.vmem %s22, 192
        %v10162 = vld [vmem:[%s10161] sm:$0xff]
        %v10163 = vld [vmem:[%s10161 + $0x8] sm:$0xff]
        %v10164 = vld [vmem:[%s10161 + $0x10] sm:$0xff]
        %v10165 = vld [vmem:[%s10161 + $0x18] sm:$0xff]
        %v10166 = vld [vmem:[%s10161 + $0x20] sm:$0xff]
        %v10167 = vld [vmem:[%s10161 + $0x28] sm:$0xff]
        %10169 = vset.pattern.permute.xlu0 0
        %10170 = vperm.xlu0 %10169, %v10162
        %v10171 = vpop.permute.xlu0 %10170
        %10174 = vset.pattern.permute.xlu0 0
        %10175 = vperm.xlu0 %10174, %v10163
        %v10176 = vpop.permute.xlu0 %10175
        %10179 = vset.pattern.permute.xlu0 0
        %10180 = vperm.xlu0 %10179, %v10164
        %v10181 = vpop.permute.xlu0 %10180
        %10184 = vset.pattern.permute.xlu0 0
        %10185 = vperm.xlu0 %10184, %v10165
        %v10186 = vpop.permute.xlu0 %10185
        %10189 = vset.pattern.permute.xlu0 0
        %10190 = vperm.xlu0 %10189, %v10166
        %v10191 = vpop.permute.xlu0 %10190
        %10194 = vset.pattern.permute.xlu0 0
        %10195 = vperm.xlu0 %10194, %v10167
        %v10196 = vpop.permute.xlu0 %10195
        %v10198 = vmul.f32 %v9759, %v10171
        %v10199 = vmul.f32 %v9760, %v10176
        %v10200 = vmul.f32 %v9761, %v10181
        %v10201 = vmul.f32 %v9762, %v10186
        %v10202 = vmul.f32 %v9763, %v10191
        %v10203 = vmul.f32 %v9764, %v10196
        %v10204 = vadd.f32 %v10155, %v10198
        %v10205 = vadd.f32 %v10156, %v10199
        %v10206 = vadd.f32 %v10157, %v10200
        %v10207 = vadd.f32 %v10158, %v10201
        %v10208 = vadd.f32 %v10159, %v10202
        %v10209 = vadd.f32 %v10160, %v10203
        %s10210 = scalar_lea.vmem %s22, 240
        %v10211 = vld [vmem:[%s10210] sm:$0xff]
        %v10212 = vld [vmem:[%s10210 + $0x8] sm:$0xff]
        %v10213 = vld [vmem:[%s10210 + $0x10] sm:$0xff]
        %v10214 = vld [vmem:[%s10210 + $0x18] sm:$0xff]
        %v10215 = vld [vmem:[%s10210 + $0x20] sm:$0xff]
        %v10216 = vld [vmem:[%s10210 + $0x28] sm:$0xff]
        %10218 = vset.pattern.permute.xlu0 0
        %10219 = vperm.xlu0 %10218, %v10211
        %v10220 = vpop.permute.xlu0 %10219
        %10223 = vset.pattern.permute.xlu0 0
        %10224 = vperm.xlu0 %10223, %v10212
        %v10225 = vpop.permute.xlu0 %10224
        %10228 = vset.pattern.permute.xlu0 0
        %10229 = vperm.xlu0 %10228, %v10213
        %v10230 = vpop.permute.xlu0 %10229
        %10233 = vset.pattern.permute.xlu0 0
        %10234 = vperm.xlu0 %10233, %v10214
        %v10235 = vpop.permute.xlu0 %10234
        %10238 = vset.pattern.permute.xlu0 0
        %10239 = vperm.xlu0 %10238, %v10215
        %v10240 = vpop.permute.xlu0 %10239
        %10243 = vset.pattern.permute.xlu0 0
        %10244 = vperm.xlu0 %10243, %v10216
        %v10245 = vpop.permute.xlu0 %10244
        %v10247 = vmul.f32 %v9888, %v10220
        %v10248 = vmul.f32 %v9889, %v10225
        %v10249 = vmul.f32 %v9890, %v10230
        %v10250 = vmul.f32 %v9891, %v10235
        %v10251 = vmul.f32 %v9892, %v10240
        %v10252 = vmul.f32 %v9893, %v10245
        %v10253 = vadd.f32 %v10204, %v10247
        %v10254 = vadd.f32 %v10205, %v10248
        %v10255 = vadd.f32 %v10206, %v10249
        %v10256 = vadd.f32 %v10207, %v10250
        %v10257 = vadd.f32 %v10208, %v10251
        %v10258 = vadd.f32 %v10209, %v10252
        %s10259 = scalar_lea.vmem %s22, 288
        %v10260 = vld [vmem:[%s10259] sm:$0xff]
        %v10261 = vld [vmem:[%s10259 + $0x8] sm:$0xff]
        %v10262 = vld [vmem:[%s10259 + $0x10] sm:$0xff]
        %v10263 = vld [vmem:[%s10259 + $0x18] sm:$0xff]
        %v10264 = vld [vmem:[%s10259 + $0x20] sm:$0xff]
        %v10265 = vld [vmem:[%s10259 + $0x28] sm:$0xff]
        %10267 = vset.pattern.permute.xlu0 0
        %10268 = vperm.xlu0 %10267, %v10260
        %v10269 = vpop.permute.xlu0 %10268
        %10272 = vset.pattern.permute.xlu0 0
        %10273 = vperm.xlu0 %10272, %v10261
        %v10274 = vpop.permute.xlu0 %10273
        %10277 = vset.pattern.permute.xlu0 0
        %10278 = vperm.xlu0 %10277, %v10262
        %v10279 = vpop.permute.xlu0 %10278
        %10282 = vset.pattern.permute.xlu0 0
        %10283 = vperm.xlu0 %10282, %v10263
        %v10284 = vpop.permute.xlu0 %10283
        %10287 = vset.pattern.permute.xlu0 0
        %10288 = vperm.xlu0 %10287, %v10264
        %v10289 = vpop.permute.xlu0 %10288
        %10292 = vset.pattern.permute.xlu0 0
        %10293 = vperm.xlu0 %10292, %v10265
        %v10294 = vpop.permute.xlu0 %10293
        %v10296 = vmul.f32 %v9914, %v10269
        %v10297 = vmul.f32 %v9915, %v10274
        %v10298 = vmul.f32 %v9916, %v10279
        %v10299 = vmul.f32 %v9917, %v10284
        %v10300 = vmul.f32 %v9918, %v10289
        %v10301 = vmul.f32 %v9919, %v10294
        %v10302 = vadd.f32 %v10253, %v10296
        %v10303 = vadd.f32 %v10254, %v10297
        %v10304 = vadd.f32 %v10255, %v10298
        %v10305 = vadd.f32 %v10256, %v10299
        %v10306 = vadd.f32 %v10257, %v10300
        %v10307 = vadd.f32 %v10258, %v10301
        %s10308 = scalar_lea.vmem %s22, 336
        %v10309 = vld [vmem:[%s10308] sm:$0xff]
        %v10310 = vld [vmem:[%s10308 + $0x8] sm:$0xff]
        %v10311 = vld [vmem:[%s10308 + $0x10] sm:$0xff]
        %v10312 = vld [vmem:[%s10308 + $0x18] sm:$0xff]
        %v10313 = vld [vmem:[%s10308 + $0x20] sm:$0xff]
        %v10314 = vld [vmem:[%s10308 + $0x28] sm:$0xff]
        %10316 = vset.pattern.permute.xlu0 0
        %10317 = vperm.xlu0 %10316, %v10309
        %v10318 = vpop.permute.xlu0 %10317
        %10321 = vset.pattern.permute.xlu0 0
        %10322 = vperm.xlu0 %10321, %v10310
        %v10323 = vpop.permute.xlu0 %10322
        %10326 = vset.pattern.permute.xlu0 0
        %10327 = vperm.xlu0 %10326, %v10311
        %v10328 = vpop.permute.xlu0 %10327
        %10331 = vset.pattern.permute.xlu0 0
        %10332 = vperm.xlu0 %10331, %v10312
        %v10333 = vpop.permute.xlu0 %10332
        %10336 = vset.pattern.permute.xlu0 0
        %10337 = vperm.xlu0 %10336, %v10313
        %v10338 = vpop.permute.xlu0 %10337
        %10341 = vset.pattern.permute.xlu0 0
        %10342 = vperm.xlu0 %10341, %v10314
        %v10343 = vpop.permute.xlu0 %10342
        %v10345 = vmul.f32 %v9940, %v10318
        %v10346 = vmul.f32 %v9941, %v10323
        %v10347 = vmul.f32 %v9942, %v10328
        %v10348 = vmul.f32 %v9943, %v10333
        %v10349 = vmul.f32 %v9944, %v10338
        %v10350 = vmul.f32 %v9945, %v10343
        %v10351 = vadd.f32 %v10302, %v10345
        %v10352 = vadd.f32 %v10303, %v10346
        %v10353 = vadd.f32 %v10304, %v10347
        %v10354 = vadd.f32 %v10305, %v10348
        %v10355 = vadd.f32 %v10306, %v10349
        %v10356 = vadd.f32 %v10307, %v10350
        %s10357 = scalar_lea.vmem %s22, 384
        %v10358 = vld [vmem:[%s10357] sm:$0xff]
        %v10359 = vld [vmem:[%s10357 + $0x8] sm:$0xff]
        %v10360 = vld [vmem:[%s10357 + $0x10] sm:$0xff]
        %v10361 = vld [vmem:[%s10357 + $0x18] sm:$0xff]
        %v10362 = vld [vmem:[%s10357 + $0x20] sm:$0xff]
        %v10363 = vld [vmem:[%s10357 + $0x28] sm:$0xff]
        %10365 = vset.pattern.permute.xlu0 0
        %10366 = vperm.xlu0 %10365, %v10358
        %v10367 = vpop.permute.xlu0 %10366
        %10370 = vset.pattern.permute.xlu0 0
        %10371 = vperm.xlu0 %10370, %v10359
        %v10372 = vpop.permute.xlu0 %10371
        %10375 = vset.pattern.permute.xlu0 0
        %10376 = vperm.xlu0 %10375, %v10360
        %v10377 = vpop.permute.xlu0 %10376
        %10380 = vset.pattern.permute.xlu0 0
        %10381 = vperm.xlu0 %10380, %v10361
        %v10382 = vpop.permute.xlu0 %10381
        %10385 = vset.pattern.permute.xlu0 0
        %10386 = vperm.xlu0 %10385, %v10362
        %v10387 = vpop.permute.xlu0 %10386
        %10390 = vset.pattern.permute.xlu0 0
        %10391 = vperm.xlu0 %10390, %v10363
        %v10392 = vpop.permute.xlu0 %10391
        %v10394 = vmul.f32 %v9966, %v10367
        %v10395 = vmul.f32 %v9967, %v10372
        %v10396 = vmul.f32 %v9968, %v10377
        %v10397 = vmul.f32 %v9969, %v10382
        %v10398 = vmul.f32 %v9970, %v10387
        %v10399 = vmul.f32 %v9971, %v10392
        %v10400 = vadd.f32 %v10351, %v10394
        %v10401 = vadd.f32 %v10352, %v10395
        %v10402 = vadd.f32 %v10353, %v10396
        %v10403 = vadd.f32 %v10354, %v10397
        %v10404 = vadd.f32 %v10355, %v10398
        %v10405 = vadd.f32 %v10356, %v10399
        %v10406 = vld [vmem:[%s23] sm:$0xff]
        %v10407 = vld [vmem:[%s23 + $0x8] sm:$0xff]
        %v10408 = vld [vmem:[%s23 + $0x10] sm:$0xff]
        %v10409 = vld [vmem:[%s23 + $0x18] sm:$0xff]
        %v10410 = vld [vmem:[%s23 + $0x20] sm:$0xff]
        %v10411 = vld [vmem:[%s23 + $0x28] sm:$0xff]
        %10413 = vset.pattern.permute.xlu0 0
        %10414 = vperm.xlu0 %10413, %v10406
        %v10415 = vpop.permute.xlu0 %10414
        %10418 = vset.pattern.permute.xlu0 0
        %10419 = vperm.xlu0 %10418, %v10407
        %v10420 = vpop.permute.xlu0 %10419
        %10423 = vset.pattern.permute.xlu0 0
        %10424 = vperm.xlu0 %10423, %v10408
        %v10425 = vpop.permute.xlu0 %10424
        %10428 = vset.pattern.permute.xlu0 0
        %10429 = vperm.xlu0 %10428, %v10409
        %v10430 = vpop.permute.xlu0 %10429
        %10433 = vset.pattern.permute.xlu0 0
        %10434 = vperm.xlu0 %10433, %v10410
        %v10435 = vpop.permute.xlu0 %10434
        %10438 = vset.pattern.permute.xlu0 0
        %10439 = vperm.xlu0 %10438, %v10411
        %v10440 = vpop.permute.xlu0 %10439
        %v10442 = vadd.f32 %v10400, %v10415
        %v10443 = vadd.f32 %v10401, %v10420
        %v10444 = vadd.f32 %v10402, %v10425
        %v10445 = vadd.f32 %v10403, %v10430
        %v10446 = vadd.f32 %v10404, %v10435
        %v10447 = vadd.f32 %v10405, %v10440
        %v10448 = vmax.f32 %v10442, 0.0
        %v10449 = vmax.f32 %v10443, 0.0
        %v10450 = vmax.f32 %v10444, 0.0
        %v10451 = vmax.f32 %v10445, 0.0
        %v10452 = vmax.f32 %v10446, 0.0
        %v10453 = vmax.f32 %v10447, 0.0
        %v10454 = vld [vmem:[#allocation19] sm:$0xf]
        %v10455 = vld [vmem:[#allocation19 + $0x4] sm:$0xf]
        %v10456 = vpack.c.bf16 %v10449, %v10448
        %v10457 = vpack.c.bf16 %v10451, %v10450
        %v10458 = vpack.c.bf16 %v10453, %v10452
        %v10459 = vld [vmem:[%s26] sm:$0xff]
        %v10460 = vld [vmem:[%s26 + $0x8] sm:$0xff]
        %10462 = vset.pattern.permute.xlu0 0
        %10463 = vperm.xlu0 %10462, %v10459
        %v10464 = vpop.permute.xlu0 %10463
        %10467 = vset.pattern.permute.xlu0 0
        %10468 = vperm.xlu0 %10467, %v10460
        %v10469 = vpop.permute.xlu0 %10468
        %v10473 = vunpack.c.l.b16 %v10454
        %v10474 = vunpack.c.l.b16 %v10455
        %v10475 = vpack.c.b16 %v10474, %v10473
        %vm10476 = vcmask 392192
        %v10478 = vsel %vm10476, %v10475, 0
        %10480 = vmatprep.subr.bf16.mxu0 0
        %10481 = vmatpush1.bf16.msra.mxu0 0
        %10482 = vmatprep.subr.bf16.mxu0 0
        %10483 = vmatpush1.bf16.msra.mxu0 0
        %10484 = vmatprep.subr.bf16.mxu0 0
        %10485 = vmatpush1.bf16.msra.mxu0 0
        %10486 = vmatprep.subr.bf16.mxu0 0
        %10487 = vmatpush1.bf16.msra.mxu0 0
        %10488 = vmatprep.subr.bf16.mxu0 0
        %10489 = vmatpush1.bf16.msra.mxu0 0
        %10490 = vmatprep.subr.bf16.mxu0 0
        %10491 = vmatpush1.bf16.msra.mxu0 %v10458
        %10492 = vmatprep.subr.bf16.mxu0 0
        %10493 = vmatpush1.bf16.msra.mxu0 %v10457
        %10494 = vmatprep.subr.bf16.mxu0 0
        %10495 = vmatpush1.bf16.msra.mxu0 %v10456
        %10496 = vmatprep.subr.bf16.mxu0 0
        %10497 = vmatpush2.bf16.msra.mxu0 0
        %10498 = vmatprep.subr.bf16.mxu0 0
        %10499 = vmatpush2.bf16.msra.mxu0 0
        %10500 = vmatprep.subr.bf16.mxu0 0
        %10501 = vmatpush2.bf16.msra.mxu0 0
        %10502 = vmatprep.subr.bf16.mxu0 0
        %10503 = vmatpush2.bf16.msra.mxu0 0
        %10504 = vmatprep.subr.bf16.mxu0 0
        %10505 = vmatpush2.bf16.msra.mxu0 0
        %10506 = vmatprep.subr.bf16.mxu0 0
        %10507 = vmatpush2.bf16.msra.mxu0 0
        %10508 = vmatprep.subr.bf16.mxu0 0
        %10509 = vmatpush2.bf16.msra.mxu0 0
        %10510 = vmatprep.subr.bf16.mxu0 0
        %10511 = vmatpush2.bf16.msra.mxu0 0
        %10512 = vmatprep.mubr.bf16.mxu0 0
        %10513 = vmatmul.mubr.bf16.gmra.mxu0 %v10478
        %v10514 = vpop.f32.mrf.mxu0
        %v10515 = vadd.f32 %v10464, %v10514
        %v10516 = vpop.f32.mrf.mxu0
        %v10517 = vpop.f32.mrf.mxu0
        %v10518 = vadd.f32 %v10469, %v10517
        %v10519 = vpop.f32.mrf.mxu0
        %10520 = vdwg.mxu0
        %v10521 = vadd.f32 %v10515, %v9628
        %v10522 = vadd.f32 %v10518, %v9631
        %10523 = vst [vmem:[%s975] sm:$0xff] %v10521
        %10524 = vst [vmem:[%s975 + $0x8] sm:$0xff] %v10522
        %s10525 = sand.u32 %s629, 1
        %s10526 = scalar_lea.sflag [#allocation4], %s10525
        %s10527 = sand.u32 %s629, 1
        %s10528 = smul.addr %s10527, 16
        %s10529 = scalar_lea.vmem [#allocation20], %s10528
        // Predicated region
        $region173: #{tpu_custom_call.1} parent=127 // pred_check
          %p10530 = pneg %p639
        $region174: #{tpu_custom_call.1} parent=127 // pred_check_branch
          %10532 = sbr.rel (%p10530) target = $region176
        $region175: #{tpu_custom_call.1} parent=127 // pred_region
          %s10534 = ssub.s32 256, 256
          %10535 = vsyncadd %s10526, %s10534
          %s10536 = smul.addr %s49, 128
          %s10537 = scalar_lea.hbm %s27, %s10536
          %s10538 = sshll.u32 %s10529, 4
          %s10539 = int_to_ptr.vmem [resolvable:$true] %s10538
          %10544 = dma.vmem_to_hbm [thread:$0]  %s10539, 256, %s10537, %s10526, 128, 256, 8
        $region176: #{tpu_custom_call.1} parent=127 // pred_fallthru
          _
      $region128: #{tpu_custom_call.1} parent=5 // pred_fallthru
        _
      %p10545 = scmp.le.s32.totalorder 2, %s44
      // Predicated region
      $region177: #{tpu_custom_call.1} parent=5 // pred_check
        %p10546 = pneg %p10545
      $region178: #{tpu_custom_call.1} parent=5 // pred_check_branch
        %10548 = sbr.rel (%p10546) target = $region180
      $region179: #{tpu_custom_call.1} parent=5 // pred_region
        %s10549 = ssub.s32 %s44, 2
        // Predicated region
        $region181: #{tpu_custom_call.1} parent=179 // pred_check
          %p10550 = pneg %p645
        $region182: #{tpu_custom_call.1} parent=179 // pred_check_branch
          %10552 = sbr.rel (%p10550) target = $region184
        $region183: #{tpu_custom_call.1} parent=179 // pred_region
          %s10553 = sand.u32 %s630, 1
          %s10554 = scalar_lea.sflag [#allocation4], %s10553
          %s10555 = sand.u32 %s630, 1
          %s10556 = smul.addr %s10555, 16
          %s10557 = scalar_lea.vmem [#allocation20], %s10556
          %10558 = dma.done %s10554, 256
        $region184: #{tpu_custom_call.1} parent=179 // pred_fallthru
          _
      $region180: #{tpu_custom_call.1} parent=5 // pred_fallthru
        _
    $region6: #{tpu_custom_call.1} parent=1 // loop_footer
      %s48 = sadd.s32 1, %s44
    $region7: #{tpu_custom_call.1} parent=1 // loop_footer_branch
      %43 = sbr.rel target = $region3
    $region8: #{tpu_custom_call.1} parent=1 // loop_exit
      _
    %10559 = vsyncpa [#allocation3], 1
    %s10560 = scalar_lea.sflag [#allocation3], 1
    %10561 = vsyncpa %s10560, 1
    %10562 = vsyncpa [#allocation6], 1
    %10563 = vsyncpa [#allocation9], 1
    %10564 = vsyncpa [#allocation12], 1
    %10565 = vsyncpa [#allocation15], 1
    %10566 = vsyncpa [#allocation18], 1
    %10567 = vsyncpa [#allocation4], 1
    %s10568 = scalar_lea.sflag [#allocation4], 1
    %10569 = vsyncpa %s10568, 1

</llo_original>
